<compile_context>
chip_gen: v5e
topology: v5e:2x2
jax: 0.10.0
libtpu: 0.0.40
codegen_flags: <defaults>
</compile_context>

<pallas_src>
import numpy as np
import jax
import jax.numpy as jnp
from jax.experimental import pallas as pl
from jax.experimental.pallas import tpu as pltpu

EPS = 1e-5


def calc_padding(k):
    return k // 3


def get_damper(kh, kw):
    # matches get_damper() in the PyTorch module: rows scaled linearly from 1.0
    # at the center row to 0.1 at the edge rows (only if kernel height >= 3).
    t = np.ones((kh, kw), np.float32)
    center = (kh - 1.0) / 2.0
    minscale = 0.1
    if center >= 1:
        for i in range(kh):
            dist = abs(i - center)
            t[i, :] *= -(1.0 - minscale) * dist / center + 1.0
    return jnp.asarray(t)


def _conv_out(size, k, pad, stride):
    return (size + 2 * pad - k) // stride + 1


# ----------------------------------------------------------------------------
# Fully fused BasicBlock kernel: conv1+bn1+relu -> conv2+bn2 -> (+shortcut) -> relu
# ----------------------------------------------------------------------------
def _make_block_kernel(N, H, W, Cin, Cout, k1, k2, stride, has_sc):
    pad1, pad2 = calc_padding(k1), calc_padding(k2)
    Hp1, Wp1 = H + 2 * pad1, W + 2 * pad1
    Ho1, Wo1 = _conv_out(H, k1, pad1, stride), _conv_out(W, k1, pad1, stride)
    Hp2, Wp2 = Ho1 + 2 * pad2, Wo1 + 2 * pad2
    Ho2, Wo2 = _conv_out(Ho1, k2, pad2, 1), _conv_out(Wo1, k2, pad2, 1)
    M1, M2 = N * Ho1 * Wo1, N * Ho2 * Wo2
    assert M1 == M2, "kernel sizes must keep the residual spatial shape aligned"

    def im2col(xp_ref, pm_ref, kk, s, Ho, Wo, C):
        # Build the (rows, kk*kk*C) bf16 patch matrix; stride folded into slices.
        for kh in range(kk):
            for kw in range(kk):
                if s == 1:
                    patch = xp_ref[:, kh:kh + Ho, kw:kw + Wo, :]
                else:
                    patch = xp_ref[:, pl.ds(kh, Ho, s), pl.ds(kw, Wo, s), :]
                c0 = (kh * kk + kw) * C
                pm_ref[:, c0:c0 + C] = patch.reshape(-1, C).astype(jnp.bfloat16)
        return pm_ref[...]

    def bn(y, g_ref, b_ref):
        # training-mode BatchNorm: batch stats, biased variance, single pass
        m = float(y.shape[0])
        s = jnp.sum(y, axis=0, keepdims=True)
        ss = jnp.sum(y * y, axis=0, keepdims=True)
        mean = s * (1.0 / m)
        var = ss * (1.0 / m) - mean * mean
        inv = jax.lax.rsqrt(var + EPS)
        return (y - mean) * (inv * g_ref[...]) + b_ref[...]

    def kernel(*refs):
        if has_sc:
            (x_ref, w1_ref, g1_ref, b1_ref, w2_ref, g2_ref, b2_ref,
             wsc_ref, gsc_ref, bsc_ref, o_ref, xp1, pm1, xp2, pm2) = refs
        else:
            (x_ref, w1_ref, g1_ref, b1_ref, w2_ref, g2_ref, b2_ref,
             o_ref, xp1, pm1, xp2, pm2) = refs

        x = x_ref[...]                                    # (N, H, W, Cin) f32

        # ---- conv1 (damped weight) + bn1 + relu --------------------------------
        xp1[...] = jnp.zeros_like(xp1)                    # zero halo in VMEM
        xp1[:, pad1:pad1 + H, pad1:pad1 + W, :] = x
        p1 = im2col(xp1, pm1, k1, stride, Ho1, Wo1, Cin)  # (M1, k1*k1*Cin) bf16
        y1 = jnp.dot(p1, w1_ref[...], preferred_element_type=jnp.float32)
        y1 = jnp.maximum(bn(y1, g1_ref, b1_ref), 0.0)     # (M1, Cout) f32

        # ---- conv2 + bn2 -------------------------------------------------------
        xp2[...] = jnp.zeros_like(xp2)
        xp2[:, pad2:pad2 + Ho1, pad2:pad2 + Wo1, :] = y1.reshape(N, Ho1, Wo1, Cout)
        p2 = im2col(xp2, pm2, k2, 1, Ho2, Wo2, Cout)      # (M2, k2*k2*Cout) bf16
        y2 = bn(jnp.dot(p2, w2_ref[...], preferred_element_type=jnp.float32),
                g2_ref, b2_ref)                           # (M2, Cout) f32

        # ---- shortcut: 1x1 conv + bn (in!=out) or identity ---------------------
        if has_sc:
            if stride == 1:
                xs = x
            else:
                xs = x_ref[:, pl.ds(0, Ho1, stride), pl.ds(0, Wo1, stride), :]
            sc = jnp.dot(xs.reshape(M1, Cin).astype(jnp.bfloat16), wsc_ref[...],
                         preferred_element_type=jnp.float32)
            sc = bn(sc, gsc_ref, bsc_ref)
        else:
            sc = x.reshape(M2, Cout)                      # identity (Cin==Cout, stride==1)

        # ---- residual add + relu ----------------------------------------------
        o_ref[...] = jnp.maximum(y2 + sc, 0.0).reshape(N, Ho2, Wo2, Cout)

    scratch = [
        pltpu.VMEM((N, Hp1, Wp1, Cin), jnp.float32),      # padded conv1 input
        pltpu.VMEM((M1, k1 * k1 * Cin), jnp.bfloat16),    # conv1 im2col matrix
        pltpu.VMEM((N, Hp2, Wp2, Cout), jnp.float32),     # padded conv2 input
        pltpu.VMEM((M2, k2 * k2 * Cout), jnp.bfloat16),   # conv2 im2col matrix
    ]
    out_shape = jax.ShapeDtypeStruct((N, Ho2, Wo2, Cout), jnp.float32)
    return kernel, scratch, out_shape


# ----------------------------------------------------------------------------
# Parameter construction (deterministic, mirrors the module's __init__ shapes)
# ----------------------------------------------------------------------------
def init_basic_block_params(key, in_channels, out_channels, k1=3, k2=3):
    k_w1, k_w2, k_ws = jax.random.split(key, 3)

    def conv_weight(k, cout, cin, kh, kw):
        fan_in = cin * kh * kw
        bound = 1.0 / np.sqrt(fan_in)
        return jax.random.uniform(k, (cout, cin, kh, kw), jnp.float32, -bound, bound)

    # apply_prune=False and prune_mask==1, so only the damper modifies the weights.
    w1 = conv_weight(k_w1, out_channels, in_channels, k1, k1) * get_damper(k1, k1)[None, None]
    w2 = conv_weight(k_w2, out_channels, out_channels, k2, k2) * get_damper(k2, k2)[None, None]

    params = {
        "w1": jnp.transpose(w1, (2, 3, 1, 0)),   # OIHW -> HWIO
        "w2": jnp.transpose(w2, (2, 3, 1, 0)),
        "g1": jnp.ones((out_channels,), jnp.float32),
        "b1": jnp.zeros((out_channels,), jnp.float32),
        "g2": jnp.ones((out_channels,), jnp.float32),
        "b2": jnp.zeros((out_channels,), jnp.float32),
    }
    if in_channels != out_channels:
        wsc = conv_weight(k_ws, out_channels, in_channels, 1, 1) * get_damper(1, 1)[None, None]
        params["w_sc"] = jnp.transpose(wsc, (2, 3, 1, 0))
        params["g_sc"] = jnp.ones((out_channels,), jnp.float32)
        params["b_sc"] = jnp.zeros((out_channels,), jnp.float32)
    return params


# ----------------------------------------------------------------------------
# BasicBlock.forward
# ----------------------------------------------------------------------------
def basic_block_forward(x_nchw, params, *, stride, k1=3, k2=3, vmem_limit_bytes=None):
    x = jnp.transpose(x_nchw, (0, 2, 3, 1)).astype(jnp.float32)      # NCHW -> NHWC
    N, H, W, Cin = x.shape
    Cout = params["w1"].shape[-1]
    has_sc = "w_sc" in params
    if not has_sc and stride != 1:
        # PyTorch's identity shortcut would also fail on the shape mismatch.
        raise ValueError("identity shortcut requires stride == 1")

    def flat_w(w):   # HWIO -> (KH*KW*Cin, Cout); bf16 MXU operand (f32 accumulation)
        kh, kw, ci, co = w.shape
        return w.reshape(kh * kw * ci, co).astype(jnp.bfloat16)

    def vec(v):
        return v.reshape(1, -1).astype(jnp.float32)

    inputs = [x,
              flat_w(params["w1"]), vec(params["g1"]), vec(params["b1"]),
              flat_w(params["w2"]), vec(params["g2"]), vec(params["b2"])]
    if has_sc:
        inputs += [flat_w(params["w_sc"]), vec(params["g_sc"]), vec(params["b_sc"])]

    kernel, scratch, out_shape = _make_block_kernel(N, H, W, Cin, Cout, k1, k2, stride, has_sc)

    vmem_spec = pl.BlockSpec(memory_space=pltpu.MemorySpace.VMEM)
    compiler_params = (pltpu.CompilerParams(vmem_limit_bytes=vmem_limit_bytes)
                       if vmem_limit_bytes is not None else None)
    out = pl.pallas_call(
        kernel,
        out_shape=out_shape,
        in_specs=[vmem_spec] * len(inputs),
        out_specs=vmem_spec,
        scratch_shapes=scratch,
        compiler_params=compiler_params,
    )(*inputs)
    return jnp.transpose(out, (0, 3, 1, 2))                          # NHWC -> NCHW


# ----------------------------------------------------------------------------
# Pure-JAX reference (f32, HIGHEST precision) for verification only
# ----------------------------------------------------------------------------
def _reference_forward(x_nchw, params, *, stride, k1=3, k2=3):
    x = jnp.transpose(x_nchw, (0, 2, 3, 1)).astype(jnp.float32)

    def conv(h, w, s, p):
        return jax.lax.conv_general_dilated(
            h, w, (s, s), [(p, p), (p, p)],
            dimension_numbers=("NHWC", "HWIO", "NHWC"),
            precision=jax.lax.Precision.HIGHEST)

    def bn(h, g, b):
        m = jnp.mean(h, axis=(0, 1, 2), keepdims=True)
        v = jnp.mean((h - m) ** 2, axis=(0, 1, 2), keepdims=True)
        return (h - m) * jax.lax.rsqrt(v + EPS) * g.reshape(1, 1, 1, -1) + b.reshape(1, 1, 1, -1)

    y = jax.nn.relu(bn(conv(x, params["w1"], stride, calc_padding(k1)), params["g1"], params["b1"]))
    y = bn(conv(y, params["w2"], 1, calc_padding(k2)), params["g2"], params["b2"])
    if "w_sc" in params:
        sc = bn(conv(x, params["w_sc"], stride, 0), params["g_sc"], params["b_sc"])
    else:
        sc = x
    return jnp.transpose(jax.nn.relu(y + sc), (0, 3, 1, 2))


if __name__ == "__main__":
    key = jax.random.PRNGKey(0)
    k_x1, k_x2, k_p1, k_p2 = jax.random.split(key, 4)

    # Tolerance note: the kernel feeds bf16 operands to the MXU (per perf
    # guidance) while the reference runs f32 / HIGHEST, so compare at 2e-2.

    # 1) projection-shortcut block (in_channels != out_channels)
    in_c, out_c, stride = 4, 8, 1
    x = jax.random.normal(k_x1, (2, in_c, 16, 16), jnp.float32)      # NCHW, like PyTorch
    params = init_basic_block_params(k_p1, in_c, out_c)
    out = jax.block_until_ready(basic_block_forward(x, params, stride=stride))
    assert out.shape == (2, out_c, 16, 16), out.shape
    ref = jax.block_until_ready(_reference_forward(x, params, stride=stride))
    np.testing.assert_allclose(np.asarray(out), np.asarray(ref), atol=2e-2, rtol=2e-2)

    # 2) identity-shortcut block (in_channels == out_channels)
    x2 = jax.random.normal(k_x2, (2, out_c, 16, 16), jnp.float32)
    params_id = init_basic_block_params(k_p2, out_c, out_c)
    out2 = jax.block_until_ready(basic_block_forward(x2, params_id, stride=1))
    assert out2.shape == (2, out_c, 16, 16), out2.shape
    ref2 = jax.block_until_ready(_reference_forward(x2, params_id, stride=1))
    np.testing.assert_allclose(np.asarray(out2), np.asarray(ref2), atol=2e-2, rtol=2e-2)

    print("KERNEL_OK")
</pallas_src>

<mosaic_0001>
module attributes {stable_mosaic.version = 11 : i64} {
  func.func @kernel(%arg0: memref<2x16x16x4xf32, #tpu.memory_space<vmem>>, %arg1: memref<36x8xbf16, #tpu.memory_space<vmem>>, %arg2: memref<1x8xf32, #tpu.memory_space<vmem>>, %arg3: memref<1x8xf32, #tpu.memory_space<vmem>>, %arg4: memref<72x8xbf16, #tpu.memory_space<vmem>>, %arg5: memref<1x8xf32, #tpu.memory_space<vmem>>, %arg6: memref<1x8xf32, #tpu.memory_space<vmem>>, %arg7: memref<4x8xbf16, #tpu.memory_space<vmem>>, %arg8: memref<1x8xf32, #tpu.memory_space<vmem>>, %arg9: memref<1x8xf32, #tpu.memory_space<vmem>>, %arg10: memref<2x16x16x8xf32, #tpu.memory_space<vmem>>, %arg11: memref<2x18x18x4xf32, #tpu.memory_space<vmem>>, %arg12: memref<512x36xbf16, #tpu.memory_space<vmem>>, %arg13: memref<2x18x18x8xf32, #tpu.memory_space<vmem>>, %arg14: memref<512x72xbf16, #tpu.memory_space<vmem>>) attributes {dimension_semantics = [], scalar_prefetch = 0 : i64, scratch_operands = 4 : i64, tpu.core_type = #tpu.core_type<tc>} {
    %c0 = arith.constant 0 : index
    %c0_0 = arith.constant 0 : index
    %c0_1 = arith.constant 0 : index
    %c0_2 = arith.constant 0 : index
    %0 = vector.load %arg0[%c0, %c0_0, %c0_1, %c0_2] : memref<2x16x16x4xf32, #tpu.memory_space<vmem>>, vector<2x16x16x4xf32>
    %cst = arith.constant 0.000000e+00 : f32
    %1 = vector.broadcast %cst : f32 to vector<2x18x18x4xf32>
    %c0_3 = arith.constant 0 : index
    %c0_4 = arith.constant 0 : index
    %c0_5 = arith.constant 0 : index
    %c0_6 = arith.constant 0 : index
    %2 = vector.load %arg11[%c0_3, %c0_4, %c0_5, %c0_6] : memref<2x18x18x4xf32, #tpu.memory_space<vmem>>, vector<2x18x18x4xf32>
    tpu.vector_store %arg11[%c0_3, %c0_4, %c0_5, %c0_6], %1 {strides = array<i32>} : memref<2x18x18x4xf32, #tpu.memory_space<vmem>>, vector<2x18x18x4xf32>,
    %c0_7 = arith.constant 0 : index
    %c1 = arith.constant 1 : index
    %c1_8 = arith.constant 1 : index
    %c0_9 = arith.constant 0 : index
    %3 = vector.load %arg11[%c0_7, %c1, %c1_8, %c0_9] : memref<2x18x18x4xf32, #tpu.memory_space<vmem>>, vector<2x16x16x4xf32>
    tpu.vector_store %arg11[%c0_7, %c1, %c1_8, %c0_9], %0 {strides = array<i32>} : memref<2x18x18x4xf32, #tpu.memory_space<vmem>>, vector<2x16x16x4xf32>,
    %c0_10 = arith.constant 0 : index
    %c0_11 = arith.constant 0 : index
    %c0_12 = arith.constant 0 : index
    %c0_13 = arith.constant 0 : index
    %4 = vector.load %arg11[%c0_10, %c0_11, %c0_12, %c0_13] : memref<2x18x18x4xf32, #tpu.memory_space<vmem>>, vector<2x16x16x4xf32>
    %5 = vector.shape_cast %4 : vector<2x16x16x4xf32> to vector<512x4xf32>
    %6 = arith.truncf %5 : vector<512x4xf32> to vector<512x4xbf16>
    %c0_14 = arith.constant 0 : index
    %c0_15 = arith.constant 0 : index
    %7 = vector.load %arg12[%c0_14, %c0_15] : memref<512x36xbf16, #tpu.memory_space<vmem>>, vector<512x4xbf16>
    tpu.vector_store %arg12[%c0_14, %c0_15], %6 {strides = array<i32>} : memref<512x36xbf16, #tpu.memory_space<vmem>>, vector<512x4xbf16>,
    %c0_16 = arith.constant 0 : index
    %c0_17 = arith.constant 0 : index
    %c1_18 = arith.constant 1 : index
    %c0_19 = arith.constant 0 : index
    %8 = vector.load %arg11[%c0_16, %c0_17, %c1_18, %c0_19] : memref<2x18x18x4xf32, #tpu.memory_space<vmem>>, vector<2x16x16x4xf32>
    %9 = vector.shape_cast %8 : vector<2x16x16x4xf32> to vector<512x4xf32>
    %10 = arith.truncf %9 : vector<512x4xf32> to vector<512x4xbf16>
    %c0_20 = arith.constant 0 : index
    %c4 = arith.constant 4 : index
    %11 = vector.load %arg12[%c0_20, %c4] : memref<512x36xbf16, #tpu.memory_space<vmem>>, vector<512x4xbf16>
    tpu.vector_store %arg12[%c0_20, %c4], %10 {strides = array<i32>} : memref<512x36xbf16, #tpu.memory_space<vmem>>, vector<512x4xbf16>,
    %c0_21 = arith.constant 0 : index
    %c0_22 = arith.constant 0 : index
    %c2 = arith.constant 2 : index
    %c0_23 = arith.constant 0 : index
    %12 = vector.load %arg11[%c0_21, %c0_22, %c2, %c0_23] : memref<2x18x18x4xf32, #tpu.memory_space<vmem>>, vector<2x16x16x4xf32>
    %13 = vector.shape_cast %12 : vector<2x16x16x4xf32> to vector<512x4xf32>
    %14 = arith.truncf %13 : vector<512x4xf32> to vector<512x4xbf16>
    %c0_24 = arith.constant 0 : index
    %c8 = arith.constant 8 : index
    %15 = vector.load %arg12[%c0_24, %c8] : memref<512x36xbf16, #tpu.memory_space<vmem>>, vector<512x4xbf16>
    tpu.vector_store %arg12[%c0_24, %c8], %14 {strides = array<i32>} : memref<512x36xbf16, #tpu.memory_space<vmem>>, vector<512x4xbf16>,
    %c0_25 = arith.constant 0 : index
    %c1_26 = arith.constant 1 : index
    %c0_27 = arith.constant 0 : index
    %c0_28 = arith.constant 0 : index
    %16 = vector.load %arg11[%c0_25, %c1_26, %c0_27, %c0_28] : memref<2x18x18x4xf32, #tpu.memory_space<vmem>>, vector<2x16x16x4xf32>
    %17 = vector.shape_cast %16 : vector<2x16x16x4xf32> to vector<512x4xf32>
    %18 = arith.truncf %17 : vector<512x4xf32> to vector<512x4xbf16>
    %c0_29 = arith.constant 0 : index
    %c12 = arith.constant 12 : index
    %19 = vector.load %arg12[%c0_29, %c12] : memref<512x36xbf16, #tpu.memory_space<vmem>>, vector<512x4xbf16>
    tpu.vector_store %arg12[%c0_29, %c12], %18 {strides = array<i32>} : memref<512x36xbf16, #tpu.memory_space<vmem>>, vector<512x4xbf16>,
    %c0_30 = arith.constant 0 : index
    %c1_31 = arith.constant 1 : index
    %c1_32 = arith.constant 1 : index
    %c0_33 = arith.constant 0 : index
    %20 = vector.load %arg11[%c0_30, %c1_31, %c1_32, %c0_33] : memref<2x18x18x4xf32, #tpu.memory_space<vmem>>, vector<2x16x16x4xf32>
    %21 = vector.shape_cast %20 : vector<2x16x16x4xf32> to vector<512x4xf32>
    %22 = arith.truncf %21 : vector<512x4xf32> to vector<512x4xbf16>
    %c0_34 = arith.constant 0 : index
    %c16 = arith.constant 16 : index
    %23 = vector.load %arg12[%c0_34, %c16] : memref<512x36xbf16, #tpu.memory_space<vmem>>, vector<512x4xbf16>
    tpu.vector_store %arg12[%c0_34, %c16], %22 {strides = array<i32>} : memref<512x36xbf16, #tpu.memory_space<vmem>>, vector<512x4xbf16>,
    %c0_35 = arith.constant 0 : index
    %c1_36 = arith.constant 1 : index
    %c2_37 = arith.constant 2 : index
    %c0_38 = arith.constant 0 : index
    %24 = vector.load %arg11[%c0_35, %c1_36, %c2_37, %c0_38] : memref<2x18x18x4xf32, #tpu.memory_space<vmem>>, vector<2x16x16x4xf32>
    %25 = vector.shape_cast %24 : vector<2x16x16x4xf32> to vector<512x4xf32>
    %26 = arith.truncf %25 : vector<512x4xf32> to vector<512x4xbf16>
    %c0_39 = arith.constant 0 : index
    %c20 = arith.constant 20 : index
    %27 = vector.load %arg12[%c0_39, %c20] : memref<512x36xbf16, #tpu.memory_space<vmem>>, vector<512x4xbf16>
    tpu.vector_store %arg12[%c0_39, %c20], %26 {strides = array<i32>} : memref<512x36xbf16, #tpu.memory_space<vmem>>, vector<512x4xbf16>,
    %c0_40 = arith.constant 0 : index
    %c2_41 = arith.constant 2 : index
    %c0_42 = arith.constant 0 : index
    %c0_43 = arith.constant 0 : index
    %28 = vector.load %arg11[%c0_40, %c2_41, %c0_42, %c0_43] : memref<2x18x18x4xf32, #tpu.memory_space<vmem>>, vector<2x16x16x4xf32>
    %29 = vector.shape_cast %28 : vector<2x16x16x4xf32> to vector<512x4xf32>
    %30 = arith.truncf %29 : vector<512x4xf32> to vector<512x4xbf16>
    %c0_44 = arith.constant 0 : index
    %c24 = arith.constant 24 : index
    %31 = vector.load %arg12[%c0_44, %c24] : memref<512x36xbf16, #tpu.memory_space<vmem>>, vector<512x4xbf16>
    tpu.vector_store %arg12[%c0_44, %c24], %30 {strides = array<i32>} : memref<512x36xbf16, #tpu.memory_space<vmem>>, vector<512x4xbf16>,
    %c0_45 = arith.constant 0 : index
    %c2_46 = arith.constant 2 : index
    %c1_47 = arith.constant 1 : index
    %c0_48 = arith.constant 0 : index
    %32 = vector.load %arg11[%c0_45, %c2_46, %c1_47, %c0_48] : memref<2x18x18x4xf32, #tpu.memory_space<vmem>>, vector<2x16x16x4xf32>
    %33 = vector.shape_cast %32 : vector<2x16x16x4xf32> to vector<512x4xf32>
    %34 = arith.truncf %33 : vector<512x4xf32> to vector<512x4xbf16>
    %c0_49 = arith.constant 0 : index
    %c28 = arith.constant 28 : index
    %35 = vector.load %arg12[%c0_49, %c28] : memref<512x36xbf16, #tpu.memory_space<vmem>>, vector<512x4xbf16>
    tpu.vector_store %arg12[%c0_49, %c28], %34 {strides = array<i32>} : memref<512x36xbf16, #tpu.memory_space<vmem>>, vector<512x4xbf16>,
    %c0_50 = arith.constant 0 : index
    %c2_51 = arith.constant 2 : index
    %c2_52 = arith.constant 2 : index
    %c0_53 = arith.constant 0 : index
    %36 = vector.load %arg11[%c0_50, %c2_51, %c2_52, %c0_53] : memref<2x18x18x4xf32, #tpu.memory_space<vmem>>, vector<2x16x16x4xf32>
    %37 = vector.shape_cast %36 : vector<2x16x16x4xf32> to vector<512x4xf32>
    %38 = arith.truncf %37 : vector<512x4xf32> to vector<512x4xbf16>
    %c0_54 = arith.constant 0 : index
    %c32 = arith.constant 32 : index
    %39 = vector.load %arg12[%c0_54, %c32] : memref<512x36xbf16, #tpu.memory_space<vmem>>, vector<512x4xbf16>
    tpu.vector_store %arg12[%c0_54, %c32], %38 {strides = array<i32>} : memref<512x36xbf16, #tpu.memory_space<vmem>>, vector<512x4xbf16>,
    %c0_55 = arith.constant 0 : index
    %c0_56 = arith.constant 0 : index
    %40 = vector.load %arg12[%c0_55, %c0_56] : memref<512x36xbf16, #tpu.memory_space<vmem>>, vector<512x36xbf16>
    %c0_57 = arith.constant 0 : index
    %c0_58 = arith.constant 0 : index
    %41 = vector.load %arg1[%c0_57, %c0_58] : memref<36x8xbf16, #tpu.memory_space<vmem>>, vector<36x8xbf16>
    %cst_59 = arith.constant dense<0.000000e+00> : vector<512x8xf32>
    %42 = tpu.matmul %40, %41, %cst_59 {dimension_numbers = #tpu.dot_dimension_numbers<[1], [0], [0], [1], [0, 0, 1, 1], [], []>} : vector<512x36xbf16>, vector<36x8xbf16>, vector<512x8xf32> -> vector<512x8xf32>
    %cst_60 = arith.constant dense<0.000000e+00> : vector<8xf32>
    %43 = vector.multi_reduction <add>, %42, %cst_60 [0] : vector<512x8xf32> to vector<8xf32>
    %44 = vector.shape_cast %43 : vector<8xf32> to vector<1x8xf32>
    %45 = arith.mulf %42, %42 : vector<512x8xf32>
    %cst_61 = arith.constant dense<0.000000e+00> : vector<8xf32>
    %46 = vector.multi_reduction <add>, %45, %cst_61 [0] : vector<512x8xf32> to vector<8xf32>
    %47 = vector.shape_cast %46 : vector<8xf32> to vector<1x8xf32>
    %cst_62 = arith.constant 0.001953125 : f32
    %48 = vector.broadcast %cst_62 : f32 to vector<1x8xf32>
    %49 = arith.mulf %44, %48 : vector<1x8xf32>
    %cst_63 = arith.constant 0.001953125 : f32
    %50 = vector.broadcast %cst_63 : f32 to vector<1x8xf32>
    %51 = arith.mulf %47, %50 : vector<1x8xf32>
    %52 = arith.mulf %49, %49 : vector<1x8xf32>
    %53 = arith.subf %51, %52 : vector<1x8xf32>
    %cst_64 = arith.constant 9.99999974E-6 : f32
    %54 = vector.broadcast %cst_64 : f32 to vector<1x8xf32>
    %55 = arith.addf %53, %54 : vector<1x8xf32>
    %56 = math.rsqrt %55 : vector<1x8xf32>
    %57 = vector.broadcast %49 : vector<1x8xf32> to vector<512x8xf32>
    %58 = arith.subf %42, %57 : vector<512x8xf32>
    %c0_65 = arith.constant 0 : index
    %c0_66 = arith.constant 0 : index
    %59 = vector.load %arg2[%c0_65, %c0_66] : memref<1x8xf32, #tpu.memory_space<vmem>>, vector<1x8xf32>
    %60 = arith.mulf %56, %59 : vector<1x8xf32>
    %61 = vector.broadcast %60 : vector<1x8xf32> to vector<512x8xf32>
    %62 = arith.mulf %58, %61 : vector<512x8xf32>
    %c0_67 = arith.constant 0 : index
    %c0_68 = arith.constant 0 : index
    %63 = vector.load %arg3[%c0_67, %c0_68] : memref<1x8xf32, #tpu.memory_space<vmem>>, vector<1x8xf32>
    %64 = vector.broadcast %63 : vector<1x8xf32> to vector<512x8xf32>
    %65 = arith.addf %62, %64 : vector<512x8xf32>
    %cst_69 = arith.constant 0.000000e+00 : f32
    %66 = vector.broadcast %cst_69 : f32 to vector<512x8xf32>
    %67 = arith.maximumf %65, %66 : vector<512x8xf32>
    %cst_70 = arith.constant 0.000000e+00 : f32
    %68 = vector.broadcast %cst_70 : f32 to vector<2x18x18x8xf32>
    %c0_71 = arith.constant 0 : index
    %c0_72 = arith.constant 0 : index
    %c0_73 = arith.constant 0 : index
    %c0_74 = arith.constant 0 : index
    %69 = vector.load %arg13[%c0_71, %c0_72, %c0_73, %c0_74] : memref<2x18x18x8xf32, #tpu.memory_space<vmem>>, vector<2x18x18x8xf32>
    tpu.vector_store %arg13[%c0_71, %c0_72, %c0_73, %c0_74], %68 {strides = array<i32>} : memref<2x18x18x8xf32, #tpu.memory_space<vmem>>, vector<2x18x18x8xf32>,
    %70 = vector.shape_cast %67 : vector<512x8xf32> to vector<2x16x16x8xf32>
    %c0_75 = arith.constant 0 : index
    %c1_76 = arith.constant 1 : index
    %c1_77 = arith.constant 1 : index
    %c0_78 = arith.constant 0 : index
    %71 = vector.load %arg13[%c0_75, %c1_76, %c1_77, %c0_78] : memref<2x18x18x8xf32, #tpu.memory_space<vmem>>, vector<2x16x16x8xf32>
    tpu.vector_store %arg13[%c0_75, %c1_76, %c1_77, %c0_78], %70 {strides = array<i32>} : memref<2x18x18x8xf32, #tpu.memory_space<vmem>>, vector<2x16x16x8xf32>,
    %c0_79 = arith.constant 0 : index
    %c0_80 = arith.constant 0 : index
    %c0_81 = arith.constant 0 : index
    %c0_82 = arith.constant 0 : index
    %72 = vector.load %arg13[%c0_79, %c0_80, %c0_81, %c0_82] : memref<2x18x18x8xf32, #tpu.memory_space<vmem>>, vector<2x16x16x8xf32>
    %73 = vector.shape_cast %72 : vector<2x16x16x8xf32> to vector<512x8xf32>
    %74 = arith.truncf %73 : vector<512x8xf32> to vector<512x8xbf16>
    %c0_83 = arith.constant 0 : index
    %c0_84 = arith.constant 0 : index
    %75 = vector.load %arg14[%c0_83, %c0_84] : memref<512x72xbf16, #tpu.memory_space<vmem>>, vector<512x8xbf16>
    tpu.vector_store %arg14[%c0_83, %c0_84], %74 {strides = array<i32>} : memref<512x72xbf16, #tpu.memory_space<vmem>>, vector<512x8xbf16>,
    %c0_85 = arith.constant 0 : index
    %c0_86 = arith.constant 0 : index
    %c1_87 = arith.constant 1 : index
    %c0_88 = arith.constant 0 : index
    %76 = vector.load %arg13[%c0_85, %c0_86, %c1_87, %c0_88] : memref<2x18x18x8xf32, #tpu.memory_space<vmem>>, vector<2x16x16x8xf32>
    %77 = vector.shape_cast %76 : vector<2x16x16x8xf32> to vector<512x8xf32>
    %78 = arith.truncf %77 : vector<512x8xf32> to vector<512x8xbf16>
    %c0_89 = arith.constant 0 : index
    %c8_90 = arith.constant 8 : index
    %79 = vector.load %arg14[%c0_89, %c8_90] : memref<512x72xbf16, #tpu.memory_space<vmem>>, vector<512x8xbf16>
    tpu.vector_store %arg14[%c0_89, %c8_90], %78 {strides = array<i32>} : memref<512x72xbf16, #tpu.memory_space<vmem>>, vector<512x8xbf16>,
    %c0_91 = arith.constant 0 : index
    %c0_92 = arith.constant 0 : index
    %c2_93 = arith.constant 2 : index
    %c0_94 = arith.constant 0 : index
    %80 = vector.load %arg13[%c0_91, %c0_92, %c2_93, %c0_94] : memref<2x18x18x8xf32, #tpu.memory_space<vmem>>, vector<2x16x16x8xf32>
    %81 = vector.shape_cast %80 : vector<2x16x16x8xf32> to vector<512x8xf32>
    %82 = arith.truncf %81 : vector<512x8xf32> to vector<512x8xbf16>
    %c0_95 = arith.constant 0 : index
    %c16_96 = arith.constant 16 : index
    %83 = vector.load %arg14[%c0_95, %c16_96] : memref<512x72xbf16, #tpu.memory_space<vmem>>, vector<512x8xbf16>
    tpu.vector_store %arg14[%c0_95, %c16_96], %82 {strides = array<i32>} : memref<512x72xbf16, #tpu.memory_space<vmem>>, vector<512x8xbf16>,
    %c0_97 = arith.constant 0 : index
    %c1_98 = arith.constant 1 : index
    %c0_99 = arith.constant 0 : index
    %c0_100 = arith.constant 0 : index
    %84 = vector.load %arg13[%c0_97, %c1_98, %c0_99, %c0_100] : memref<2x18x18x8xf32, #tpu.memory_space<vmem>>, vector<2x16x16x8xf32>
    %85 = vector.shape_cast %84 : vector<2x16x16x8xf32> to vector<512x8xf32>
    %86 = arith.truncf %85 : vector<512x8xf32> to vector<512x8xbf16>
    %c0_101 = arith.constant 0 : index
    %c24_102 = arith.constant 24 : index
    %87 = vector.load %arg14[%c0_101, %c24_102] : memref<512x72xbf16, #tpu.memory_space<vmem>>, vector<512x8xbf16>
    tpu.vector_store %arg14[%c0_101, %c24_102], %86 {strides = array<i32>} : memref<512x72xbf16, #tpu.memory_space<vmem>>, vector<512x8xbf16>,
    %c0_103 = arith.constant 0 : index
    %c1_104 = arith.constant 1 : index
    %c1_105 = arith.constant 1 : index
    %c0_106 = arith.constant 0 : index
    %88 = vector.load %arg13[%c0_103, %c1_104, %c1_105, %c0_106] : memref<2x18x18x8xf32, #tpu.memory_space<vmem>>, vector<2x16x16x8xf32>
    %89 = vector.shape_cast %88 : vector<2x16x16x8xf32> to vector<512x8xf32>
    %90 = arith.truncf %89 : vector<512x8xf32> to vector<512x8xbf16>
    %c0_107 = arith.constant 0 : index
    %c32_108 = arith.constant 32 : index
    %91 = vector.load %arg14[%c0_107, %c32_108] : memref<512x72xbf16, #tpu.memory_space<vmem>>, vector<512x8xbf16>
    tpu.vector_store %arg14[%c0_107, %c32_108], %90 {strides = array<i32>} : memref<512x72xbf16, #tpu.memory_space<vmem>>, vector<512x8xbf16>,
    %c0_109 = arith.constant 0 : index
    %c1_110 = arith.constant 1 : index
    %c2_111 = arith.constant 2 : index
    %c0_112 = arith.constant 0 : index
    %92 = vector.load %arg13[%c0_109, %c1_110, %c2_111, %c0_112] : memref<2x18x18x8xf32, #tpu.memory_space<vmem>>, vector<2x16x16x8xf32>
    %93 = vector.shape_cast %92 : vector<2x16x16x8xf32> to vector<512x8xf32>
    %94 = arith.truncf %93 : vector<512x8xf32> to vector<512x8xbf16>
    %c0_113 = arith.constant 0 : index
    %c40 = arith.constant 40 : index
    %95 = vector.load %arg14[%c0_113, %c40] : memref<512x72xbf16, #tpu.memory_space<vmem>>, vector<512x8xbf16>
    tpu.vector_store %arg14[%c0_113, %c40], %94 {strides = array<i32>} : memref<512x72xbf16, #tpu.memory_space<vmem>>, vector<512x8xbf16>,
    %c0_114 = arith.constant 0 : index
    %c2_115 = arith.constant 2 : index
    %c0_116 = arith.constant 0 : index
    %c0_117 = arith.constant 0 : index
    %96 = vector.load %arg13[%c0_114, %c2_115, %c0_116, %c0_117] : memref<2x18x18x8xf32, #tpu.memory_space<vmem>>, vector<2x16x16x8xf32>
    %97 = vector.shape_cast %96 : vector<2x16x16x8xf32> to vector<512x8xf32>
    %98 = arith.truncf %97 : vector<512x8xf32> to vector<512x8xbf16>
    %c0_118 = arith.constant 0 : index
    %c48 = arith.constant 48 : index
    %99 = vector.load %arg14[%c0_118, %c48] : memref<512x72xbf16, #tpu.memory_space<vmem>>, vector<512x8xbf16>
    tpu.vector_store %arg14[%c0_118, %c48], %98 {strides = array<i32>} : memref<512x72xbf16, #tpu.memory_space<vmem>>, vector<512x8xbf16>,
    %c0_119 = arith.constant 0 : index
    %c2_120 = arith.constant 2 : index
    %c1_121 = arith.constant 1 : index
    %c0_122 = arith.constant 0 : index
    %100 = vector.load %arg13[%c0_119, %c2_120, %c1_121, %c0_122] : memref<2x18x18x8xf32, #tpu.memory_space<vmem>>, vector<2x16x16x8xf32>
    %101 = vector.shape_cast %100 : vector<2x16x16x8xf32> to vector<512x8xf32>
    %102 = arith.truncf %101 : vector<512x8xf32> to vector<512x8xbf16>
    %c0_123 = arith.constant 0 : index
    %c56 = arith.constant 56 : index
    %103 = vector.load %arg14[%c0_123, %c56] : memref<512x72xbf16, #tpu.memory_space<vmem>>, vector<512x8xbf16>
    tpu.vector_store %arg14[%c0_123, %c56], %102 {strides = array<i32>} : memref<512x72xbf16, #tpu.memory_space<vmem>>, vector<512x8xbf16>,
    %c0_124 = arith.constant 0 : index
    %c2_125 = arith.constant 2 : index
    %c2_126 = arith.constant 2 : index
    %c0_127 = arith.constant 0 : index
    %104 = vector.load %arg13[%c0_124, %c2_125, %c2_126, %c0_127] : memref<2x18x18x8xf32, #tpu.memory_space<vmem>>, vector<2x16x16x8xf32>
    %105 = vector.shape_cast %104 : vector<2x16x16x8xf32> to vector<512x8xf32>
    %106 = arith.truncf %105 : vector<512x8xf32> to vector<512x8xbf16>
    %c0_128 = arith.constant 0 : index
    %c64 = arith.constant 64 : index
    %107 = vector.load %arg14[%c0_128, %c64] : memref<512x72xbf16, #tpu.memory_space<vmem>>, vector<512x8xbf16>
    tpu.vector_store %arg14[%c0_128, %c64], %106 {strides = array<i32>} : memref<512x72xbf16, #tpu.memory_space<vmem>>, vector<512x8xbf16>,
    %c0_129 = arith.constant 0 : index
    %c0_130 = arith.constant 0 : index
    %108 = vector.load %arg14[%c0_129, %c0_130] : memref<512x72xbf16, #tpu.memory_space<vmem>>, vector<512x72xbf16>
    %c0_131 = arith.constant 0 : index
    %c0_132 = arith.constant 0 : index
    %109 = vector.load %arg4[%c0_131, %c0_132] : memref<72x8xbf16, #tpu.memory_space<vmem>>, vector<72x8xbf16>
    %cst_133 = arith.constant dense<0.000000e+00> : vector<512x8xf32>
    %110 = tpu.matmul %108, %109, %cst_133 {dimension_numbers = #tpu.dot_dimension_numbers<[1], [0], [0], [1], [0, 0, 1, 1], [], []>} : vector<512x72xbf16>, vector<72x8xbf16>, vector<512x8xf32> -> vector<512x8xf32>
    %cst_134 = arith.constant dense<0.000000e+00> : vector<8xf32>
    %111 = vector.multi_reduction <add>, %110, %cst_134 [0] : vector<512x8xf32> to vector<8xf32>
    %112 = vector.shape_cast %111 : vector<8xf32> to vector<1x8xf32>
    %113 = arith.mulf %110, %110 : vector<512x8xf32>
    %cst_135 = arith.constant dense<0.000000e+00> : vector<8xf32>
    %114 = vector.multi_reduction <add>, %113, %cst_135 [0] : vector<512x8xf32> to vector<8xf32>
    %115 = vector.shape_cast %114 : vector<8xf32> to vector<1x8xf32>
    %cst_136 = arith.constant 0.001953125 : f32
    %116 = vector.broadcast %cst_136 : f32 to vector<1x8xf32>
    %117 = arith.mulf %112, %116 : vector<1x8xf32>
    %cst_137 = arith.constant 0.001953125 : f32
    %118 = vector.broadcast %cst_137 : f32 to vector<1x8xf32>
    %119 = arith.mulf %115, %118 : vector<1x8xf32>
    %120 = arith.mulf %117, %117 : vector<1x8xf32>
    %121 = arith.subf %119, %120 : vector<1x8xf32>
    %cst_138 = arith.constant 9.99999974E-6 : f32
    %122 = vector.broadcast %cst_138 : f32 to vector<1x8xf32>
    %123 = arith.addf %121, %122 : vector<1x8xf32>
    %124 = math.rsqrt %123 : vector<1x8xf32>
    %125 = vector.broadcast %117 : vector<1x8xf32> to vector<512x8xf32>
    %126 = arith.subf %110, %125 : vector<512x8xf32>
    %c0_139 = arith.constant 0 : index
    %c0_140 = arith.constant 0 : index
    %127 = vector.load %arg5[%c0_139, %c0_140] : memref<1x8xf32, #tpu.memory_space<vmem>>, vector<1x8xf32>
    %128 = arith.mulf %124, %127 : vector<1x8xf32>
    %129 = vector.broadcast %128 : vector<1x8xf32> to vector<512x8xf32>
    %130 = arith.mulf %126, %129 : vector<512x8xf32>
    %c0_141 = arith.constant 0 : index
    %c0_142 = arith.constant 0 : index
    %131 = vector.load %arg6[%c0_141, %c0_142] : memref<1x8xf32, #tpu.memory_space<vmem>>, vector<1x8xf32>
    %132 = vector.broadcast %131 : vector<1x8xf32> to vector<512x8xf32>
    %133 = arith.addf %130, %132 : vector<512x8xf32>
    %134 = vector.shape_cast %0 : vector<2x16x16x4xf32> to vector<512x4xf32>
    %135 = arith.truncf %134 : vector<512x4xf32> to vector<512x4xbf16>
    %c0_143 = arith.constant 0 : index
    %c0_144 = arith.constant 0 : index
    %136 = vector.load %arg7[%c0_143, %c0_144] : memref<4x8xbf16, #tpu.memory_space<vmem>>, vector<4x8xbf16>
    %cst_145 = arith.constant dense<0.000000e+00> : vector<512x8xf32>
    %137 = tpu.matmul %135, %136, %cst_145 {dimension_numbers = #tpu.dot_dimension_numbers<[1], [0], [0], [1], [0, 0, 1, 1], [], []>} : vector<512x4xbf16>, vector<4x8xbf16>, vector<512x8xf32> -> vector<512x8xf32>
    %cst_146 = arith.constant dense<0.000000e+00> : vector<8xf32>
    %138 = vector.multi_reduction <add>, %137, %cst_146 [0] : vector<512x8xf32> to vector<8xf32>
    %139 = vector.shape_cast %138 : vector<8xf32> to vector<1x8xf32>
    %140 = arith.mulf %137, %137 : vector<512x8xf32>
    %cst_147 = arith.constant dense<0.000000e+00> : vector<8xf32>
    %141 = vector.multi_reduction <add>, %140, %cst_147 [0] : vector<512x8xf32> to vector<8xf32>
    %142 = vector.shape_cast %141 : vector<8xf32> to vector<1x8xf32>
    %cst_148 = arith.constant 0.001953125 : f32
    %143 = vector.broadcast %cst_148 : f32 to vector<1x8xf32>
    %144 = arith.mulf %139, %143 : vector<1x8xf32>
    %cst_149 = arith.constant 0.001953125 : f32
    %145 = vector.broadcast %cst_149 : f32 to vector<1x8xf32>
    %146 = arith.mulf %142, %145 : vector<1x8xf32>
    %147 = arith.mulf %144, %144 : vector<1x8xf32>
    %148 = arith.subf %146, %147 : vector<1x8xf32>
    %cst_150 = arith.constant 9.99999974E-6 : f32
    %149 = vector.broadcast %cst_150 : f32 to vector<1x8xf32>
    %150 = arith.addf %148, %149 : vector<1x8xf32>
    %151 = math.rsqrt %150 : vector<1x8xf32>
    %152 = vector.broadcast %144 : vector<1x8xf32> to vector<512x8xf32>
    %153 = arith.subf %137, %152 : vector<512x8xf32>
    %c0_151 = arith.constant 0 : index
    %c0_152 = arith.constant 0 : index
    %154 = vector.load %arg8[%c0_151, %c0_152] : memref<1x8xf32, #tpu.memory_space<vmem>>, vector<1x8xf32>
    %155 = arith.mulf %151, %154 : vector<1x8xf32>
    %156 = vector.broadcast %155 : vector<1x8xf32> to vector<512x8xf32>
    %157 = arith.mulf %153, %156 : vector<512x8xf32>
    %c0_153 = arith.constant 0 : index
    %c0_154 = arith.constant 0 : index
    %158 = vector.load %arg9[%c0_153, %c0_154] : memref<1x8xf32, #tpu.memory_space<vmem>>, vector<1x8xf32>
    %159 = vector.broadcast %158 : vector<1x8xf32> to vector<512x8xf32>
    %160 = arith.addf %157, %159 : vector<512x8xf32>
    %161 = arith.addf %133, %160 : vector<512x8xf32>
    %cst_155 = arith.constant 0.000000e+00 : f32
    %162 = vector.broadcast %cst_155 : f32 to vector<512x8xf32>
    %163 = arith.maximumf %161, %162 : vector<512x8xf32>
    %164 = vector.shape_cast %163 : vector<512x8xf32> to vector<2x16x16x8xf32>
    %c0_156 = arith.constant 0 : index
    %c0_157 = arith.constant 0 : index
    %c0_158 = arith.constant 0 : index
    %c0_159 = arith.constant 0 : index
    %165 = vector.load %arg10[%c0_156, %c0_157, %c0_158, %c0_159] : memref<2x16x16x8xf32, #tpu.memory_space<vmem>>, vector<2x16x16x8xf32>
    tpu.vector_store %arg10[%c0_156, %c0_157, %c0_158, %c0_159], %164 {strides = array<i32>} : memref<2x16x16x8xf32, #tpu.memory_space<vmem>>, vector<2x16x16x8xf32>,
    return
  }
}

</mosaic_0001>

<llo_original>
// kernel: tpu_custom_call.1
$region0: #{tpu_custom_call.1}
  #allocation0 [shape = 'u32[]', space=smem, size = 0x4, offset = 0x4, fixed_abs, tag = 'smem constant byte address 0x4 - core index']
  #allocation1 [shape = 'u32[72,128]{1,0:T(1,128)}', space=vmem, size = 0x9000, scoped, tag = 'internal scratch']
  #allocation2 [shape = 'f32[2,18,18,4]{3,2,1,0:T(8,128)}', space=vmem, size = 0x6c000, scoped, tag = 'scratch operand']
  #allocation3 [shape = 'bf16[512,36]{1,0:T(8,128)(2,1)}', space=vmem, size = 0x20000, scoped, tag = 'scratch operand']
  #allocation4 [shape = 'f32[2,18,18,8]{3,2,1,0:T(8,128)}', space=vmem, size = 0x6c000, scoped, tag = 'scratch operand']
  #allocation5 [shape = 'bf16[512,72]{1,0:T(8,128)(2,1)}', space=vmem, size = 0x20000, scoped, tag = 'scratch operand']
  %s0 = inlined_call_operand.vmem [shape: f32[2,16,16,4], index: 0, kind: input, shape index: {}]
  %s1 = inlined_call_operand.vmem [shape: bf16[36,8], index: 1, kind: input, shape index: {}]
  %s2 = inlined_call_operand.vmem [shape: f32[1,8], index: 2, kind: input, shape index: {}]
  %s3 = inlined_call_operand.vmem [shape: f32[1,8], index: 3, kind: input, shape index: {}]
  %s4 = inlined_call_operand.vmem [shape: bf16[72,8], index: 4, kind: input, shape index: {}]
  %s5 = inlined_call_operand.vmem [shape: f32[1,8], index: 5, kind: input, shape index: {}]
  %s6 = inlined_call_operand.vmem [shape: f32[1,8], index: 6, kind: input, shape index: {}]
  %s7 = inlined_call_operand.vmem [shape: bf16[4,8], index: 7, kind: input, shape index: {}]
  %s8 = inlined_call_operand.vmem [shape: f32[1,8], index: 8, kind: input, shape index: {}]
  %s9 = inlined_call_operand.vmem [shape: f32[1,8], index: 9, kind: input, shape index: {}]
  %s10 = inlined_call_operand.vmem [shape: f32[2,16,16,8], index: 10, kind: output, shape index: {}]
  %s11 = sld [smem:[#allocation0]]
  $region50: #{tpu_custom_call.1} parent=0
    _
  %s13 = ssub.s32 1, %s11
  %s14 = scalar_select 0, %s13, %s11
  // Predicated region
  $region2: #{tpu_custom_call.1} parent=0 // pred_check
    _
  $region3: #{tpu_custom_call.1} parent=0 // pred_check_branch
    %16 = sbr.rel (0) target = $region5
  $region4: #{tpu_custom_call.1} parent=0 // pred_region
    _
  $region5: #{tpu_custom_call.1} parent=0 // pred_fallthru
    _
  // Predicated region
  $region6: #{tpu_custom_call.1} parent=0 // pred_check
    _
  $region7: #{tpu_custom_call.1} parent=0 // pred_check_branch
    %18 = sbr.rel (0) target = $region9
  $region8: #{tpu_custom_call.1} parent=0 // pred_region
    _
  $region9: #{tpu_custom_call.1} parent=0 // pred_fallthru
    _
  // Predicated region
  $region10: #{tpu_custom_call.1} parent=0 // pred_check
    _
  $region11: #{tpu_custom_call.1} parent=0 // pred_check_branch
    %20 = sbr.rel (0) target = $region13
  $region12: #{tpu_custom_call.1} parent=0 // pred_region
    _
  $region13: #{tpu_custom_call.1} parent=0 // pred_fallthru
    _
  // Predicated region
  $region14: #{tpu_custom_call.1} parent=0 // pred_check
    _
  $region15: #{tpu_custom_call.1} parent=0 // pred_check_branch
    %22 = sbr.rel (0) target = $region17
  $region16: #{tpu_custom_call.1} parent=0 // pred_region
    _
  $region17: #{tpu_custom_call.1} parent=0 // pred_fallthru
    _
  // Predicated region
  $region18: #{tpu_custom_call.1} parent=0 // pred_check
    _
  $region19: #{tpu_custom_call.1} parent=0 // pred_check_branch
    %24 = sbr.rel (0) target = $region21
  $region20: #{tpu_custom_call.1} parent=0 // pred_region
    _
  $region21: #{tpu_custom_call.1} parent=0 // pred_fallthru
    _
  // Predicated region
  $region22: #{tpu_custom_call.1} parent=0 // pred_check
    _
  $region23: #{tpu_custom_call.1} parent=0 // pred_check_branch
    %26 = sbr.rel (0) target = $region25
  $region24: #{tpu_custom_call.1} parent=0 // pred_region
    _
  $region25: #{tpu_custom_call.1} parent=0 // pred_fallthru
    _
  // Predicated region
  $region26: #{tpu_custom_call.1} parent=0 // pred_check
    _
  $region27: #{tpu_custom_call.1} parent=0 // pred_check_branch
    %28 = sbr.rel (0) target = $region29
  $region28: #{tpu_custom_call.1} parent=0 // pred_region
    _
  $region29: #{tpu_custom_call.1} parent=0 // pred_fallthru
    _
  // Predicated region
  $region30: #{tpu_custom_call.1} parent=0 // pred_check
    _
  $region31: #{tpu_custom_call.1} parent=0 // pred_check_branch
    %30 = sbr.rel (0) target = $region33
  $region32: #{tpu_custom_call.1} parent=0 // pred_region
    _
  $region33: #{tpu_custom_call.1} parent=0 // pred_fallthru
    _
  // Predicated region
  $region34: #{tpu_custom_call.1} parent=0 // pred_check
    _
  $region35: #{tpu_custom_call.1} parent=0 // pred_check_branch
    %32 = sbr.rel (0) target = $region37
  $region36: #{tpu_custom_call.1} parent=0 // pred_region
    _
  $region37: #{tpu_custom_call.1} parent=0 // pred_fallthru
    _
  // Predicated region
  $region38: #{tpu_custom_call.1} parent=0 // pred_check
    _
  $region39: #{tpu_custom_call.1} parent=0 // pred_check_branch
    %34 = sbr.rel (0) target = $region41
  $region40: #{tpu_custom_call.1} parent=0 // pred_region
    _
  $region41: #{tpu_custom_call.1} parent=0 // pred_fallthru
    _
  %v36 = vld [vmem:[%s0] sm:$0xff]
  %v37 = vld [vmem:[%s0 + $0x8] sm:$0xff]
  %v38 = vld [vmem:[%s0 + $0x10] sm:$0xff]
  %v39 = vld [vmem:[%s0 + $0x18] sm:$0xff]
  %v40 = vld [vmem:[%s0 + $0x20] sm:$0xff]
  %v41 = vld [vmem:[%s0 + $0x28] sm:$0xff]
  %v42 = vld [vmem:[%s0 + $0x30] sm:$0xff]
  %v43 = vld [vmem:[%s0 + $0x38] sm:$0xff]
  %v44 = vld [vmem:[%s0 + $0x40] sm:$0xff]
  %v45 = vld [vmem:[%s0 + $0x48] sm:$0xff]
  %v46 = vld [vmem:[%s0 + $0x50] sm:$0xff]
  %v47 = vld [vmem:[%s0 + $0x58] sm:$0xff]
  %v48 = vld [vmem:[%s0 + $0x60] sm:$0xff]
  %v49 = vld [vmem:[%s0 + $0x68] sm:$0xff]
  %v50 = vld [vmem:[%s0 + $0x70] sm:$0xff]
  %v51 = vld [vmem:[%s0 + $0x78] sm:$0xff]
  %v52 = vld [vmem:[%s0 + $0x80] sm:$0xff]
  %v53 = vld [vmem:[%s0 + $0x88] sm:$0xff]
  %v54 = vld [vmem:[%s0 + $0x90] sm:$0xff]
  %v55 = vld [vmem:[%s0 + $0x98] sm:$0xff]
  %v56 = vld [vmem:[%s0 + $0xa0] sm:$0xff]
  %v57 = vld [vmem:[%s0 + $0xa8] sm:$0xff]
  %v58 = vld [vmem:[%s0 + $0xb0] sm:$0xff]
  %v59 = vld [vmem:[%s0 + $0xb8] sm:$0xff]
  %v60 = vld [vmem:[%s0 + $0xc0] sm:$0xff]
  %v61 = vld [vmem:[%s0 + $0xc8] sm:$0xff]
  %v62 = vld [vmem:[%s0 + $0xd0] sm:$0xff]
  %v63 = vld [vmem:[%s0 + $0xd8] sm:$0xff]
  %v64 = vld [vmem:[%s0 + $0xe0] sm:$0xff]
  %v65 = vld [vmem:[%s0 + $0xe8] sm:$0xff]
  %v66 = vld [vmem:[%s0 + $0xf0] sm:$0xff]
  %v67 = vld [vmem:[%s0 + $0xf8] sm:$0xff]
  %v68 = vld [vmem:[%s0 + $0x100] sm:$0xff]
  %v69 = vld [vmem:[%s0 + $0x108] sm:$0xff]
  %v70 = vld [vmem:[%s0 + $0x110] sm:$0xff]
  %v71 = vld [vmem:[%s0 + $0x118] sm:$0xff]
  %v72 = vld [vmem:[%s0 + $0x120] sm:$0xff]
  %v73 = vld [vmem:[%s0 + $0x128] sm:$0xff]
  %v74 = vld [vmem:[%s0 + $0x130] sm:$0xff]
  %v75 = vld [vmem:[%s0 + $0x138] sm:$0xff]
  %v76 = vld [vmem:[%s0 + $0x140] sm:$0xff]
  %v77 = vld [vmem:[%s0 + $0x148] sm:$0xff]
  %v78 = vld [vmem:[%s0 + $0x150] sm:$0xff]
  %v79 = vld [vmem:[%s0 + $0x158] sm:$0xff]
  %v80 = vld [vmem:[%s0 + $0x160] sm:$0xff]
  %v81 = vld [vmem:[%s0 + $0x168] sm:$0xff]
  %v82 = vld [vmem:[%s0 + $0x170] sm:$0xff]
  %v83 = vld [vmem:[%s0 + $0x178] sm:$0xff]
  %v84 = vld [vmem:[%s0 + $0x180] sm:$0xff]
  %v85 = vld [vmem:[%s0 + $0x188] sm:$0xff]
  %v86 = vld [vmem:[%s0 + $0x190] sm:$0xff]
  %v87 = vld [vmem:[%s0 + $0x198] sm:$0xff]
  %v88 = vld [vmem:[%s0 + $0x1a0] sm:$0xff]
  %v89 = vld [vmem:[%s0 + $0x1a8] sm:$0xff]
  %v90 = vld [vmem:[%s0 + $0x1b0] sm:$0xff]
  %v91 = vld [vmem:[%s0 + $0x1b8] sm:$0xff]
  %v92 = vld [vmem:[%s0 + $0x1c0] sm:$0xff]
  %v93 = vld [vmem:[%s0 + $0x1c8] sm:$0xff]
  %v94 = vld [vmem:[%s0 + $0x1d0] sm:$0xff]
  %v95 = vld [vmem:[%s0 + $0x1d8] sm:$0xff]
  %v96 = vld [vmem:[%s0 + $0x1e0] sm:$0xff]
  %v97 = vld [vmem:[%s0 + $0x1e8] sm:$0xff]
  %v98 = vld [vmem:[%s0 + $0x1f0] sm:$0xff]
  %v99 = vld [vmem:[%s0 + $0x1f8] sm:$0xff]
  %vm100 = vcmask 31744
  %101 = vst.msk [vmem:[#allocation2] sm:$0xff] %vm100, 0.0
  %102 = vst.msk [vmem:[#allocation2 + $0x8] sm:$0xff] %vm100, 0.0
  %vm103 = vcmask 25600
  %104 = vst.msk [vmem:[#allocation2 + $0x10] sm:$0x3] %vm103, 0.0
  %105 = vst.msk [vmem:[#allocation2 + $0x18] sm:$0xff] %vm100, 0.0
  %106 = vst.msk [vmem:[#allocation2 + $0x20] sm:$0xff] %vm100, 0.0
  %107 = vst.msk [vmem:[#allocation2 + $0x28] sm:$0x3] %vm103, 0.0
  %108 = vst.msk [vmem:[#allocation2 + $0x30] sm:$0xff] %vm100, 0.0
  %109 = vst.msk [vmem:[#allocation2 + $0x38] sm:$0xff] %vm100, 0.0
  %110 = vst.msk [vmem:[#allocation2 + $0x40] sm:$0x3] %vm103, 0.0
  %111 = vst.msk [vmem:[#allocation2 + $0x48] sm:$0xff] %vm100, 0.0
  %112 = vst.msk [vmem:[#allocation2 + $0x50] sm:$0xff] %vm100, 0.0
  %113 = vst.msk [vmem:[#allocation2 + $0x58] sm:$0x3] %vm103, 0.0
  %114 = vst.msk [vmem:[#allocation2 + $0x60] sm:$0xff] %vm100, 0.0
  %115 = vst.msk [vmem:[#allocation2 + $0x68] sm:$0xff] %vm100, 0.0
  %116 = vst.msk [vmem:[#allocation2 + $0x70] sm:$0x3] %vm103, 0.0
  %117 = vst.msk [vmem:[#allocation2 + $0x78] sm:$0xff] %vm100, 0.0
  %118 = vst.msk [vmem:[#allocation2 + $0x80] sm:$0xff] %vm100, 0.0
  %119 = vst.msk [vmem:[#allocation2 + $0x88] sm:$0x3] %vm103, 0.0
  %120 = vst.msk [vmem:[#allocation2 + $0x90] sm:$0xff] %vm100, 0.0
  %121 = vst.msk [vmem:[#allocation2 + $0x98] sm:$0xff] %vm100, 0.0
  %122 = vst.msk [vmem:[#allocation2 + $0xa0] sm:$0x3] %vm103, 0.0
  %123 = vst.msk [vmem:[#allocation2 + $0xa8] sm:$0xff] %vm100, 0.0
  %124 = vst.msk [vmem:[#allocation2 + $0xb0] sm:$0xff] %vm100, 0.0
  %125 = vst.msk [vmem:[#allocation2 + $0xb8] sm:$0x3] %vm103, 0.0
  %126 = vst.msk [vmem:[#allocation2 + $0xc0] sm:$0xff] %vm100, 0.0
  %127 = vst.msk [vmem:[#allocation2 + $0xc8] sm:$0xff] %vm100, 0.0
  %128 = vst.msk [vmem:[#allocation2 + $0xd0] sm:$0x3] %vm103, 0.0
  %129 = vst.msk [vmem:[#allocation2 + $0xd8] sm:$0xff] %vm100, 0.0
  %130 = vst.msk [vmem:[#allocation2 + $0xe0] sm:$0xff] %vm100, 0.0
  %131 = vst.msk [vmem:[#allocation2 + $0xe8] sm:$0x3] %vm103, 0.0
  %132 = vst.msk [vmem:[#allocation2 + $0xf0] sm:$0xff] %vm100, 0.0
  %133 = vst.msk [vmem:[#allocation2 + $0xf8] sm:$0xff] %vm100, 0.0
  %134 = vst.msk [vmem:[#allocation2 + $0x100] sm:$0x3] %vm103, 0.0
  %135 = vst.msk [vmem:[#allocation2 + $0x108] sm:$0xff] %vm100, 0.0
  %136 = vst.msk [vmem:[#allocation2 + $0x110] sm:$0xff] %vm100, 0.0
  %137 = vst.msk [vmem:[#allocation2 + $0x118] sm:$0x3] %vm103, 0.0
  %138 = vst.msk [vmem:[#allocation2 + $0x120] sm:$0xff] %vm100, 0.0
  %139 = vst.msk [vmem:[#allocation2 + $0x128] sm:$0xff] %vm100, 0.0
  %140 = vst.msk [vmem:[#allocation2 + $0x130] sm:$0x3] %vm103, 0.0
  %141 = vst.msk [vmem:[#allocation2 + $0x138] sm:$0xff] %vm100, 0.0
  %142 = vst.msk [vmem:[#allocation2 + $0x140] sm:$0xff] %vm100, 0.0
  %143 = vst.msk [vmem:[#allocation2 + $0x148] sm:$0x3] %vm103, 0.0
  %144 = vst.msk [vmem:[#allocation2 + $0x150] sm:$0xff] %vm100, 0.0
  %145 = vst.msk [vmem:[#allocation2 + $0x158] sm:$0xff] %vm100, 0.0
  %146 = vst.msk [vmem:[#allocation2 + $0x160] sm:$0x3] %vm103, 0.0
  %147 = vst.msk [vmem:[#allocation2 + $0x168] sm:$0xff] %vm100, 0.0
  %148 = vst.msk [vmem:[#allocation2 + $0x170] sm:$0xff] %vm100, 0.0
  %149 = vst.msk [vmem:[#allocation2 + $0x178] sm:$0x3] %vm103, 0.0
  %150 = vst.msk [vmem:[#allocation2 + $0x180] sm:$0xff] %vm100, 0.0
  %151 = vst.msk [vmem:[#allocation2 + $0x188] sm:$0xff] %vm100, 0.0
  %152 = vst.msk [vmem:[#allocation2 + $0x190] sm:$0x3] %vm103, 0.0
  %153 = vst.msk [vmem:[#allocation2 + $0x198] sm:$0xff] %vm100, 0.0
  %154 = vst.msk [vmem:[#allocation2 + $0x1a0] sm:$0xff] %vm100, 0.0
  %155 = vst.msk [vmem:[#allocation2 + $0x1a8] sm:$0x3] %vm103, 0.0
  %156 = vst.msk [vmem:[#allocation2 + $0x1b0] sm:$0xff] %vm100, 0.0
  %157 = vst.msk [vmem:[#allocation2 + $0x1b8] sm:$0xff] %vm100, 0.0
  %158 = vst.msk [vmem:[#allocation2 + $0x1c0] sm:$0x3] %vm103, 0.0
  %159 = vst.msk [vmem:[#allocation2 + $0x1c8] sm:$0xff] %vm100, 0.0
  %160 = vst.msk [vmem:[#allocation2 + $0x1d0] sm:$0xff] %vm100, 0.0
  %161 = vst.msk [vmem:[#allocation2 + $0x1d8] sm:$0x3] %vm103, 0.0
  %162 = vst.msk [vmem:[#allocation2 + $0x1e0] sm:$0xff] %vm100, 0.0
  %163 = vst.msk [vmem:[#allocation2 + $0x1e8] sm:$0xff] %vm100, 0.0
  %164 = vst.msk [vmem:[#allocation2 + $0x1f0] sm:$0x3] %vm103, 0.0
  %165 = vst.msk [vmem:[#allocation2 + $0x1f8] sm:$0xff] %vm100, 0.0
  %166 = vst.msk [vmem:[#allocation2 + $0x200] sm:$0xff] %vm100, 0.0
  %167 = vst.msk [vmem:[#allocation2 + $0x208] sm:$0x3] %vm103, 0.0
  %168 = vst.msk [vmem:[#allocation2 + $0x210] sm:$0xff] %vm100, 0.0
  %169 = vst.msk [vmem:[#allocation2 + $0x218] sm:$0xff] %vm100, 0.0
  %170 = vst.msk [vmem:[#allocation2 + $0x220] sm:$0x3] %vm103, 0.0
  %171 = vst.msk [vmem:[#allocation2 + $0x228] sm:$0xff] %vm100, 0.0
  %172 = vst.msk [vmem:[#allocation2 + $0x230] sm:$0xff] %vm100, 0.0
  %173 = vst.msk [vmem:[#allocation2 + $0x238] sm:$0x3] %vm103, 0.0
  %174 = vst.msk [vmem:[#allocation2 + $0x240] sm:$0xff] %vm100, 0.0
  %175 = vst.msk [vmem:[#allocation2 + $0x248] sm:$0xff] %vm100, 0.0
  %176 = vst.msk [vmem:[#allocation2 + $0x250] sm:$0x3] %vm103, 0.0
  %177 = vst.msk [vmem:[#allocation2 + $0x258] sm:$0xff] %vm100, 0.0
  %178 = vst.msk [vmem:[#allocation2 + $0x260] sm:$0xff] %vm100, 0.0
  %179 = vst.msk [vmem:[#allocation2 + $0x268] sm:$0x3] %vm103, 0.0
  %180 = vst.msk [vmem:[#allocation2 + $0x270] sm:$0xff] %vm100, 0.0
  %181 = vst.msk [vmem:[#allocation2 + $0x278] sm:$0xff] %vm100, 0.0
  %182 = vst.msk [vmem:[#allocation2 + $0x280] sm:$0x3] %vm103, 0.0
  %183 = vst.msk [vmem:[#allocation2 + $0x288] sm:$0xff] %vm100, 0.0
  %184 = vst.msk [vmem:[#allocation2 + $0x290] sm:$0xff] %vm100, 0.0
  %185 = vst.msk [vmem:[#allocation2 + $0x298] sm:$0x3] %vm103, 0.0
  %186 = vst.msk [vmem:[#allocation2 + $0x2a0] sm:$0xff] %vm100, 0.0
  %187 = vst.msk [vmem:[#allocation2 + $0x2a8] sm:$0xff] %vm100, 0.0
  %188 = vst.msk [vmem:[#allocation2 + $0x2b0] sm:$0x3] %vm103, 0.0
  %189 = vst.msk [vmem:[#allocation2 + $0x2b8] sm:$0xff] %vm100, 0.0
  %190 = vst.msk [vmem:[#allocation2 + $0x2c0] sm:$0xff] %vm100, 0.0
  %191 = vst.msk [vmem:[#allocation2 + $0x2c8] sm:$0x3] %vm103, 0.0
  %192 = vst.msk [vmem:[#allocation2 + $0x2d0] sm:$0xff] %vm100, 0.0
  %193 = vst.msk [vmem:[#allocation2 + $0x2d8] sm:$0xff] %vm100, 0.0
  %194 = vst.msk [vmem:[#allocation2 + $0x2e0] sm:$0x3] %vm103, 0.0
  %195 = vst.msk [vmem:[#allocation2 + $0x2e8] sm:$0xff] %vm100, 0.0
  %196 = vst.msk [vmem:[#allocation2 + $0x2f0] sm:$0xff] %vm100, 0.0
  %197 = vst.msk [vmem:[#allocation2 + $0x2f8] sm:$0x3] %vm103, 0.0
  %198 = vst.msk [vmem:[#allocation2 + $0x300] sm:$0xff] %vm100, 0.0
  %199 = vst.msk [vmem:[#allocation2 + $0x308] sm:$0xff] %vm100, 0.0
  %200 = vst.msk [vmem:[#allocation2 + $0x310] sm:$0x3] %vm103, 0.0
  %201 = vst.msk [vmem:[#allocation2 + $0x318] sm:$0xff] %vm100, 0.0
  %202 = vst.msk [vmem:[#allocation2 + $0x320] sm:$0xff] %vm100, 0.0
  %203 = vst.msk [vmem:[#allocation2 + $0x328] sm:$0x3] %vm103, 0.0
  %204 = vst.msk [vmem:[#allocation2 + $0x330] sm:$0xff] %vm100, 0.0
  %205 = vst.msk [vmem:[#allocation2 + $0x338] sm:$0xff] %vm100, 0.0
  %206 = vst.msk [vmem:[#allocation2 + $0x340] sm:$0x3] %vm103, 0.0
  %207 = vst.msk [vmem:[#allocation2 + $0x348] sm:$0xff] %vm100, 0.0
  %208 = vst.msk [vmem:[#allocation2 + $0x350] sm:$0xff] %vm100, 0.0
  %209 = vst.msk [vmem:[#allocation2 + $0x358] sm:$0x3] %vm103, 0.0
  %s210 = scalar_lea.vmem [#allocation2], 24
  %211 = vst.msk [vmem:[%s210 + $0x1] sm:$0xff] %vm100, %v36
  %212 = vst.msk [vmem:[%s210 + $0x9] sm:$0xff] %vm100, %v37
  %213 = vst.msk [vmem:[%s210 + $0x19] sm:$0xff] %vm100, %v38
  %214 = vst.msk [vmem:[%s210 + $0x21] sm:$0xff] %vm100, %v39
  %215 = vst.msk [vmem:[%s210 + $0x31] sm:$0xff] %vm100, %v40
  %216 = vst.msk [vmem:[%s210 + $0x39] sm:$0xff] %vm100, %v41
  %217 = vst.msk [vmem:[%s210 + $0x49] sm:$0xff] %vm100, %v42
  %218 = vst.msk [vmem:[%s210 + $0x51] sm:$0xff] %vm100, %v43
  %219 = vst.msk [vmem:[%s210 + $0x61] sm:$0xff] %vm100, %v44
  %220 = vst.msk [vmem:[%s210 + $0x69] sm:$0xff] %vm100, %v45
  %221 = vst.msk [vmem:[%s210 + $0x79] sm:$0xff] %vm100, %v46
  %222 = vst.msk [vmem:[%s210 + $0x81] sm:$0xff] %vm100, %v47
  %223 = vst.msk [vmem:[%s210 + $0x91] sm:$0xff] %vm100, %v48
  %224 = vst.msk [vmem:[%s210 + $0x99] sm:$0xff] %vm100, %v49
  %225 = vst.msk [vmem:[%s210 + $0xa9] sm:$0xff] %vm100, %v50
  %226 = vst.msk [vmem:[%s210 + $0xb1] sm:$0xff] %vm100, %v51
  %227 = vst.msk [vmem:[%s210 + $0xc1] sm:$0xff] %vm100, %v52
  %228 = vst.msk [vmem:[%s210 + $0xc9] sm:$0xff] %vm100, %v53
  %229 = vst.msk [vmem:[%s210 + $0xd9] sm:$0xff] %vm100, %v54
  %230 = vst.msk [vmem:[%s210 + $0xe1] sm:$0xff] %vm100, %v55
  %231 = vst.msk [vmem:[%s210 + $0xf1] sm:$0xff] %vm100, %v56
  %232 = vst.msk [vmem:[%s210 + $0xf9] sm:$0xff] %vm100, %v57
  %233 = vst.msk [vmem:[%s210 + $0x109] sm:$0xff] %vm100, %v58
  %234 = vst.msk [vmem:[%s210 + $0x111] sm:$0xff] %vm100, %v59
  %235 = vst.msk [vmem:[%s210 + $0x121] sm:$0xff] %vm100, %v60
  %236 = vst.msk [vmem:[%s210 + $0x129] sm:$0xff] %vm100, %v61
  %237 = vst.msk [vmem:[%s210 + $0x139] sm:$0xff] %vm100, %v62
  %238 = vst.msk [vmem:[%s210 + $0x141] sm:$0xff] %vm100, %v63
  %239 = vst.msk [vmem:[%s210 + $0x151] sm:$0xff] %vm100, %v64
  %240 = vst.msk [vmem:[%s210 + $0x159] sm:$0xff] %vm100, %v65
  %241 = vst.msk [vmem:[%s210 + $0x169] sm:$0xff] %vm100, %v66
  %242 = vst.msk [vmem:[%s210 + $0x171] sm:$0xff] %vm100, %v67
  %243 = vst.msk [vmem:[%s210 + $0x1b1] sm:$0xff] %vm100, %v68
  %244 = vst.msk [vmem:[%s210 + $0x1b9] sm:$0xff] %vm100, %v69
  %245 = vst.msk [vmem:[%s210 + $0x1c9] sm:$0xff] %vm100, %v70
  %246 = vst.msk [vmem:[%s210 + $0x1d1] sm:$0xff] %vm100, %v71
  %247 = vst.msk [vmem:[%s210 + $0x1e1] sm:$0xff] %vm100, %v72
  %248 = vst.msk [vmem:[%s210 + $0x1e9] sm:$0xff] %vm100, %v73
  %249 = vst.msk [vmem:[%s210 + $0x1f9] sm:$0xff] %vm100, %v74
  %250 = vst.msk [vmem:[%s210 + $0x201] sm:$0xff] %vm100, %v75
  %251 = vst.msk [vmem:[%s210 + $0x211] sm:$0xff] %vm100, %v76
  %252 = vst.msk [vmem:[%s210 + $0x219] sm:$0xff] %vm100, %v77
  %253 = vst.msk [vmem:[%s210 + $0x229] sm:$0xff] %vm100, %v78
  %254 = vst.msk [vmem:[%s210 + $0x231] sm:$0xff] %vm100, %v79
  %255 = vst.msk [vmem:[%s210 + $0x241] sm:$0xff] %vm100, %v80
  %256 = vst.msk [vmem:[%s210 + $0x249] sm:$0xff] %vm100, %v81
  %257 = vst.msk [vmem:[%s210 + $0x259] sm:$0xff] %vm100, %v82
  %258 = vst.msk [vmem:[%s210 + $0x261] sm:$0xff] %vm100, %v83
  %259 = vst.msk [vmem:[%s210 + $0x271] sm:$0xff] %vm100, %v84
  %260 = vst.msk [vmem:[%s210 + $0x279] sm:$0xff] %vm100, %v85
  %261 = vst.msk [vmem:[%s210 + $0x289] sm:$0xff] %vm100, %v86
  %262 = vst.msk [vmem:[%s210 + $0x291] sm:$0xff] %vm100, %v87
  %263 = vst.msk [vmem:[%s210 + $0x2a1] sm:$0xff] %vm100, %v88
  %264 = vst.msk [vmem:[%s210 + $0x2a9] sm:$0xff] %vm100, %v89
  %265 = vst.msk [vmem:[%s210 + $0x2b9] sm:$0xff] %vm100, %v90
  %266 = vst.msk [vmem:[%s210 + $0x2c1] sm:$0xff] %vm100, %v91
  %267 = vst.msk [vmem:[%s210 + $0x2d1] sm:$0xff] %vm100, %v92
  %268 = vst.msk [vmem:[%s210 + $0x2d9] sm:$0xff] %vm100, %v93
  %269 = vst.msk [vmem:[%s210 + $0x2e9] sm:$0xff] %vm100, %v94
  %270 = vst.msk [vmem:[%s210 + $0x2f1] sm:$0xff] %vm100, %v95
  %271 = vst.msk [vmem:[%s210 + $0x301] sm:$0xff] %vm100, %v96
  %272 = vst.msk [vmem:[%s210 + $0x309] sm:$0xff] %vm100, %v97
  %273 = vst.msk [vmem:[%s210 + $0x319] sm:$0xff] %vm100, %v98
  %274 = vst.msk [vmem:[%s210 + $0x321] sm:$0xff] %vm100, %v99
  %v275 = vld [vmem:[#allocation2] sm:$0xff]
  %v276 = vld [vmem:[#allocation2 + $0x8] sm:$0xff]
  %v277 = vld [vmem:[#allocation2 + $0x18] sm:$0xff]
  %v278 = vld [vmem:[#allocation2 + $0x20] sm:$0xff]
  %v279 = vld [vmem:[#allocation2 + $0x30] sm:$0xff]
  %v280 = vld [vmem:[#allocation2 + $0x38] sm:$0xff]
  %v281 = vld [vmem:[#allocation2 + $0x48] sm:$0xff]
  %v282 = vld [vmem:[#allocation2 + $0x50] sm:$0xff]
  %v283 = vld [vmem:[#allocation2 + $0x60] sm:$0xff]
  %v284 = vld [vmem:[#allocation2 + $0x68] sm:$0xff]
  %v285 = vld [vmem:[#allocation2 + $0x78] sm:$0xff]
  %v286 = vld [vmem:[#allocation2 + $0x80] sm:$0xff]
  %v287 = vld [vmem:[#allocation2 + $0x90] sm:$0xff]
  %v288 = vld [vmem:[#allocation2 + $0x98] sm:$0xff]
  %v289 = vld [vmem:[#allocation2 + $0xa8] sm:$0xff]
  %v290 = vld [vmem:[#allocation2 + $0xb0] sm:$0xff]
  %v291 = vld [vmem:[#allocation2 + $0xc0] sm:$0xff]
  %v292 = vld [vmem:[#allocation2 + $0xc8] sm:$0xff]
  %v293 = vld [vmem:[#allocation2 + $0xd8] sm:$0xff]
  %v294 = vld [vmem:[#allocation2 + $0xe0] sm:$0xff]
  %v295 = vld [vmem:[#allocation2 + $0xf0] sm:$0xff]
  %v296 = vld [vmem:[#allocation2 + $0xf8] sm:$0xff]
  %v297 = vld [vmem:[#allocation2 + $0x108] sm:$0xff]
  %v298 = vld [vmem:[#allocation2 + $0x110] sm:$0xff]
  %v299 = vld [vmem:[#allocation2 + $0x120] sm:$0xff]
  %v300 = vld [vmem:[#allocation2 + $0x128] sm:$0xff]
  %v301 = vld [vmem:[#allocation2 + $0x138] sm:$0xff]
  %v302 = vld [vmem:[#allocation2 + $0x140] sm:$0xff]
  %v303 = vld [vmem:[#allocation2 + $0x150] sm:$0xff]
  %v304 = vld [vmem:[#allocation2 + $0x158] sm:$0xff]
  %v305 = vld [vmem:[#allocation2 + $0x168] sm:$0xff]
  %v306 = vld [vmem:[#allocation2 + $0x170] sm:$0xff]
  %v307 = vld [vmem:[#allocation2 + $0x1b0] sm:$0xff]
  %v308 = vld [vmem:[#allocation2 + $0x1b8] sm:$0xff]
  %v309 = vld [vmem:[#allocation2 + $0x1c8] sm:$0xff]
  %v310 = vld [vmem:[#allocation2 + $0x1d0] sm:$0xff]
  %v311 = vld [vmem:[#allocation2 + $0x1e0] sm:$0xff]
  %v312 = vld [vmem:[#allocation2 + $0x1e8] sm:$0xff]
  %v313 = vld [vmem:[#allocation2 + $0x1f8] sm:$0xff]
  %v314 = vld [vmem:[#allocation2 + $0x200] sm:$0xff]
  %v315 = vld [vmem:[#allocation2 + $0x210] sm:$0xff]
  %v316 = vld [vmem:[#allocation2 + $0x218] sm:$0xff]
  %v317 = vld [vmem:[#allocation2 + $0x228] sm:$0xff]
  %v318 = vld [vmem:[#allocation2 + $0x230] sm:$0xff]
  %v319 = vld [vmem:[#allocation2 + $0x240] sm:$0xff]
  %v320 = vld [vmem:[#allocation2 + $0x248] sm:$0xff]
  %v321 = vld [vmem:[#allocation2 + $0x258] sm:$0xff]
  %v322 = vld [vmem:[#allocation2 + $0x260] sm:$0xff]
  %v323 = vld [vmem:[#allocation2 + $0x270] sm:$0xff]
  %v324 = vld [vmem:[#allocation2 + $0x278] sm:$0xff]
  %v325 = vld [vmem:[#allocation2 + $0x288] sm:$0xff]
  %v326 = vld [vmem:[#allocation2 + $0x290] sm:$0xff]
  %v327 = vld [vmem:[#allocation2 + $0x2a0] sm:$0xff]
  %v328 = vld [vmem:[#allocation2 + $0x2a8] sm:$0xff]
  %v329 = vld [vmem:[#allocation2 + $0x2b8] sm:$0xff]
  %v330 = vld [vmem:[#allocation2 + $0x2c0] sm:$0xff]
  %v331 = vld [vmem:[#allocation2 + $0x2d0] sm:$0xff]
  %v332 = vld [vmem:[#allocation2 + $0x2d8] sm:$0xff]
  %v333 = vld [vmem:[#allocation2 + $0x2e8] sm:$0xff]
  %v334 = vld [vmem:[#allocation2 + $0x2f0] sm:$0xff]
  %v335 = vld [vmem:[#allocation2 + $0x300] sm:$0xff]
  %v336 = vld [vmem:[#allocation2 + $0x308] sm:$0xff]
  %v337 = vld [vmem:[#allocation2 + $0x318] sm:$0xff]
  %v338 = vld [vmem:[#allocation2 + $0x320] sm:$0xff]
  %v339 = vpack.c.bf16 %v275, %v275
  %v340 = vpack.c.bf16 %v276, %v276
  %v341 = vpack.c.bf16 %v277, %v277
  %v342 = vpack.c.bf16 %v278, %v278
  %v343 = vpack.c.bf16 %v279, %v279
  %v344 = vpack.c.bf16 %v280, %v280
  %v345 = vpack.c.bf16 %v281, %v281
  %v346 = vpack.c.bf16 %v282, %v282
  %v347 = vpack.c.bf16 %v283, %v283
  %v348 = vpack.c.bf16 %v284, %v284
  %v349 = vpack.c.bf16 %v285, %v285
  %v350 = vpack.c.bf16 %v286, %v286
  %v351 = vpack.c.bf16 %v287, %v287
  %v352 = vpack.c.bf16 %v288, %v288
  %v353 = vpack.c.bf16 %v289, %v289
  %v354 = vpack.c.bf16 %v290, %v290
  %v355 = vpack.c.bf16 %v291, %v291
  %v356 = vpack.c.bf16 %v292, %v292
  %v357 = vpack.c.bf16 %v293, %v293
  %v358 = vpack.c.bf16 %v294, %v294
  %v359 = vpack.c.bf16 %v295, %v295
  %v360 = vpack.c.bf16 %v296, %v296
  %v361 = vpack.c.bf16 %v297, %v297
  %v362 = vpack.c.bf16 %v298, %v298
  %v363 = vpack.c.bf16 %v299, %v299
  %v364 = vpack.c.bf16 %v300, %v300
  %v365 = vpack.c.bf16 %v301, %v301
  %v366 = vpack.c.bf16 %v302, %v302
  %v367 = vpack.c.bf16 %v303, %v303
  %v368 = vpack.c.bf16 %v304, %v304
  %v369 = vpack.c.bf16 %v305, %v305
  %v370 = vpack.c.bf16 %v306, %v306
  %v371 = vpack.c.bf16 %v307, %v307
  %v372 = vpack.c.bf16 %v308, %v308
  %v373 = vpack.c.bf16 %v309, %v309
  %v374 = vpack.c.bf16 %v310, %v310
  %v375 = vpack.c.bf16 %v311, %v311
  %v376 = vpack.c.bf16 %v312, %v312
  %v377 = vpack.c.bf16 %v313, %v313
  %v378 = vpack.c.bf16 %v314, %v314
  %v379 = vpack.c.bf16 %v315, %v315
  %v380 = vpack.c.bf16 %v316, %v316
  %v381 = vpack.c.bf16 %v317, %v317
  %v382 = vpack.c.bf16 %v318, %v318
  %v383 = vpack.c.bf16 %v319, %v319
  %v384 = vpack.c.bf16 %v320, %v320
  %v385 = vpack.c.bf16 %v321, %v321
  %v386 = vpack.c.bf16 %v322, %v322
  %v387 = vpack.c.bf16 %v323, %v323
  %v388 = vpack.c.bf16 %v324, %v324
  %v389 = vpack.c.bf16 %v325, %v325
  %v390 = vpack.c.bf16 %v326, %v326
  %v391 = vpack.c.bf16 %v327, %v327
  %v392 = vpack.c.bf16 %v328, %v328
  %v393 = vpack.c.bf16 %v329, %v329
  %v394 = vpack.c.bf16 %v330, %v330
  %v395 = vpack.c.bf16 %v331, %v331
  %v396 = vpack.c.bf16 %v332, %v332
  %v397 = vpack.c.bf16 %v333, %v333
  %v398 = vpack.c.bf16 %v334, %v334
  %v399 = vpack.c.bf16 %v335, %v335
  %v400 = vpack.c.bf16 %v336, %v336
  %v401 = vpack.c.bf16 %v337, %v337
  %v402 = vpack.c.bf16 %v338, %v338
  %vm403 = vcmask 27648
  %404 = vst.msk [vmem:[#allocation3] sm:$0xf] %vm403, %v339
  %405 = vst.msk [vmem:[#allocation3 + $0x4] sm:$0xf] %vm403, %v340
  %406 = vst.msk [vmem:[#allocation3 + $0x8] sm:$0xf] %vm403, %v341
  %407 = vst.msk [vmem:[#allocation3 + $0xc] sm:$0xf] %vm403, %v342
  %408 = vst.msk [vmem:[#allocation3 + $0x10] sm:$0xf] %vm403, %v343
  %409 = vst.msk [vmem:[#allocation3 + $0x14] sm:$0xf] %vm403, %v344
  %410 = vst.msk [vmem:[#allocation3 + $0x18] sm:$0xf] %vm403, %v345
  %411 = vst.msk [vmem:[#allocation3 + $0x1c] sm:$0xf] %vm403, %v346
  %412 = vst.msk [vmem:[#allocation3 + $0x20] sm:$0xf] %vm403, %v347
  %413 = vst.msk [vmem:[#allocation3 + $0x24] sm:$0xf] %vm403, %v348
  %414 = vst.msk [vmem:[#allocation3 + $0x28] sm:$0xf] %vm403, %v349
  %415 = vst.msk [vmem:[#allocation3 + $0x2c] sm:$0xf] %vm403, %v350
  %416 = vst.msk [vmem:[#allocation3 + $0x30] sm:$0xf] %vm403, %v351
  %417 = vst.msk [vmem:[#allocation3 + $0x34] sm:$0xf] %vm403, %v352
  %418 = vst.msk [vmem:[#allocation3 + $0x38] sm:$0xf] %vm403, %v353
  %419 = vst.msk [vmem:[#allocation3 + $0x3c] sm:$0xf] %vm403, %v354
  %420 = vst.msk [vmem:[#allocation3 + $0x40] sm:$0xf] %vm403, %v355
  %421 = vst.msk [vmem:[#allocation3 + $0x44] sm:$0xf] %vm403, %v356
  %422 = vst.msk [vmem:[#allocation3 + $0x48] sm:$0xf] %vm403, %v357
  %423 = vst.msk [vmem:[#allocation3 + $0x4c] sm:$0xf] %vm403, %v358
  %424 = vst.msk [vmem:[#allocation3 + $0x50] sm:$0xf] %vm403, %v359
  %425 = vst.msk [vmem:[#allocation3 + $0x54] sm:$0xf] %vm403, %v360
  %426 = vst.msk [vmem:[#allocation3 + $0x58] sm:$0xf] %vm403, %v361
  %427 = vst.msk [vmem:[#allocation3 + $0x5c] sm:$0xf] %vm403, %v362
  %428 = vst.msk [vmem:[#allocation3 + $0x60] sm:$0xf] %vm403, %v363
  %429 = vst.msk [vmem:[#allocation3 + $0x64] sm:$0xf] %vm403, %v364
  %430 = vst.msk [vmem:[#allocation3 + $0x68] sm:$0xf] %vm403, %v365
  %431 = vst.msk [vmem:[#allocation3 + $0x6c] sm:$0xf] %vm403, %v366
  %432 = vst.msk [vmem:[#allocation3 + $0x70] sm:$0xf] %vm403, %v367
  %433 = vst.msk [vmem:[#allocation3 + $0x74] sm:$0xf] %vm403, %v368
  %434 = vst.msk [vmem:[#allocation3 + $0x78] sm:$0xf] %vm403, %v369
  %435 = vst.msk [vmem:[#allocation3 + $0x7c] sm:$0xf] %vm403, %v370
  %436 = vst.msk [vmem:[#allocation3 + $0x80] sm:$0xf] %vm403, %v371
  %437 = vst.msk [vmem:[#allocation3 + $0x84] sm:$0xf] %vm403, %v372
  %438 = vst.msk [vmem:[#allocation3 + $0x88] sm:$0xf] %vm403, %v373
  %439 = vst.msk [vmem:[#allocation3 + $0x8c] sm:$0xf] %vm403, %v374
  %440 = vst.msk [vmem:[#allocation3 + $0x90] sm:$0xf] %vm403, %v375
  %441 = vst.msk [vmem:[#allocation3 + $0x94] sm:$0xf] %vm403, %v376
  %442 = vst.msk [vmem:[#allocation3 + $0x98] sm:$0xf] %vm403, %v377
  %443 = vst.msk [vmem:[#allocation3 + $0x9c] sm:$0xf] %vm403, %v378
  %444 = vst.msk [vmem:[#allocation3 + $0xa0] sm:$0xf] %vm403, %v379
  %445 = vst.msk [vmem:[#allocation3 + $0xa4] sm:$0xf] %vm403, %v380
  %446 = vst.msk [vmem:[#allocation3 + $0xa8] sm:$0xf] %vm403, %v381
  %447 = vst.msk [vmem:[#allocation3 + $0xac] sm:$0xf] %vm403, %v382
  %448 = vst.msk [vmem:[#allocation3 + $0xb0] sm:$0xf] %vm403, %v383
  %449 = vst.msk [vmem:[#allocation3 + $0xb4] sm:$0xf] %vm403, %v384
  %450 = vst.msk [vmem:[#allocation3 + $0xb8] sm:$0xf] %vm403, %v385
  %451 = vst.msk [vmem:[#allocation3 + $0xbc] sm:$0xf] %vm403, %v386
  %452 = vst.msk [vmem:[#allocation3 + $0xc0] sm:$0xf] %vm403, %v387
  %453 = vst.msk [vmem:[#allocation3 + $0xc4] sm:$0xf] %vm403, %v388
  %454 = vst.msk [vmem:[#allocation3 + $0xc8] sm:$0xf] %vm403, %v389
  %455 = vst.msk [vmem:[#allocation3 + $0xcc] sm:$0xf] %vm403, %v390
  %456 = vst.msk [vmem:[#allocation3 + $0xd0] sm:$0xf] %vm403, %v391
  %457 = vst.msk [vmem:[#allocation3 + $0xd4] sm:$0xf] %vm403, %v392
  %458 = vst.msk [vmem:[#allocation3 + $0xd8] sm:$0xf] %vm403, %v393
  %459 = vst.msk [vmem:[#allocation3 + $0xdc] sm:$0xf] %vm403, %v394
  %460 = vst.msk [vmem:[#allocation3 + $0xe0] sm:$0xf] %vm403, %v395
  %461 = vst.msk [vmem:[#allocation3 + $0xe4] sm:$0xf] %vm403, %v396
  %462 = vst.msk [vmem:[#allocation3 + $0xe8] sm:$0xf] %vm403, %v397
  %463 = vst.msk [vmem:[#allocation3 + $0xec] sm:$0xf] %vm403, %v398
  %464 = vst.msk [vmem:[#allocation3 + $0xf0] sm:$0xf] %vm403, %v399
  %465 = vst.msk [vmem:[#allocation3 + $0xf4] sm:$0xf] %vm403, %v400
  %466 = vst.msk [vmem:[#allocation3 + $0xf8] sm:$0xf] %vm403, %v401
  %467 = vst.msk [vmem:[#allocation3 + $0xfc] sm:$0xf] %vm403, %v402
  %v468 = vld [vmem:[#allocation2 + $0x1] sm:$0xff]
  %v469 = vld [vmem:[#allocation2 + $0x9] sm:$0xff]
  %v470 = vld [vmem:[#allocation2 + $0x19] sm:$0xff]
  %v471 = vld [vmem:[#allocation2 + $0x21] sm:$0xff]
  %v472 = vld [vmem:[#allocation2 + $0x31] sm:$0xff]
  %v473 = vld [vmem:[#allocation2 + $0x39] sm:$0xff]
  %v474 = vld [vmem:[#allocation2 + $0x49] sm:$0xff]
  %v475 = vld [vmem:[#allocation2 + $0x51] sm:$0xff]
  %v476 = vld [vmem:[#allocation2 + $0x61] sm:$0xff]
  %v477 = vld [vmem:[#allocation2 + $0x69] sm:$0xff]
  %v478 = vld [vmem:[#allocation2 + $0x79] sm:$0xff]
  %v479 = vld [vmem:[#allocation2 + $0x81] sm:$0xff]
  %v480 = vld [vmem:[#allocation2 + $0x91] sm:$0xff]
  %v481 = vld [vmem:[#allocation2 + $0x99] sm:$0xff]
  %v482 = vld [vmem:[#allocation2 + $0xa9] sm:$0xff]
  %v483 = vld [vmem:[#allocation2 + $0xb1] sm:$0xff]
  %v484 = vld [vmem:[#allocation2 + $0xc1] sm:$0xff]
  %v485 = vld [vmem:[#allocation2 + $0xc9] sm:$0xff]
  %v486 = vld [vmem:[#allocation2 + $0xd9] sm:$0xff]
  %v487 = vld [vmem:[#allocation2 + $0xe1] sm:$0xff]
  %v488 = vld [vmem:[#allocation2 + $0xf1] sm:$0xff]
  %v489 = vld [vmem:[#allocation2 + $0xf9] sm:$0xff]
  %v490 = vld [vmem:[#allocation2 + $0x109] sm:$0xff]
  %v491 = vld [vmem:[#allocation2 + $0x111] sm:$0xff]
  %v492 = vld [vmem:[#allocation2 + $0x121] sm:$0xff]
  %v493 = vld [vmem:[#allocation2 + $0x129] sm:$0xff]
  %v494 = vld [vmem:[#allocation2 + $0x139] sm:$0xff]
  %v495 = vld [vmem:[#allocation2 + $0x141] sm:$0xff]
  %v496 = vld [vmem:[#allocation2 + $0x151] sm:$0xff]
  %v497 = vld [vmem:[#allocation2 + $0x159] sm:$0xff]
  %v498 = vld [vmem:[#allocation2 + $0x169] sm:$0xff]
  %v499 = vld [vmem:[#allocation2 + $0x171] sm:$0xff]
  %v500 = vld [vmem:[#allocation2 + $0x1b1] sm:$0xff]
  %v501 = vld [vmem:[#allocation2 + $0x1b9] sm:$0xff]
  %v502 = vld [vmem:[#allocation2 + $0x1c9] sm:$0xff]
  %v503 = vld [vmem:[#allocation2 + $0x1d1] sm:$0xff]
  %v504 = vld [vmem:[#allocation2 + $0x1e1] sm:$0xff]
  %v505 = vld [vmem:[#allocation2 + $0x1e9] sm:$0xff]
  %v506 = vld [vmem:[#allocation2 + $0x1f9] sm:$0xff]
  %v507 = vld [vmem:[#allocation2 + $0x201] sm:$0xff]
  %v508 = vld [vmem:[#allocation2 + $0x211] sm:$0xff]
  %v509 = vld [vmem:[#allocation2 + $0x219] sm:$0xff]
  %v510 = vld [vmem:[#allocation2 + $0x229] sm:$0xff]
  %v511 = vld [vmem:[#allocation2 + $0x231] sm:$0xff]
  %v512 = vld [vmem:[#allocation2 + $0x241] sm:$0xff]
  %v513 = vld [vmem:[#allocation2 + $0x249] sm:$0xff]
  %v514 = vld [vmem:[#allocation2 + $0x259] sm:$0xff]
  %v515 = vld [vmem:[#allocation2 + $0x261] sm:$0xff]
  %v516 = vld [vmem:[#allocation2 + $0x271] sm:$0xff]
  %v517 = vld [vmem:[#allocation2 + $0x279] sm:$0xff]
  %v518 = vld [vmem:[#allocation2 + $0x289] sm:$0xff]
  %v519 = vld [vmem:[#allocation2 + $0x291] sm:$0xff]
  %v520 = vld [vmem:[#allocation2 + $0x2a1] sm:$0xff]
  %v521 = vld [vmem:[#allocation2 + $0x2a9] sm:$0xff]
  %v522 = vld [vmem:[#allocation2 + $0x2b9] sm:$0xff]
  %v523 = vld [vmem:[#allocation2 + $0x2c1] sm:$0xff]
  %v524 = vld [vmem:[#allocation2 + $0x2d1] sm:$0xff]
  %v525 = vld [vmem:[#allocation2 + $0x2d9] sm:$0xff]
  %v526 = vld [vmem:[#allocation2 + $0x2e9] sm:$0xff]
  %v527 = vld [vmem:[#allocation2 + $0x2f1] sm:$0xff]
  %v528 = vld [vmem:[#allocation2 + $0x301] sm:$0xff]
  %v529 = vld [vmem:[#allocation2 + $0x309] sm:$0xff]
  %v530 = vld [vmem:[#allocation2 + $0x319] sm:$0xff]
  %v531 = vld [vmem:[#allocation2 + $0x321] sm:$0xff]
  %v532 = vpack.c.bf16 %v468, %v468
  %v533 = vpack.c.bf16 %v469, %v469
  %v534 = vpack.c.bf16 %v470, %v470
  %v535 = vpack.c.bf16 %v471, %v471
  %v536 = vpack.c.bf16 %v472, %v472
  %v537 = vpack.c.bf16 %v473, %v473
  %v538 = vpack.c.bf16 %v474, %v474
  %v539 = vpack.c.bf16 %v475, %v475
  %v540 = vpack.c.bf16 %v476, %v476
  %v541 = vpack.c.bf16 %v477, %v477
  %v542 = vpack.c.bf16 %v478, %v478
  %v543 = vpack.c.bf16 %v479, %v479
  %v544 = vpack.c.bf16 %v480, %v480
  %v545 = vpack.c.bf16 %v481, %v481
  %v546 = vpack.c.bf16 %v482, %v482
  %v547 = vpack.c.bf16 %v483, %v483
  %v548 = vpack.c.bf16 %v484, %v484
  %v549 = vpack.c.bf16 %v485, %v485
  %v550 = vpack.c.bf16 %v486, %v486
  %v551 = vpack.c.bf16 %v487, %v487
  %v552 = vpack.c.bf16 %v488, %v488
  %v553 = vpack.c.bf16 %v489, %v489
  %v554 = vpack.c.bf16 %v490, %v490
  %v555 = vpack.c.bf16 %v491, %v491
  %v556 = vpack.c.bf16 %v492, %v492
  %v557 = vpack.c.bf16 %v493, %v493
  %v558 = vpack.c.bf16 %v494, %v494
  %v559 = vpack.c.bf16 %v495, %v495
  %v560 = vpack.c.bf16 %v496, %v496
  %v561 = vpack.c.bf16 %v497, %v497
  %v562 = vpack.c.bf16 %v498, %v498
  %v563 = vpack.c.bf16 %v499, %v499
  %v564 = vpack.c.bf16 %v500, %v500
  %v565 = vpack.c.bf16 %v501, %v501
  %v566 = vpack.c.bf16 %v502, %v502
  %v567 = vpack.c.bf16 %v503, %v503
  %v568 = vpack.c.bf16 %v504, %v504
  %v569 = vpack.c.bf16 %v505, %v505
  %v570 = vpack.c.bf16 %v506, %v506
  %v571 = vpack.c.bf16 %v507, %v507
  %v572 = vpack.c.bf16 %v508, %v508
  %v573 = vpack.c.bf16 %v509, %v509
  %v574 = vpack.c.bf16 %v510, %v510
  %v575 = vpack.c.bf16 %v511, %v511
  %v576 = vpack.c.bf16 %v512, %v512
  %v577 = vpack.c.bf16 %v513, %v513
  %v578 = vpack.c.bf16 %v514, %v514
  %v579 = vpack.c.bf16 %v515, %v515
  %v580 = vpack.c.bf16 %v516, %v516
  %v581 = vpack.c.bf16 %v517, %v517
  %v582 = vpack.c.bf16 %v518, %v518
  %v583 = vpack.c.bf16 %v519, %v519
  %v584 = vpack.c.bf16 %v520, %v520
  %v585 = vpack.c.bf16 %v521, %v521
  %v586 = vpack.c.bf16 %v522, %v522
  %v587 = vpack.c.bf16 %v523, %v523
  %v588 = vpack.c.bf16 %v524, %v524
  %v589 = vpack.c.bf16 %v525, %v525
  %v590 = vpack.c.bf16 %v526, %v526
  %v591 = vpack.c.bf16 %v527, %v527
  %v592 = vpack.c.bf16 %v528, %v528
  %v593 = vpack.c.bf16 %v529, %v529
  %v594 = vpack.c.bf16 %v530, %v530
  %v595 = vpack.c.bf16 %v531, %v531
  %660 = vrot.lane.b32.xlu0 %v532, 4
  %v661 = vpop.permute.xlu0 %660
  %662 = vrot.lane.b32.xlu0 %v533, 4
  %v663 = vpop.permute.xlu0 %662
  %664 = vrot.lane.b32.xlu0 %v534, 4
  %v665 = vpop.permute.xlu0 %664
  %666 = vrot.lane.b32.xlu0 %v535, 4
  %v667 = vpop.permute.xlu0 %666
  %668 = vrot.lane.b32.xlu0 %v536, 4
  %v669 = vpop.permute.xlu0 %668
  %670 = vrot.lane.b32.xlu0 %v537, 4
  %v671 = vpop.permute.xlu0 %670
  %672 = vrot.lane.b32.xlu0 %v538, 4
  %v673 = vpop.permute.xlu0 %672
  %674 = vrot.lane.b32.xlu0 %v539, 4
  %v675 = vpop.permute.xlu0 %674
  %676 = vrot.lane.b32.xlu0 %v540, 4
  %v677 = vpop.permute.xlu0 %676
  %678 = vrot.lane.b32.xlu0 %v541, 4
  %v679 = vpop.permute.xlu0 %678
  %680 = vrot.lane.b32.xlu0 %v542, 4
  %v681 = vpop.permute.xlu0 %680
  %682 = vrot.lane.b32.xlu0 %v543, 4
  %v683 = vpop.permute.xlu0 %682
  %684 = vrot.lane.b32.xlu0 %v544, 4
  %v685 = vpop.permute.xlu0 %684
  %686 = vrot.lane.b32.xlu0 %v545, 4
  %v687 = vpop.permute.xlu0 %686
  %688 = vrot.lane.b32.xlu0 %v546, 4
  %v689 = vpop.permute.xlu0 %688
  %690 = vrot.lane.b32.xlu0 %v547, 4
  %v691 = vpop.permute.xlu0 %690
  %692 = vrot.lane.b32.xlu0 %v548, 4
  %v693 = vpop.permute.xlu0 %692
  %694 = vrot.lane.b32.xlu0 %v549, 4
  %v695 = vpop.permute.xlu0 %694
  %696 = vrot.lane.b32.xlu0 %v550, 4
  %v697 = vpop.permute.xlu0 %696
  %698 = vrot.lane.b32.xlu0 %v551, 4
  %v699 = vpop.permute.xlu0 %698
  %700 = vrot.lane.b32.xlu0 %v552, 4
  %v701 = vpop.permute.xlu0 %700
  %702 = vrot.lane.b32.xlu0 %v553, 4
  %v703 = vpop.permute.xlu0 %702
  %704 = vrot.lane.b32.xlu0 %v554, 4
  %v705 = vpop.permute.xlu0 %704
  %706 = vrot.lane.b32.xlu0 %v555, 4
  %v707 = vpop.permute.xlu0 %706
  %708 = vrot.lane.b32.xlu0 %v556, 4
  %v709 = vpop.permute.xlu0 %708
  %710 = vrot.lane.b32.xlu0 %v557, 4
  %v711 = vpop.permute.xlu0 %710
  %712 = vrot.lane.b32.xlu0 %v558, 4
  %v713 = vpop.permute.xlu0 %712
  %714 = vrot.lane.b32.xlu0 %v559, 4
  %v715 = vpop.permute.xlu0 %714
  %716 = vrot.lane.b32.xlu0 %v560, 4
  %v717 = vpop.permute.xlu0 %716
  %718 = vrot.lane.b32.xlu0 %v561, 4
  %v719 = vpop.permute.xlu0 %718
  %720 = vrot.lane.b32.xlu0 %v562, 4
  %v721 = vpop.permute.xlu0 %720
  %722 = vrot.lane.b32.xlu0 %v563, 4
  %v723 = vpop.permute.xlu0 %722
  %724 = vrot.lane.b32.xlu0 %v564, 4
  %v725 = vpop.permute.xlu0 %724
  %726 = vrot.lane.b32.xlu0 %v565, 4
  %v727 = vpop.permute.xlu0 %726
  %728 = vrot.lane.b32.xlu0 %v566, 4
  %v729 = vpop.permute.xlu0 %728
  %730 = vrot.lane.b32.xlu0 %v567, 4
  %v731 = vpop.permute.xlu0 %730
  %732 = vrot.lane.b32.xlu0 %v568, 4
  %v733 = vpop.permute.xlu0 %732
  %734 = vrot.lane.b32.xlu0 %v569, 4
  %v735 = vpop.permute.xlu0 %734
  %736 = vrot.lane.b32.xlu0 %v570, 4
  %v737 = vpop.permute.xlu0 %736
  %738 = vrot.lane.b32.xlu0 %v571, 4
  %v739 = vpop.permute.xlu0 %738
  %740 = vrot.lane.b32.xlu0 %v572, 4
  %v741 = vpop.permute.xlu0 %740
  %742 = vrot.lane.b32.xlu0 %v573, 4
  %v743 = vpop.permute.xlu0 %742
  %744 = vrot.lane.b32.xlu0 %v574, 4
  %v745 = vpop.permute.xlu0 %744
  %746 = vrot.lane.b32.xlu0 %v575, 4
  %v747 = vpop.permute.xlu0 %746
  %748 = vrot.lane.b32.xlu0 %v576, 4
  %v749 = vpop.permute.xlu0 %748
  %750 = vrot.lane.b32.xlu0 %v577, 4
  %v751 = vpop.permute.xlu0 %750
  %752 = vrot.lane.b32.xlu0 %v578, 4
  %v753 = vpop.permute.xlu0 %752
  %754 = vrot.lane.b32.xlu0 %v579, 4
  %v755 = vpop.permute.xlu0 %754
  %756 = vrot.lane.b32.xlu0 %v580, 4
  %v757 = vpop.permute.xlu0 %756
  %758 = vrot.lane.b32.xlu0 %v581, 4
  %v759 = vpop.permute.xlu0 %758
  %760 = vrot.lane.b32.xlu0 %v582, 4
  %v761 = vpop.permute.xlu0 %760
  %762 = vrot.lane.b32.xlu0 %v583, 4
  %v763 = vpop.permute.xlu0 %762
  %764 = vrot.lane.b32.xlu0 %v584, 4
  %v765 = vpop.permute.xlu0 %764
  %766 = vrot.lane.b32.xlu0 %v585, 4
  %v767 = vpop.permute.xlu0 %766
  %768 = vrot.lane.b32.xlu0 %v586, 4
  %v769 = vpop.permute.xlu0 %768
  %770 = vrot.lane.b32.xlu0 %v587, 4
  %v771 = vpop.permute.xlu0 %770
  %772 = vrot.lane.b32.xlu0 %v588, 4
  %v773 = vpop.permute.xlu0 %772
  %774 = vrot.lane.b32.xlu0 %v589, 4
  %v775 = vpop.permute.xlu0 %774
  %776 = vrot.lane.b32.xlu0 %v590, 4
  %v777 = vpop.permute.xlu0 %776
  %778 = vrot.lane.b32.xlu0 %v591, 4
  %v779 = vpop.permute.xlu0 %778
  %780 = vrot.lane.b32.xlu0 %v592, 4
  %v781 = vpop.permute.xlu0 %780
  %782 = vrot.lane.b32.xlu0 %v593, 4
  %v783 = vpop.permute.xlu0 %782
  %784 = vrot.lane.b32.xlu0 %v594, 4
  %v785 = vpop.permute.xlu0 %784
  %786 = vrot.lane.b32.xlu0 %v595, 4
  %v787 = vpop.permute.xlu0 %786
  %vm852 = vcmask 60448
  %853 = vst.msk [vmem:[#allocation3] sm:$0xf] %vm852, %v661
  %854 = vst.msk [vmem:[#allocation3 + $0x4] sm:$0xf] %vm852, %v663
  %855 = vst.msk [vmem:[#allocation3 + $0x8] sm:$0xf] %vm852, %v665
  %856 = vst.msk [vmem:[#allocation3 + $0xc] sm:$0xf] %vm852, %v667
  %857 = vst.msk [vmem:[#allocation3 + $0x10] sm:$0xf] %vm852, %v669
  %858 = vst.msk [vmem:[#allocation3 + $0x14] sm:$0xf] %vm852, %v671
  %859 = vst.msk [vmem:[#allocation3 + $0x18] sm:$0xf] %vm852, %v673
  %860 = vst.msk [vmem:[#allocation3 + $0x1c] sm:$0xf] %vm852, %v675
  %861 = vst.msk [vmem:[#allocation3 + $0x20] sm:$0xf] %vm852, %v677
  %862 = vst.msk [vmem:[#allocation3 + $0x24] sm:$0xf] %vm852, %v679
  %863 = vst.msk [vmem:[#allocation3 + $0x28] sm:$0xf] %vm852, %v681
  %864 = vst.msk [vmem:[#allocation3 + $0x2c] sm:$0xf] %vm852, %v683
  %865 = vst.msk [vmem:[#allocation3 + $0x30] sm:$0xf] %vm852, %v685
  %866 = vst.msk [vmem:[#allocation3 + $0x34] sm:$0xf] %vm852, %v687
  %867 = vst.msk [vmem:[#allocation3 + $0x38] sm:$0xf] %vm852, %v689
  %868 = vst.msk [vmem:[#allocation3 + $0x3c] sm:$0xf] %vm852, %v691
  %869 = vst.msk [vmem:[#allocation3 + $0x40] sm:$0xf] %vm852, %v693
  %870 = vst.msk [vmem:[#allocation3 + $0x44] sm:$0xf] %vm852, %v695
  %871 = vst.msk [vmem:[#allocation3 + $0x48] sm:$0xf] %vm852, %v697
  %872 = vst.msk [vmem:[#allocation3 + $0x4c] sm:$0xf] %vm852, %v699
  %873 = vst.msk [vmem:[#allocation3 + $0x50] sm:$0xf] %vm852, %v701
  %874 = vst.msk [vmem:[#allocation3 + $0x54] sm:$0xf] %vm852, %v703
  %875 = vst.msk [vmem:[#allocation3 + $0x58] sm:$0xf] %vm852, %v705
  %876 = vst.msk [vmem:[#allocation3 + $0x5c] sm:$0xf] %vm852, %v707
  %877 = vst.msk [vmem:[#allocation3 + $0x60] sm:$0xf] %vm852, %v709
  %878 = vst.msk [vmem:[#allocation3 + $0x64] sm:$0xf] %vm852, %v711
  %879 = vst.msk [vmem:[#allocation3 + $0x68] sm:$0xf] %vm852, %v713
  %880 = vst.msk [vmem:[#allocation3 + $0x6c] sm:$0xf] %vm852, %v715
  %881 = vst.msk [vmem:[#allocation3 + $0x70] sm:$0xf] %vm852, %v717
  %882 = vst.msk [vmem:[#allocation3 + $0x74] sm:$0xf] %vm852, %v719
  %883 = vst.msk [vmem:[#allocation3 + $0x78] sm:$0xf] %vm852, %v721
  %884 = vst.msk [vmem:[#allocation3 + $0x7c] sm:$0xf] %vm852, %v723
  %885 = vst.msk [vmem:[#allocation3 + $0x80] sm:$0xf] %vm852, %v725
  %886 = vst.msk [vmem:[#allocation3 + $0x84] sm:$0xf] %vm852, %v727
  %887 = vst.msk [vmem:[#allocation3 + $0x88] sm:$0xf] %vm852, %v729
  %888 = vst.msk [vmem:[#allocation3 + $0x8c] sm:$0xf] %vm852, %v731
  %889 = vst.msk [vmem:[#allocation3 + $0x90] sm:$0xf] %vm852, %v733
  %890 = vst.msk [vmem:[#allocation3 + $0x94] sm:$0xf] %vm852, %v735
  %891 = vst.msk [vmem:[#allocation3 + $0x98] sm:$0xf] %vm852, %v737
  %892 = vst.msk [vmem:[#allocation3 + $0x9c] sm:$0xf] %vm852, %v739
  %893 = vst.msk [vmem:[#allocation3 + $0xa0] sm:$0xf] %vm852, %v741
  %894 = vst.msk [vmem:[#allocation3 + $0xa4] sm:$0xf] %vm852, %v743
  %895 = vst.msk [vmem:[#allocation3 + $0xa8] sm:$0xf] %vm852, %v745
  %896 = vst.msk [vmem:[#allocation3 + $0xac] sm:$0xf] %vm852, %v747
  %897 = vst.msk [vmem:[#allocation3 + $0xb0] sm:$0xf] %vm852, %v749
  %898 = vst.msk [vmem:[#allocation3 + $0xb4] sm:$0xf] %vm852, %v751
  %899 = vst.msk [vmem:[#allocation3 + $0xb8] sm:$0xf] %vm852, %v753
  %900 = vst.msk [vmem:[#allocation3 + $0xbc] sm:$0xf] %vm852, %v755
  %901 = vst.msk [vmem:[#allocation3 + $0xc0] sm:$0xf] %vm852, %v757
  %902 = vst.msk [vmem:[#allocation3 + $0xc4] sm:$0xf] %vm852, %v759
  %903 = vst.msk [vmem:[#allocation3 + $0xc8] sm:$0xf] %vm852, %v761
  %904 = vst.msk [vmem:[#allocation3 + $0xcc] sm:$0xf] %vm852, %v763
  %905 = vst.msk [vmem:[#allocation3 + $0xd0] sm:$0xf] %vm852, %v765
  %906 = vst.msk [vmem:[#allocation3 + $0xd4] sm:$0xf] %vm852, %v767
  %907 = vst.msk [vmem:[#allocation3 + $0xd8] sm:$0xf] %vm852, %v769
  %908 = vst.msk [vmem:[#allocation3 + $0xdc] sm:$0xf] %vm852, %v771
  %909 = vst.msk [vmem:[#allocation3 + $0xe0] sm:$0xf] %vm852, %v773
  %910 = vst.msk [vmem:[#allocation3 + $0xe4] sm:$0xf] %vm852, %v775
  %911 = vst.msk [vmem:[#allocation3 + $0xe8] sm:$0xf] %vm852, %v777
  %912 = vst.msk [vmem:[#allocation3 + $0xec] sm:$0xf] %vm852, %v779
  %913 = vst.msk [vmem:[#allocation3 + $0xf0] sm:$0xf] %vm852, %v781
  %914 = vst.msk [vmem:[#allocation3 + $0xf4] sm:$0xf] %vm852, %v783
  %915 = vst.msk [vmem:[#allocation3 + $0xf8] sm:$0xf] %vm852, %v785
  %916 = vst.msk [vmem:[#allocation3 + $0xfc] sm:$0xf] %vm852, %v787
  %v917 = vld [vmem:[#allocation2 + $0x2] sm:$0xff]
  %v918 = vld [vmem:[#allocation2 + $0xa] sm:$0xff]
  %v919 = vld [vmem:[#allocation2 + $0x1a] sm:$0xff]
  %v920 = vld [vmem:[#allocation2 + $0x22] sm:$0xff]
  %v921 = vld [vmem:[#allocation2 + $0x32] sm:$0xff]
  %v922 = vld [vmem:[#allocation2 + $0x3a] sm:$0xff]
  %v923 = vld [vmem:[#allocation2 + $0x4a] sm:$0xff]
  %v924 = vld [vmem:[#allocation2 + $0x52] sm:$0xff]
  %v925 = vld [vmem:[#allocation2 + $0x62] sm:$0xff]
  %v926 = vld [vmem:[#allocation2 + $0x6a] sm:$0xff]
  %v927 = vld [vmem:[#allocation2 + $0x7a] sm:$0xff]
  %v928 = vld [vmem:[#allocation2 + $0x82] sm:$0xff]
  %v929 = vld [vmem:[#allocation2 + $0x92] sm:$0xff]
  %v930 = vld [vmem:[#allocation2 + $0x9a] sm:$0xff]
  %v931 = vld [vmem:[#allocation2 + $0xaa] sm:$0xff]
  %v932 = vld [vmem:[#allocation2 + $0xb2] sm:$0xff]
  %v933 = vld [vmem:[#allocation2 + $0xc2] sm:$0xff]
  %v934 = vld [vmem:[#allocation2 + $0xca] sm:$0xff]
  %v935 = vld [vmem:[#allocation2 + $0xda] sm:$0xff]
  %v936 = vld [vmem:[#allocation2 + $0xe2] sm:$0xff]
  %v937 = vld [vmem:[#allocation2 + $0xf2] sm:$0xff]
  %v938 = vld [vmem:[#allocation2 + $0xfa] sm:$0xff]
  %v939 = vld [vmem:[#allocation2 + $0x10a] sm:$0xff]
  %v940 = vld [vmem:[#allocation2 + $0x112] sm:$0xff]
  %v941 = vld [vmem:[#allocation2 + $0x122] sm:$0xff]
  %v942 = vld [vmem:[#allocation2 + $0x12a] sm:$0xff]
  %v943 = vld [vmem:[#allocation2 + $0x13a] sm:$0xff]
  %v944 = vld [vmem:[#allocation2 + $0x142] sm:$0xff]
  %v945 = vld [vmem:[#allocation2 + $0x152] sm:$0xff]
  %v946 = vld [vmem:[#allocation2 + $0x15a] sm:$0xff]
  %v947 = vld [vmem:[#allocation2 + $0x16a] sm:$0xff]
  %v948 = vld [vmem:[#allocation2 + $0x172] sm:$0xff]
  %v949 = vld [vmem:[#allocation2 + $0x1b2] sm:$0xff]
  %v950 = vld [vmem:[#allocation2 + $0x1ba] sm:$0xff]
  %v951 = vld [vmem:[#allocation2 + $0x1ca] sm:$0xff]
  %v952 = vld [vmem:[#allocation2 + $0x1d2] sm:$0xff]
  %v953 = vld [vmem:[#allocation2 + $0x1e2] sm:$0xff]
  %v954 = vld [vmem:[#allocation2 + $0x1ea] sm:$0xff]
  %v955 = vld [vmem:[#allocation2 + $0x1fa] sm:$0xff]
  %v956 = vld [vmem:[#allocation2 + $0x202] sm:$0xff]
  %v957 = vld [vmem:[#allocation2 + $0x212] sm:$0xff]
  %v958 = vld [vmem:[#allocation2 + $0x21a] sm:$0xff]
  %v959 = vld [vmem:[#allocation2 + $0x22a] sm:$0xff]
  %v960 = vld [vmem:[#allocation2 + $0x232] sm:$0xff]
  %v961 = vld [vmem:[#allocation2 + $0x242] sm:$0xff]
  %v962 = vld [vmem:[#allocation2 + $0x24a] sm:$0xff]
  %v963 = vld [vmem:[#allocation2 + $0x25a] sm:$0xff]
  %v964 = vld [vmem:[#allocation2 + $0x262] sm:$0xff]
  %v965 = vld [vmem:[#allocation2 + $0x272] sm:$0xff]
  %v966 = vld [vmem:[#allocation2 + $0x27a] sm:$0xff]
  %v967 = vld [vmem:[#allocation2 + $0x28a] sm:$0xff]
  %v968 = vld [vmem:[#allocation2 + $0x292] sm:$0xff]
  %v969 = vld [vmem:[#allocation2 + $0x2a2] sm:$0xff]
  %v970 = vld [vmem:[#allocation2 + $0x2aa] sm:$0xff]
  %v971 = vld [vmem:[#allocation2 + $0x2ba] sm:$0xff]
  %v972 = vld [vmem:[#allocation2 + $0x2c2] sm:$0xff]
  %v973 = vld [vmem:[#allocation2 + $0x2d2] sm:$0xff]
  %v974 = vld [vmem:[#allocation2 + $0x2da] sm:$0xff]
  %v975 = vld [vmem:[#allocation2 + $0x2ea] sm:$0xff]
  %v976 = vld [vmem:[#allocation2 + $0x2f2] sm:$0xff]
  %v977 = vld [vmem:[#allocation2 + $0x302] sm:$0xff]
  %v978 = vld [vmem:[#allocation2 + $0x30a] sm:$0xff]
  %v979 = vld [vmem:[#allocation2 + $0x31a] sm:$0xff]
  %v980 = vld [vmem:[#allocation2 + $0x322] sm:$0xff]
  %v981 = vpack.c.bf16 %v917, %v917
  %v982 = vpack.c.bf16 %v918, %v918
  %v983 = vpack.c.bf16 %v919, %v919
  %v984 = vpack.c.bf16 %v920, %v920
  %v985 = vpack.c.bf16 %v921, %v921
  %v986 = vpack.c.bf16 %v922, %v922
  %v987 = vpack.c.bf16 %v923, %v923
  %v988 = vpack.c.bf16 %v924, %v924
  %v989 = vpack.c.bf16 %v925, %v925
  %v990 = vpack.c.bf16 %v926, %v926
  %v991 = vpack.c.bf16 %v927, %v927
  %v992 = vpack.c.bf16 %v928, %v928
  %v993 = vpack.c.bf16 %v929, %v929
  %v994 = vpack.c.bf16 %v930, %v930
  %v995 = vpack.c.bf16 %v931, %v931
  %v996 = vpack.c.bf16 %v932, %v932
  %v997 = vpack.c.bf16 %v933, %v933
  %v998 = vpack.c.bf16 %v934, %v934
  %v999 = vpack.c.bf16 %v935, %v935
  %v1000 = vpack.c.bf16 %v936, %v936
  %v1001 = vpack.c.bf16 %v937, %v937
  %v1002 = vpack.c.bf16 %v938, %v938
  %v1003 = vpack.c.bf16 %v939, %v939
  %v1004 = vpack.c.bf16 %v940, %v940
  %v1005 = vpack.c.bf16 %v941, %v941
  %v1006 = vpack.c.bf16 %v942, %v942
  %v1007 = vpack.c.bf16 %v943, %v943
  %v1008 = vpack.c.bf16 %v944, %v944
  %v1009 = vpack.c.bf16 %v945, %v945
  %v1010 = vpack.c.bf16 %v946, %v946
  %v1011 = vpack.c.bf16 %v947, %v947
  %v1012 = vpack.c.bf16 %v948, %v948
  %v1013 = vpack.c.bf16 %v949, %v949
  %v1014 = vpack.c.bf16 %v950, %v950
  %v1015 = vpack.c.bf16 %v951, %v951
  %v1016 = vpack.c.bf16 %v952, %v952
  %v1017 = vpack.c.bf16 %v953, %v953
  %v1018 = vpack.c.bf16 %v954, %v954
  %v1019 = vpack.c.bf16 %v955, %v955
  %v1020 = vpack.c.bf16 %v956, %v956
  %v1021 = vpack.c.bf16 %v957, %v957
  %v1022 = vpack.c.bf16 %v958, %v958
  %v1023 = vpack.c.bf16 %v959, %v959
  %v1024 = vpack.c.bf16 %v960, %v960
  %v1025 = vpack.c.bf16 %v961, %v961
  %v1026 = vpack.c.bf16 %v962, %v962
  %v1027 = vpack.c.bf16 %v963, %v963
  %v1028 = vpack.c.bf16 %v964, %v964
  %v1029 = vpack.c.bf16 %v965, %v965
  %v1030 = vpack.c.bf16 %v966, %v966
  %v1031 = vpack.c.bf16 %v967, %v967
  %v1032 = vpack.c.bf16 %v968, %v968
  %v1033 = vpack.c.bf16 %v969, %v969
  %v1034 = vpack.c.bf16 %v970, %v970
  %v1035 = vpack.c.bf16 %v971, %v971
  %v1036 = vpack.c.bf16 %v972, %v972
  %v1037 = vpack.c.bf16 %v973, %v973
  %v1038 = vpack.c.bf16 %v974, %v974
  %v1039 = vpack.c.bf16 %v975, %v975
  %v1040 = vpack.c.bf16 %v976, %v976
  %v1041 = vpack.c.bf16 %v977, %v977
  %v1042 = vpack.c.bf16 %v978, %v978
  %v1043 = vpack.c.bf16 %v979, %v979
  %v1044 = vpack.c.bf16 %v980, %v980
  %1109 = vrot.lane.b32.xlu0 %v981, 8
  %v1110 = vpop.permute.xlu0 %1109
  %1111 = vrot.lane.b32.xlu0 %v982, 8
  %v1112 = vpop.permute.xlu0 %1111
  %1113 = vrot.lane.b32.xlu0 %v983, 8
  %v1114 = vpop.permute.xlu0 %1113
  %1115 = vrot.lane.b32.xlu0 %v984, 8
  %v1116 = vpop.permute.xlu0 %1115
  %1117 = vrot.lane.b32.xlu0 %v985, 8
  %v1118 = vpop.permute.xlu0 %1117
  %1119 = vrot.lane.b32.xlu0 %v986, 8
  %v1120 = vpop.permute.xlu0 %1119
  %1121 = vrot.lane.b32.xlu0 %v987, 8
  %v1122 = vpop.permute.xlu0 %1121
  %1123 = vrot.lane.b32.xlu0 %v988, 8
  %v1124 = vpop.permute.xlu0 %1123
  %1125 = vrot.lane.b32.xlu0 %v989, 8
  %v1126 = vpop.permute.xlu0 %1125
  %1127 = vrot.lane.b32.xlu0 %v990, 8
  %v1128 = vpop.permute.xlu0 %1127
  %1129 = vrot.lane.b32.xlu0 %v991, 8
  %v1130 = vpop.permute.xlu0 %1129
  %1131 = vrot.lane.b32.xlu0 %v992, 8
  %v1132 = vpop.permute.xlu0 %1131
  %1133 = vrot.lane.b32.xlu0 %v993, 8
  %v1134 = vpop.permute.xlu0 %1133
  %1135 = vrot.lane.b32.xlu0 %v994, 8
  %v1136 = vpop.permute.xlu0 %1135
  %1137 = vrot.lane.b32.xlu0 %v995, 8
  %v1138 = vpop.permute.xlu0 %1137
  %1139 = vrot.lane.b32.xlu0 %v996, 8
  %v1140 = vpop.permute.xlu0 %1139
  %1141 = vrot.lane.b32.xlu0 %v997, 8
  %v1142 = vpop.permute.xlu0 %1141
  %1143 = vrot.lane.b32.xlu0 %v998, 8
  %v1144 = vpop.permute.xlu0 %1143
  %1145 = vrot.lane.b32.xlu0 %v999, 8
  %v1146 = vpop.permute.xlu0 %1145
  %1147 = vrot.lane.b32.xlu0 %v1000, 8
  %v1148 = vpop.permute.xlu0 %1147
  %1149 = vrot.lane.b32.xlu0 %v1001, 8
  %v1150 = vpop.permute.xlu0 %1149
  %1151 = vrot.lane.b32.xlu0 %v1002, 8
  %v1152 = vpop.permute.xlu0 %1151
  %1153 = vrot.lane.b32.xlu0 %v1003, 8
  %v1154 = vpop.permute.xlu0 %1153
  %1155 = vrot.lane.b32.xlu0 %v1004, 8
  %v1156 = vpop.permute.xlu0 %1155
  %1157 = vrot.lane.b32.xlu0 %v1005, 8
  %v1158 = vpop.permute.xlu0 %1157
  %1159 = vrot.lane.b32.xlu0 %v1006, 8
  %v1160 = vpop.permute.xlu0 %1159
  %1161 = vrot.lane.b32.xlu0 %v1007, 8
  %v1162 = vpop.permute.xlu0 %1161
  %1163 = vrot.lane.b32.xlu0 %v1008, 8
  %v1164 = vpop.permute.xlu0 %1163
  %1165 = vrot.lane.b32.xlu0 %v1009, 8
  %v1166 = vpop.permute.xlu0 %1165
  %1167 = vrot.lane.b32.xlu0 %v1010, 8
  %v1168 = vpop.permute.xlu0 %1167
  %1169 = vrot.lane.b32.xlu0 %v1011, 8
  %v1170 = vpop.permute.xlu0 %1169
  %1171 = vrot.lane.b32.xlu0 %v1012, 8
  %v1172 = vpop.permute.xlu0 %1171
  %1173 = vrot.lane.b32.xlu0 %v1013, 8
  %v1174 = vpop.permute.xlu0 %1173
  %1175 = vrot.lane.b32.xlu0 %v1014, 8
  %v1176 = vpop.permute.xlu0 %1175
  %1177 = vrot.lane.b32.xlu0 %v1015, 8
  %v1178 = vpop.permute.xlu0 %1177
  %1179 = vrot.lane.b32.xlu0 %v1016, 8
  %v1180 = vpop.permute.xlu0 %1179
  %1181 = vrot.lane.b32.xlu0 %v1017, 8
  %v1182 = vpop.permute.xlu0 %1181
  %1183 = vrot.lane.b32.xlu0 %v1018, 8
  %v1184 = vpop.permute.xlu0 %1183
  %1185 = vrot.lane.b32.xlu0 %v1019, 8
  %v1186 = vpop.permute.xlu0 %1185
  %1187 = vrot.lane.b32.xlu0 %v1020, 8
  %v1188 = vpop.permute.xlu0 %1187
  %1189 = vrot.lane.b32.xlu0 %v1021, 8
  %v1190 = vpop.permute.xlu0 %1189
  %1191 = vrot.lane.b32.xlu0 %v1022, 8
  %v1192 = vpop.permute.xlu0 %1191
  %1193 = vrot.lane.b32.xlu0 %v1023, 8
  %v1194 = vpop.permute.xlu0 %1193
  %1195 = vrot.lane.b32.xlu0 %v1024, 8
  %v1196 = vpop.permute.xlu0 %1195
  %1197 = vrot.lane.b32.xlu0 %v1025, 8
  %v1198 = vpop.permute.xlu0 %1197
  %1199 = vrot.lane.b32.xlu0 %v1026, 8
  %v1200 = vpop.permute.xlu0 %1199
  %1201 = vrot.lane.b32.xlu0 %v1027, 8
  %v1202 = vpop.permute.xlu0 %1201
  %1203 = vrot.lane.b32.xlu0 %v1028, 8
  %v1204 = vpop.permute.xlu0 %1203
  %1205 = vrot.lane.b32.xlu0 %v1029, 8
  %v1206 = vpop.permute.xlu0 %1205
  %1207 = vrot.lane.b32.xlu0 %v1030, 8
  %v1208 = vpop.permute.xlu0 %1207
  %1209 = vrot.lane.b32.xlu0 %v1031, 8
  %v1210 = vpop.permute.xlu0 %1209
  %1211 = vrot.lane.b32.xlu0 %v1032, 8
  %v1212 = vpop.permute.xlu0 %1211
  %1213 = vrot.lane.b32.xlu0 %v1033, 8
  %v1214 = vpop.permute.xlu0 %1213
  %1215 = vrot.lane.b32.xlu0 %v1034, 8
  %v1216 = vpop.permute.xlu0 %1215
  %1217 = vrot.lane.b32.xlu0 %v1035, 8
  %v1218 = vpop.permute.xlu0 %1217
  %1219 = vrot.lane.b32.xlu0 %v1036, 8
  %v1220 = vpop.permute.xlu0 %1219
  %1221 = vrot.lane.b32.xlu0 %v1037, 8
  %v1222 = vpop.permute.xlu0 %1221
  %1223 = vrot.lane.b32.xlu0 %v1038, 8
  %v1224 = vpop.permute.xlu0 %1223
  %1225 = vrot.lane.b32.xlu0 %v1039, 8
  %v1226 = vpop.permute.xlu0 %1225
  %1227 = vrot.lane.b32.xlu0 %v1040, 8
  %v1228 = vpop.permute.xlu0 %1227
  %1229 = vrot.lane.b32.xlu0 %v1041, 8
  %v1230 = vpop.permute.xlu0 %1229
  %1231 = vrot.lane.b32.xlu0 %v1042, 8
  %v1232 = vpop.permute.xlu0 %1231
  %1233 = vrot.lane.b32.xlu0 %v1043, 8
  %v1234 = vpop.permute.xlu0 %1233
  %1235 = vrot.lane.b32.xlu0 %v1044, 8
  %v1236 = vpop.permute.xlu0 %1235
  %vm1301 = vcmask 93248
  %1302 = vst.msk [vmem:[#allocation3] sm:$0xf] %vm1301, %v1110
  %1303 = vst.msk [vmem:[#allocation3 + $0x4] sm:$0xf] %vm1301, %v1112
  %1304 = vst.msk [vmem:[#allocation3 + $0x8] sm:$0xf] %vm1301, %v1114
  %1305 = vst.msk [vmem:[#allocation3 + $0xc] sm:$0xf] %vm1301, %v1116
  %1306 = vst.msk [vmem:[#allocation3 + $0x10] sm:$0xf] %vm1301, %v1118
  %1307 = vst.msk [vmem:[#allocation3 + $0x14] sm:$0xf] %vm1301, %v1120
  %1308 = vst.msk [vmem:[#allocation3 + $0x18] sm:$0xf] %vm1301, %v1122
  %1309 = vst.msk [vmem:[#allocation3 + $0x1c] sm:$0xf] %vm1301, %v1124
  %1310 = vst.msk [vmem:[#allocation3 + $0x20] sm:$0xf] %vm1301, %v1126
  %1311 = vst.msk [vmem:[#allocation3 + $0x24] sm:$0xf] %vm1301, %v1128
  %1312 = vst.msk [vmem:[#allocation3 + $0x28] sm:$0xf] %vm1301, %v1130
  %1313 = vst.msk [vmem:[#allocation3 + $0x2c] sm:$0xf] %vm1301, %v1132
  %1314 = vst.msk [vmem:[#allocation3 + $0x30] sm:$0xf] %vm1301, %v1134
  %1315 = vst.msk [vmem:[#allocation3 + $0x34] sm:$0xf] %vm1301, %v1136
  %1316 = vst.msk [vmem:[#allocation3 + $0x38] sm:$0xf] %vm1301, %v1138
  %1317 = vst.msk [vmem:[#allocation3 + $0x3c] sm:$0xf] %vm1301, %v1140
  %1318 = vst.msk [vmem:[#allocation3 + $0x40] sm:$0xf] %vm1301, %v1142
  %1319 = vst.msk [vmem:[#allocation3 + $0x44] sm:$0xf] %vm1301, %v1144
  %1320 = vst.msk [vmem:[#allocation3 + $0x48] sm:$0xf] %vm1301, %v1146
  %1321 = vst.msk [vmem:[#allocation3 + $0x4c] sm:$0xf] %vm1301, %v1148
  %1322 = vst.msk [vmem:[#allocation3 + $0x50] sm:$0xf] %vm1301, %v1150
  %1323 = vst.msk [vmem:[#allocation3 + $0x54] sm:$0xf] %vm1301, %v1152
  %1324 = vst.msk [vmem:[#allocation3 + $0x58] sm:$0xf] %vm1301, %v1154
  %1325 = vst.msk [vmem:[#allocation3 + $0x5c] sm:$0xf] %vm1301, %v1156
  %1326 = vst.msk [vmem:[#allocation3 + $0x60] sm:$0xf] %vm1301, %v1158
  %1327 = vst.msk [vmem:[#allocation3 + $0x64] sm:$0xf] %vm1301, %v1160
  %1328 = vst.msk [vmem:[#allocation3 + $0x68] sm:$0xf] %vm1301, %v1162
  %1329 = vst.msk [vmem:[#allocation3 + $0x6c] sm:$0xf] %vm1301, %v1164
  %1330 = vst.msk [vmem:[#allocation3 + $0x70] sm:$0xf] %vm1301, %v1166
  %1331 = vst.msk [vmem:[#allocation3 + $0x74] sm:$0xf] %vm1301, %v1168
  %1332 = vst.msk [vmem:[#allocation3 + $0x78] sm:$0xf] %vm1301, %v1170
  %1333 = vst.msk [vmem:[#allocation3 + $0x7c] sm:$0xf] %vm1301, %v1172
  %1334 = vst.msk [vmem:[#allocation3 + $0x80] sm:$0xf] %vm1301, %v1174
  %1335 = vst.msk [vmem:[#allocation3 + $0x84] sm:$0xf] %vm1301, %v1176
  %1336 = vst.msk [vmem:[#allocation3 + $0x88] sm:$0xf] %vm1301, %v1178
  %1337 = vst.msk [vmem:[#allocation3 + $0x8c] sm:$0xf] %vm1301, %v1180
  %1338 = vst.msk [vmem:[#allocation3 + $0x90] sm:$0xf] %vm1301, %v1182
  %1339 = vst.msk [vmem:[#allocation3 + $0x94] sm:$0xf] %vm1301, %v1184
  %1340 = vst.msk [vmem:[#allocation3 + $0x98] sm:$0xf] %vm1301, %v1186
  %1341 = vst.msk [vmem:[#allocation3 + $0x9c] sm:$0xf] %vm1301, %v1188
  %1342 = vst.msk [vmem:[#allocation3 + $0xa0] sm:$0xf] %vm1301, %v1190
  %1343 = vst.msk [vmem:[#allocation3 + $0xa4] sm:$0xf] %vm1301, %v1192
  %1344 = vst.msk [vmem:[#allocation3 + $0xa8] sm:$0xf] %vm1301, %v1194
  %1345 = vst.msk [vmem:[#allocation3 + $0xac] sm:$0xf] %vm1301, %v1196
  %1346 = vst.msk [vmem:[#allocation3 + $0xb0] sm:$0xf] %vm1301, %v1198
  %1347 = vst.msk [vmem:[#allocation3 + $0xb4] sm:$0xf] %vm1301, %v1200
  %1348 = vst.msk [vmem:[#allocation3 + $0xb8] sm:$0xf] %vm1301, %v1202
  %1349 = vst.msk [vmem:[#allocation3 + $0xbc] sm:$0xf] %vm1301, %v1204
  %1350 = vst.msk [vmem:[#allocation3 + $0xc0] sm:$0xf] %vm1301, %v1206
  %1351 = vst.msk [vmem:[#allocation3 + $0xc4] sm:$0xf] %vm1301, %v1208
  %1352 = vst.msk [vmem:[#allocation3 + $0xc8] sm:$0xf] %vm1301, %v1210
  %1353 = vst.msk [vmem:[#allocation3 + $0xcc] sm:$0xf] %vm1301, %v1212
  %1354 = vst.msk [vmem:[#allocation3 + $0xd0] sm:$0xf] %vm1301, %v1214
  %1355 = vst.msk [vmem:[#allocation3 + $0xd4] sm:$0xf] %vm1301, %v1216
  %1356 = vst.msk [vmem:[#allocation3 + $0xd8] sm:$0xf] %vm1301, %v1218
  %1357 = vst.msk [vmem:[#allocation3 + $0xdc] sm:$0xf] %vm1301, %v1220
  %1358 = vst.msk [vmem:[#allocation3 + $0xe0] sm:$0xf] %vm1301, %v1222
  %1359 = vst.msk [vmem:[#allocation3 + $0xe4] sm:$0xf] %vm1301, %v1224
  %1360 = vst.msk [vmem:[#allocation3 + $0xe8] sm:$0xf] %vm1301, %v1226
  %1361 = vst.msk [vmem:[#allocation3 + $0xec] sm:$0xf] %vm1301, %v1228
  %1362 = vst.msk [vmem:[#allocation3 + $0xf0] sm:$0xf] %vm1301, %v1230
  %1363 = vst.msk [vmem:[#allocation3 + $0xf4] sm:$0xf] %vm1301, %v1232
  %1364 = vst.msk [vmem:[#allocation3 + $0xf8] sm:$0xf] %vm1301, %v1234
  %1365 = vst.msk [vmem:[#allocation3 + $0xfc] sm:$0xf] %vm1301, %v1236
  %v1366 = vld [vmem:[%s210] sm:$0xff]
  %v1367 = vld [vmem:[%s210 + $0x8] sm:$0xff]
  %v1368 = vld [vmem:[%s210 + $0x18] sm:$0xff]
  %v1369 = vld [vmem:[%s210 + $0x20] sm:$0xff]
  %v1370 = vld [vmem:[%s210 + $0x30] sm:$0xff]
  %v1371 = vld [vmem:[%s210 + $0x38] sm:$0xff]
  %v1372 = vld [vmem:[%s210 + $0x48] sm:$0xff]
  %v1373 = vld [vmem:[%s210 + $0x50] sm:$0xff]
  %v1374 = vld [vmem:[%s210 + $0x60] sm:$0xff]
  %v1375 = vld [vmem:[%s210 + $0x68] sm:$0xff]
  %v1376 = vld [vmem:[%s210 + $0x78] sm:$0xff]
  %v1377 = vld [vmem:[%s210 + $0x80] sm:$0xff]
  %v1378 = vld [vmem:[%s210 + $0x90] sm:$0xff]
  %v1379 = vld [vmem:[%s210 + $0x98] sm:$0xff]
  %v1380 = vld [vmem:[%s210 + $0xa8] sm:$0xff]
  %v1381 = vld [vmem:[%s210 + $0xb0] sm:$0xff]
  %v1382 = vld [vmem:[%s210 + $0xc0] sm:$0xff]
  %v1383 = vld [vmem:[%s210 + $0xc8] sm:$0xff]
  %v1384 = vld [vmem:[%s210 + $0xd8] sm:$0xff]
  %v1385 = vld [vmem:[%s210 + $0xe0] sm:$0xff]
  %v1386 = vld [vmem:[%s210 + $0xf0] sm:$0xff]
  %v1387 = vld [vmem:[%s210 + $0xf8] sm:$0xff]
  %v1388 = vld [vmem:[%s210 + $0x108] sm:$0xff]
  %v1389 = vld [vmem:[%s210 + $0x110] sm:$0xff]
  %v1390 = vld [vmem:[%s210 + $0x120] sm:$0xff]
  %v1391 = vld [vmem:[%s210 + $0x128] sm:$0xff]
  %v1392 = vld [vmem:[%s210 + $0x138] sm:$0xff]
  %v1393 = vld [vmem:[%s210 + $0x140] sm:$0xff]
  %v1394 = vld [vmem:[%s210 + $0x150] sm:$0xff]
  %v1395 = vld [vmem:[%s210 + $0x158] sm:$0xff]
  %v1396 = vld [vmem:[%s210 + $0x168] sm:$0xff]
  %v1397 = vld [vmem:[%s210 + $0x170] sm:$0xff]
  %v1398 = vld [vmem:[%s210 + $0x1b0] sm:$0xff]
  %v1399 = vld [vmem:[%s210 + $0x1b8] sm:$0xff]
  %v1400 = vld [vmem:[%s210 + $0x1c8] sm:$0xff]
  %v1401 = vld [vmem:[%s210 + $0x1d0] sm:$0xff]
  %v1402 = vld [vmem:[%s210 + $0x1e0] sm:$0xff]
  %v1403 = vld [vmem:[%s210 + $0x1e8] sm:$0xff]
  %v1404 = vld [vmem:[%s210 + $0x1f8] sm:$0xff]
  %v1405 = vld [vmem:[%s210 + $0x200] sm:$0xff]
  %v1406 = vld [vmem:[%s210 + $0x210] sm:$0xff]
  %v1407 = vld [vmem:[%s210 + $0x218] sm:$0xff]
  %v1408 = vld [vmem:[%s210 + $0x228] sm:$0xff]
  %v1409 = vld [vmem:[%s210 + $0x230] sm:$0xff]
  %v1410 = vld [vmem:[%s210 + $0x240] sm:$0xff]
  %v1411 = vld [vmem:[%s210 + $0x248] sm:$0xff]
  %v1412 = vld [vmem:[%s210 + $0x258] sm:$0xff]
  %v1413 = vld [vmem:[%s210 + $0x260] sm:$0xff]
  %v1414 = vld [vmem:[%s210 + $0x270] sm:$0xff]
  %v1415 = vld [vmem:[%s210 + $0x278] sm:$0xff]
  %v1416 = vld [vmem:[%s210 + $0x288] sm:$0xff]
  %v1417 = vld [vmem:[%s210 + $0x290] sm:$0xff]
  %v1418 = vld [vmem:[%s210 + $0x2a0] sm:$0xff]
  %v1419 = vld [vmem:[%s210 + $0x2a8] sm:$0xff]
  %v1420 = vld [vmem:[%s210 + $0x2b8] sm:$0xff]
  %v1421 = vld [vmem:[%s210 + $0x2c0] sm:$0xff]
  %v1422 = vld [vmem:[%s210 + $0x2d0] sm:$0xff]
  %v1423 = vld [vmem:[%s210 + $0x2d8] sm:$0xff]
  %v1424 = vld [vmem:[%s210 + $0x2e8] sm:$0xff]
  %v1425 = vld [vmem:[%s210 + $0x2f0] sm:$0xff]
  %v1426 = vld [vmem:[%s210 + $0x300] sm:$0xff]
  %v1427 = vld [vmem:[%s210 + $0x308] sm:$0xff]
  %v1428 = vld [vmem:[%s210 + $0x318] sm:$0xff]
  %v1429 = vld [vmem:[%s210 + $0x320] sm:$0xff]
  %v1430 = vpack.c.bf16 %v1366, %v1366
  %v1431 = vpack.c.bf16 %v1367, %v1367
  %v1432 = vpack.c.bf16 %v1368, %v1368
  %v1433 = vpack.c.bf16 %v1369, %v1369
  %v1434 = vpack.c.bf16 %v1370, %v1370
  %v1435 = vpack.c.bf16 %v1371, %v1371
  %v1436 = vpack.c.bf16 %v1372, %v1372
  %v1437 = vpack.c.bf16 %v1373, %v1373
  %v1438 = vpack.c.bf16 %v1374, %v1374
  %v1439 = vpack.c.bf16 %v1375, %v1375
  %v1440 = vpack.c.bf16 %v1376, %v1376
  %v1441 = vpack.c.bf16 %v1377, %v1377
  %v1442 = vpack.c.bf16 %v1378, %v1378
  %v1443 = vpack.c.bf16 %v1379, %v1379
  %v1444 = vpack.c.bf16 %v1380, %v1380
  %v1445 = vpack.c.bf16 %v1381, %v1381
  %v1446 = vpack.c.bf16 %v1382, %v1382
  %v1447 = vpack.c.bf16 %v1383, %v1383
  %v1448 = vpack.c.bf16 %v1384, %v1384
  %v1449 = vpack.c.bf16 %v1385, %v1385
  %v1450 = vpack.c.bf16 %v1386, %v1386
  %v1451 = vpack.c.bf16 %v1387, %v1387
  %v1452 = vpack.c.bf16 %v1388, %v1388
  %v1453 = vpack.c.bf16 %v1389, %v1389
  %v1454 = vpack.c.bf16 %v1390, %v1390
  %v1455 = vpack.c.bf16 %v1391, %v1391
  %v1456 = vpack.c.bf16 %v1392, %v1392
  %v1457 = vpack.c.bf16 %v1393, %v1393
  %v1458 = vpack.c.bf16 %v1394, %v1394
  %v1459 = vpack.c.bf16 %v1395, %v1395
  %v1460 = vpack.c.bf16 %v1396, %v1396
  %v1461 = vpack.c.bf16 %v1397, %v1397
  %v1462 = vpack.c.bf16 %v1398, %v1398
  %v1463 = vpack.c.bf16 %v1399, %v1399
  %v1464 = vpack.c.bf16 %v1400, %v1400
  %v1465 = vpack.c.bf16 %v1401, %v1401
  %v1466 = vpack.c.bf16 %v1402, %v1402
  %v1467 = vpack.c.bf16 %v1403, %v1403
  %v1468 = vpack.c.bf16 %v1404, %v1404
  %v1469 = vpack.c.bf16 %v1405, %v1405
  %v1470 = vpack.c.bf16 %v1406, %v1406
  %v1471 = vpack.c.bf16 %v1407, %v1407
  %v1472 = vpack.c.bf16 %v1408, %v1408
  %v1473 = vpack.c.bf16 %v1409, %v1409
  %v1474 = vpack.c.bf16 %v1410, %v1410
  %v1475 = vpack.c.bf16 %v1411, %v1411
  %v1476 = vpack.c.bf16 %v1412, %v1412
  %v1477 = vpack.c.bf16 %v1413, %v1413
  %v1478 = vpack.c.bf16 %v1414, %v1414
  %v1479 = vpack.c.bf16 %v1415, %v1415
  %v1480 = vpack.c.bf16 %v1416, %v1416
  %v1481 = vpack.c.bf16 %v1417, %v1417
  %v1482 = vpack.c.bf16 %v1418, %v1418
  %v1483 = vpack.c.bf16 %v1419, %v1419
  %v1484 = vpack.c.bf16 %v1420, %v1420
  %v1485 = vpack.c.bf16 %v1421, %v1421
  %v1486 = vpack.c.bf16 %v1422, %v1422
  %v1487 = vpack.c.bf16 %v1423, %v1423
  %v1488 = vpack.c.bf16 %v1424, %v1424
  %v1489 = vpack.c.bf16 %v1425, %v1425
  %v1490 = vpack.c.bf16 %v1426, %v1426
  %v1491 = vpack.c.bf16 %v1427, %v1427
  %v1492 = vpack.c.bf16 %v1428, %v1428
  %v1493 = vpack.c.bf16 %v1429, %v1429
  %1558 = vrot.lane.b32.xlu0 %v1430, 12
  %v1559 = vpop.permute.xlu0 %1558
  %1560 = vrot.lane.b32.xlu0 %v1431, 12
  %v1561 = vpop.permute.xlu0 %1560
  %1562 = vrot.lane.b32.xlu0 %v1432, 12
  %v1563 = vpop.permute.xlu0 %1562
  %1564 = vrot.lane.b32.xlu0 %v1433, 12
  %v1565 = vpop.permute.xlu0 %1564
  %1566 = vrot.lane.b32.xlu0 %v1434, 12
  %v1567 = vpop.permute.xlu0 %1566
  %1568 = vrot.lane.b32.xlu0 %v1435, 12
  %v1569 = vpop.permute.xlu0 %1568
  %1570 = vrot.lane.b32.xlu0 %v1436, 12
  %v1571 = vpop.permute.xlu0 %1570
  %1572 = vrot.lane.b32.xlu0 %v1437, 12
  %v1573 = vpop.permute.xlu0 %1572
  %1574 = vrot.lane.b32.xlu0 %v1438, 12
  %v1575 = vpop.permute.xlu0 %1574
  %1576 = vrot.lane.b32.xlu0 %v1439, 12
  %v1577 = vpop.permute.xlu0 %1576
  %1578 = vrot.lane.b32.xlu0 %v1440, 12
  %v1579 = vpop.permute.xlu0 %1578
  %1580 = vrot.lane.b32.xlu0 %v1441, 12
  %v1581 = vpop.permute.xlu0 %1580
  %1582 = vrot.lane.b32.xlu0 %v1442, 12
  %v1583 = vpop.permute.xlu0 %1582
  %1584 = vrot.lane.b32.xlu0 %v1443, 12
  %v1585 = vpop.permute.xlu0 %1584
  %1586 = vrot.lane.b32.xlu0 %v1444, 12
  %v1587 = vpop.permute.xlu0 %1586
  %1588 = vrot.lane.b32.xlu0 %v1445, 12
  %v1589 = vpop.permute.xlu0 %1588
  %1590 = vrot.lane.b32.xlu0 %v1446, 12
  %v1591 = vpop.permute.xlu0 %1590
  %1592 = vrot.lane.b32.xlu0 %v1447, 12
  %v1593 = vpop.permute.xlu0 %1592
  %1594 = vrot.lane.b32.xlu0 %v1448, 12
  %v1595 = vpop.permute.xlu0 %1594
  %1596 = vrot.lane.b32.xlu0 %v1449, 12
  %v1597 = vpop.permute.xlu0 %1596
  %1598 = vrot.lane.b32.xlu0 %v1450, 12
  %v1599 = vpop.permute.xlu0 %1598
  %1600 = vrot.lane.b32.xlu0 %v1451, 12
  %v1601 = vpop.permute.xlu0 %1600
  %1602 = vrot.lane.b32.xlu0 %v1452, 12
  %v1603 = vpop.permute.xlu0 %1602
  %1604 = vrot.lane.b32.xlu0 %v1453, 12
  %v1605 = vpop.permute.xlu0 %1604
  %1606 = vrot.lane.b32.xlu0 %v1454, 12
  %v1607 = vpop.permute.xlu0 %1606
  %1608 = vrot.lane.b32.xlu0 %v1455, 12
  %v1609 = vpop.permute.xlu0 %1608
  %1610 = vrot.lane.b32.xlu0 %v1456, 12
  %v1611 = vpop.permute.xlu0 %1610
  %1612 = vrot.lane.b32.xlu0 %v1457, 12
  %v1613 = vpop.permute.xlu0 %1612
  %1614 = vrot.lane.b32.xlu0 %v1458, 12
  %v1615 = vpop.permute.xlu0 %1614
  %1616 = vrot.lane.b32.xlu0 %v1459, 12
  %v1617 = vpop.permute.xlu0 %1616
  %1618 = vrot.lane.b32.xlu0 %v1460, 12
  %v1619 = vpop.permute.xlu0 %1618
  %1620 = vrot.lane.b32.xlu0 %v1461, 12
  %v1621 = vpop.permute.xlu0 %1620
  %1622 = vrot.lane.b32.xlu0 %v1462, 12
  %v1623 = vpop.permute.xlu0 %1622
  %1624 = vrot.lane.b32.xlu0 %v1463, 12
  %v1625 = vpop.permute.xlu0 %1624
  %1626 = vrot.lane.b32.xlu0 %v1464, 12
  %v1627 = vpop.permute.xlu0 %1626
  %1628 = vrot.lane.b32.xlu0 %v1465, 12
  %v1629 = vpop.permute.xlu0 %1628
  %1630 = vrot.lane.b32.xlu0 %v1466, 12
  %v1631 = vpop.permute.xlu0 %1630
  %1632 = vrot.lane.b32.xlu0 %v1467, 12
  %v1633 = vpop.permute.xlu0 %1632
  %1634 = vrot.lane.b32.xlu0 %v1468, 12
  %v1635 = vpop.permute.xlu0 %1634
  %1636 = vrot.lane.b32.xlu0 %v1469, 12
  %v1637 = vpop.permute.xlu0 %1636
  %1638 = vrot.lane.b32.xlu0 %v1470, 12
  %v1639 = vpop.permute.xlu0 %1638
  %1640 = vrot.lane.b32.xlu0 %v1471, 12
  %v1641 = vpop.permute.xlu0 %1640
  %1642 = vrot.lane.b32.xlu0 %v1472, 12
  %v1643 = vpop.permute.xlu0 %1642
  %1644 = vrot.lane.b32.xlu0 %v1473, 12
  %v1645 = vpop.permute.xlu0 %1644
  %1646 = vrot.lane.b32.xlu0 %v1474, 12
  %v1647 = vpop.permute.xlu0 %1646
  %1648 = vrot.lane.b32.xlu0 %v1475, 12
  %v1649 = vpop.permute.xlu0 %1648
  %1650 = vrot.lane.b32.xlu0 %v1476, 12
  %v1651 = vpop.permute.xlu0 %1650
  %1652 = vrot.lane.b32.xlu0 %v1477, 12
  %v1653 = vpop.permute.xlu0 %1652
  %1654 = vrot.lane.b32.xlu0 %v1478, 12
  %v1655 = vpop.permute.xlu0 %1654
  %1656 = vrot.lane.b32.xlu0 %v1479, 12
  %v1657 = vpop.permute.xlu0 %1656
  %1658 = vrot.lane.b32.xlu0 %v1480, 12
  %v1659 = vpop.permute.xlu0 %1658
  %1660 = vrot.lane.b32.xlu0 %v1481, 12
  %v1661 = vpop.permute.xlu0 %1660
  %1662 = vrot.lane.b32.xlu0 %v1482, 12
  %v1663 = vpop.permute.xlu0 %1662
  %1664 = vrot.lane.b32.xlu0 %v1483, 12
  %v1665 = vpop.permute.xlu0 %1664
  %1666 = vrot.lane.b32.xlu0 %v1484, 12
  %v1667 = vpop.permute.xlu0 %1666
  %1668 = vrot.lane.b32.xlu0 %v1485, 12
  %v1669 = vpop.permute.xlu0 %1668
  %1670 = vrot.lane.b32.xlu0 %v1486, 12
  %v1671 = vpop.permute.xlu0 %1670
  %1672 = vrot.lane.b32.xlu0 %v1487, 12
  %v1673 = vpop.permute.xlu0 %1672
  %1674 = vrot.lane.b32.xlu0 %v1488, 12
  %v1675 = vpop.permute.xlu0 %1674
  %1676 = vrot.lane.b32.xlu0 %v1489, 12
  %v1677 = vpop.permute.xlu0 %1676
  %1678 = vrot.lane.b32.xlu0 %v1490, 12
  %v1679 = vpop.permute.xlu0 %1678
  %1680 = vrot.lane.b32.xlu0 %v1491, 12
  %v1681 = vpop.permute.xlu0 %1680
  %1682 = vrot.lane.b32.xlu0 %v1492, 12
  %v1683 = vpop.permute.xlu0 %1682
  %1684 = vrot.lane.b32.xlu0 %v1493, 12
  %v1685 = vpop.permute.xlu0 %1684
  %vm1750 = vcmask 126048
  %1751 = vst.msk [vmem:[#allocation3] sm:$0xf] %vm1750, %v1559
  %1752 = vst.msk [vmem:[#allocation3 + $0x4] sm:$0xf] %vm1750, %v1561
  %1753 = vst.msk [vmem:[#allocation3 + $0x8] sm:$0xf] %vm1750, %v1563
  %1754 = vst.msk [vmem:[#allocation3 + $0xc] sm:$0xf] %vm1750, %v1565
  %1755 = vst.msk [vmem:[#allocation3 + $0x10] sm:$0xf] %vm1750, %v1567
  %1756 = vst.msk [vmem:[#allocation3 + $0x14] sm:$0xf] %vm1750, %v1569
  %1757 = vst.msk [vmem:[#allocation3 + $0x18] sm:$0xf] %vm1750, %v1571
  %1758 = vst.msk [vmem:[#allocation3 + $0x1c] sm:$0xf] %vm1750, %v1573
  %1759 = vst.msk [vmem:[#allocation3 + $0x20] sm:$0xf] %vm1750, %v1575
  %1760 = vst.msk [vmem:[#allocation3 + $0x24] sm:$0xf] %vm1750, %v1577
  %1761 = vst.msk [vmem:[#allocation3 + $0x28] sm:$0xf] %vm1750, %v1579
  %1762 = vst.msk [vmem:[#allocation3 + $0x2c] sm:$0xf] %vm1750, %v1581
  %1763 = vst.msk [vmem:[#allocation3 + $0x30] sm:$0xf] %vm1750, %v1583
  %1764 = vst.msk [vmem:[#allocation3 + $0x34] sm:$0xf] %vm1750, %v1585
  %1765 = vst.msk [vmem:[#allocation3 + $0x38] sm:$0xf] %vm1750, %v1587
  %1766 = vst.msk [vmem:[#allocation3 + $0x3c] sm:$0xf] %vm1750, %v1589
  %1767 = vst.msk [vmem:[#allocation3 + $0x40] sm:$0xf] %vm1750, %v1591
  %1768 = vst.msk [vmem:[#allocation3 + $0x44] sm:$0xf] %vm1750, %v1593
  %1769 = vst.msk [vmem:[#allocation3 + $0x48] sm:$0xf] %vm1750, %v1595
  %1770 = vst.msk [vmem:[#allocation3 + $0x4c] sm:$0xf] %vm1750, %v1597
  %1771 = vst.msk [vmem:[#allocation3 + $0x50] sm:$0xf] %vm1750, %v1599
  %1772 = vst.msk [vmem:[#allocation3 + $0x54] sm:$0xf] %vm1750, %v1601
  %1773 = vst.msk [vmem:[#allocation3 + $0x58] sm:$0xf] %vm1750, %v1603
  %1774 = vst.msk [vmem:[#allocation3 + $0x5c] sm:$0xf] %vm1750, %v1605
  %1775 = vst.msk [vmem:[#allocation3 + $0x60] sm:$0xf] %vm1750, %v1607
  %1776 = vst.msk [vmem:[#allocation3 + $0x64] sm:$0xf] %vm1750, %v1609
  %1777 = vst.msk [vmem:[#allocation3 + $0x68] sm:$0xf] %vm1750, %v1611
  %1778 = vst.msk [vmem:[#allocation3 + $0x6c] sm:$0xf] %vm1750, %v1613
  %1779 = vst.msk [vmem:[#allocation3 + $0x70] sm:$0xf] %vm1750, %v1615
  %1780 = vst.msk [vmem:[#allocation3 + $0x74] sm:$0xf] %vm1750, %v1617
  %1781 = vst.msk [vmem:[#allocation3 + $0x78] sm:$0xf] %vm1750, %v1619
  %1782 = vst.msk [vmem:[#allocation3 + $0x7c] sm:$0xf] %vm1750, %v1621
  %1783 = vst.msk [vmem:[#allocation3 + $0x80] sm:$0xf] %vm1750, %v1623
  %1784 = vst.msk [vmem:[#allocation3 + $0x84] sm:$0xf] %vm1750, %v1625
  %1785 = vst.msk [vmem:[#allocation3 + $0x88] sm:$0xf] %vm1750, %v1627
  %1786 = vst.msk [vmem:[#allocation3 + $0x8c] sm:$0xf] %vm1750, %v1629
  %1787 = vst.msk [vmem:[#allocation3 + $0x90] sm:$0xf] %vm1750, %v1631
  %1788 = vst.msk [vmem:[#allocation3 + $0x94] sm:$0xf] %vm1750, %v1633
  %1789 = vst.msk [vmem:[#allocation3 + $0x98] sm:$0xf] %vm1750, %v1635
  %1790 = vst.msk [vmem:[#allocation3 + $0x9c] sm:$0xf] %vm1750, %v1637
  %1791 = vst.msk [vmem:[#allocation3 + $0xa0] sm:$0xf] %vm1750, %v1639
  %1792 = vst.msk [vmem:[#allocation3 + $0xa4] sm:$0xf] %vm1750, %v1641
  %1793 = vst.msk [vmem:[#allocation3 + $0xa8] sm:$0xf] %vm1750, %v1643
  %1794 = vst.msk [vmem:[#allocation3 + $0xac] sm:$0xf] %vm1750, %v1645
  %1795 = vst.msk [vmem:[#allocation3 + $0xb0] sm:$0xf] %vm1750, %v1647
  %1796 = vst.msk [vmem:[#allocation3 + $0xb4] sm:$0xf] %vm1750, %v1649
  %1797 = vst.msk [vmem:[#allocation3 + $0xb8] sm:$0xf] %vm1750, %v1651
  %1798 = vst.msk [vmem:[#allocation3 + $0xbc] sm:$0xf] %vm1750, %v1653
  %1799 = vst.msk [vmem:[#allocation3 + $0xc0] sm:$0xf] %vm1750, %v1655
  %1800 = vst.msk [vmem:[#allocation3 + $0xc4] sm:$0xf] %vm1750, %v1657
  %1801 = vst.msk [vmem:[#allocation3 + $0xc8] sm:$0xf] %vm1750, %v1659
  %1802 = vst.msk [vmem:[#allocation3 + $0xcc] sm:$0xf] %vm1750, %v1661
  %1803 = vst.msk [vmem:[#allocation3 + $0xd0] sm:$0xf] %vm1750, %v1663
  %1804 = vst.msk [vmem:[#allocation3 + $0xd4] sm:$0xf] %vm1750, %v1665
  %1805 = vst.msk [vmem:[#allocation3 + $0xd8] sm:$0xf] %vm1750, %v1667
  %1806 = vst.msk [vmem:[#allocation3 + $0xdc] sm:$0xf] %vm1750, %v1669
  %1807 = vst.msk [vmem:[#allocation3 + $0xe0] sm:$0xf] %vm1750, %v1671
  %1808 = vst.msk [vmem:[#allocation3 + $0xe4] sm:$0xf] %vm1750, %v1673
  %1809 = vst.msk [vmem:[#allocation3 + $0xe8] sm:$0xf] %vm1750, %v1675
  %1810 = vst.msk [vmem:[#allocation3 + $0xec] sm:$0xf] %vm1750, %v1677
  %1811 = vst.msk [vmem:[#allocation3 + $0xf0] sm:$0xf] %vm1750, %v1679
  %1812 = vst.msk [vmem:[#allocation3 + $0xf4] sm:$0xf] %vm1750, %v1681
  %1813 = vst.msk [vmem:[#allocation3 + $0xf8] sm:$0xf] %vm1750, %v1683
  %1814 = vst.msk [vmem:[#allocation3 + $0xfc] sm:$0xf] %vm1750, %v1685
  %v1815 = vld [vmem:[%s210 + $0x1] sm:$0xff]
  %v1816 = vld [vmem:[%s210 + $0x9] sm:$0xff]
  %v1817 = vld [vmem:[%s210 + $0x19] sm:$0xff]
  %v1818 = vld [vmem:[%s210 + $0x21] sm:$0xff]
  %v1819 = vld [vmem:[%s210 + $0x31] sm:$0xff]
  %v1820 = vld [vmem:[%s210 + $0x39] sm:$0xff]
  %v1821 = vld [vmem:[%s210 + $0x49] sm:$0xff]
  %v1822 = vld [vmem:[%s210 + $0x51] sm:$0xff]
  %v1823 = vld [vmem:[%s210 + $0x61] sm:$0xff]
  %v1824 = vld [vmem:[%s210 + $0x69] sm:$0xff]
  %v1825 = vld [vmem:[%s210 + $0x79] sm:$0xff]
  %v1826 = vld [vmem:[%s210 + $0x81] sm:$0xff]
  %v1827 = vld [vmem:[%s210 + $0x91] sm:$0xff]
  %v1828 = vld [vmem:[%s210 + $0x99] sm:$0xff]
  %v1829 = vld [vmem:[%s210 + $0xa9] sm:$0xff]
  %v1830 = vld [vmem:[%s210 + $0xb1] sm:$0xff]
  %v1831 = vld [vmem:[%s210 + $0xc1] sm:$0xff]
  %v1832 = vld [vmem:[%s210 + $0xc9] sm:$0xff]
  %v1833 = vld [vmem:[%s210 + $0xd9] sm:$0xff]
  %v1834 = vld [vmem:[%s210 + $0xe1] sm:$0xff]
  %v1835 = vld [vmem:[%s210 + $0xf1] sm:$0xff]
  %v1836 = vld [vmem:[%s210 + $0xf9] sm:$0xff]
  %v1837 = vld [vmem:[%s210 + $0x109] sm:$0xff]
  %v1838 = vld [vmem:[%s210 + $0x111] sm:$0xff]
  %v1839 = vld [vmem:[%s210 + $0x121] sm:$0xff]
  %v1840 = vld [vmem:[%s210 + $0x129] sm:$0xff]
  %v1841 = vld [vmem:[%s210 + $0x139] sm:$0xff]
  %v1842 = vld [vmem:[%s210 + $0x141] sm:$0xff]
  %v1843 = vld [vmem:[%s210 + $0x151] sm:$0xff]
  %v1844 = vld [vmem:[%s210 + $0x159] sm:$0xff]
  %v1845 = vld [vmem:[%s210 + $0x169] sm:$0xff]
  %v1846 = vld [vmem:[%s210 + $0x171] sm:$0xff]
  %v1847 = vld [vmem:[%s210 + $0x1b1] sm:$0xff]
  %v1848 = vld [vmem:[%s210 + $0x1b9] sm:$0xff]
  %v1849 = vld [vmem:[%s210 + $0x1c9] sm:$0xff]
  %v1850 = vld [vmem:[%s210 + $0x1d1] sm:$0xff]
  %v1851 = vld [vmem:[%s210 + $0x1e1] sm:$0xff]
  %v1852 = vld [vmem:[%s210 + $0x1e9] sm:$0xff]
  %v1853 = vld [vmem:[%s210 + $0x1f9] sm:$0xff]
  %v1854 = vld [vmem:[%s210 + $0x201] sm:$0xff]
  %v1855 = vld [vmem:[%s210 + $0x211] sm:$0xff]
  %v1856 = vld [vmem:[%s210 + $0x219] sm:$0xff]
  %v1857 = vld [vmem:[%s210 + $0x229] sm:$0xff]
  %v1858 = vld [vmem:[%s210 + $0x231] sm:$0xff]
  %v1859 = vld [vmem:[%s210 + $0x241] sm:$0xff]
  %v1860 = vld [vmem:[%s210 + $0x249] sm:$0xff]
  %v1861 = vld [vmem:[%s210 + $0x259] sm:$0xff]
  %v1862 = vld [vmem:[%s210 + $0x261] sm:$0xff]
  %v1863 = vld [vmem:[%s210 + $0x271] sm:$0xff]
  %v1864 = vld [vmem:[%s210 + $0x279] sm:$0xff]
  %v1865 = vld [vmem:[%s210 + $0x289] sm:$0xff]
  %v1866 = vld [vmem:[%s210 + $0x291] sm:$0xff]
  %v1867 = vld [vmem:[%s210 + $0x2a1] sm:$0xff]
  %v1868 = vld [vmem:[%s210 + $0x2a9] sm:$0xff]
  %v1869 = vld [vmem:[%s210 + $0x2b9] sm:$0xff]
  %v1870 = vld [vmem:[%s210 + $0x2c1] sm:$0xff]
  %v1871 = vld [vmem:[%s210 + $0x2d1] sm:$0xff]
  %v1872 = vld [vmem:[%s210 + $0x2d9] sm:$0xff]
  %v1873 = vld [vmem:[%s210 + $0x2e9] sm:$0xff]
  %v1874 = vld [vmem:[%s210 + $0x2f1] sm:$0xff]
  %v1875 = vld [vmem:[%s210 + $0x301] sm:$0xff]
  %v1876 = vld [vmem:[%s210 + $0x309] sm:$0xff]
  %v1877 = vld [vmem:[%s210 + $0x319] sm:$0xff]
  %v1878 = vld [vmem:[%s210 + $0x321] sm:$0xff]
  %v1879 = vpack.c.bf16 %v1815, %v1815
  %v1880 = vpack.c.bf16 %v1816, %v1816
  %v1881 = vpack.c.bf16 %v1817, %v1817
  %v1882 = vpack.c.bf16 %v1818, %v1818
  %v1883 = vpack.c.bf16 %v1819, %v1819
  %v1884 = vpack.c.bf16 %v1820, %v1820
  %v1885 = vpack.c.bf16 %v1821, %v1821
  %v1886 = vpack.c.bf16 %v1822, %v1822
  %v1887 = vpack.c.bf16 %v1823, %v1823
  %v1888 = vpack.c.bf16 %v1824, %v1824
  %v1889 = vpack.c.bf16 %v1825, %v1825
  %v1890 = vpack.c.bf16 %v1826, %v1826
  %v1891 = vpack.c.bf16 %v1827, %v1827
  %v1892 = vpack.c.bf16 %v1828, %v1828
  %v1893 = vpack.c.bf16 %v1829, %v1829
  %v1894 = vpack.c.bf16 %v1830, %v1830
  %v1895 = vpack.c.bf16 %v1831, %v1831
  %v1896 = vpack.c.bf16 %v1832, %v1832
  %v1897 = vpack.c.bf16 %v1833, %v1833
  %v1898 = vpack.c.bf16 %v1834, %v1834
  %v1899 = vpack.c.bf16 %v1835, %v1835
  %v1900 = vpack.c.bf16 %v1836, %v1836
  %v1901 = vpack.c.bf16 %v1837, %v1837
  %v1902 = vpack.c.bf16 %v1838, %v1838
  %v1903 = vpack.c.bf16 %v1839, %v1839
  %v1904 = vpack.c.bf16 %v1840, %v1840
  %v1905 = vpack.c.bf16 %v1841, %v1841
  %v1906 = vpack.c.bf16 %v1842, %v1842
  %v1907 = vpack.c.bf16 %v1843, %v1843
  %v1908 = vpack.c.bf16 %v1844, %v1844
  %v1909 = vpack.c.bf16 %v1845, %v1845
  %v1910 = vpack.c.bf16 %v1846, %v1846
  %v1911 = vpack.c.bf16 %v1847, %v1847
  %v1912 = vpack.c.bf16 %v1848, %v1848
  %v1913 = vpack.c.bf16 %v1849, %v1849
  %v1914 = vpack.c.bf16 %v1850, %v1850
  %v1915 = vpack.c.bf16 %v1851, %v1851
  %v1916 = vpack.c.bf16 %v1852, %v1852
  %v1917 = vpack.c.bf16 %v1853, %v1853
  %v1918 = vpack.c.bf16 %v1854, %v1854
  %v1919 = vpack.c.bf16 %v1855, %v1855
  %v1920 = vpack.c.bf16 %v1856, %v1856
  %v1921 = vpack.c.bf16 %v1857, %v1857
  %v1922 = vpack.c.bf16 %v1858, %v1858
  %v1923 = vpack.c.bf16 %v1859, %v1859
  %v1924 = vpack.c.bf16 %v1860, %v1860
  %v1925 = vpack.c.bf16 %v1861, %v1861
  %v1926 = vpack.c.bf16 %v1862, %v1862
  %v1927 = vpack.c.bf16 %v1863, %v1863
  %v1928 = vpack.c.bf16 %v1864, %v1864
  %v1929 = vpack.c.bf16 %v1865, %v1865
  %v1930 = vpack.c.bf16 %v1866, %v1866
  %v1931 = vpack.c.bf16 %v1867, %v1867
  %v1932 = vpack.c.bf16 %v1868, %v1868
  %v1933 = vpack.c.bf16 %v1869, %v1869
  %v1934 = vpack.c.bf16 %v1870, %v1870
  %v1935 = vpack.c.bf16 %v1871, %v1871
  %v1936 = vpack.c.bf16 %v1872, %v1872
  %v1937 = vpack.c.bf16 %v1873, %v1873
  %v1938 = vpack.c.bf16 %v1874, %v1874
  %v1939 = vpack.c.bf16 %v1875, %v1875
  %v1940 = vpack.c.bf16 %v1876, %v1876
  %v1941 = vpack.c.bf16 %v1877, %v1877
  %v1942 = vpack.c.bf16 %v1878, %v1878
  %2007 = vrot.lane.b32.xlu0 %v1879, 16
  %v2008 = vpop.permute.xlu0 %2007
  %2009 = vrot.lane.b32.xlu0 %v1880, 16
  %v2010 = vpop.permute.xlu0 %2009
  %2011 = vrot.lane.b32.xlu0 %v1881, 16
  %v2012 = vpop.permute.xlu0 %2011
  %2013 = vrot.lane.b32.xlu0 %v1882, 16
  %v2014 = vpop.permute.xlu0 %2013
  %2015 = vrot.lane.b32.xlu0 %v1883, 16
  %v2016 = vpop.permute.xlu0 %2015
  %2017 = vrot.lane.b32.xlu0 %v1884, 16
  %v2018 = vpop.permute.xlu0 %2017
  %2019 = vrot.lane.b32.xlu0 %v1885, 16
  %v2020 = vpop.permute.xlu0 %2019
  %2021 = vrot.lane.b32.xlu0 %v1886, 16
  %v2022 = vpop.permute.xlu0 %2021
  %2023 = vrot.lane.b32.xlu0 %v1887, 16
  %v2024 = vpop.permute.xlu0 %2023
  %2025 = vrot.lane.b32.xlu0 %v1888, 16
  %v2026 = vpop.permute.xlu0 %2025
  %2027 = vrot.lane.b32.xlu0 %v1889, 16
  %v2028 = vpop.permute.xlu0 %2027
  %2029 = vrot.lane.b32.xlu0 %v1890, 16
  %v2030 = vpop.permute.xlu0 %2029
  %2031 = vrot.lane.b32.xlu0 %v1891, 16
  %v2032 = vpop.permute.xlu0 %2031
  %2033 = vrot.lane.b32.xlu0 %v1892, 16
  %v2034 = vpop.permute.xlu0 %2033
  %2035 = vrot.lane.b32.xlu0 %v1893, 16
  %v2036 = vpop.permute.xlu0 %2035
  %2037 = vrot.lane.b32.xlu0 %v1894, 16
  %v2038 = vpop.permute.xlu0 %2037
  %2039 = vrot.lane.b32.xlu0 %v1895, 16
  %v2040 = vpop.permute.xlu0 %2039
  %2041 = vrot.lane.b32.xlu0 %v1896, 16
  %v2042 = vpop.permute.xlu0 %2041
  %2043 = vrot.lane.b32.xlu0 %v1897, 16
  %v2044 = vpop.permute.xlu0 %2043
  %2045 = vrot.lane.b32.xlu0 %v1898, 16
  %v2046 = vpop.permute.xlu0 %2045
  %2047 = vrot.lane.b32.xlu0 %v1899, 16
  %v2048 = vpop.permute.xlu0 %2047
  %2049 = vrot.lane.b32.xlu0 %v1900, 16
  %v2050 = vpop.permute.xlu0 %2049
  %2051 = vrot.lane.b32.xlu0 %v1901, 16
  %v2052 = vpop.permute.xlu0 %2051
  %2053 = vrot.lane.b32.xlu0 %v1902, 16
  %v2054 = vpop.permute.xlu0 %2053
  %2055 = vrot.lane.b32.xlu0 %v1903, 16
  %v2056 = vpop.permute.xlu0 %2055
  %2057 = vrot.lane.b32.xlu0 %v1904, 16
  %v2058 = vpop.permute.xlu0 %2057
  %2059 = vrot.lane.b32.xlu0 %v1905, 16
  %v2060 = vpop.permute.xlu0 %2059
  %2061 = vrot.lane.b32.xlu0 %v1906, 16
  %v2062 = vpop.permute.xlu0 %2061
  %2063 = vrot.lane.b32.xlu0 %v1907, 16
  %v2064 = vpop.permute.xlu0 %2063
  %2065 = vrot.lane.b32.xlu0 %v1908, 16
  %v2066 = vpop.permute.xlu0 %2065
  %2067 = vrot.lane.b32.xlu0 %v1909, 16
  %v2068 = vpop.permute.xlu0 %2067
  %2069 = vrot.lane.b32.xlu0 %v1910, 16
  %v2070 = vpop.permute.xlu0 %2069
  %2071 = vrot.lane.b32.xlu0 %v1911, 16
  %v2072 = vpop.permute.xlu0 %2071
  %2073 = vrot.lane.b32.xlu0 %v1912, 16
  %v2074 = vpop.permute.xlu0 %2073
  %2075 = vrot.lane.b32.xlu0 %v1913, 16
  %v2076 = vpop.permute.xlu0 %2075
  %2077 = vrot.lane.b32.xlu0 %v1914, 16
  %v2078 = vpop.permute.xlu0 %2077
  %2079 = vrot.lane.b32.xlu0 %v1915, 16
  %v2080 = vpop.permute.xlu0 %2079
  %2081 = vrot.lane.b32.xlu0 %v1916, 16
  %v2082 = vpop.permute.xlu0 %2081
  %2083 = vrot.lane.b32.xlu0 %v1917, 16
  %v2084 = vpop.permute.xlu0 %2083
  %2085 = vrot.lane.b32.xlu0 %v1918, 16
  %v2086 = vpop.permute.xlu0 %2085
  %2087 = vrot.lane.b32.xlu0 %v1919, 16
  %v2088 = vpop.permute.xlu0 %2087
  %2089 = vrot.lane.b32.xlu0 %v1920, 16
  %v2090 = vpop.permute.xlu0 %2089
  %2091 = vrot.lane.b32.xlu0 %v1921, 16
  %v2092 = vpop.permute.xlu0 %2091
  %2093 = vrot.lane.b32.xlu0 %v1922, 16
  %v2094 = vpop.permute.xlu0 %2093
  %2095 = vrot.lane.b32.xlu0 %v1923, 16
  %v2096 = vpop.permute.xlu0 %2095
  %2097 = vrot.lane.b32.xlu0 %v1924, 16
  %v2098 = vpop.permute.xlu0 %2097
  %2099 = vrot.lane.b32.xlu0 %v1925, 16
  %v2100 = vpop.permute.xlu0 %2099
  %2101 = vrot.lane.b32.xlu0 %v1926, 16
  %v2102 = vpop.permute.xlu0 %2101
  %2103 = vrot.lane.b32.xlu0 %v1927, 16
  %v2104 = vpop.permute.xlu0 %2103
  %2105 = vrot.lane.b32.xlu0 %v1928, 16
  %v2106 = vpop.permute.xlu0 %2105
  %2107 = vrot.lane.b32.xlu0 %v1929, 16
  %v2108 = vpop.permute.xlu0 %2107
  %2109 = vrot.lane.b32.xlu0 %v1930, 16
  %v2110 = vpop.permute.xlu0 %2109
  %2111 = vrot.lane.b32.xlu0 %v1931, 16
  %v2112 = vpop.permute.xlu0 %2111
  %2113 = vrot.lane.b32.xlu0 %v1932, 16
  %v2114 = vpop.permute.xlu0 %2113
  %2115 = vrot.lane.b32.xlu0 %v1933, 16
  %v2116 = vpop.permute.xlu0 %2115
  %2117 = vrot.lane.b32.xlu0 %v1934, 16
  %v2118 = vpop.permute.xlu0 %2117
  %2119 = vrot.lane.b32.xlu0 %v1935, 16
  %v2120 = vpop.permute.xlu0 %2119
  %2121 = vrot.lane.b32.xlu0 %v1936, 16
  %v2122 = vpop.permute.xlu0 %2121
  %2123 = vrot.lane.b32.xlu0 %v1937, 16
  %v2124 = vpop.permute.xlu0 %2123
  %2125 = vrot.lane.b32.xlu0 %v1938, 16
  %v2126 = vpop.permute.xlu0 %2125
  %2127 = vrot.lane.b32.xlu0 %v1939, 16
  %v2128 = vpop.permute.xlu0 %2127
  %2129 = vrot.lane.b32.xlu0 %v1940, 16
  %v2130 = vpop.permute.xlu0 %2129
  %2131 = vrot.lane.b32.xlu0 %v1941, 16
  %v2132 = vpop.permute.xlu0 %2131
  %2133 = vrot.lane.b32.xlu0 %v1942, 16
  %v2134 = vpop.permute.xlu0 %2133
  %vm2199 = vcmask 158848
  %2200 = vst.msk [vmem:[#allocation3] sm:$0xf] %vm2199, %v2008
  %2201 = vst.msk [vmem:[#allocation3 + $0x4] sm:$0xf] %vm2199, %v2010
  %2202 = vst.msk [vmem:[#allocation3 + $0x8] sm:$0xf] %vm2199, %v2012
  %2203 = vst.msk [vmem:[#allocation3 + $0xc] sm:$0xf] %vm2199, %v2014
  %2204 = vst.msk [vmem:[#allocation3 + $0x10] sm:$0xf] %vm2199, %v2016
  %2205 = vst.msk [vmem:[#allocation3 + $0x14] sm:$0xf] %vm2199, %v2018
  %2206 = vst.msk [vmem:[#allocation3 + $0x18] sm:$0xf] %vm2199, %v2020
  %2207 = vst.msk [vmem:[#allocation3 + $0x1c] sm:$0xf] %vm2199, %v2022
  %2208 = vst.msk [vmem:[#allocation3 + $0x20] sm:$0xf] %vm2199, %v2024
  %2209 = vst.msk [vmem:[#allocation3 + $0x24] sm:$0xf] %vm2199, %v2026
  %2210 = vst.msk [vmem:[#allocation3 + $0x28] sm:$0xf] %vm2199, %v2028
  %2211 = vst.msk [vmem:[#allocation3 + $0x2c] sm:$0xf] %vm2199, %v2030
  %2212 = vst.msk [vmem:[#allocation3 + $0x30] sm:$0xf] %vm2199, %v2032
  %2213 = vst.msk [vmem:[#allocation3 + $0x34] sm:$0xf] %vm2199, %v2034
  %2214 = vst.msk [vmem:[#allocation3 + $0x38] sm:$0xf] %vm2199, %v2036
  %2215 = vst.msk [vmem:[#allocation3 + $0x3c] sm:$0xf] %vm2199, %v2038
  %2216 = vst.msk [vmem:[#allocation3 + $0x40] sm:$0xf] %vm2199, %v2040
  %2217 = vst.msk [vmem:[#allocation3 + $0x44] sm:$0xf] %vm2199, %v2042
  %2218 = vst.msk [vmem:[#allocation3 + $0x48] sm:$0xf] %vm2199, %v2044
  %2219 = vst.msk [vmem:[#allocation3 + $0x4c] sm:$0xf] %vm2199, %v2046
  %2220 = vst.msk [vmem:[#allocation3 + $0x50] sm:$0xf] %vm2199, %v2048
  %2221 = vst.msk [vmem:[#allocation3 + $0x54] sm:$0xf] %vm2199, %v2050
  %2222 = vst.msk [vmem:[#allocation3 + $0x58] sm:$0xf] %vm2199, %v2052
  %2223 = vst.msk [vmem:[#allocation3 + $0x5c] sm:$0xf] %vm2199, %v2054
  %2224 = vst.msk [vmem:[#allocation3 + $0x60] sm:$0xf] %vm2199, %v2056
  %2225 = vst.msk [vmem:[#allocation3 + $0x64] sm:$0xf] %vm2199, %v2058
  %2226 = vst.msk [vmem:[#allocation3 + $0x68] sm:$0xf] %vm2199, %v2060
  %2227 = vst.msk [vmem:[#allocation3 + $0x6c] sm:$0xf] %vm2199, %v2062
  %2228 = vst.msk [vmem:[#allocation3 + $0x70] sm:$0xf] %vm2199, %v2064
  %2229 = vst.msk [vmem:[#allocation3 + $0x74] sm:$0xf] %vm2199, %v2066
  %2230 = vst.msk [vmem:[#allocation3 + $0x78] sm:$0xf] %vm2199, %v2068
  %2231 = vst.msk [vmem:[#allocation3 + $0x7c] sm:$0xf] %vm2199, %v2070
  %2232 = vst.msk [vmem:[#allocation3 + $0x80] sm:$0xf] %vm2199, %v2072
  %2233 = vst.msk [vmem:[#allocation3 + $0x84] sm:$0xf] %vm2199, %v2074
  %2234 = vst.msk [vmem:[#allocation3 + $0x88] sm:$0xf] %vm2199, %v2076
  %2235 = vst.msk [vmem:[#allocation3 + $0x8c] sm:$0xf] %vm2199, %v2078
  %2236 = vst.msk [vmem:[#allocation3 + $0x90] sm:$0xf] %vm2199, %v2080
  %2237 = vst.msk [vmem:[#allocation3 + $0x94] sm:$0xf] %vm2199, %v2082
  %2238 = vst.msk [vmem:[#allocation3 + $0x98] sm:$0xf] %vm2199, %v2084
  %2239 = vst.msk [vmem:[#allocation3 + $0x9c] sm:$0xf] %vm2199, %v2086
  %2240 = vst.msk [vmem:[#allocation3 + $0xa0] sm:$0xf] %vm2199, %v2088
  %2241 = vst.msk [vmem:[#allocation3 + $0xa4] sm:$0xf] %vm2199, %v2090
  %2242 = vst.msk [vmem:[#allocation3 + $0xa8] sm:$0xf] %vm2199, %v2092
  %2243 = vst.msk [vmem:[#allocation3 + $0xac] sm:$0xf] %vm2199, %v2094
  %2244 = vst.msk [vmem:[#allocation3 + $0xb0] sm:$0xf] %vm2199, %v2096
  %2245 = vst.msk [vmem:[#allocation3 + $0xb4] sm:$0xf] %vm2199, %v2098
  %2246 = vst.msk [vmem:[#allocation3 + $0xb8] sm:$0xf] %vm2199, %v2100
  %2247 = vst.msk [vmem:[#allocation3 + $0xbc] sm:$0xf] %vm2199, %v2102
  %2248 = vst.msk [vmem:[#allocation3 + $0xc0] sm:$0xf] %vm2199, %v2104
  %2249 = vst.msk [vmem:[#allocation3 + $0xc4] sm:$0xf] %vm2199, %v2106
  %2250 = vst.msk [vmem:[#allocation3 + $0xc8] sm:$0xf] %vm2199, %v2108
  %2251 = vst.msk [vmem:[#allocation3 + $0xcc] sm:$0xf] %vm2199, %v2110
  %2252 = vst.msk [vmem:[#allocation3 + $0xd0] sm:$0xf] %vm2199, %v2112
  %2253 = vst.msk [vmem:[#allocation3 + $0xd4] sm:$0xf] %vm2199, %v2114
  %2254 = vst.msk [vmem:[#allocation3 + $0xd8] sm:$0xf] %vm2199, %v2116
  %2255 = vst.msk [vmem:[#allocation3 + $0xdc] sm:$0xf] %vm2199, %v2118
  %2256 = vst.msk [vmem:[#allocation3 + $0xe0] sm:$0xf] %vm2199, %v2120
  %2257 = vst.msk [vmem:[#allocation3 + $0xe4] sm:$0xf] %vm2199, %v2122
  %2258 = vst.msk [vmem:[#allocation3 + $0xe8] sm:$0xf] %vm2199, %v2124
  %2259 = vst.msk [vmem:[#allocation3 + $0xec] sm:$0xf] %vm2199, %v2126
  %2260 = vst.msk [vmem:[#allocation3 + $0xf0] sm:$0xf] %vm2199, %v2128
  %2261 = vst.msk [vmem:[#allocation3 + $0xf4] sm:$0xf] %vm2199, %v2130
  %2262 = vst.msk [vmem:[#allocation3 + $0xf8] sm:$0xf] %vm2199, %v2132
  %2263 = vst.msk [vmem:[#allocation3 + $0xfc] sm:$0xf] %vm2199, %v2134
  %v2264 = vld [vmem:[%s210 + $0x2] sm:$0xff]
  %v2265 = vld [vmem:[%s210 + $0xa] sm:$0xff]
  %v2266 = vld [vmem:[%s210 + $0x1a] sm:$0xff]
  %v2267 = vld [vmem:[%s210 + $0x22] sm:$0xff]
  %v2268 = vld [vmem:[%s210 + $0x32] sm:$0xff]
  %v2269 = vld [vmem:[%s210 + $0x3a] sm:$0xff]
  %v2270 = vld [vmem:[%s210 + $0x4a] sm:$0xff]
  %v2271 = vld [vmem:[%s210 + $0x52] sm:$0xff]
  %v2272 = vld [vmem:[%s210 + $0x62] sm:$0xff]
  %v2273 = vld [vmem:[%s210 + $0x6a] sm:$0xff]
  %v2274 = vld [vmem:[%s210 + $0x7a] sm:$0xff]
  %v2275 = vld [vmem:[%s210 + $0x82] sm:$0xff]
  %v2276 = vld [vmem:[%s210 + $0x92] sm:$0xff]
  %v2277 = vld [vmem:[%s210 + $0x9a] sm:$0xff]
  %v2278 = vld [vmem:[%s210 + $0xaa] sm:$0xff]
  %v2279 = vld [vmem:[%s210 + $0xb2] sm:$0xff]
  %v2280 = vld [vmem:[%s210 + $0xc2] sm:$0xff]
  %v2281 = vld [vmem:[%s210 + $0xca] sm:$0xff]
  %v2282 = vld [vmem:[%s210 + $0xda] sm:$0xff]
  %v2283 = vld [vmem:[%s210 + $0xe2] sm:$0xff]
  %v2284 = vld [vmem:[%s210 + $0xf2] sm:$0xff]
  %v2285 = vld [vmem:[%s210 + $0xfa] sm:$0xff]
  %v2286 = vld [vmem:[%s210 + $0x10a] sm:$0xff]
  %v2287 = vld [vmem:[%s210 + $0x112] sm:$0xff]
  %v2288 = vld [vmem:[%s210 + $0x122] sm:$0xff]
  %v2289 = vld [vmem:[%s210 + $0x12a] sm:$0xff]
  %v2290 = vld [vmem:[%s210 + $0x13a] sm:$0xff]
  %v2291 = vld [vmem:[%s210 + $0x142] sm:$0xff]
  %v2292 = vld [vmem:[%s210 + $0x152] sm:$0xff]
  %v2293 = vld [vmem:[%s210 + $0x15a] sm:$0xff]
  %v2294 = vld [vmem:[%s210 + $0x16a] sm:$0xff]
  %v2295 = vld [vmem:[%s210 + $0x172] sm:$0xff]
  %v2296 = vld [vmem:[%s210 + $0x1b2] sm:$0xff]
  %v2297 = vld [vmem:[%s210 + $0x1ba] sm:$0xff]
  %v2298 = vld [vmem:[%s210 + $0x1ca] sm:$0xff]
  %v2299 = vld [vmem:[%s210 + $0x1d2] sm:$0xff]
  %v2300 = vld [vmem:[%s210 + $0x1e2] sm:$0xff]
  %v2301 = vld [vmem:[%s210 + $0x1ea] sm:$0xff]
  %v2302 = vld [vmem:[%s210 + $0x1fa] sm:$0xff]
  %v2303 = vld [vmem:[%s210 + $0x202] sm:$0xff]
  %v2304 = vld [vmem:[%s210 + $0x212] sm:$0xff]
  %v2305 = vld [vmem:[%s210 + $0x21a] sm:$0xff]
  %v2306 = vld [vmem:[%s210 + $0x22a] sm:$0xff]
  %v2307 = vld [vmem:[%s210 + $0x232] sm:$0xff]
  %v2308 = vld [vmem:[%s210 + $0x242] sm:$0xff]
  %v2309 = vld [vmem:[%s210 + $0x24a] sm:$0xff]
  %v2310 = vld [vmem:[%s210 + $0x25a] sm:$0xff]
  %v2311 = vld [vmem:[%s210 + $0x262] sm:$0xff]
  %v2312 = vld [vmem:[%s210 + $0x272] sm:$0xff]
  %v2313 = vld [vmem:[%s210 + $0x27a] sm:$0xff]
  %v2314 = vld [vmem:[%s210 + $0x28a] sm:$0xff]
  %v2315 = vld [vmem:[%s210 + $0x292] sm:$0xff]
  %v2316 = vld [vmem:[%s210 + $0x2a2] sm:$0xff]
  %v2317 = vld [vmem:[%s210 + $0x2aa] sm:$0xff]
  %v2318 = vld [vmem:[%s210 + $0x2ba] sm:$0xff]
  %v2319 = vld [vmem:[%s210 + $0x2c2] sm:$0xff]
  %v2320 = vld [vmem:[%s210 + $0x2d2] sm:$0xff]
  %v2321 = vld [vmem:[%s210 + $0x2da] sm:$0xff]
  %v2322 = vld [vmem:[%s210 + $0x2ea] sm:$0xff]
  %v2323 = vld [vmem:[%s210 + $0x2f2] sm:$0xff]
  %v2324 = vld [vmem:[%s210 + $0x302] sm:$0xff]
  %v2325 = vld [vmem:[%s210 + $0x30a] sm:$0xff]
  %v2326 = vld [vmem:[%s210 + $0x31a] sm:$0xff]
  %v2327 = vld [vmem:[%s210 + $0x322] sm:$0xff]
  %v2328 = vpack.c.bf16 %v2264, %v2264
  %v2329 = vpack.c.bf16 %v2265, %v2265
  %v2330 = vpack.c.bf16 %v2266, %v2266
  %v2331 = vpack.c.bf16 %v2267, %v2267
  %v2332 = vpack.c.bf16 %v2268, %v2268
  %v2333 = vpack.c.bf16 %v2269, %v2269
  %v2334 = vpack.c.bf16 %v2270, %v2270
  %v2335 = vpack.c.bf16 %v2271, %v2271
  %v2336 = vpack.c.bf16 %v2272, %v2272
  %v2337 = vpack.c.bf16 %v2273, %v2273
  %v2338 = vpack.c.bf16 %v2274, %v2274
  %v2339 = vpack.c.bf16 %v2275, %v2275
  %v2340 = vpack.c.bf16 %v2276, %v2276
  %v2341 = vpack.c.bf16 %v2277, %v2277
  %v2342 = vpack.c.bf16 %v2278, %v2278
  %v2343 = vpack.c.bf16 %v2279, %v2279
  %v2344 = vpack.c.bf16 %v2280, %v2280
  %v2345 = vpack.c.bf16 %v2281, %v2281
  %v2346 = vpack.c.bf16 %v2282, %v2282
  %v2347 = vpack.c.bf16 %v2283, %v2283
  %v2348 = vpack.c.bf16 %v2284, %v2284
  %v2349 = vpack.c.bf16 %v2285, %v2285
  %v2350 = vpack.c.bf16 %v2286, %v2286
  %v2351 = vpack.c.bf16 %v2287, %v2287
  %v2352 = vpack.c.bf16 %v2288, %v2288
  %v2353 = vpack.c.bf16 %v2289, %v2289
  %v2354 = vpack.c.bf16 %v2290, %v2290
  %v2355 = vpack.c.bf16 %v2291, %v2291
  %v2356 = vpack.c.bf16 %v2292, %v2292
  %v2357 = vpack.c.bf16 %v2293, %v2293
  %v2358 = vpack.c.bf16 %v2294, %v2294
  %v2359 = vpack.c.bf16 %v2295, %v2295
  %v2360 = vpack.c.bf16 %v2296, %v2296
  %v2361 = vpack.c.bf16 %v2297, %v2297
  %v2362 = vpack.c.bf16 %v2298, %v2298
  %v2363 = vpack.c.bf16 %v2299, %v2299
  %v2364 = vpack.c.bf16 %v2300, %v2300
  %v2365 = vpack.c.bf16 %v2301, %v2301
  %v2366 = vpack.c.bf16 %v2302, %v2302
  %v2367 = vpack.c.bf16 %v2303, %v2303
  %v2368 = vpack.c.bf16 %v2304, %v2304
  %v2369 = vpack.c.bf16 %v2305, %v2305
  %v2370 = vpack.c.bf16 %v2306, %v2306
  %v2371 = vpack.c.bf16 %v2307, %v2307
  %v2372 = vpack.c.bf16 %v2308, %v2308
  %v2373 = vpack.c.bf16 %v2309, %v2309
  %v2374 = vpack.c.bf16 %v2310, %v2310
  %v2375 = vpack.c.bf16 %v2311, %v2311
  %v2376 = vpack.c.bf16 %v2312, %v2312
  %v2377 = vpack.c.bf16 %v2313, %v2313
  %v2378 = vpack.c.bf16 %v2314, %v2314
  %v2379 = vpack.c.bf16 %v2315, %v2315
  %v2380 = vpack.c.bf16 %v2316, %v2316
  %v2381 = vpack.c.bf16 %v2317, %v2317
  %v2382 = vpack.c.bf16 %v2318, %v2318
  %v2383 = vpack.c.bf16 %v2319, %v2319
  %v2384 = vpack.c.bf16 %v2320, %v2320
  %v2385 = vpack.c.bf16 %v2321, %v2321
  %v2386 = vpack.c.bf16 %v2322, %v2322
  %v2387 = vpack.c.bf16 %v2323, %v2323
  %v2388 = vpack.c.bf16 %v2324, %v2324
  %v2389 = vpack.c.bf16 %v2325, %v2325
  %v2390 = vpack.c.bf16 %v2326, %v2326
  %v2391 = vpack.c.bf16 %v2327, %v2327
  %2456 = vrot.lane.b32.xlu0 %v2328, 20
  %v2457 = vpop.permute.xlu0 %2456
  %2458 = vrot.lane.b32.xlu0 %v2329, 20
  %v2459 = vpop.permute.xlu0 %2458
  %2460 = vrot.lane.b32.xlu0 %v2330, 20
  %v2461 = vpop.permute.xlu0 %2460
  %2462 = vrot.lane.b32.xlu0 %v2331, 20
  %v2463 = vpop.permute.xlu0 %2462
  %2464 = vrot.lane.b32.xlu0 %v2332, 20
  %v2465 = vpop.permute.xlu0 %2464
  %2466 = vrot.lane.b32.xlu0 %v2333, 20
  %v2467 = vpop.permute.xlu0 %2466
  %2468 = vrot.lane.b32.xlu0 %v2334, 20
  %v2469 = vpop.permute.xlu0 %2468
  %2470 = vrot.lane.b32.xlu0 %v2335, 20
  %v2471 = vpop.permute.xlu0 %2470
  %2472 = vrot.lane.b32.xlu0 %v2336, 20
  %v2473 = vpop.permute.xlu0 %2472
  %2474 = vrot.lane.b32.xlu0 %v2337, 20
  %v2475 = vpop.permute.xlu0 %2474
  %2476 = vrot.lane.b32.xlu0 %v2338, 20
  %v2477 = vpop.permute.xlu0 %2476
  %2478 = vrot.lane.b32.xlu0 %v2339, 20
  %v2479 = vpop.permute.xlu0 %2478
  %2480 = vrot.lane.b32.xlu0 %v2340, 20
  %v2481 = vpop.permute.xlu0 %2480
  %2482 = vrot.lane.b32.xlu0 %v2341, 20
  %v2483 = vpop.permute.xlu0 %2482
  %2484 = vrot.lane.b32.xlu0 %v2342, 20
  %v2485 = vpop.permute.xlu0 %2484
  %2486 = vrot.lane.b32.xlu0 %v2343, 20
  %v2487 = vpop.permute.xlu0 %2486
  %2488 = vrot.lane.b32.xlu0 %v2344, 20
  %v2489 = vpop.permute.xlu0 %2488
  %2490 = vrot.lane.b32.xlu0 %v2345, 20
  %v2491 = vpop.permute.xlu0 %2490
  %2492 = vrot.lane.b32.xlu0 %v2346, 20
  %v2493 = vpop.permute.xlu0 %2492
  %2494 = vrot.lane.b32.xlu0 %v2347, 20
  %v2495 = vpop.permute.xlu0 %2494
  %2496 = vrot.lane.b32.xlu0 %v2348, 20
  %v2497 = vpop.permute.xlu0 %2496
  %2498 = vrot.lane.b32.xlu0 %v2349, 20
  %v2499 = vpop.permute.xlu0 %2498
  %2500 = vrot.lane.b32.xlu0 %v2350, 20
  %v2501 = vpop.permute.xlu0 %2500
  %2502 = vrot.lane.b32.xlu0 %v2351, 20
  %v2503 = vpop.permute.xlu0 %2502
  %2504 = vrot.lane.b32.xlu0 %v2352, 20
  %v2505 = vpop.permute.xlu0 %2504
  %2506 = vrot.lane.b32.xlu0 %v2353, 20
  %v2507 = vpop.permute.xlu0 %2506
  %2508 = vrot.lane.b32.xlu0 %v2354, 20
  %v2509 = vpop.permute.xlu0 %2508
  %2510 = vrot.lane.b32.xlu0 %v2355, 20
  %v2511 = vpop.permute.xlu0 %2510
  %2512 = vrot.lane.b32.xlu0 %v2356, 20
  %v2513 = vpop.permute.xlu0 %2512
  %2514 = vrot.lane.b32.xlu0 %v2357, 20
  %v2515 = vpop.permute.xlu0 %2514
  %2516 = vrot.lane.b32.xlu0 %v2358, 20
  %v2517 = vpop.permute.xlu0 %2516
  %2518 = vrot.lane.b32.xlu0 %v2359, 20
  %v2519 = vpop.permute.xlu0 %2518
  %2520 = vrot.lane.b32.xlu0 %v2360, 20
  %v2521 = vpop.permute.xlu0 %2520
  %2522 = vrot.lane.b32.xlu0 %v2361, 20
  %v2523 = vpop.permute.xlu0 %2522
  %2524 = vrot.lane.b32.xlu0 %v2362, 20
  %v2525 = vpop.permute.xlu0 %2524
  %2526 = vrot.lane.b32.xlu0 %v2363, 20
  %v2527 = vpop.permute.xlu0 %2526
  %2528 = vrot.lane.b32.xlu0 %v2364, 20
  %v2529 = vpop.permute.xlu0 %2528
  %2530 = vrot.lane.b32.xlu0 %v2365, 20
  %v2531 = vpop.permute.xlu0 %2530
  %2532 = vrot.lane.b32.xlu0 %v2366, 20
  %v2533 = vpop.permute.xlu0 %2532
  %2534 = vrot.lane.b32.xlu0 %v2367, 20
  %v2535 = vpop.permute.xlu0 %2534
  %2536 = vrot.lane.b32.xlu0 %v2368, 20
  %v2537 = vpop.permute.xlu0 %2536
  %2538 = vrot.lane.b32.xlu0 %v2369, 20
  %v2539 = vpop.permute.xlu0 %2538
  %2540 = vrot.lane.b32.xlu0 %v2370, 20
  %v2541 = vpop.permute.xlu0 %2540
  %2542 = vrot.lane.b32.xlu0 %v2371, 20
  %v2543 = vpop.permute.xlu0 %2542
  %2544 = vrot.lane.b32.xlu0 %v2372, 20
  %v2545 = vpop.permute.xlu0 %2544
  %2546 = vrot.lane.b32.xlu0 %v2373, 20
  %v2547 = vpop.permute.xlu0 %2546
  %2548 = vrot.lane.b32.xlu0 %v2374, 20
  %v2549 = vpop.permute.xlu0 %2548
  %2550 = vrot.lane.b32.xlu0 %v2375, 20
  %v2551 = vpop.permute.xlu0 %2550
  %2552 = vrot.lane.b32.xlu0 %v2376, 20
  %v2553 = vpop.permute.xlu0 %2552
  %2554 = vrot.lane.b32.xlu0 %v2377, 20
  %v2555 = vpop.permute.xlu0 %2554
  %2556 = vrot.lane.b32.xlu0 %v2378, 20
  %v2557 = vpop.permute.xlu0 %2556
  %2558 = vrot.lane.b32.xlu0 %v2379, 20
  %v2559 = vpop.permute.xlu0 %2558
  %2560 = vrot.lane.b32.xlu0 %v2380, 20
  %v2561 = vpop.permute.xlu0 %2560
  %2562 = vrot.lane.b32.xlu0 %v2381, 20
  %v2563 = vpop.permute.xlu0 %2562
  %2564 = vrot.lane.b32.xlu0 %v2382, 20
  %v2565 = vpop.permute.xlu0 %2564
  %2566 = vrot.lane.b32.xlu0 %v2383, 20
  %v2567 = vpop.permute.xlu0 %2566
  %2568 = vrot.lane.b32.xlu0 %v2384, 20
  %v2569 = vpop.permute.xlu0 %2568
  %2570 = vrot.lane.b32.xlu0 %v2385, 20
  %v2571 = vpop.permute.xlu0 %2570
  %2572 = vrot.lane.b32.xlu0 %v2386, 20
  %v2573 = vpop.permute.xlu0 %2572
  %2574 = vrot.lane.b32.xlu0 %v2387, 20
  %v2575 = vpop.permute.xlu0 %2574
  %2576 = vrot.lane.b32.xlu0 %v2388, 20
  %v2577 = vpop.permute.xlu0 %2576
  %2578 = vrot.lane.b32.xlu0 %v2389, 20
  %v2579 = vpop.permute.xlu0 %2578
  %2580 = vrot.lane.b32.xlu0 %v2390, 20
  %v2581 = vpop.permute.xlu0 %2580
  %2582 = vrot.lane.b32.xlu0 %v2391, 20
  %v2583 = vpop.permute.xlu0 %2582
  %vm2648 = vcmask 191648
  %2649 = vst.msk [vmem:[#allocation3] sm:$0xf] %vm2648, %v2457
  %2650 = vst.msk [vmem:[#allocation3 + $0x4] sm:$0xf] %vm2648, %v2459
  %2651 = vst.msk [vmem:[#allocation3 + $0x8] sm:$0xf] %vm2648, %v2461
  %2652 = vst.msk [vmem:[#allocation3 + $0xc] sm:$0xf] %vm2648, %v2463
  %2653 = vst.msk [vmem:[#allocation3 + $0x10] sm:$0xf] %vm2648, %v2465
  %2654 = vst.msk [vmem:[#allocation3 + $0x14] sm:$0xf] %vm2648, %v2467
  %2655 = vst.msk [vmem:[#allocation3 + $0x18] sm:$0xf] %vm2648, %v2469
  %2656 = vst.msk [vmem:[#allocation3 + $0x1c] sm:$0xf] %vm2648, %v2471
  %2657 = vst.msk [vmem:[#allocation3 + $0x20] sm:$0xf] %vm2648, %v2473
  %2658 = vst.msk [vmem:[#allocation3 + $0x24] sm:$0xf] %vm2648, %v2475
  %2659 = vst.msk [vmem:[#allocation3 + $0x28] sm:$0xf] %vm2648, %v2477
  %2660 = vst.msk [vmem:[#allocation3 + $0x2c] sm:$0xf] %vm2648, %v2479
  %2661 = vst.msk [vmem:[#allocation3 + $0x30] sm:$0xf] %vm2648, %v2481
  %2662 = vst.msk [vmem:[#allocation3 + $0x34] sm:$0xf] %vm2648, %v2483
  %2663 = vst.msk [vmem:[#allocation3 + $0x38] sm:$0xf] %vm2648, %v2485
  %2664 = vst.msk [vmem:[#allocation3 + $0x3c] sm:$0xf] %vm2648, %v2487
  %2665 = vst.msk [vmem:[#allocation3 + $0x40] sm:$0xf] %vm2648, %v2489
  %2666 = vst.msk [vmem:[#allocation3 + $0x44] sm:$0xf] %vm2648, %v2491
  %2667 = vst.msk [vmem:[#allocation3 + $0x48] sm:$0xf] %vm2648, %v2493
  %2668 = vst.msk [vmem:[#allocation3 + $0x4c] sm:$0xf] %vm2648, %v2495
  %2669 = vst.msk [vmem:[#allocation3 + $0x50] sm:$0xf] %vm2648, %v2497
  %2670 = vst.msk [vmem:[#allocation3 + $0x54] sm:$0xf] %vm2648, %v2499
  %2671 = vst.msk [vmem:[#allocation3 + $0x58] sm:$0xf] %vm2648, %v2501
  %2672 = vst.msk [vmem:[#allocation3 + $0x5c] sm:$0xf] %vm2648, %v2503
  %2673 = vst.msk [vmem:[#allocation3 + $0x60] sm:$0xf] %vm2648, %v2505
  %2674 = vst.msk [vmem:[#allocation3 + $0x64] sm:$0xf] %vm2648, %v2507
  %2675 = vst.msk [vmem:[#allocation3 + $0x68] sm:$0xf] %vm2648, %v2509
  %2676 = vst.msk [vmem:[#allocation3 + $0x6c] sm:$0xf] %vm2648, %v2511
  %2677 = vst.msk [vmem:[#allocation3 + $0x70] sm:$0xf] %vm2648, %v2513
  %2678 = vst.msk [vmem:[#allocation3 + $0x74] sm:$0xf] %vm2648, %v2515
  %2679 = vst.msk [vmem:[#allocation3 + $0x78] sm:$0xf] %vm2648, %v2517
  %2680 = vst.msk [vmem:[#allocation3 + $0x7c] sm:$0xf] %vm2648, %v2519
  %2681 = vst.msk [vmem:[#allocation3 + $0x80] sm:$0xf] %vm2648, %v2521
  %2682 = vst.msk [vmem:[#allocation3 + $0x84] sm:$0xf] %vm2648, %v2523
  %2683 = vst.msk [vmem:[#allocation3 + $0x88] sm:$0xf] %vm2648, %v2525
  %2684 = vst.msk [vmem:[#allocation3 + $0x8c] sm:$0xf] %vm2648, %v2527
  %2685 = vst.msk [vmem:[#allocation3 + $0x90] sm:$0xf] %vm2648, %v2529
  %2686 = vst.msk [vmem:[#allocation3 + $0x94] sm:$0xf] %vm2648, %v2531
  %2687 = vst.msk [vmem:[#allocation3 + $0x98] sm:$0xf] %vm2648, %v2533
  %2688 = vst.msk [vmem:[#allocation3 + $0x9c] sm:$0xf] %vm2648, %v2535
  %2689 = vst.msk [vmem:[#allocation3 + $0xa0] sm:$0xf] %vm2648, %v2537
  %2690 = vst.msk [vmem:[#allocation3 + $0xa4] sm:$0xf] %vm2648, %v2539
  %2691 = vst.msk [vmem:[#allocation3 + $0xa8] sm:$0xf] %vm2648, %v2541
  %2692 = vst.msk [vmem:[#allocation3 + $0xac] sm:$0xf] %vm2648, %v2543
  %2693 = vst.msk [vmem:[#allocation3 + $0xb0] sm:$0xf] %vm2648, %v2545
  %2694 = vst.msk [vmem:[#allocation3 + $0xb4] sm:$0xf] %vm2648, %v2547
  %2695 = vst.msk [vmem:[#allocation3 + $0xb8] sm:$0xf] %vm2648, %v2549
  %2696 = vst.msk [vmem:[#allocation3 + $0xbc] sm:$0xf] %vm2648, %v2551
  %2697 = vst.msk [vmem:[#allocation3 + $0xc0] sm:$0xf] %vm2648, %v2553
  %2698 = vst.msk [vmem:[#allocation3 + $0xc4] sm:$0xf] %vm2648, %v2555
  %2699 = vst.msk [vmem:[#allocation3 + $0xc8] sm:$0xf] %vm2648, %v2557
  %2700 = vst.msk [vmem:[#allocation3 + $0xcc] sm:$0xf] %vm2648, %v2559
  %2701 = vst.msk [vmem:[#allocation3 + $0xd0] sm:$0xf] %vm2648, %v2561
  %2702 = vst.msk [vmem:[#allocation3 + $0xd4] sm:$0xf] %vm2648, %v2563
  %2703 = vst.msk [vmem:[#allocation3 + $0xd8] sm:$0xf] %vm2648, %v2565
  %2704 = vst.msk [vmem:[#allocation3 + $0xdc] sm:$0xf] %vm2648, %v2567
  %2705 = vst.msk [vmem:[#allocation3 + $0xe0] sm:$0xf] %vm2648, %v2569
  %2706 = vst.msk [vmem:[#allocation3 + $0xe4] sm:$0xf] %vm2648, %v2571
  %2707 = vst.msk [vmem:[#allocation3 + $0xe8] sm:$0xf] %vm2648, %v2573
  %2708 = vst.msk [vmem:[#allocation3 + $0xec] sm:$0xf] %vm2648, %v2575
  %2709 = vst.msk [vmem:[#allocation3 + $0xf0] sm:$0xf] %vm2648, %v2577
  %2710 = vst.msk [vmem:[#allocation3 + $0xf4] sm:$0xf] %vm2648, %v2579
  %2711 = vst.msk [vmem:[#allocation3 + $0xf8] sm:$0xf] %vm2648, %v2581
  %2712 = vst.msk [vmem:[#allocation3 + $0xfc] sm:$0xf] %vm2648, %v2583
  %s2713 = scalar_lea.vmem [#allocation2], 48
  %v2714 = vld [vmem:[%s2713] sm:$0xff]
  %v2715 = vld [vmem:[%s2713 + $0x8] sm:$0xff]
  %v2716 = vld [vmem:[%s2713 + $0x18] sm:$0xff]
  %v2717 = vld [vmem:[%s2713 + $0x20] sm:$0xff]
  %v2718 = vld [vmem:[%s2713 + $0x30] sm:$0xff]
  %v2719 = vld [vmem:[%s2713 + $0x38] sm:$0xff]
  %v2720 = vld [vmem:[%s2713 + $0x48] sm:$0xff]
  %v2721 = vld [vmem:[%s2713 + $0x50] sm:$0xff]
  %v2722 = vld [vmem:[%s2713 + $0x60] sm:$0xff]
  %v2723 = vld [vmem:[%s2713 + $0x68] sm:$0xff]
  %v2724 = vld [vmem:[%s2713 + $0x78] sm:$0xff]
  %v2725 = vld [vmem:[%s2713 + $0x80] sm:$0xff]
  %v2726 = vld [vmem:[%s2713 + $0x90] sm:$0xff]
  %v2727 = vld [vmem:[%s2713 + $0x98] sm:$0xff]
  %v2728 = vld [vmem:[%s2713 + $0xa8] sm:$0xff]
  %v2729 = vld [vmem:[%s2713 + $0xb0] sm:$0xff]
  %v2730 = vld [vmem:[%s2713 + $0xc0] sm:$0xff]
  %v2731 = vld [vmem:[%s2713 + $0xc8] sm:$0xff]
  %v2732 = vld [vmem:[%s2713 + $0xd8] sm:$0xff]
  %v2733 = vld [vmem:[%s2713 + $0xe0] sm:$0xff]
  %v2734 = vld [vmem:[%s2713 + $0xf0] sm:$0xff]
  %v2735 = vld [vmem:[%s2713 + $0xf8] sm:$0xff]
  %v2736 = vld [vmem:[%s2713 + $0x108] sm:$0xff]
  %v2737 = vld [vmem:[%s2713 + $0x110] sm:$0xff]
  %v2738 = vld [vmem:[%s2713 + $0x120] sm:$0xff]
  %v2739 = vld [vmem:[%s2713 + $0x128] sm:$0xff]
  %v2740 = vld [vmem:[%s2713 + $0x138] sm:$0xff]
  %v2741 = vld [vmem:[%s2713 + $0x140] sm:$0xff]
  %v2742 = vld [vmem:[%s2713 + $0x150] sm:$0xff]
  %v2743 = vld [vmem:[%s2713 + $0x158] sm:$0xff]
  %v2744 = vld [vmem:[%s2713 + $0x168] sm:$0xff]
  %v2745 = vld [vmem:[%s2713 + $0x170] sm:$0xff]
  %v2746 = vld [vmem:[%s2713 + $0x1b0] sm:$0xff]
  %v2747 = vld [vmem:[%s2713 + $0x1b8] sm:$0xff]
  %v2748 = vld [vmem:[%s2713 + $0x1c8] sm:$0xff]
  %v2749 = vld [vmem:[%s2713 + $0x1d0] sm:$0xff]
  %v2750 = vld [vmem:[%s2713 + $0x1e0] sm:$0xff]
  %v2751 = vld [vmem:[%s2713 + $0x1e8] sm:$0xff]
  %v2752 = vld [vmem:[%s2713 + $0x1f8] sm:$0xff]
  %v2753 = vld [vmem:[%s2713 + $0x200] sm:$0xff]
  %v2754 = vld [vmem:[%s2713 + $0x210] sm:$0xff]
  %v2755 = vld [vmem:[%s2713 + $0x218] sm:$0xff]
  %v2756 = vld [vmem:[%s2713 + $0x228] sm:$0xff]
  %v2757 = vld [vmem:[%s2713 + $0x230] sm:$0xff]
  %v2758 = vld [vmem:[%s2713 + $0x240] sm:$0xff]
  %v2759 = vld [vmem:[%s2713 + $0x248] sm:$0xff]
  %v2760 = vld [vmem:[%s2713 + $0x258] sm:$0xff]
  %v2761 = vld [vmem:[%s2713 + $0x260] sm:$0xff]
  %v2762 = vld [vmem:[%s2713 + $0x270] sm:$0xff]
  %v2763 = vld [vmem:[%s2713 + $0x278] sm:$0xff]
  %v2764 = vld [vmem:[%s2713 + $0x288] sm:$0xff]
  %v2765 = vld [vmem:[%s2713 + $0x290] sm:$0xff]
  %v2766 = vld [vmem:[%s2713 + $0x2a0] sm:$0xff]
  %v2767 = vld [vmem:[%s2713 + $0x2a8] sm:$0xff]
  %v2768 = vld [vmem:[%s2713 + $0x2b8] sm:$0xff]
  %v2769 = vld [vmem:[%s2713 + $0x2c0] sm:$0xff]
  %v2770 = vld [vmem:[%s2713 + $0x2d0] sm:$0xff]
  %v2771 = vld [vmem:[%s2713 + $0x2d8] sm:$0xff]
  %v2772 = vld [vmem:[%s2713 + $0x2e8] sm:$0xff]
  %v2773 = vld [vmem:[%s2713 + $0x2f0] sm:$0xff]
  %v2774 = vld [vmem:[%s2713 + $0x300] sm:$0xff]
  %v2775 = vld [vmem:[%s2713 + $0x308] sm:$0xff]
  %v2776 = vld [vmem:[%s2713 + $0x318] sm:$0xff]
  %v2777 = vld [vmem:[%s2713 + $0x320] sm:$0xff]
  %v2778 = vpack.c.bf16 %v2714, %v2714
  %v2779 = vpack.c.bf16 %v2715, %v2715
  %v2780 = vpack.c.bf16 %v2716, %v2716
  %v2781 = vpack.c.bf16 %v2717, %v2717
  %v2782 = vpack.c.bf16 %v2718, %v2718
  %v2783 = vpack.c.bf16 %v2719, %v2719
  %v2784 = vpack.c.bf16 %v2720, %v2720
  %v2785 = vpack.c.bf16 %v2721, %v2721
  %v2786 = vpack.c.bf16 %v2722, %v2722
  %v2787 = vpack.c.bf16 %v2723, %v2723
  %v2788 = vpack.c.bf16 %v2724, %v2724
  %v2789 = vpack.c.bf16 %v2725, %v2725
  %v2790 = vpack.c.bf16 %v2726, %v2726
  %v2791 = vpack.c.bf16 %v2727, %v2727
  %v2792 = vpack.c.bf16 %v2728, %v2728
  %v2793 = vpack.c.bf16 %v2729, %v2729
  %v2794 = vpack.c.bf16 %v2730, %v2730
  %v2795 = vpack.c.bf16 %v2731, %v2731
  %v2796 = vpack.c.bf16 %v2732, %v2732
  %v2797 = vpack.c.bf16 %v2733, %v2733
  %v2798 = vpack.c.bf16 %v2734, %v2734
  %v2799 = vpack.c.bf16 %v2735, %v2735
  %v2800 = vpack.c.bf16 %v2736, %v2736
  %v2801 = vpack.c.bf16 %v2737, %v2737
  %v2802 = vpack.c.bf16 %v2738, %v2738
  %v2803 = vpack.c.bf16 %v2739, %v2739
  %v2804 = vpack.c.bf16 %v2740, %v2740
  %v2805 = vpack.c.bf16 %v2741, %v2741
  %v2806 = vpack.c.bf16 %v2742, %v2742
  %v2807 = vpack.c.bf16 %v2743, %v2743
  %v2808 = vpack.c.bf16 %v2744, %v2744
  %v2809 = vpack.c.bf16 %v2745, %v2745
  %v2810 = vpack.c.bf16 %v2746, %v2746
  %v2811 = vpack.c.bf16 %v2747, %v2747
  %v2812 = vpack.c.bf16 %v2748, %v2748
  %v2813 = vpack.c.bf16 %v2749, %v2749
  %v2814 = vpack.c.bf16 %v2750, %v2750
  %v2815 = vpack.c.bf16 %v2751, %v2751
  %v2816 = vpack.c.bf16 %v2752, %v2752
  %v2817 = vpack.c.bf16 %v2753, %v2753
  %v2818 = vpack.c.bf16 %v2754, %v2754
  %v2819 = vpack.c.bf16 %v2755, %v2755
  %v2820 = vpack.c.bf16 %v2756, %v2756
  %v2821 = vpack.c.bf16 %v2757, %v2757
  %v2822 = vpack.c.bf16 %v2758, %v2758
  %v2823 = vpack.c.bf16 %v2759, %v2759
  %v2824 = vpack.c.bf16 %v2760, %v2760
  %v2825 = vpack.c.bf16 %v2761, %v2761
  %v2826 = vpack.c.bf16 %v2762, %v2762
  %v2827 = vpack.c.bf16 %v2763, %v2763
  %v2828 = vpack.c.bf16 %v2764, %v2764
  %v2829 = vpack.c.bf16 %v2765, %v2765
  %v2830 = vpack.c.bf16 %v2766, %v2766
  %v2831 = vpack.c.bf16 %v2767, %v2767
  %v2832 = vpack.c.bf16 %v2768, %v2768
  %v2833 = vpack.c.bf16 %v2769, %v2769
  %v2834 = vpack.c.bf16 %v2770, %v2770
  %v2835 = vpack.c.bf16 %v2771, %v2771
  %v2836 = vpack.c.bf16 %v2772, %v2772
  %v2837 = vpack.c.bf16 %v2773, %v2773
  %v2838 = vpack.c.bf16 %v2774, %v2774
  %v2839 = vpack.c.bf16 %v2775, %v2775
  %v2840 = vpack.c.bf16 %v2776, %v2776
  %v2841 = vpack.c.bf16 %v2777, %v2777
  %2906 = vrot.lane.b32.xlu0 %v2778, 24
  %v2907 = vpop.permute.xlu0 %2906
  %2908 = vrot.lane.b32.xlu0 %v2779, 24
  %v2909 = vpop.permute.xlu0 %2908
  %2910 = vrot.lane.b32.xlu0 %v2780, 24
  %v2911 = vpop.permute.xlu0 %2910
  %2912 = vrot.lane.b32.xlu0 %v2781, 24
  %v2913 = vpop.permute.xlu0 %2912
  %2914 = vrot.lane.b32.xlu0 %v2782, 24
  %v2915 = vpop.permute.xlu0 %2914
  %2916 = vrot.lane.b32.xlu0 %v2783, 24
  %v2917 = vpop.permute.xlu0 %2916
  %2918 = vrot.lane.b32.xlu0 %v2784, 24
  %v2919 = vpop.permute.xlu0 %2918
  %2920 = vrot.lane.b32.xlu0 %v2785, 24
  %v2921 = vpop.permute.xlu0 %2920
  %2922 = vrot.lane.b32.xlu0 %v2786, 24
  %v2923 = vpop.permute.xlu0 %2922
  %2924 = vrot.lane.b32.xlu0 %v2787, 24
  %v2925 = vpop.permute.xlu0 %2924
  %2926 = vrot.lane.b32.xlu0 %v2788, 24
  %v2927 = vpop.permute.xlu0 %2926
  %2928 = vrot.lane.b32.xlu0 %v2789, 24
  %v2929 = vpop.permute.xlu0 %2928
  %2930 = vrot.lane.b32.xlu0 %v2790, 24
  %v2931 = vpop.permute.xlu0 %2930
  %2932 = vrot.lane.b32.xlu0 %v2791, 24
  %v2933 = vpop.permute.xlu0 %2932
  %2934 = vrot.lane.b32.xlu0 %v2792, 24
  %v2935 = vpop.permute.xlu0 %2934
  %2936 = vrot.lane.b32.xlu0 %v2793, 24
  %v2937 = vpop.permute.xlu0 %2936
  %2938 = vrot.lane.b32.xlu0 %v2794, 24
  %v2939 = vpop.permute.xlu0 %2938
  %2940 = vrot.lane.b32.xlu0 %v2795, 24
  %v2941 = vpop.permute.xlu0 %2940
  %2942 = vrot.lane.b32.xlu0 %v2796, 24
  %v2943 = vpop.permute.xlu0 %2942
  %2944 = vrot.lane.b32.xlu0 %v2797, 24
  %v2945 = vpop.permute.xlu0 %2944
  %2946 = vrot.lane.b32.xlu0 %v2798, 24
  %v2947 = vpop.permute.xlu0 %2946
  %2948 = vrot.lane.b32.xlu0 %v2799, 24
  %v2949 = vpop.permute.xlu0 %2948
  %2950 = vrot.lane.b32.xlu0 %v2800, 24
  %v2951 = vpop.permute.xlu0 %2950
  %2952 = vrot.lane.b32.xlu0 %v2801, 24
  %v2953 = vpop.permute.xlu0 %2952
  %2954 = vrot.lane.b32.xlu0 %v2802, 24
  %v2955 = vpop.permute.xlu0 %2954
  %2956 = vrot.lane.b32.xlu0 %v2803, 24
  %v2957 = vpop.permute.xlu0 %2956
  %2958 = vrot.lane.b32.xlu0 %v2804, 24
  %v2959 = vpop.permute.xlu0 %2958
  %2960 = vrot.lane.b32.xlu0 %v2805, 24
  %v2961 = vpop.permute.xlu0 %2960
  %2962 = vrot.lane.b32.xlu0 %v2806, 24
  %v2963 = vpop.permute.xlu0 %2962
  %2964 = vrot.lane.b32.xlu0 %v2807, 24
  %v2965 = vpop.permute.xlu0 %2964
  %2966 = vrot.lane.b32.xlu0 %v2808, 24
  %v2967 = vpop.permute.xlu0 %2966
  %2968 = vrot.lane.b32.xlu0 %v2809, 24
  %v2969 = vpop.permute.xlu0 %2968
  %2970 = vrot.lane.b32.xlu0 %v2810, 24
  %v2971 = vpop.permute.xlu0 %2970
  %2972 = vrot.lane.b32.xlu0 %v2811, 24
  %v2973 = vpop.permute.xlu0 %2972
  %2974 = vrot.lane.b32.xlu0 %v2812, 24
  %v2975 = vpop.permute.xlu0 %2974
  %2976 = vrot.lane.b32.xlu0 %v2813, 24
  %v2977 = vpop.permute.xlu0 %2976
  %2978 = vrot.lane.b32.xlu0 %v2814, 24
  %v2979 = vpop.permute.xlu0 %2978
  %2980 = vrot.lane.b32.xlu0 %v2815, 24
  %v2981 = vpop.permute.xlu0 %2980
  %2982 = vrot.lane.b32.xlu0 %v2816, 24
  %v2983 = vpop.permute.xlu0 %2982
  %2984 = vrot.lane.b32.xlu0 %v2817, 24
  %v2985 = vpop.permute.xlu0 %2984
  %2986 = vrot.lane.b32.xlu0 %v2818, 24
  %v2987 = vpop.permute.xlu0 %2986
  %2988 = vrot.lane.b32.xlu0 %v2819, 24
  %v2989 = vpop.permute.xlu0 %2988
  %2990 = vrot.lane.b32.xlu0 %v2820, 24
  %v2991 = vpop.permute.xlu0 %2990
  %2992 = vrot.lane.b32.xlu0 %v2821, 24
  %v2993 = vpop.permute.xlu0 %2992
  %2994 = vrot.lane.b32.xlu0 %v2822, 24
  %v2995 = vpop.permute.xlu0 %2994
  %2996 = vrot.lane.b32.xlu0 %v2823, 24
  %v2997 = vpop.permute.xlu0 %2996
  %2998 = vrot.lane.b32.xlu0 %v2824, 24
  %v2999 = vpop.permute.xlu0 %2998
  %3000 = vrot.lane.b32.xlu0 %v2825, 24
  %v3001 = vpop.permute.xlu0 %3000
  %3002 = vrot.lane.b32.xlu0 %v2826, 24
  %v3003 = vpop.permute.xlu0 %3002
  %3004 = vrot.lane.b32.xlu0 %v2827, 24
  %v3005 = vpop.permute.xlu0 %3004
  %3006 = vrot.lane.b32.xlu0 %v2828, 24
  %v3007 = vpop.permute.xlu0 %3006
  %3008 = vrot.lane.b32.xlu0 %v2829, 24
  %v3009 = vpop.permute.xlu0 %3008
  %3010 = vrot.lane.b32.xlu0 %v2830, 24
  %v3011 = vpop.permute.xlu0 %3010
  %3012 = vrot.lane.b32.xlu0 %v2831, 24
  %v3013 = vpop.permute.xlu0 %3012
  %3014 = vrot.lane.b32.xlu0 %v2832, 24
  %v3015 = vpop.permute.xlu0 %3014
  %3016 = vrot.lane.b32.xlu0 %v2833, 24
  %v3017 = vpop.permute.xlu0 %3016
  %3018 = vrot.lane.b32.xlu0 %v2834, 24
  %v3019 = vpop.permute.xlu0 %3018
  %3020 = vrot.lane.b32.xlu0 %v2835, 24
  %v3021 = vpop.permute.xlu0 %3020
  %3022 = vrot.lane.b32.xlu0 %v2836, 24
  %v3023 = vpop.permute.xlu0 %3022
  %3024 = vrot.lane.b32.xlu0 %v2837, 24
  %v3025 = vpop.permute.xlu0 %3024
  %3026 = vrot.lane.b32.xlu0 %v2838, 24
  %v3027 = vpop.permute.xlu0 %3026
  %3028 = vrot.lane.b32.xlu0 %v2839, 24
  %v3029 = vpop.permute.xlu0 %3028
  %3030 = vrot.lane.b32.xlu0 %v2840, 24
  %v3031 = vpop.permute.xlu0 %3030
  %3032 = vrot.lane.b32.xlu0 %v2841, 24
  %v3033 = vpop.permute.xlu0 %3032
  %vm3098 = vcmask 224448
  %3099 = vst.msk [vmem:[#allocation3] sm:$0xf] %vm3098, %v2907
  %3100 = vst.msk [vmem:[#allocation3 + $0x4] sm:$0xf] %vm3098, %v2909
  %3101 = vst.msk [vmem:[#allocation3 + $0x8] sm:$0xf] %vm3098, %v2911
  %3102 = vst.msk [vmem:[#allocation3 + $0xc] sm:$0xf] %vm3098, %v2913
  %3103 = vst.msk [vmem:[#allocation3 + $0x10] sm:$0xf] %vm3098, %v2915
  %3104 = vst.msk [vmem:[#allocation3 + $0x14] sm:$0xf] %vm3098, %v2917
  %3105 = vst.msk [vmem:[#allocation3 + $0x18] sm:$0xf] %vm3098, %v2919
  %3106 = vst.msk [vmem:[#allocation3 + $0x1c] sm:$0xf] %vm3098, %v2921
  %3107 = vst.msk [vmem:[#allocation3 + $0x20] sm:$0xf] %vm3098, %v2923
  %3108 = vst.msk [vmem:[#allocation3 + $0x24] sm:$0xf] %vm3098, %v2925
  %3109 = vst.msk [vmem:[#allocation3 + $0x28] sm:$0xf] %vm3098, %v2927
  %3110 = vst.msk [vmem:[#allocation3 + $0x2c] sm:$0xf] %vm3098, %v2929
  %3111 = vst.msk [vmem:[#allocation3 + $0x30] sm:$0xf] %vm3098, %v2931
  %3112 = vst.msk [vmem:[#allocation3 + $0x34] sm:$0xf] %vm3098, %v2933
  %3113 = vst.msk [vmem:[#allocation3 + $0x38] sm:$0xf] %vm3098, %v2935
  %3114 = vst.msk [vmem:[#allocation3 + $0x3c] sm:$0xf] %vm3098, %v2937
  %3115 = vst.msk [vmem:[#allocation3 + $0x40] sm:$0xf] %vm3098, %v2939
  %3116 = vst.msk [vmem:[#allocation3 + $0x44] sm:$0xf] %vm3098, %v2941
  %3117 = vst.msk [vmem:[#allocation3 + $0x48] sm:$0xf] %vm3098, %v2943
  %3118 = vst.msk [vmem:[#allocation3 + $0x4c] sm:$0xf] %vm3098, %v2945
  %3119 = vst.msk [vmem:[#allocation3 + $0x50] sm:$0xf] %vm3098, %v2947
  %3120 = vst.msk [vmem:[#allocation3 + $0x54] sm:$0xf] %vm3098, %v2949
  %3121 = vst.msk [vmem:[#allocation3 + $0x58] sm:$0xf] %vm3098, %v2951
  %3122 = vst.msk [vmem:[#allocation3 + $0x5c] sm:$0xf] %vm3098, %v2953
  %3123 = vst.msk [vmem:[#allocation3 + $0x60] sm:$0xf] %vm3098, %v2955
  %3124 = vst.msk [vmem:[#allocation3 + $0x64] sm:$0xf] %vm3098, %v2957
  %3125 = vst.msk [vmem:[#allocation3 + $0x68] sm:$0xf] %vm3098, %v2959
  %3126 = vst.msk [vmem:[#allocation3 + $0x6c] sm:$0xf] %vm3098, %v2961
  %3127 = vst.msk [vmem:[#allocation3 + $0x70] sm:$0xf] %vm3098, %v2963
  %3128 = vst.msk [vmem:[#allocation3 + $0x74] sm:$0xf] %vm3098, %v2965
  %3129 = vst.msk [vmem:[#allocation3 + $0x78] sm:$0xf] %vm3098, %v2967
  %3130 = vst.msk [vmem:[#allocation3 + $0x7c] sm:$0xf] %vm3098, %v2969
  %3131 = vst.msk [vmem:[#allocation3 + $0x80] sm:$0xf] %vm3098, %v2971
  %3132 = vst.msk [vmem:[#allocation3 + $0x84] sm:$0xf] %vm3098, %v2973
  %3133 = vst.msk [vmem:[#allocation3 + $0x88] sm:$0xf] %vm3098, %v2975
  %3134 = vst.msk [vmem:[#allocation3 + $0x8c] sm:$0xf] %vm3098, %v2977
  %3135 = vst.msk [vmem:[#allocation3 + $0x90] sm:$0xf] %vm3098, %v2979
  %3136 = vst.msk [vmem:[#allocation3 + $0x94] sm:$0xf] %vm3098, %v2981
  %3137 = vst.msk [vmem:[#allocation3 + $0x98] sm:$0xf] %vm3098, %v2983
  %3138 = vst.msk [vmem:[#allocation3 + $0x9c] sm:$0xf] %vm3098, %v2985
  %3139 = vst.msk [vmem:[#allocation3 + $0xa0] sm:$0xf] %vm3098, %v2987
  %3140 = vst.msk [vmem:[#allocation3 + $0xa4] sm:$0xf] %vm3098, %v2989
  %3141 = vst.msk [vmem:[#allocation3 + $0xa8] sm:$0xf] %vm3098, %v2991
  %3142 = vst.msk [vmem:[#allocation3 + $0xac] sm:$0xf] %vm3098, %v2993
  %3143 = vst.msk [vmem:[#allocation3 + $0xb0] sm:$0xf] %vm3098, %v2995
  %3144 = vst.msk [vmem:[#allocation3 + $0xb4] sm:$0xf] %vm3098, %v2997
  %3145 = vst.msk [vmem:[#allocation3 + $0xb8] sm:$0xf] %vm3098, %v2999
  %3146 = vst.msk [vmem:[#allocation3 + $0xbc] sm:$0xf] %vm3098, %v3001
  %3147 = vst.msk [vmem:[#allocation3 + $0xc0] sm:$0xf] %vm3098, %v3003
  %3148 = vst.msk [vmem:[#allocation3 + $0xc4] sm:$0xf] %vm3098, %v3005
  %3149 = vst.msk [vmem:[#allocation3 + $0xc8] sm:$0xf] %vm3098, %v3007
  %3150 = vst.msk [vmem:[#allocation3 + $0xcc] sm:$0xf] %vm3098, %v3009
  %3151 = vst.msk [vmem:[#allocation3 + $0xd0] sm:$0xf] %vm3098, %v3011
  %3152 = vst.msk [vmem:[#allocation3 + $0xd4] sm:$0xf] %vm3098, %v3013
  %3153 = vst.msk [vmem:[#allocation3 + $0xd8] sm:$0xf] %vm3098, %v3015
  %3154 = vst.msk [vmem:[#allocation3 + $0xdc] sm:$0xf] %vm3098, %v3017
  %3155 = vst.msk [vmem:[#allocation3 + $0xe0] sm:$0xf] %vm3098, %v3019
  %3156 = vst.msk [vmem:[#allocation3 + $0xe4] sm:$0xf] %vm3098, %v3021
  %3157 = vst.msk [vmem:[#allocation3 + $0xe8] sm:$0xf] %vm3098, %v3023
  %3158 = vst.msk [vmem:[#allocation3 + $0xec] sm:$0xf] %vm3098, %v3025
  %3159 = vst.msk [vmem:[#allocation3 + $0xf0] sm:$0xf] %vm3098, %v3027
  %3160 = vst.msk [vmem:[#allocation3 + $0xf4] sm:$0xf] %vm3098, %v3029
  %3161 = vst.msk [vmem:[#allocation3 + $0xf8] sm:$0xf] %vm3098, %v3031
  %3162 = vst.msk [vmem:[#allocation3 + $0xfc] sm:$0xf] %vm3098, %v3033
  %v3163 = vld [vmem:[%s2713 + $0x1] sm:$0xff]
  %v3164 = vld [vmem:[%s2713 + $0x9] sm:$0xff]
  %v3165 = vld [vmem:[%s2713 + $0x19] sm:$0xff]
  %v3166 = vld [vmem:[%s2713 + $0x21] sm:$0xff]
  %v3167 = vld [vmem:[%s2713 + $0x31] sm:$0xff]
  %v3168 = vld [vmem:[%s2713 + $0x39] sm:$0xff]
  %v3169 = vld [vmem:[%s2713 + $0x49] sm:$0xff]
  %v3170 = vld [vmem:[%s2713 + $0x51] sm:$0xff]
  %v3171 = vld [vmem:[%s2713 + $0x61] sm:$0xff]
  %v3172 = vld [vmem:[%s2713 + $0x69] sm:$0xff]
  %v3173 = vld [vmem:[%s2713 + $0x79] sm:$0xff]
  %v3174 = vld [vmem:[%s2713 + $0x81] sm:$0xff]
  %v3175 = vld [vmem:[%s2713 + $0x91] sm:$0xff]
  %v3176 = vld [vmem:[%s2713 + $0x99] sm:$0xff]
  %v3177 = vld [vmem:[%s2713 + $0xa9] sm:$0xff]
  %v3178 = vld [vmem:[%s2713 + $0xb1] sm:$0xff]
  %v3179 = vld [vmem:[%s2713 + $0xc1] sm:$0xff]
  %v3180 = vld [vmem:[%s2713 + $0xc9] sm:$0xff]
  %v3181 = vld [vmem:[%s2713 + $0xd9] sm:$0xff]
  %v3182 = vld [vmem:[%s2713 + $0xe1] sm:$0xff]
  %v3183 = vld [vmem:[%s2713 + $0xf1] sm:$0xff]
  %v3184 = vld [vmem:[%s2713 + $0xf9] sm:$0xff]
  %v3185 = vld [vmem:[%s2713 + $0x109] sm:$0xff]
  %v3186 = vld [vmem:[%s2713 + $0x111] sm:$0xff]
  %v3187 = vld [vmem:[%s2713 + $0x121] sm:$0xff]
  %v3188 = vld [vmem:[%s2713 + $0x129] sm:$0xff]
  %v3189 = vld [vmem:[%s2713 + $0x139] sm:$0xff]
  %v3190 = vld [vmem:[%s2713 + $0x141] sm:$0xff]
  %v3191 = vld [vmem:[%s2713 + $0x151] sm:$0xff]
  %v3192 = vld [vmem:[%s2713 + $0x159] sm:$0xff]
  %v3193 = vld [vmem:[%s2713 + $0x169] sm:$0xff]
  %v3194 = vld [vmem:[%s2713 + $0x171] sm:$0xff]
  %v3195 = vld [vmem:[%s2713 + $0x1b1] sm:$0xff]
  %v3196 = vld [vmem:[%s2713 + $0x1b9] sm:$0xff]
  %v3197 = vld [vmem:[%s2713 + $0x1c9] sm:$0xff]
  %v3198 = vld [vmem:[%s2713 + $0x1d1] sm:$0xff]
  %v3199 = vld [vmem:[%s2713 + $0x1e1] sm:$0xff]
  %v3200 = vld [vmem:[%s2713 + $0x1e9] sm:$0xff]
  %v3201 = vld [vmem:[%s2713 + $0x1f9] sm:$0xff]
  %v3202 = vld [vmem:[%s2713 + $0x201] sm:$0xff]
  %v3203 = vld [vmem:[%s2713 + $0x211] sm:$0xff]
  %v3204 = vld [vmem:[%s2713 + $0x219] sm:$0xff]
  %v3205 = vld [vmem:[%s2713 + $0x229] sm:$0xff]
  %v3206 = vld [vmem:[%s2713 + $0x231] sm:$0xff]
  %v3207 = vld [vmem:[%s2713 + $0x241] sm:$0xff]
  %v3208 = vld [vmem:[%s2713 + $0x249] sm:$0xff]
  %v3209 = vld [vmem:[%s2713 + $0x259] sm:$0xff]
  %v3210 = vld [vmem:[%s2713 + $0x261] sm:$0xff]
  %v3211 = vld [vmem:[%s2713 + $0x271] sm:$0xff]
  %v3212 = vld [vmem:[%s2713 + $0x279] sm:$0xff]
  %v3213 = vld [vmem:[%s2713 + $0x289] sm:$0xff]
  %v3214 = vld [vmem:[%s2713 + $0x291] sm:$0xff]
  %v3215 = vld [vmem:[%s2713 + $0x2a1] sm:$0xff]
  %v3216 = vld [vmem:[%s2713 + $0x2a9] sm:$0xff]
  %v3217 = vld [vmem:[%s2713 + $0x2b9] sm:$0xff]
  %v3218 = vld [vmem:[%s2713 + $0x2c1] sm:$0xff]
  %v3219 = vld [vmem:[%s2713 + $0x2d1] sm:$0xff]
  %v3220 = vld [vmem:[%s2713 + $0x2d9] sm:$0xff]
  %v3221 = vld [vmem:[%s2713 + $0x2e9] sm:$0xff]
  %v3222 = vld [vmem:[%s2713 + $0x2f1] sm:$0xff]
  %v3223 = vld [vmem:[%s2713 + $0x301] sm:$0xff]
  %v3224 = vld [vmem:[%s2713 + $0x309] sm:$0xff]
  %v3225 = vld [vmem:[%s2713 + $0x319] sm:$0xff]
  %v3226 = vld [vmem:[%s2713 + $0x321] sm:$0xff]
  %v3227 = vpack.c.bf16 %v3163, %v3163
  %v3228 = vpack.c.bf16 %v3164, %v3164
  %v3229 = vpack.c.bf16 %v3165, %v3165
  %v3230 = vpack.c.bf16 %v3166, %v3166
  %v3231 = vpack.c.bf16 %v3167, %v3167
  %v3232 = vpack.c.bf16 %v3168, %v3168
  %v3233 = vpack.c.bf16 %v3169, %v3169
  %v3234 = vpack.c.bf16 %v3170, %v3170
  %v3235 = vpack.c.bf16 %v3171, %v3171
  %v3236 = vpack.c.bf16 %v3172, %v3172
  %v3237 = vpack.c.bf16 %v3173, %v3173
  %v3238 = vpack.c.bf16 %v3174, %v3174
  %v3239 = vpack.c.bf16 %v3175, %v3175
  %v3240 = vpack.c.bf16 %v3176, %v3176
  %v3241 = vpack.c.bf16 %v3177, %v3177
  %v3242 = vpack.c.bf16 %v3178, %v3178
  %v3243 = vpack.c.bf16 %v3179, %v3179
  %v3244 = vpack.c.bf16 %v3180, %v3180
  %v3245 = vpack.c.bf16 %v3181, %v3181
  %v3246 = vpack.c.bf16 %v3182, %v3182
  %v3247 = vpack.c.bf16 %v3183, %v3183
  %v3248 = vpack.c.bf16 %v3184, %v3184
  %v3249 = vpack.c.bf16 %v3185, %v3185
  %v3250 = vpack.c.bf16 %v3186, %v3186
  %v3251 = vpack.c.bf16 %v3187, %v3187
  %v3252 = vpack.c.bf16 %v3188, %v3188
  %v3253 = vpack.c.bf16 %v3189, %v3189
  %v3254 = vpack.c.bf16 %v3190, %v3190
  %v3255 = vpack.c.bf16 %v3191, %v3191
  %v3256 = vpack.c.bf16 %v3192, %v3192
  %v3257 = vpack.c.bf16 %v3193, %v3193
  %v3258 = vpack.c.bf16 %v3194, %v3194
  %v3259 = vpack.c.bf16 %v3195, %v3195
  %v3260 = vpack.c.bf16 %v3196, %v3196
  %v3261 = vpack.c.bf16 %v3197, %v3197
  %v3262 = vpack.c.bf16 %v3198, %v3198
  %v3263 = vpack.c.bf16 %v3199, %v3199
  %v3264 = vpack.c.bf16 %v3200, %v3200
  %v3265 = vpack.c.bf16 %v3201, %v3201
  %v3266 = vpack.c.bf16 %v3202, %v3202
  %v3267 = vpack.c.bf16 %v3203, %v3203
  %v3268 = vpack.c.bf16 %v3204, %v3204
  %v3269 = vpack.c.bf16 %v3205, %v3205
  %v3270 = vpack.c.bf16 %v3206, %v3206
  %v3271 = vpack.c.bf16 %v3207, %v3207
  %v3272 = vpack.c.bf16 %v3208, %v3208
  %v3273 = vpack.c.bf16 %v3209, %v3209
  %v3274 = vpack.c.bf16 %v3210, %v3210
  %v3275 = vpack.c.bf16 %v3211, %v3211
  %v3276 = vpack.c.bf16 %v3212, %v3212
  %v3277 = vpack.c.bf16 %v3213, %v3213
  %v3278 = vpack.c.bf16 %v3214, %v3214
  %v3279 = vpack.c.bf16 %v3215, %v3215
  %v3280 = vpack.c.bf16 %v3216, %v3216
  %v3281 = vpack.c.bf16 %v3217, %v3217
  %v3282 = vpack.c.bf16 %v3218, %v3218
  %v3283 = vpack.c.bf16 %v3219, %v3219
  %v3284 = vpack.c.bf16 %v3220, %v3220
  %v3285 = vpack.c.bf16 %v3221, %v3221
  %v3286 = vpack.c.bf16 %v3222, %v3222
  %v3287 = vpack.c.bf16 %v3223, %v3223
  %v3288 = vpack.c.bf16 %v3224, %v3224
  %v3289 = vpack.c.bf16 %v3225, %v3225
  %v3290 = vpack.c.bf16 %v3226, %v3226
  %3355 = vrot.lane.b32.xlu0 %v3227, 28
  %v3356 = vpop.permute.xlu0 %3355
  %3357 = vrot.lane.b32.xlu0 %v3228, 28
  %v3358 = vpop.permute.xlu0 %3357
  %3359 = vrot.lane.b32.xlu0 %v3229, 28
  %v3360 = vpop.permute.xlu0 %3359
  %3361 = vrot.lane.b32.xlu0 %v3230, 28
  %v3362 = vpop.permute.xlu0 %3361
  %3363 = vrot.lane.b32.xlu0 %v3231, 28
  %v3364 = vpop.permute.xlu0 %3363
  %3365 = vrot.lane.b32.xlu0 %v3232, 28
  %v3366 = vpop.permute.xlu0 %3365
  %3367 = vrot.lane.b32.xlu0 %v3233, 28
  %v3368 = vpop.permute.xlu0 %3367
  %3369 = vrot.lane.b32.xlu0 %v3234, 28
  %v3370 = vpop.permute.xlu0 %3369
  %3371 = vrot.lane.b32.xlu0 %v3235, 28
  %v3372 = vpop.permute.xlu0 %3371
  %3373 = vrot.lane.b32.xlu0 %v3236, 28
  %v3374 = vpop.permute.xlu0 %3373
  %3375 = vrot.lane.b32.xlu0 %v3237, 28
  %v3376 = vpop.permute.xlu0 %3375
  %3377 = vrot.lane.b32.xlu0 %v3238, 28
  %v3378 = vpop.permute.xlu0 %3377
  %3379 = vrot.lane.b32.xlu0 %v3239, 28
  %v3380 = vpop.permute.xlu0 %3379
  %3381 = vrot.lane.b32.xlu0 %v3240, 28
  %v3382 = vpop.permute.xlu0 %3381
  %3383 = vrot.lane.b32.xlu0 %v3241, 28
  %v3384 = vpop.permute.xlu0 %3383
  %3385 = vrot.lane.b32.xlu0 %v3242, 28
  %v3386 = vpop.permute.xlu0 %3385
  %3387 = vrot.lane.b32.xlu0 %v3243, 28
  %v3388 = vpop.permute.xlu0 %3387
  %3389 = vrot.lane.b32.xlu0 %v3244, 28
  %v3390 = vpop.permute.xlu0 %3389
  %3391 = vrot.lane.b32.xlu0 %v3245, 28
  %v3392 = vpop.permute.xlu0 %3391
  %3393 = vrot.lane.b32.xlu0 %v3246, 28
  %v3394 = vpop.permute.xlu0 %3393
  %3395 = vrot.lane.b32.xlu0 %v3247, 28
  %v3396 = vpop.permute.xlu0 %3395
  %3397 = vrot.lane.b32.xlu0 %v3248, 28
  %v3398 = vpop.permute.xlu0 %3397
  %3399 = vrot.lane.b32.xlu0 %v3249, 28
  %v3400 = vpop.permute.xlu0 %3399
  %3401 = vrot.lane.b32.xlu0 %v3250, 28
  %v3402 = vpop.permute.xlu0 %3401
  %3403 = vrot.lane.b32.xlu0 %v3251, 28
  %v3404 = vpop.permute.xlu0 %3403
  %3405 = vrot.lane.b32.xlu0 %v3252, 28
  %v3406 = vpop.permute.xlu0 %3405
  %3407 = vrot.lane.b32.xlu0 %v3253, 28
  %v3408 = vpop.permute.xlu0 %3407
  %3409 = vrot.lane.b32.xlu0 %v3254, 28
  %v3410 = vpop.permute.xlu0 %3409
  %3411 = vrot.lane.b32.xlu0 %v3255, 28
  %v3412 = vpop.permute.xlu0 %3411
  %3413 = vrot.lane.b32.xlu0 %v3256, 28
  %v3414 = vpop.permute.xlu0 %3413
  %3415 = vrot.lane.b32.xlu0 %v3257, 28
  %v3416 = vpop.permute.xlu0 %3415
  %3417 = vrot.lane.b32.xlu0 %v3258, 28
  %v3418 = vpop.permute.xlu0 %3417
  %3419 = vrot.lane.b32.xlu0 %v3259, 28
  %v3420 = vpop.permute.xlu0 %3419
  %3421 = vrot.lane.b32.xlu0 %v3260, 28
  %v3422 = vpop.permute.xlu0 %3421
  %3423 = vrot.lane.b32.xlu0 %v3261, 28
  %v3424 = vpop.permute.xlu0 %3423
  %3425 = vrot.lane.b32.xlu0 %v3262, 28
  %v3426 = vpop.permute.xlu0 %3425
  %3427 = vrot.lane.b32.xlu0 %v3263, 28
  %v3428 = vpop.permute.xlu0 %3427
  %3429 = vrot.lane.b32.xlu0 %v3264, 28
  %v3430 = vpop.permute.xlu0 %3429
  %3431 = vrot.lane.b32.xlu0 %v3265, 28
  %v3432 = vpop.permute.xlu0 %3431
  %3433 = vrot.lane.b32.xlu0 %v3266, 28
  %v3434 = vpop.permute.xlu0 %3433
  %3435 = vrot.lane.b32.xlu0 %v3267, 28
  %v3436 = vpop.permute.xlu0 %3435
  %3437 = vrot.lane.b32.xlu0 %v3268, 28
  %v3438 = vpop.permute.xlu0 %3437
  %3439 = vrot.lane.b32.xlu0 %v3269, 28
  %v3440 = vpop.permute.xlu0 %3439
  %3441 = vrot.lane.b32.xlu0 %v3270, 28
  %v3442 = vpop.permute.xlu0 %3441
  %3443 = vrot.lane.b32.xlu0 %v3271, 28
  %v3444 = vpop.permute.xlu0 %3443
  %3445 = vrot.lane.b32.xlu0 %v3272, 28
  %v3446 = vpop.permute.xlu0 %3445
  %3447 = vrot.lane.b32.xlu0 %v3273, 28
  %v3448 = vpop.permute.xlu0 %3447
  %3449 = vrot.lane.b32.xlu0 %v3274, 28
  %v3450 = vpop.permute.xlu0 %3449
  %3451 = vrot.lane.b32.xlu0 %v3275, 28
  %v3452 = vpop.permute.xlu0 %3451
  %3453 = vrot.lane.b32.xlu0 %v3276, 28
  %v3454 = vpop.permute.xlu0 %3453
  %3455 = vrot.lane.b32.xlu0 %v3277, 28
  %v3456 = vpop.permute.xlu0 %3455
  %3457 = vrot.lane.b32.xlu0 %v3278, 28
  %v3458 = vpop.permute.xlu0 %3457
  %3459 = vrot.lane.b32.xlu0 %v3279, 28
  %v3460 = vpop.permute.xlu0 %3459
  %3461 = vrot.lane.b32.xlu0 %v3280, 28
  %v3462 = vpop.permute.xlu0 %3461
  %3463 = vrot.lane.b32.xlu0 %v3281, 28
  %v3464 = vpop.permute.xlu0 %3463
  %3465 = vrot.lane.b32.xlu0 %v3282, 28
  %v3466 = vpop.permute.xlu0 %3465
  %3467 = vrot.lane.b32.xlu0 %v3283, 28
  %v3468 = vpop.permute.xlu0 %3467
  %3469 = vrot.lane.b32.xlu0 %v3284, 28
  %v3470 = vpop.permute.xlu0 %3469
  %3471 = vrot.lane.b32.xlu0 %v3285, 28
  %v3472 = vpop.permute.xlu0 %3471
  %3473 = vrot.lane.b32.xlu0 %v3286, 28
  %v3474 = vpop.permute.xlu0 %3473
  %3475 = vrot.lane.b32.xlu0 %v3287, 28
  %v3476 = vpop.permute.xlu0 %3475
  %3477 = vrot.lane.b32.xlu0 %v3288, 28
  %v3478 = vpop.permute.xlu0 %3477
  %3479 = vrot.lane.b32.xlu0 %v3289, 28
  %v3480 = vpop.permute.xlu0 %3479
  %3481 = vrot.lane.b32.xlu0 %v3290, 28
  %v3482 = vpop.permute.xlu0 %3481
  %vm3547 = vcmask 257248
  %3548 = vst.msk [vmem:[#allocation3] sm:$0xf] %vm3547, %v3356
  %3549 = vst.msk [vmem:[#allocation3 + $0x4] sm:$0xf] %vm3547, %v3358
  %3550 = vst.msk [vmem:[#allocation3 + $0x8] sm:$0xf] %vm3547, %v3360
  %3551 = vst.msk [vmem:[#allocation3 + $0xc] sm:$0xf] %vm3547, %v3362
  %3552 = vst.msk [vmem:[#allocation3 + $0x10] sm:$0xf] %vm3547, %v3364
  %3553 = vst.msk [vmem:[#allocation3 + $0x14] sm:$0xf] %vm3547, %v3366
  %3554 = vst.msk [vmem:[#allocation3 + $0x18] sm:$0xf] %vm3547, %v3368
  %3555 = vst.msk [vmem:[#allocation3 + $0x1c] sm:$0xf] %vm3547, %v3370
  %3556 = vst.msk [vmem:[#allocation3 + $0x20] sm:$0xf] %vm3547, %v3372
  %3557 = vst.msk [vmem:[#allocation3 + $0x24] sm:$0xf] %vm3547, %v3374
  %3558 = vst.msk [vmem:[#allocation3 + $0x28] sm:$0xf] %vm3547, %v3376
  %3559 = vst.msk [vmem:[#allocation3 + $0x2c] sm:$0xf] %vm3547, %v3378
  %3560 = vst.msk [vmem:[#allocation3 + $0x30] sm:$0xf] %vm3547, %v3380
  %3561 = vst.msk [vmem:[#allocation3 + $0x34] sm:$0xf] %vm3547, %v3382
  %3562 = vst.msk [vmem:[#allocation3 + $0x38] sm:$0xf] %vm3547, %v3384
  %3563 = vst.msk [vmem:[#allocation3 + $0x3c] sm:$0xf] %vm3547, %v3386
  %3564 = vst.msk [vmem:[#allocation3 + $0x40] sm:$0xf] %vm3547, %v3388
  %3565 = vst.msk [vmem:[#allocation3 + $0x44] sm:$0xf] %vm3547, %v3390
  %3566 = vst.msk [vmem:[#allocation3 + $0x48] sm:$0xf] %vm3547, %v3392
  %3567 = vst.msk [vmem:[#allocation3 + $0x4c] sm:$0xf] %vm3547, %v3394
  %3568 = vst.msk [vmem:[#allocation3 + $0x50] sm:$0xf] %vm3547, %v3396
  %3569 = vst.msk [vmem:[#allocation3 + $0x54] sm:$0xf] %vm3547, %v3398
  %3570 = vst.msk [vmem:[#allocation3 + $0x58] sm:$0xf] %vm3547, %v3400
  %3571 = vst.msk [vmem:[#allocation3 + $0x5c] sm:$0xf] %vm3547, %v3402
  %3572 = vst.msk [vmem:[#allocation3 + $0x60] sm:$0xf] %vm3547, %v3404
  %3573 = vst.msk [vmem:[#allocation3 + $0x64] sm:$0xf] %vm3547, %v3406
  %3574 = vst.msk [vmem:[#allocation3 + $0x68] sm:$0xf] %vm3547, %v3408
  %3575 = vst.msk [vmem:[#allocation3 + $0x6c] sm:$0xf] %vm3547, %v3410
  %3576 = vst.msk [vmem:[#allocation3 + $0x70] sm:$0xf] %vm3547, %v3412
  %3577 = vst.msk [vmem:[#allocation3 + $0x74] sm:$0xf] %vm3547, %v3414
  %3578 = vst.msk [vmem:[#allocation3 + $0x78] sm:$0xf] %vm3547, %v3416
  %3579 = vst.msk [vmem:[#allocation3 + $0x7c] sm:$0xf] %vm3547, %v3418
  %3580 = vst.msk [vmem:[#allocation3 + $0x80] sm:$0xf] %vm3547, %v3420
  %3581 = vst.msk [vmem:[#allocation3 + $0x84] sm:$0xf] %vm3547, %v3422
  %3582 = vst.msk [vmem:[#allocation3 + $0x88] sm:$0xf] %vm3547, %v3424
  %3583 = vst.msk [vmem:[#allocation3 + $0x8c] sm:$0xf] %vm3547, %v3426
  %3584 = vst.msk [vmem:[#allocation3 + $0x90] sm:$0xf] %vm3547, %v3428
  %3585 = vst.msk [vmem:[#allocation3 + $0x94] sm:$0xf] %vm3547, %v3430
  %3586 = vst.msk [vmem:[#allocation3 + $0x98] sm:$0xf] %vm3547, %v3432
  %3587 = vst.msk [vmem:[#allocation3 + $0x9c] sm:$0xf] %vm3547, %v3434
  %3588 = vst.msk [vmem:[#allocation3 + $0xa0] sm:$0xf] %vm3547, %v3436
  %3589 = vst.msk [vmem:[#allocation3 + $0xa4] sm:$0xf] %vm3547, %v3438
  %3590 = vst.msk [vmem:[#allocation3 + $0xa8] sm:$0xf] %vm3547, %v3440
  %3591 = vst.msk [vmem:[#allocation3 + $0xac] sm:$0xf] %vm3547, %v3442
  %3592 = vst.msk [vmem:[#allocation3 + $0xb0] sm:$0xf] %vm3547, %v3444
  %3593 = vst.msk [vmem:[#allocation3 + $0xb4] sm:$0xf] %vm3547, %v3446
  %3594 = vst.msk [vmem:[#allocation3 + $0xb8] sm:$0xf] %vm3547, %v3448
  %3595 = vst.msk [vmem:[#allocation3 + $0xbc] sm:$0xf] %vm3547, %v3450
  %3596 = vst.msk [vmem:[#allocation3 + $0xc0] sm:$0xf] %vm3547, %v3452
  %3597 = vst.msk [vmem:[#allocation3 + $0xc4] sm:$0xf] %vm3547, %v3454
  %3598 = vst.msk [vmem:[#allocation3 + $0xc8] sm:$0xf] %vm3547, %v3456
  %3599 = vst.msk [vmem:[#allocation3 + $0xcc] sm:$0xf] %vm3547, %v3458
  %3600 = vst.msk [vmem:[#allocation3 + $0xd0] sm:$0xf] %vm3547, %v3460
  %3601 = vst.msk [vmem:[#allocation3 + $0xd4] sm:$0xf] %vm3547, %v3462
  %3602 = vst.msk [vmem:[#allocation3 + $0xd8] sm:$0xf] %vm3547, %v3464
  %3603 = vst.msk [vmem:[#allocation3 + $0xdc] sm:$0xf] %vm3547, %v3466
  %3604 = vst.msk [vmem:[#allocation3 + $0xe0] sm:$0xf] %vm3547, %v3468
  %3605 = vst.msk [vmem:[#allocation3 + $0xe4] sm:$0xf] %vm3547, %v3470
  %3606 = vst.msk [vmem:[#allocation3 + $0xe8] sm:$0xf] %vm3547, %v3472
  %3607 = vst.msk [vmem:[#allocation3 + $0xec] sm:$0xf] %vm3547, %v3474
  %3608 = vst.msk [vmem:[#allocation3 + $0xf0] sm:$0xf] %vm3547, %v3476
  %3609 = vst.msk [vmem:[#allocation3 + $0xf4] sm:$0xf] %vm3547, %v3478
  %3610 = vst.msk [vmem:[#allocation3 + $0xf8] sm:$0xf] %vm3547, %v3480
  %3611 = vst.msk [vmem:[#allocation3 + $0xfc] sm:$0xf] %vm3547, %v3482
  %v3612 = vld [vmem:[%s2713 + $0x2] sm:$0xff]
  %v3613 = vld [vmem:[%s2713 + $0xa] sm:$0xff]
  %v3614 = vld [vmem:[%s2713 + $0x1a] sm:$0xff]
  %v3615 = vld [vmem:[%s2713 + $0x22] sm:$0xff]
  %v3616 = vld [vmem:[%s2713 + $0x32] sm:$0xff]
  %v3617 = vld [vmem:[%s2713 + $0x3a] sm:$0xff]
  %v3618 = vld [vmem:[%s2713 + $0x4a] sm:$0xff]
  %v3619 = vld [vmem:[%s2713 + $0x52] sm:$0xff]
  %v3620 = vld [vmem:[%s2713 + $0x62] sm:$0xff]
  %v3621 = vld [vmem:[%s2713 + $0x6a] sm:$0xff]
  %v3622 = vld [vmem:[%s2713 + $0x7a] sm:$0xff]
  %v3623 = vld [vmem:[%s2713 + $0x82] sm:$0xff]
  %v3624 = vld [vmem:[%s2713 + $0x92] sm:$0xff]
  %v3625 = vld [vmem:[%s2713 + $0x9a] sm:$0xff]
  %v3626 = vld [vmem:[%s2713 + $0xaa] sm:$0xff]
  %v3627 = vld [vmem:[%s2713 + $0xb2] sm:$0xff]
  %v3628 = vld [vmem:[%s2713 + $0xc2] sm:$0xff]
  %v3629 = vld [vmem:[%s2713 + $0xca] sm:$0xff]
  %v3630 = vld [vmem:[%s2713 + $0xda] sm:$0xff]
  %v3631 = vld [vmem:[%s2713 + $0xe2] sm:$0xff]
  %v3632 = vld [vmem:[%s2713 + $0xf2] sm:$0xff]
  %v3633 = vld [vmem:[%s2713 + $0xfa] sm:$0xff]
  %v3634 = vld [vmem:[%s2713 + $0x10a] sm:$0xff]
  %v3635 = vld [vmem:[%s2713 + $0x112] sm:$0xff]
  %v3636 = vld [vmem:[%s2713 + $0x122] sm:$0xff]
  %v3637 = vld [vmem:[%s2713 + $0x12a] sm:$0xff]
  %v3638 = vld [vmem:[%s2713 + $0x13a] sm:$0xff]
  %v3639 = vld [vmem:[%s2713 + $0x142] sm:$0xff]
  %v3640 = vld [vmem:[%s2713 + $0x152] sm:$0xff]
  %v3641 = vld [vmem:[%s2713 + $0x15a] sm:$0xff]
  %v3642 = vld [vmem:[%s2713 + $0x16a] sm:$0xff]
  %v3643 = vld [vmem:[%s2713 + $0x172] sm:$0xff]
  %v3644 = vld [vmem:[%s2713 + $0x1b2] sm:$0xff]
  %v3645 = vld [vmem:[%s2713 + $0x1ba] sm:$0xff]
  %v3646 = vld [vmem:[%s2713 + $0x1ca] sm:$0xff]
  %v3647 = vld [vmem:[%s2713 + $0x1d2] sm:$0xff]
  %v3648 = vld [vmem:[%s2713 + $0x1e2] sm:$0xff]
  %v3649 = vld [vmem:[%s2713 + $0x1ea] sm:$0xff]
  %v3650 = vld [vmem:[%s2713 + $0x1fa] sm:$0xff]
  %v3651 = vld [vmem:[%s2713 + $0x202] sm:$0xff]
  %v3652 = vld [vmem:[%s2713 + $0x212] sm:$0xff]
  %v3653 = vld [vmem:[%s2713 + $0x21a] sm:$0xff]
  %v3654 = vld [vmem:[%s2713 + $0x22a] sm:$0xff]
  %v3655 = vld [vmem:[%s2713 + $0x232] sm:$0xff]
  %v3656 = vld [vmem:[%s2713 + $0x242] sm:$0xff]
  %v3657 = vld [vmem:[%s2713 + $0x24a] sm:$0xff]
  %v3658 = vld [vmem:[%s2713 + $0x25a] sm:$0xff]
  %v3659 = vld [vmem:[%s2713 + $0x262] sm:$0xff]
  %v3660 = vld [vmem:[%s2713 + $0x272] sm:$0xff]
  %v3661 = vld [vmem:[%s2713 + $0x27a] sm:$0xff]
  %v3662 = vld [vmem:[%s2713 + $0x28a] sm:$0xff]
  %v3663 = vld [vmem:[%s2713 + $0x292] sm:$0xff]
  %v3664 = vld [vmem:[%s2713 + $0x2a2] sm:$0xff]
  %v3665 = vld [vmem:[%s2713 + $0x2aa] sm:$0xff]
  %v3666 = vld [vmem:[%s2713 + $0x2ba] sm:$0xff]
  %v3667 = vld [vmem:[%s2713 + $0x2c2] sm:$0xff]
  %v3668 = vld [vmem:[%s2713 + $0x2d2] sm:$0xff]
  %v3669 = vld [vmem:[%s2713 + $0x2da] sm:$0xff]
  %v3670 = vld [vmem:[%s2713 + $0x2ea] sm:$0xff]
  %v3671 = vld [vmem:[%s2713 + $0x2f2] sm:$0xff]
  %v3672 = vld [vmem:[%s2713 + $0x302] sm:$0xff]
  %v3673 = vld [vmem:[%s2713 + $0x30a] sm:$0xff]
  %v3674 = vld [vmem:[%s2713 + $0x31a] sm:$0xff]
  %v3675 = vld [vmem:[%s2713 + $0x322] sm:$0xff]
  %v3676 = vpack.c.bf16 %v3612, %v3612
  %v3677 = vpack.c.bf16 %v3613, %v3613
  %v3678 = vpack.c.bf16 %v3614, %v3614
  %v3679 = vpack.c.bf16 %v3615, %v3615
  %v3680 = vpack.c.bf16 %v3616, %v3616
  %v3681 = vpack.c.bf16 %v3617, %v3617
  %v3682 = vpack.c.bf16 %v3618, %v3618
  %v3683 = vpack.c.bf16 %v3619, %v3619
  %v3684 = vpack.c.bf16 %v3620, %v3620
  %v3685 = vpack.c.bf16 %v3621, %v3621
  %v3686 = vpack.c.bf16 %v3622, %v3622
  %v3687 = vpack.c.bf16 %v3623, %v3623
  %v3688 = vpack.c.bf16 %v3624, %v3624
  %v3689 = vpack.c.bf16 %v3625, %v3625
  %v3690 = vpack.c.bf16 %v3626, %v3626
  %v3691 = vpack.c.bf16 %v3627, %v3627
  %v3692 = vpack.c.bf16 %v3628, %v3628
  %v3693 = vpack.c.bf16 %v3629, %v3629
  %v3694 = vpack.c.bf16 %v3630, %v3630
  %v3695 = vpack.c.bf16 %v3631, %v3631
  %v3696 = vpack.c.bf16 %v3632, %v3632
  %v3697 = vpack.c.bf16 %v3633, %v3633
  %v3698 = vpack.c.bf16 %v3634, %v3634
  %v3699 = vpack.c.bf16 %v3635, %v3635
  %v3700 = vpack.c.bf16 %v3636, %v3636
  %v3701 = vpack.c.bf16 %v3637, %v3637
  %v3702 = vpack.c.bf16 %v3638, %v3638
  %v3703 = vpack.c.bf16 %v3639, %v3639
  %v3704 = vpack.c.bf16 %v3640, %v3640
  %v3705 = vpack.c.bf16 %v3641, %v3641
  %v3706 = vpack.c.bf16 %v3642, %v3642
  %v3707 = vpack.c.bf16 %v3643, %v3643
  %v3708 = vpack.c.bf16 %v3644, %v3644
  %v3709 = vpack.c.bf16 %v3645, %v3645
  %v3710 = vpack.c.bf16 %v3646, %v3646
  %v3711 = vpack.c.bf16 %v3647, %v3647
  %v3712 = vpack.c.bf16 %v3648, %v3648
  %v3713 = vpack.c.bf16 %v3649, %v3649
  %v3714 = vpack.c.bf16 %v3650, %v3650
  %v3715 = vpack.c.bf16 %v3651, %v3651
  %v3716 = vpack.c.bf16 %v3652, %v3652
  %v3717 = vpack.c.bf16 %v3653, %v3653
  %v3718 = vpack.c.bf16 %v3654, %v3654
  %v3719 = vpack.c.bf16 %v3655, %v3655
  %v3720 = vpack.c.bf16 %v3656, %v3656
  %v3721 = vpack.c.bf16 %v3657, %v3657
  %v3722 = vpack.c.bf16 %v3658, %v3658
  %v3723 = vpack.c.bf16 %v3659, %v3659
  %v3724 = vpack.c.bf16 %v3660, %v3660
  %v3725 = vpack.c.bf16 %v3661, %v3661
  %v3726 = vpack.c.bf16 %v3662, %v3662
  %v3727 = vpack.c.bf16 %v3663, %v3663
  %v3728 = vpack.c.bf16 %v3664, %v3664
  %v3729 = vpack.c.bf16 %v3665, %v3665
  %v3730 = vpack.c.bf16 %v3666, %v3666
  %v3731 = vpack.c.bf16 %v3667, %v3667
  %v3732 = vpack.c.bf16 %v3668, %v3668
  %v3733 = vpack.c.bf16 %v3669, %v3669
  %v3734 = vpack.c.bf16 %v3670, %v3670
  %v3735 = vpack.c.bf16 %v3671, %v3671
  %v3736 = vpack.c.bf16 %v3672, %v3672
  %v3737 = vpack.c.bf16 %v3673, %v3673
  %v3738 = vpack.c.bf16 %v3674, %v3674
  %v3739 = vpack.c.bf16 %v3675, %v3675
  %3804 = vrot.lane.b32.xlu0 %v3676, 32
  %v3805 = vpop.permute.xlu0 %3804
  %3806 = vrot.lane.b32.xlu0 %v3677, 32
  %v3807 = vpop.permute.xlu0 %3806
  %3808 = vrot.lane.b32.xlu0 %v3678, 32
  %v3809 = vpop.permute.xlu0 %3808
  %3810 = vrot.lane.b32.xlu0 %v3679, 32
  %v3811 = vpop.permute.xlu0 %3810
  %3812 = vrot.lane.b32.xlu0 %v3680, 32
  %v3813 = vpop.permute.xlu0 %3812
  %3814 = vrot.lane.b32.xlu0 %v3681, 32
  %v3815 = vpop.permute.xlu0 %3814
  %3816 = vrot.lane.b32.xlu0 %v3682, 32
  %v3817 = vpop.permute.xlu0 %3816
  %3818 = vrot.lane.b32.xlu0 %v3683, 32
  %v3819 = vpop.permute.xlu0 %3818
  %3820 = vrot.lane.b32.xlu0 %v3684, 32
  %v3821 = vpop.permute.xlu0 %3820
  %3822 = vrot.lane.b32.xlu0 %v3685, 32
  %v3823 = vpop.permute.xlu0 %3822
  %3824 = vrot.lane.b32.xlu0 %v3686, 32
  %v3825 = vpop.permute.xlu0 %3824
  %3826 = vrot.lane.b32.xlu0 %v3687, 32
  %v3827 = vpop.permute.xlu0 %3826
  %3828 = vrot.lane.b32.xlu0 %v3688, 32
  %v3829 = vpop.permute.xlu0 %3828
  %3830 = vrot.lane.b32.xlu0 %v3689, 32
  %v3831 = vpop.permute.xlu0 %3830
  %3832 = vrot.lane.b32.xlu0 %v3690, 32
  %v3833 = vpop.permute.xlu0 %3832
  %3834 = vrot.lane.b32.xlu0 %v3691, 32
  %v3835 = vpop.permute.xlu0 %3834
  %3836 = vrot.lane.b32.xlu0 %v3692, 32
  %v3837 = vpop.permute.xlu0 %3836
  %3838 = vrot.lane.b32.xlu0 %v3693, 32
  %v3839 = vpop.permute.xlu0 %3838
  %3840 = vrot.lane.b32.xlu0 %v3694, 32
  %v3841 = vpop.permute.xlu0 %3840
  %3842 = vrot.lane.b32.xlu0 %v3695, 32
  %v3843 = vpop.permute.xlu0 %3842
  %3844 = vrot.lane.b32.xlu0 %v3696, 32
  %v3845 = vpop.permute.xlu0 %3844
  %3846 = vrot.lane.b32.xlu0 %v3697, 32
  %v3847 = vpop.permute.xlu0 %3846
  %3848 = vrot.lane.b32.xlu0 %v3698, 32
  %v3849 = vpop.permute.xlu0 %3848
  %3850 = vrot.lane.b32.xlu0 %v3699, 32
  %v3851 = vpop.permute.xlu0 %3850
  %3852 = vrot.lane.b32.xlu0 %v3700, 32
  %v3853 = vpop.permute.xlu0 %3852
  %3854 = vrot.lane.b32.xlu0 %v3701, 32
  %v3855 = vpop.permute.xlu0 %3854
  %3856 = vrot.lane.b32.xlu0 %v3702, 32
  %v3857 = vpop.permute.xlu0 %3856
  %3858 = vrot.lane.b32.xlu0 %v3703, 32
  %v3859 = vpop.permute.xlu0 %3858
  %3860 = vrot.lane.b32.xlu0 %v3704, 32
  %v3861 = vpop.permute.xlu0 %3860
  %3862 = vrot.lane.b32.xlu0 %v3705, 32
  %v3863 = vpop.permute.xlu0 %3862
  %3864 = vrot.lane.b32.xlu0 %v3706, 32
  %v3865 = vpop.permute.xlu0 %3864
  %3866 = vrot.lane.b32.xlu0 %v3707, 32
  %v3867 = vpop.permute.xlu0 %3866
  %3868 = vrot.lane.b32.xlu0 %v3708, 32
  %v3869 = vpop.permute.xlu0 %3868
  %3870 = vrot.lane.b32.xlu0 %v3709, 32
  %v3871 = vpop.permute.xlu0 %3870
  %3872 = vrot.lane.b32.xlu0 %v3710, 32
  %v3873 = vpop.permute.xlu0 %3872
  %3874 = vrot.lane.b32.xlu0 %v3711, 32
  %v3875 = vpop.permute.xlu0 %3874
  %3876 = vrot.lane.b32.xlu0 %v3712, 32
  %v3877 = vpop.permute.xlu0 %3876
  %3878 = vrot.lane.b32.xlu0 %v3713, 32
  %v3879 = vpop.permute.xlu0 %3878
  %3880 = vrot.lane.b32.xlu0 %v3714, 32
  %v3881 = vpop.permute.xlu0 %3880
  %3882 = vrot.lane.b32.xlu0 %v3715, 32
  %v3883 = vpop.permute.xlu0 %3882
  %3884 = vrot.lane.b32.xlu0 %v3716, 32
  %v3885 = vpop.permute.xlu0 %3884
  %3886 = vrot.lane.b32.xlu0 %v3717, 32
  %v3887 = vpop.permute.xlu0 %3886
  %3888 = vrot.lane.b32.xlu0 %v3718, 32
  %v3889 = vpop.permute.xlu0 %3888
  %3890 = vrot.lane.b32.xlu0 %v3719, 32
  %v3891 = vpop.permute.xlu0 %3890
  %3892 = vrot.lane.b32.xlu0 %v3720, 32
  %v3893 = vpop.permute.xlu0 %3892
  %3894 = vrot.lane.b32.xlu0 %v3721, 32
  %v3895 = vpop.permute.xlu0 %3894
  %3896 = vrot.lane.b32.xlu0 %v3722, 32
  %v3897 = vpop.permute.xlu0 %3896
  %3898 = vrot.lane.b32.xlu0 %v3723, 32
  %v3899 = vpop.permute.xlu0 %3898
  %3900 = vrot.lane.b32.xlu0 %v3724, 32
  %v3901 = vpop.permute.xlu0 %3900
  %3902 = vrot.lane.b32.xlu0 %v3725, 32
  %v3903 = vpop.permute.xlu0 %3902
  %3904 = vrot.lane.b32.xlu0 %v3726, 32
  %v3905 = vpop.permute.xlu0 %3904
  %3906 = vrot.lane.b32.xlu0 %v3727, 32
  %v3907 = vpop.permute.xlu0 %3906
  %3908 = vrot.lane.b32.xlu0 %v3728, 32
  %v3909 = vpop.permute.xlu0 %3908
  %3910 = vrot.lane.b32.xlu0 %v3729, 32
  %v3911 = vpop.permute.xlu0 %3910
  %3912 = vrot.lane.b32.xlu0 %v3730, 32
  %v3913 = vpop.permute.xlu0 %3912
  %3914 = vrot.lane.b32.xlu0 %v3731, 32
  %v3915 = vpop.permute.xlu0 %3914
  %3916 = vrot.lane.b32.xlu0 %v3732, 32
  %v3917 = vpop.permute.xlu0 %3916
  %3918 = vrot.lane.b32.xlu0 %v3733, 32
  %v3919 = vpop.permute.xlu0 %3918
  %3920 = vrot.lane.b32.xlu0 %v3734, 32
  %v3921 = vpop.permute.xlu0 %3920
  %3922 = vrot.lane.b32.xlu0 %v3735, 32
  %v3923 = vpop.permute.xlu0 %3922
  %3924 = vrot.lane.b32.xlu0 %v3736, 32
  %v3925 = vpop.permute.xlu0 %3924
  %3926 = vrot.lane.b32.xlu0 %v3737, 32
  %v3927 = vpop.permute.xlu0 %3926
  %3928 = vrot.lane.b32.xlu0 %v3738, 32
  %v3929 = vpop.permute.xlu0 %3928
  %3930 = vrot.lane.b32.xlu0 %v3739, 32
  %v3931 = vpop.permute.xlu0 %3930
  %vm3996 = vcmask 290048
  %3997 = vst.msk [vmem:[#allocation3] sm:$0xf] %vm3996, %v3805
  %3998 = vst.msk [vmem:[#allocation3 + $0x4] sm:$0xf] %vm3996, %v3807
  %3999 = vst.msk [vmem:[#allocation3 + $0x8] sm:$0xf] %vm3996, %v3809
  %4000 = vst.msk [vmem:[#allocation3 + $0xc] sm:$0xf] %vm3996, %v3811
  %4001 = vst.msk [vmem:[#allocation3 + $0x10] sm:$0xf] %vm3996, %v3813
  %4002 = vst.msk [vmem:[#allocation3 + $0x14] sm:$0xf] %vm3996, %v3815
  %4003 = vst.msk [vmem:[#allocation3 + $0x18] sm:$0xf] %vm3996, %v3817
  %4004 = vst.msk [vmem:[#allocation3 + $0x1c] sm:$0xf] %vm3996, %v3819
  %4005 = vst.msk [vmem:[#allocation3 + $0x20] sm:$0xf] %vm3996, %v3821
  %4006 = vst.msk [vmem:[#allocation3 + $0x24] sm:$0xf] %vm3996, %v3823
  %4007 = vst.msk [vmem:[#allocation3 + $0x28] sm:$0xf] %vm3996, %v3825
  %4008 = vst.msk [vmem:[#allocation3 + $0x2c] sm:$0xf] %vm3996, %v3827
  %4009 = vst.msk [vmem:[#allocation3 + $0x30] sm:$0xf] %vm3996, %v3829
  %4010 = vst.msk [vmem:[#allocation3 + $0x34] sm:$0xf] %vm3996, %v3831
  %4011 = vst.msk [vmem:[#allocation3 + $0x38] sm:$0xf] %vm3996, %v3833
  %4012 = vst.msk [vmem:[#allocation3 + $0x3c] sm:$0xf] %vm3996, %v3835
  %4013 = vst.msk [vmem:[#allocation3 + $0x40] sm:$0xf] %vm3996, %v3837
  %4014 = vst.msk [vmem:[#allocation3 + $0x44] sm:$0xf] %vm3996, %v3839
  %4015 = vst.msk [vmem:[#allocation3 + $0x48] sm:$0xf] %vm3996, %v3841
  %4016 = vst.msk [vmem:[#allocation3 + $0x4c] sm:$0xf] %vm3996, %v3843
  %4017 = vst.msk [vmem:[#allocation3 + $0x50] sm:$0xf] %vm3996, %v3845
  %4018 = vst.msk [vmem:[#allocation3 + $0x54] sm:$0xf] %vm3996, %v3847
  %4019 = vst.msk [vmem:[#allocation3 + $0x58] sm:$0xf] %vm3996, %v3849
  %4020 = vst.msk [vmem:[#allocation3 + $0x5c] sm:$0xf] %vm3996, %v3851
  %4021 = vst.msk [vmem:[#allocation3 + $0x60] sm:$0xf] %vm3996, %v3853
  %4022 = vst.msk [vmem:[#allocation3 + $0x64] sm:$0xf] %vm3996, %v3855
  %4023 = vst.msk [vmem:[#allocation3 + $0x68] sm:$0xf] %vm3996, %v3857
  %4024 = vst.msk [vmem:[#allocation3 + $0x6c] sm:$0xf] %vm3996, %v3859
  %4025 = vst.msk [vmem:[#allocation3 + $0x70] sm:$0xf] %vm3996, %v3861
  %4026 = vst.msk [vmem:[#allocation3 + $0x74] sm:$0xf] %vm3996, %v3863
  %4027 = vst.msk [vmem:[#allocation3 + $0x78] sm:$0xf] %vm3996, %v3865
  %4028 = vst.msk [vmem:[#allocation3 + $0x7c] sm:$0xf] %vm3996, %v3867
  %4029 = vst.msk [vmem:[#allocation3 + $0x80] sm:$0xf] %vm3996, %v3869
  %4030 = vst.msk [vmem:[#allocation3 + $0x84] sm:$0xf] %vm3996, %v3871
  %4031 = vst.msk [vmem:[#allocation3 + $0x88] sm:$0xf] %vm3996, %v3873
  %4032 = vst.msk [vmem:[#allocation3 + $0x8c] sm:$0xf] %vm3996, %v3875
  %4033 = vst.msk [vmem:[#allocation3 + $0x90] sm:$0xf] %vm3996, %v3877
  %4034 = vst.msk [vmem:[#allocation3 + $0x94] sm:$0xf] %vm3996, %v3879
  %4035 = vst.msk [vmem:[#allocation3 + $0x98] sm:$0xf] %vm3996, %v3881
  %4036 = vst.msk [vmem:[#allocation3 + $0x9c] sm:$0xf] %vm3996, %v3883
  %4037 = vst.msk [vmem:[#allocation3 + $0xa0] sm:$0xf] %vm3996, %v3885
  %4038 = vst.msk [vmem:[#allocation3 + $0xa4] sm:$0xf] %vm3996, %v3887
  %4039 = vst.msk [vmem:[#allocation3 + $0xa8] sm:$0xf] %vm3996, %v3889
  %4040 = vst.msk [vmem:[#allocation3 + $0xac] sm:$0xf] %vm3996, %v3891
  %4041 = vst.msk [vmem:[#allocation3 + $0xb0] sm:$0xf] %vm3996, %v3893
  %4042 = vst.msk [vmem:[#allocation3 + $0xb4] sm:$0xf] %vm3996, %v3895
  %4043 = vst.msk [vmem:[#allocation3 + $0xb8] sm:$0xf] %vm3996, %v3897
  %4044 = vst.msk [vmem:[#allocation3 + $0xbc] sm:$0xf] %vm3996, %v3899
  %4045 = vst.msk [vmem:[#allocation3 + $0xc0] sm:$0xf] %vm3996, %v3901
  %4046 = vst.msk [vmem:[#allocation3 + $0xc4] sm:$0xf] %vm3996, %v3903
  %4047 = vst.msk [vmem:[#allocation3 + $0xc8] sm:$0xf] %vm3996, %v3905
  %4048 = vst.msk [vmem:[#allocation3 + $0xcc] sm:$0xf] %vm3996, %v3907
  %4049 = vst.msk [vmem:[#allocation3 + $0xd0] sm:$0xf] %vm3996, %v3909
  %4050 = vst.msk [vmem:[#allocation3 + $0xd4] sm:$0xf] %vm3996, %v3911
  %4051 = vst.msk [vmem:[#allocation3 + $0xd8] sm:$0xf] %vm3996, %v3913
  %4052 = vst.msk [vmem:[#allocation3 + $0xdc] sm:$0xf] %vm3996, %v3915
  %4053 = vst.msk [vmem:[#allocation3 + $0xe0] sm:$0xf] %vm3996, %v3917
  %4054 = vst.msk [vmem:[#allocation3 + $0xe4] sm:$0xf] %vm3996, %v3919
  %4055 = vst.msk [vmem:[#allocation3 + $0xe8] sm:$0xf] %vm3996, %v3921
  %4056 = vst.msk [vmem:[#allocation3 + $0xec] sm:$0xf] %vm3996, %v3923
  %4057 = vst.msk [vmem:[#allocation3 + $0xf0] sm:$0xf] %vm3996, %v3925
  %4058 = vst.msk [vmem:[#allocation3 + $0xf4] sm:$0xf] %vm3996, %v3927
  %4059 = vst.msk [vmem:[#allocation3 + $0xf8] sm:$0xf] %vm3996, %v3929
  %4060 = vst.msk [vmem:[#allocation3 + $0xfc] sm:$0xf] %vm3996, %v3931
  %v4061 = vld [vmem:[#allocation3] sm:$0xf]
  %v4062 = vld [vmem:[#allocation3 + $0x4] sm:$0xf]
  %v4063 = vld [vmem:[#allocation3 + $0x8] sm:$0xf]
  %v4064 = vld [vmem:[#allocation3 + $0xc] sm:$0xf]
  %v4065 = vld [vmem:[#allocation3 + $0x10] sm:$0xf]
  %v4066 = vld [vmem:[#allocation3 + $0x14] sm:$0xf]
  %v4067 = vld [vmem:[#allocation3 + $0x18] sm:$0xf]
  %v4068 = vld [vmem:[#allocation3 + $0x1c] sm:$0xf]
  %v4069 = vld [vmem:[#allocation3 + $0x20] sm:$0xf]
  %v4070 = vld [vmem:[#allocation3 + $0x24] sm:$0xf]
  %v4071 = vld [vmem:[#allocation3 + $0x28] sm:$0xf]
  %v4072 = vld [vmem:[#allocation3 + $0x2c] sm:$0xf]
  %v4073 = vld [vmem:[#allocation3 + $0x30] sm:$0xf]
  %v4074 = vld [vmem:[#allocation3 + $0x34] sm:$0xf]
  %v4075 = vld [vmem:[#allocation3 + $0x38] sm:$0xf]
  %v4076 = vld [vmem:[#allocation3 + $0x3c] sm:$0xf]
  %v4077 = vld [vmem:[#allocation3 + $0x40] sm:$0xf]
  %v4078 = vld [vmem:[#allocation3 + $0x44] sm:$0xf]
  %v4079 = vld [vmem:[#allocation3 + $0x48] sm:$0xf]
  %v4080 = vld [vmem:[#allocation3 + $0x4c] sm:$0xf]
  %v4081 = vld [vmem:[#allocation3 + $0x50] sm:$0xf]
  %v4082 = vld [vmem:[#allocation3 + $0x54] sm:$0xf]
  %v4083 = vld [vmem:[#allocation3 + $0x58] sm:$0xf]
  %v4084 = vld [vmem:[#allocation3 + $0x5c] sm:$0xf]
  %v4085 = vld [vmem:[#allocation3 + $0x60] sm:$0xf]
  %v4086 = vld [vmem:[#allocation3 + $0x64] sm:$0xf]
  %v4087 = vld [vmem:[#allocation3 + $0x68] sm:$0xf]
  %v4088 = vld [vmem:[#allocation3 + $0x6c] sm:$0xf]
  %v4089 = vld [vmem:[#allocation3 + $0x70] sm:$0xf]
  %v4090 = vld [vmem:[#allocation3 + $0x74] sm:$0xf]
  %v4091 = vld [vmem:[#allocation3 + $0x78] sm:$0xf]
  %v4092 = vld [vmem:[#allocation3 + $0x7c] sm:$0xf]
  %v4093 = vld [vmem:[#allocation3 + $0x80] sm:$0xf]
  %v4094 = vld [vmem:[#allocation3 + $0x84] sm:$0xf]
  %v4095 = vld [vmem:[#allocation3 + $0x88] sm:$0xf]
  %v4096 = vld [vmem:[#allocation3 + $0x8c] sm:$0xf]
  %v4097 = vld [vmem:[#allocation3 + $0x90] sm:$0xf]
  %v4098 = vld [vmem:[#allocation3 + $0x94] sm:$0xf]
  %v4099 = vld [vmem:[#allocation3 + $0x98] sm:$0xf]
  %v4100 = vld [vmem:[#allocation3 + $0x9c] sm:$0xf]
  %v4101 = vld [vmem:[#allocation3 + $0xa0] sm:$0xf]
  %v4102 = vld [vmem:[#allocation3 + $0xa4] sm:$0xf]
  %v4103 = vld [vmem:[#allocation3 + $0xa8] sm:$0xf]
  %v4104 = vld [vmem:[#allocation3 + $0xac] sm:$0xf]
  %v4105 = vld [vmem:[#allocation3 + $0xb0] sm:$0xf]
  %v4106 = vld [vmem:[#allocation3 + $0xb4] sm:$0xf]
  %v4107 = vld [vmem:[#allocation3 + $0xb8] sm:$0xf]
  %v4108 = vld [vmem:[#allocation3 + $0xbc] sm:$0xf]
  %v4109 = vld [vmem:[#allocation3 + $0xc0] sm:$0xf]
  %v4110 = vld [vmem:[#allocation3 + $0xc4] sm:$0xf]
  %v4111 = vld [vmem:[#allocation3 + $0xc8] sm:$0xf]
  %v4112 = vld [vmem:[#allocation3 + $0xcc] sm:$0xf]
  %v4113 = vld [vmem:[#allocation3 + $0xd0] sm:$0xf]
  %v4114 = vld [vmem:[#allocation3 + $0xd4] sm:$0xf]
  %v4115 = vld [vmem:[#allocation3 + $0xd8] sm:$0xf]
  %v4116 = vld [vmem:[#allocation3 + $0xdc] sm:$0xf]
  %v4117 = vld [vmem:[#allocation3 + $0xe0] sm:$0xf]
  %v4118 = vld [vmem:[#allocation3 + $0xe4] sm:$0xf]
  %v4119 = vld [vmem:[#allocation3 + $0xe8] sm:$0xf]
  %v4120 = vld [vmem:[#allocation3 + $0xec] sm:$0xf]
  %v4121 = vld [vmem:[#allocation3 + $0xf0] sm:$0xf]
  %v4122 = vld [vmem:[#allocation3 + $0xf4] sm:$0xf]
  %v4123 = vld [vmem:[#allocation3 + $0xf8] sm:$0xf]
  %v4124 = vld [vmem:[#allocation3 + $0xfc] sm:$0xf]
  %v4125 = vld [vmem:[%s1] sm:$0xf]
  %v4126 = vld [vmem:[%s1 + $0x4] sm:$0xf]
  %v4127 = vld [vmem:[%s1 + $0x8] sm:$0xf]
  %v4128 = vld [vmem:[%s1 + $0xc] sm:$0xf]
  %v4129 = vld [vmem:[%s1 + $0x10] sm:$0x3]
  %v4194 = vunpack.c.l.b16 %v4061
  %v4195 = vunpack.c.l.b16 %v4062
  %v4196 = vunpack.c.l.b16 %v4063
  %v4197 = vunpack.c.l.b16 %v4064
  %v4198 = vunpack.c.l.b16 %v4065
  %v4199 = vunpack.c.l.b16 %v4066
  %v4200 = vunpack.c.l.b16 %v4067
  %v4201 = vunpack.c.l.b16 %v4068
  %v4202 = vunpack.c.l.b16 %v4069
  %v4203 = vunpack.c.l.b16 %v4070
  %v4204 = vunpack.c.l.b16 %v4071
  %v4205 = vunpack.c.l.b16 %v4072
  %v4206 = vunpack.c.l.b16 %v4073
  %v4207 = vunpack.c.l.b16 %v4074
  %v4208 = vunpack.c.l.b16 %v4075
  %v4209 = vunpack.c.l.b16 %v4076
  %v4210 = vunpack.c.l.b16 %v4077
  %v4211 = vunpack.c.l.b16 %v4078
  %v4212 = vunpack.c.l.b16 %v4079
  %v4213 = vunpack.c.l.b16 %v4080
  %v4214 = vunpack.c.l.b16 %v4081
  %v4215 = vunpack.c.l.b16 %v4082
  %v4216 = vunpack.c.l.b16 %v4083
  %v4217 = vunpack.c.l.b16 %v4084
  %v4218 = vunpack.c.l.b16 %v4085
  %v4219 = vunpack.c.l.b16 %v4086
  %v4220 = vunpack.c.l.b16 %v4087
  %v4221 = vunpack.c.l.b16 %v4088
  %v4222 = vunpack.c.l.b16 %v4089
  %v4223 = vunpack.c.l.b16 %v4090
  %v4224 = vunpack.c.l.b16 %v4091
  %v4225 = vunpack.c.l.b16 %v4092
  %v4226 = vunpack.c.l.b16 %v4093
  %v4227 = vunpack.c.l.b16 %v4094
  %v4228 = vunpack.c.l.b16 %v4095
  %v4229 = vunpack.c.l.b16 %v4096
  %v4230 = vunpack.c.l.b16 %v4097
  %v4231 = vunpack.c.l.b16 %v4098
  %v4232 = vunpack.c.l.b16 %v4099
  %v4233 = vunpack.c.l.b16 %v4100
  %v4234 = vunpack.c.l.b16 %v4101
  %v4235 = vunpack.c.l.b16 %v4102
  %v4236 = vunpack.c.l.b16 %v4103
  %v4237 = vunpack.c.l.b16 %v4104
  %v4238 = vunpack.c.l.b16 %v4105
  %v4239 = vunpack.c.l.b16 %v4106
  %v4240 = vunpack.c.l.b16 %v4107
  %v4241 = vunpack.c.l.b16 %v4108
  %v4242 = vunpack.c.l.b16 %v4109
  %v4243 = vunpack.c.l.b16 %v4110
  %v4244 = vunpack.c.l.b16 %v4111
  %v4245 = vunpack.c.l.b16 %v4112
  %v4246 = vunpack.c.l.b16 %v4113
  %v4247 = vunpack.c.l.b16 %v4114
  %v4248 = vunpack.c.l.b16 %v4115
  %v4249 = vunpack.c.l.b16 %v4116
  %v4250 = vunpack.c.l.b16 %v4117
  %v4251 = vunpack.c.l.b16 %v4118
  %v4252 = vunpack.c.l.b16 %v4119
  %v4253 = vunpack.c.l.b16 %v4120
  %v4254 = vunpack.c.l.b16 %v4121
  %v4255 = vunpack.c.l.b16 %v4122
  %v4256 = vunpack.c.l.b16 %v4123
  %v4257 = vunpack.c.l.b16 %v4124
  %v4258 = vpack.c.b16 %v4195, %v4194
  %v4259 = vpack.c.b16 %v4197, %v4196
  %v4260 = vpack.c.b16 %v4199, %v4198
  %v4261 = vpack.c.b16 %v4201, %v4200
  %v4262 = vpack.c.b16 %v4203, %v4202
  %v4263 = vpack.c.b16 %v4205, %v4204
  %v4264 = vpack.c.b16 %v4207, %v4206
  %v4265 = vpack.c.b16 %v4209, %v4208
  %v4266 = vpack.c.b16 %v4211, %v4210
  %v4267 = vpack.c.b16 %v4213, %v4212
  %v4268 = vpack.c.b16 %v4215, %v4214
  %v4269 = vpack.c.b16 %v4217, %v4216
  %v4270 = vpack.c.b16 %v4219, %v4218
  %v4271 = vpack.c.b16 %v4221, %v4220
  %v4272 = vpack.c.b16 %v4223, %v4222
  %v4273 = vpack.c.b16 %v4225, %v4224
  %v4274 = vpack.c.b16 %v4227, %v4226
  %v4275 = vpack.c.b16 %v4229, %v4228
  %v4276 = vpack.c.b16 %v4231, %v4230
  %v4277 = vpack.c.b16 %v4233, %v4232
  %v4278 = vpack.c.b16 %v4235, %v4234
  %v4279 = vpack.c.b16 %v4237, %v4236
  %v4280 = vpack.c.b16 %v4239, %v4238
  %v4281 = vpack.c.b16 %v4241, %v4240
  %v4282 = vpack.c.b16 %v4243, %v4242
  %v4283 = vpack.c.b16 %v4245, %v4244
  %v4284 = vpack.c.b16 %v4247, %v4246
  %v4285 = vpack.c.b16 %v4249, %v4248
  %v4286 = vpack.c.b16 %v4251, %v4250
  %v4287 = vpack.c.b16 %v4253, %v4252
  %v4288 = vpack.c.b16 %v4255, %v4254
  %v4289 = vpack.c.b16 %v4257, %v4256
  %v4295 = vunpack.c.l.b16 %v4125
  %v4296 = vunpack.c.l.b16 %v4126
  %v4297 = vunpack.c.l.b16 %v4127
  %v4298 = vunpack.c.l.b16 %v4128
  %v4299 = vunpack.c.l.b16 %v4129
  %v4300 = vpack.c.b16 %v4296, %v4295
  %v4301 = vpack.c.b16 %v4298, %v4297
  %v4302 = vpack.c.b16 %v4299, %v4299
  %vm4305 = vcmask 293888
  %v4307 = vsel %vm4305, %v4258, 0
  %v4310 = vsel %vm4305, %v4259, 0
  %v4313 = vsel %vm4305, %v4260, 0
  %v4316 = vsel %vm4305, %v4261, 0
  %v4319 = vsel %vm4305, %v4262, 0
  %v4322 = vsel %vm4305, %v4263, 0
  %v4325 = vsel %vm4305, %v4264, 0
  %v4328 = vsel %vm4305, %v4265, 0
  %v4331 = vsel %vm4305, %v4266, 0
  %v4334 = vsel %vm4305, %v4267, 0
  %v4337 = vsel %vm4305, %v4268, 0
  %v4340 = vsel %vm4305, %v4269, 0
  %v4343 = vsel %vm4305, %v4270, 0
  %v4346 = vsel %vm4305, %v4271, 0
  %v4349 = vsel %vm4305, %v4272, 0
  %v4352 = vsel %vm4305, %v4273, 0
  %v4355 = vsel %vm4305, %v4274, 0
  %v4358 = vsel %vm4305, %v4275, 0
  %v4361 = vsel %vm4305, %v4276, 0
  %v4364 = vsel %vm4305, %v4277, 0
  %v4367 = vsel %vm4305, %v4278, 0
  %v4370 = vsel %vm4305, %v4279, 0
  %v4373 = vsel %vm4305, %v4280, 0
  %v4376 = vsel %vm4305, %v4281, 0
  %v4379 = vsel %vm4305, %v4282, 0
  %v4382 = vsel %vm4305, %v4283, 0
  %v4385 = vsel %vm4305, %v4284, 0
  %v4388 = vsel %vm4305, %v4285, 0
  %v4391 = vsel %vm4305, %v4286, 0
  %v4394 = vsel %vm4305, %v4287, 0
  %v4397 = vsel %vm4305, %v4288, 0
  %v4400 = vsel %vm4305, %v4289, 0
  %vm4402 = vcmask 1041408
  %v4404 = vsel %vm4402, %v4302, 0
  %4406 = vmatpush.bf16.msra.mxu0 0
  %4407 = vmatpush.bf16.msra.mxu0 0
  %4408 = vmatpush.bf16.msra.mxu0 0
  %4409 = vmatpush.bf16.msra.mxu0 0
  %4410 = vmatpush.bf16.msra.mxu0 0
  %4411 = vmatpush.bf16.msra.mxu0 %v4404
  %4412 = vmatpush.bf16.msra.mxu0 %v4301
  %4413 = vmatpush.bf16.msra.mxu0 %v4300
  %4414 = vmatmul.bf16.gmra.mxu0 %v4307
  %v4415 = vpop.f32.mrf.mxu0
  %v4416 = vadd.f32 0.0, %v4415
  %v4417 = vpop.f32.mrf.mxu0
  %v4418 = vadd.f32 0.0, %v4417
  %4419 = vmatmul.bf16.gmra.mxu0 %v4310
  %v4420 = vpop.f32.mrf.mxu0
  %v4421 = vadd.f32 0.0, %v4420
  %v4422 = vpop.f32.mrf.mxu0
  %v4423 = vadd.f32 0.0, %v4422
  %4424 = vmatmul.bf16.gmra.mxu0 %v4313
  %v4425 = vpop.f32.mrf.mxu0
  %v4426 = vadd.f32 0.0, %v4425
  %v4427 = vpop.f32.mrf.mxu0
  %v4428 = vadd.f32 0.0, %v4427
  %4429 = vmatmul.bf16.gmra.mxu0 %v4316
  %v4430 = vpop.f32.mrf.mxu0
  %v4431 = vadd.f32 0.0, %v4430
  %v4432 = vpop.f32.mrf.mxu0
  %v4433 = vadd.f32 0.0, %v4432
  %4434 = vmatmul.bf16.gmra.mxu0 %v4319
  %v4435 = vpop.f32.mrf.mxu0
  %v4436 = vadd.f32 0.0, %v4435
  %v4437 = vpop.f32.mrf.mxu0
  %v4438 = vadd.f32 0.0, %v4437
  %4439 = vmatmul.bf16.gmra.mxu0 %v4322
  %v4440 = vpop.f32.mrf.mxu0
  %v4441 = vadd.f32 0.0, %v4440
  %v4442 = vpop.f32.mrf.mxu0
  %v4443 = vadd.f32 0.0, %v4442
  %4444 = vmatmul.bf16.gmra.mxu0 %v4325
  %v4445 = vpop.f32.mrf.mxu0
  %v4446 = vadd.f32 0.0, %v4445
  %v4447 = vpop.f32.mrf.mxu0
  %v4448 = vadd.f32 0.0, %v4447
  %4449 = vmatmul.bf16.gmra.mxu0 %v4328
  %v4450 = vpop.f32.mrf.mxu0
  %v4451 = vadd.f32 0.0, %v4450
  %v4452 = vpop.f32.mrf.mxu0
  %v4453 = vadd.f32 0.0, %v4452
  %4454 = vmatmul.bf16.gmra.mxu0 %v4331
  %v4455 = vpop.f32.mrf.mxu0
  %v4456 = vadd.f32 0.0, %v4455
  %v4457 = vpop.f32.mrf.mxu0
  %v4458 = vadd.f32 0.0, %v4457
  %4459 = vmatmul.bf16.gmra.mxu0 %v4334
  %v4460 = vpop.f32.mrf.mxu0
  %v4461 = vadd.f32 0.0, %v4460
  %v4462 = vpop.f32.mrf.mxu0
  %v4463 = vadd.f32 0.0, %v4462
  %4464 = vmatmul.bf16.gmra.mxu0 %v4337
  %v4465 = vpop.f32.mrf.mxu0
  %v4466 = vadd.f32 0.0, %v4465
  %v4467 = vpop.f32.mrf.mxu0
  %v4468 = vadd.f32 0.0, %v4467
  %4469 = vmatmul.bf16.gmra.mxu0 %v4340
  %v4470 = vpop.f32.mrf.mxu0
  %v4471 = vadd.f32 0.0, %v4470
  %v4472 = vpop.f32.mrf.mxu0
  %v4473 = vadd.f32 0.0, %v4472
  %4474 = vmatmul.bf16.gmra.mxu0 %v4343
  %v4475 = vpop.f32.mrf.mxu0
  %v4476 = vadd.f32 0.0, %v4475
  %v4477 = vpop.f32.mrf.mxu0
  %v4478 = vadd.f32 0.0, %v4477
  %4479 = vmatmul.bf16.gmra.mxu0 %v4346
  %v4480 = vpop.f32.mrf.mxu0
  %v4481 = vadd.f32 0.0, %v4480
  %v4482 = vpop.f32.mrf.mxu0
  %v4483 = vadd.f32 0.0, %v4482
  %4484 = vmatmul.bf16.gmra.mxu0 %v4349
  %v4485 = vpop.f32.mrf.mxu0
  %v4486 = vadd.f32 0.0, %v4485
  %v4487 = vpop.f32.mrf.mxu0
  %v4488 = vadd.f32 0.0, %v4487
  %4489 = vmatmul.bf16.gmra.mxu0 %v4352
  %v4490 = vpop.f32.mrf.mxu0
  %v4491 = vadd.f32 0.0, %v4490
  %v4492 = vpop.f32.mrf.mxu0
  %v4493 = vadd.f32 0.0, %v4492
  %4494 = vmatmul.bf16.gmra.mxu0 %v4355
  %v4495 = vpop.f32.mrf.mxu0
  %v4496 = vadd.f32 0.0, %v4495
  %v4497 = vpop.f32.mrf.mxu0
  %v4498 = vadd.f32 0.0, %v4497
  %4499 = vmatmul.bf16.gmra.mxu0 %v4358
  %v4500 = vpop.f32.mrf.mxu0
  %v4501 = vadd.f32 0.0, %v4500
  %v4502 = vpop.f32.mrf.mxu0
  %v4503 = vadd.f32 0.0, %v4502
  %4504 = vmatmul.bf16.gmra.mxu0 %v4361
  %v4505 = vpop.f32.mrf.mxu0
  %v4506 = vadd.f32 0.0, %v4505
  %v4507 = vpop.f32.mrf.mxu0
  %v4508 = vadd.f32 0.0, %v4507
  %4509 = vmatmul.bf16.gmra.mxu0 %v4364
  %v4510 = vpop.f32.mrf.mxu0
  %v4511 = vadd.f32 0.0, %v4510
  %v4512 = vpop.f32.mrf.mxu0
  %v4513 = vadd.f32 0.0, %v4512
  %4514 = vmatmul.bf16.gmra.mxu0 %v4367
  %v4515 = vpop.f32.mrf.mxu0
  %v4516 = vadd.f32 0.0, %v4515
  %v4517 = vpop.f32.mrf.mxu0
  %v4518 = vadd.f32 0.0, %v4517
  %4519 = vmatmul.bf16.gmra.mxu0 %v4370
  %v4520 = vpop.f32.mrf.mxu0
  %v4521 = vadd.f32 0.0, %v4520
  %v4522 = vpop.f32.mrf.mxu0
  %v4523 = vadd.f32 0.0, %v4522
  %4524 = vmatmul.bf16.gmra.mxu0 %v4373
  %v4525 = vpop.f32.mrf.mxu0
  %v4526 = vadd.f32 0.0, %v4525
  %v4527 = vpop.f32.mrf.mxu0
  %v4528 = vadd.f32 0.0, %v4527
  %4529 = vmatmul.bf16.gmra.mxu0 %v4376
  %v4530 = vpop.f32.mrf.mxu0
  %v4531 = vadd.f32 0.0, %v4530
  %v4532 = vpop.f32.mrf.mxu0
  %v4533 = vadd.f32 0.0, %v4532
  %4534 = vmatmul.bf16.gmra.mxu0 %v4379
  %v4535 = vpop.f32.mrf.mxu0
  %v4536 = vadd.f32 0.0, %v4535
  %v4537 = vpop.f32.mrf.mxu0
  %v4538 = vadd.f32 0.0, %v4537
  %4539 = vmatmul.bf16.gmra.mxu0 %v4382
  %v4540 = vpop.f32.mrf.mxu0
  %v4541 = vadd.f32 0.0, %v4540
  %v4542 = vpop.f32.mrf.mxu0
  %v4543 = vadd.f32 0.0, %v4542
  %4544 = vmatmul.bf16.gmra.mxu0 %v4385
  %v4545 = vpop.f32.mrf.mxu0
  %v4546 = vadd.f32 0.0, %v4545
  %v4547 = vpop.f32.mrf.mxu0
  %v4548 = vadd.f32 0.0, %v4547
  %4549 = vmatmul.bf16.gmra.mxu0 %v4388
  %v4550 = vpop.f32.mrf.mxu0
  %v4551 = vadd.f32 0.0, %v4550
  %v4552 = vpop.f32.mrf.mxu0
  %v4553 = vadd.f32 0.0, %v4552
  %4554 = vmatmul.bf16.gmra.mxu0 %v4391
  %v4555 = vpop.f32.mrf.mxu0
  %v4556 = vadd.f32 0.0, %v4555
  %v4557 = vpop.f32.mrf.mxu0
  %v4558 = vadd.f32 0.0, %v4557
  %4559 = vmatmul.bf16.gmra.mxu0 %v4394
  %v4560 = vpop.f32.mrf.mxu0
  %v4561 = vadd.f32 0.0, %v4560
  %v4562 = vpop.f32.mrf.mxu0
  %v4563 = vadd.f32 0.0, %v4562
  %4564 = vmatmul.bf16.gmra.mxu0 %v4397
  %v4565 = vpop.f32.mrf.mxu0
  %v4566 = vadd.f32 0.0, %v4565
  %v4567 = vpop.f32.mrf.mxu0
  %v4568 = vadd.f32 0.0, %v4567
  %4569 = vmatmul.bf16.gmra.mxu0 %v4400
  %v4570 = vpop.f32.mrf.mxu0
  %v4571 = vadd.f32 0.0, %v4570
  %v4572 = vpop.f32.mrf.mxu0
  %v4573 = vadd.f32 0.0, %v4572
  %4574 = vdwg.mxu0
  %vm4575 = vcmask 64512
  %v4576 = vsel %vm4575, %v4416, 0.0
  %v4577 = vsel %vm4575, %v4418, 0.0
  %v4578 = vadd.f32 %v4576, %v4577
  %v4579 = vsel %vm4575, %v4421, 0.0
  %v4580 = vadd.f32 %v4578, %v4579
  %v4581 = vsel %vm4575, %v4423, 0.0
  %v4582 = vadd.f32 %v4580, %v4581
  %v4583 = vsel %vm4575, %v4426, 0.0
  %v4584 = vadd.f32 %v4582, %v4583
  %v4585 = vsel %vm4575, %v4428, 0.0
  %v4586 = vadd.f32 %v4584, %v4585
  %v4587 = vsel %vm4575, %v4431, 0.0
  %v4588 = vadd.f32 %v4586, %v4587
  %v4589 = vsel %vm4575, %v4433, 0.0
  %v4590 = vadd.f32 %v4588, %v4589
  %v4591 = vsel %vm4575, %v4436, 0.0
  %v4592 = vadd.f32 %v4590, %v4591
  %v4593 = vsel %vm4575, %v4438, 0.0
  %v4594 = vadd.f32 %v4592, %v4593
  %v4595 = vsel %vm4575, %v4441, 0.0
  %v4596 = vadd.f32 %v4594, %v4595
  %v4597 = vsel %vm4575, %v4443, 0.0
  %v4598 = vadd.f32 %v4596, %v4597
  %v4599 = vsel %vm4575, %v4446, 0.0
  %v4600 = vadd.f32 %v4598, %v4599
  %v4601 = vsel %vm4575, %v4448, 0.0
  %v4602 = vadd.f32 %v4600, %v4601
  %v4603 = vsel %vm4575, %v4451, 0.0
  %v4604 = vadd.f32 %v4602, %v4603
  %v4605 = vsel %vm4575, %v4453, 0.0
  %v4606 = vadd.f32 %v4604, %v4605
  %v4607 = vsel %vm4575, %v4456, 0.0
  %v4608 = vadd.f32 %v4606, %v4607
  %v4609 = vsel %vm4575, %v4458, 0.0
  %v4610 = vadd.f32 %v4608, %v4609
  %v4611 = vsel %vm4575, %v4461, 0.0
  %v4612 = vadd.f32 %v4610, %v4611
  %v4613 = vsel %vm4575, %v4463, 0.0
  %v4614 = vadd.f32 %v4612, %v4613
  %v4615 = vsel %vm4575, %v4466, 0.0
  %v4616 = vadd.f32 %v4614, %v4615
  %v4617 = vsel %vm4575, %v4468, 0.0
  %v4618 = vadd.f32 %v4616, %v4617
  %v4619 = vsel %vm4575, %v4471, 0.0
  %v4620 = vadd.f32 %v4618, %v4619
  %v4621 = vsel %vm4575, %v4473, 0.0
  %v4622 = vadd.f32 %v4620, %v4621
  %v4623 = vsel %vm4575, %v4476, 0.0
  %v4624 = vadd.f32 %v4622, %v4623
  %v4625 = vsel %vm4575, %v4478, 0.0
  %v4626 = vadd.f32 %v4624, %v4625
  %v4627 = vsel %vm4575, %v4481, 0.0
  %v4628 = vadd.f32 %v4626, %v4627
  %v4629 = vsel %vm4575, %v4483, 0.0
  %v4630 = vadd.f32 %v4628, %v4629
  %v4631 = vsel %vm4575, %v4486, 0.0
  %v4632 = vadd.f32 %v4630, %v4631
  %v4633 = vsel %vm4575, %v4488, 0.0
  %v4634 = vadd.f32 %v4632, %v4633
  %v4635 = vsel %vm4575, %v4491, 0.0
  %v4636 = vadd.f32 %v4634, %v4635
  %v4637 = vsel %vm4575, %v4493, 0.0
  %v4638 = vadd.f32 %v4636, %v4637
  %v4639 = vsel %vm4575, %v4496, 0.0
  %v4640 = vadd.f32 %v4638, %v4639
  %v4641 = vsel %vm4575, %v4498, 0.0
  %v4642 = vadd.f32 %v4640, %v4641
  %v4643 = vsel %vm4575, %v4501, 0.0
  %v4644 = vadd.f32 %v4642, %v4643
  %v4645 = vsel %vm4575, %v4503, 0.0
  %v4646 = vadd.f32 %v4644, %v4645
  %v4647 = vsel %vm4575, %v4506, 0.0
  %v4648 = vadd.f32 %v4646, %v4647
  %v4649 = vsel %vm4575, %v4508, 0.0
  %v4650 = vadd.f32 %v4648, %v4649
  %v4651 = vsel %vm4575, %v4511, 0.0
  %v4652 = vadd.f32 %v4650, %v4651
  %v4653 = vsel %vm4575, %v4513, 0.0
  %v4654 = vadd.f32 %v4652, %v4653
  %v4655 = vsel %vm4575, %v4516, 0.0
  %v4656 = vadd.f32 %v4654, %v4655
  %v4657 = vsel %vm4575, %v4518, 0.0
  %v4658 = vadd.f32 %v4656, %v4657
  %v4659 = vsel %vm4575, %v4521, 0.0
  %v4660 = vadd.f32 %v4658, %v4659
  %v4661 = vsel %vm4575, %v4523, 0.0
  %v4662 = vadd.f32 %v4660, %v4661
  %v4663 = vsel %vm4575, %v4526, 0.0
  %v4664 = vadd.f32 %v4662, %v4663
  %v4665 = vsel %vm4575, %v4528, 0.0
  %v4666 = vadd.f32 %v4664, %v4665
  %v4667 = vsel %vm4575, %v4531, 0.0
  %v4668 = vadd.f32 %v4666, %v4667
  %v4669 = vsel %vm4575, %v4533, 0.0
  %v4670 = vadd.f32 %v4668, %v4669
  %v4671 = vsel %vm4575, %v4536, 0.0
  %v4672 = vadd.f32 %v4670, %v4671
  %v4673 = vsel %vm4575, %v4538, 0.0
  %v4674 = vadd.f32 %v4672, %v4673
  %v4675 = vsel %vm4575, %v4541, 0.0
  %v4676 = vadd.f32 %v4674, %v4675
  %v4677 = vsel %vm4575, %v4543, 0.0
  %v4678 = vadd.f32 %v4676, %v4677
  %v4679 = vsel %vm4575, %v4546, 0.0
  %v4680 = vadd.f32 %v4678, %v4679
  %v4681 = vsel %vm4575, %v4548, 0.0
  %v4682 = vadd.f32 %v4680, %v4681
  %v4683 = vsel %vm4575, %v4551, 0.0
  %v4684 = vadd.f32 %v4682, %v4683
  %v4685 = vsel %vm4575, %v4553, 0.0
  %v4686 = vadd.f32 %v4684, %v4685
  %v4687 = vsel %vm4575, %v4556, 0.0
  %v4688 = vadd.f32 %v4686, %v4687
  %v4689 = vsel %vm4575, %v4558, 0.0
  %v4690 = vadd.f32 %v4688, %v4689
  %v4691 = vsel %vm4575, %v4561, 0.0
  %v4692 = vadd.f32 %v4690, %v4691
  %v4693 = vsel %vm4575, %v4563, 0.0
  %v4694 = vadd.f32 %v4692, %v4693
  %v4695 = vsel %vm4575, %v4566, 0.0
  %v4696 = vadd.f32 %v4694, %v4695
  %v4697 = vsel %vm4575, %v4568, 0.0
  %v4698 = vadd.f32 %v4696, %v4697
  %v4699 = vsel %vm4575, %v4571, 0.0
  %v4700 = vadd.f32 %v4698, %v4699
  %v4701 = vsel %vm4575, %v4573, 0.0
  %v4702 = vadd.f32 %v4700, %v4701
  %v4703 = vrot.slane %v4702, 4
  %v4704 = vadd.f32 %v4702, %v4703
  %v4705 = vrot.slane %v4704, 2
  %v4706 = vadd.f32 %v4704, %v4705
  %v4707 = vrot.slane %v4706, 1
  %v4708 = vadd.f32 %v4706, %v4707
  %v4709 = vmul.f32 %v4416, %v4416
  %v4710 = vmul.f32 %v4418, %v4418
  %v4711 = vmul.f32 %v4421, %v4421
  %v4712 = vmul.f32 %v4423, %v4423
  %v4713 = vmul.f32 %v4426, %v4426
  %v4714 = vmul.f32 %v4428, %v4428
  %v4715 = vmul.f32 %v4431, %v4431
  %v4716 = vmul.f32 %v4433, %v4433
  %v4717 = vmul.f32 %v4436, %v4436
  %v4718 = vmul.f32 %v4438, %v4438
  %v4719 = vmul.f32 %v4441, %v4441
  %v4720 = vmul.f32 %v4443, %v4443
  %v4721 = vmul.f32 %v4446, %v4446
  %v4722 = vmul.f32 %v4448, %v4448
  %v4723 = vmul.f32 %v4451, %v4451
  %v4724 = vmul.f32 %v4453, %v4453
  %v4725 = vmul.f32 %v4456, %v4456
  %v4726 = vmul.f32 %v4458, %v4458
  %v4727 = vmul.f32 %v4461, %v4461
  %v4728 = vmul.f32 %v4463, %v4463
  %v4729 = vmul.f32 %v4466, %v4466
  %v4730 = vmul.f32 %v4468, %v4468
  %v4731 = vmul.f32 %v4471, %v4471
  %v4732 = vmul.f32 %v4473, %v4473
  %v4733 = vmul.f32 %v4476, %v4476
  %v4734 = vmul.f32 %v4478, %v4478
  %v4735 = vmul.f32 %v4481, %v4481
  %v4736 = vmul.f32 %v4483, %v4483
  %v4737 = vmul.f32 %v4486, %v4486
  %v4738 = vmul.f32 %v4488, %v4488
  %v4739 = vmul.f32 %v4491, %v4491
  %v4740 = vmul.f32 %v4493, %v4493
  %v4741 = vmul.f32 %v4496, %v4496
  %v4742 = vmul.f32 %v4498, %v4498
  %v4743 = vmul.f32 %v4501, %v4501
  %v4744 = vmul.f32 %v4503, %v4503
  %v4745 = vmul.f32 %v4506, %v4506
  %v4746 = vmul.f32 %v4508, %v4508
  %v4747 = vmul.f32 %v4511, %v4511
  %v4748 = vmul.f32 %v4513, %v4513
  %v4749 = vmul.f32 %v4516, %v4516
  %v4750 = vmul.f32 %v4518, %v4518
  %v4751 = vmul.f32 %v4521, %v4521
  %v4752 = vmul.f32 %v4523, %v4523
  %v4753 = vmul.f32 %v4526, %v4526
  %v4754 = vmul.f32 %v4528, %v4528
  %v4755 = vmul.f32 %v4531, %v4531
  %v4756 = vmul.f32 %v4533, %v4533
  %v4757 = vmul.f32 %v4536, %v4536
  %v4758 = vmul.f32 %v4538, %v4538
  %v4759 = vmul.f32 %v4541, %v4541
  %v4760 = vmul.f32 %v4543, %v4543
  %v4761 = vmul.f32 %v4546, %v4546
  %v4762 = vmul.f32 %v4548, %v4548
  %v4763 = vmul.f32 %v4551, %v4551
  %v4764 = vmul.f32 %v4553, %v4553
  %v4765 = vmul.f32 %v4556, %v4556
  %v4766 = vmul.f32 %v4558, %v4558
  %v4767 = vmul.f32 %v4561, %v4561
  %v4768 = vmul.f32 %v4563, %v4563
  %v4769 = vmul.f32 %v4566, %v4566
  %v4770 = vmul.f32 %v4568, %v4568
  %v4771 = vmul.f32 %v4571, %v4571
  %v4772 = vmul.f32 %v4573, %v4573
  %v4773 = vsel %vm4575, %v4709, 0.0
  %v4774 = vsel %vm4575, %v4710, 0.0
  %v4775 = vadd.f32 %v4773, %v4774
  %v4776 = vsel %vm4575, %v4711, 0.0
  %v4777 = vadd.f32 %v4775, %v4776
  %v4778 = vsel %vm4575, %v4712, 0.0
  %v4779 = vadd.f32 %v4777, %v4778
  %v4780 = vsel %vm4575, %v4713, 0.0
  %v4781 = vadd.f32 %v4779, %v4780
  %v4782 = vsel %vm4575, %v4714, 0.0
  %v4783 = vadd.f32 %v4781, %v4782
  %v4784 = vsel %vm4575, %v4715, 0.0
  %v4785 = vadd.f32 %v4783, %v4784
  %v4786 = vsel %vm4575, %v4716, 0.0
  %v4787 = vadd.f32 %v4785, %v4786
  %v4788 = vsel %vm4575, %v4717, 0.0
  %v4789 = vadd.f32 %v4787, %v4788
  %v4790 = vsel %vm4575, %v4718, 0.0
  %v4791 = vadd.f32 %v4789, %v4790
  %v4792 = vsel %vm4575, %v4719, 0.0
  %v4793 = vadd.f32 %v4791, %v4792
  %v4794 = vsel %vm4575, %v4720, 0.0
  %v4795 = vadd.f32 %v4793, %v4794
  %v4796 = vsel %vm4575, %v4721, 0.0
  %v4797 = vadd.f32 %v4795, %v4796
  %v4798 = vsel %vm4575, %v4722, 0.0
  %v4799 = vadd.f32 %v4797, %v4798
  %v4800 = vsel %vm4575, %v4723, 0.0
  %v4801 = vadd.f32 %v4799, %v4800
  %v4802 = vsel %vm4575, %v4724, 0.0
  %v4803 = vadd.f32 %v4801, %v4802
  %v4804 = vsel %vm4575, %v4725, 0.0
  %v4805 = vadd.f32 %v4803, %v4804
  %v4806 = vsel %vm4575, %v4726, 0.0
  %v4807 = vadd.f32 %v4805, %v4806
  %v4808 = vsel %vm4575, %v4727, 0.0
  %v4809 = vadd.f32 %v4807, %v4808
  %v4810 = vsel %vm4575, %v4728, 0.0
  %v4811 = vadd.f32 %v4809, %v4810
  %v4812 = vsel %vm4575, %v4729, 0.0
  %v4813 = vadd.f32 %v4811, %v4812
  %v4814 = vsel %vm4575, %v4730, 0.0
  %v4815 = vadd.f32 %v4813, %v4814
  %v4816 = vsel %vm4575, %v4731, 0.0
  %v4817 = vadd.f32 %v4815, %v4816
  %v4818 = vsel %vm4575, %v4732, 0.0
  %v4819 = vadd.f32 %v4817, %v4818
  %v4820 = vsel %vm4575, %v4733, 0.0
  %v4821 = vadd.f32 %v4819, %v4820
  %v4822 = vsel %vm4575, %v4734, 0.0
  %v4823 = vadd.f32 %v4821, %v4822
  %v4824 = vsel %vm4575, %v4735, 0.0
  %v4825 = vadd.f32 %v4823, %v4824
  %v4826 = vsel %vm4575, %v4736, 0.0
  %v4827 = vadd.f32 %v4825, %v4826
  %v4828 = vsel %vm4575, %v4737, 0.0
  %v4829 = vadd.f32 %v4827, %v4828
  %v4830 = vsel %vm4575, %v4738, 0.0
  %v4831 = vadd.f32 %v4829, %v4830
  %v4832 = vsel %vm4575, %v4739, 0.0
  %v4833 = vadd.f32 %v4831, %v4832
  %v4834 = vsel %vm4575, %v4740, 0.0
  %v4835 = vadd.f32 %v4833, %v4834
  %v4836 = vsel %vm4575, %v4741, 0.0
  %v4837 = vadd.f32 %v4835, %v4836
  %v4838 = vsel %vm4575, %v4742, 0.0
  %v4839 = vadd.f32 %v4837, %v4838
  %v4840 = vsel %vm4575, %v4743, 0.0
  %v4841 = vadd.f32 %v4839, %v4840
  %v4842 = vsel %vm4575, %v4744, 0.0
  %v4843 = vadd.f32 %v4841, %v4842
  %v4844 = vsel %vm4575, %v4745, 0.0
  %v4845 = vadd.f32 %v4843, %v4844
  %v4846 = vsel %vm4575, %v4746, 0.0
  %v4847 = vadd.f32 %v4845, %v4846
  %v4848 = vsel %vm4575, %v4747, 0.0
  %v4849 = vadd.f32 %v4847, %v4848
  %v4850 = vsel %vm4575, %v4748, 0.0
  %v4851 = vadd.f32 %v4849, %v4850
  %v4852 = vsel %vm4575, %v4749, 0.0
  %v4853 = vadd.f32 %v4851, %v4852
  %v4854 = vsel %vm4575, %v4750, 0.0
  %v4855 = vadd.f32 %v4853, %v4854
  %v4856 = vsel %vm4575, %v4751, 0.0
  %v4857 = vadd.f32 %v4855, %v4856
  %v4858 = vsel %vm4575, %v4752, 0.0
  %v4859 = vadd.f32 %v4857, %v4858
  %v4860 = vsel %vm4575, %v4753, 0.0
  %v4861 = vadd.f32 %v4859, %v4860
  %v4862 = vsel %vm4575, %v4754, 0.0
  %v4863 = vadd.f32 %v4861, %v4862
  %v4864 = vsel %vm4575, %v4755, 0.0
  %v4865 = vadd.f32 %v4863, %v4864
  %v4866 = vsel %vm4575, %v4756, 0.0
  %v4867 = vadd.f32 %v4865, %v4866
  %v4868 = vsel %vm4575, %v4757, 0.0
  %v4869 = vadd.f32 %v4867, %v4868
  %v4870 = vsel %vm4575, %v4758, 0.0
  %v4871 = vadd.f32 %v4869, %v4870
  %v4872 = vsel %vm4575, %v4759, 0.0
  %v4873 = vadd.f32 %v4871, %v4872
  %v4874 = vsel %vm4575, %v4760, 0.0
  %v4875 = vadd.f32 %v4873, %v4874
  %v4876 = vsel %vm4575, %v4761, 0.0
  %v4877 = vadd.f32 %v4875, %v4876
  %v4878 = vsel %vm4575, %v4762, 0.0
  %v4879 = vadd.f32 %v4877, %v4878
  %v4880 = vsel %vm4575, %v4763, 0.0
  %v4881 = vadd.f32 %v4879, %v4880
  %v4882 = vsel %vm4575, %v4764, 0.0
  %v4883 = vadd.f32 %v4881, %v4882
  %v4884 = vsel %vm4575, %v4765, 0.0
  %v4885 = vadd.f32 %v4883, %v4884
  %v4886 = vsel %vm4575, %v4766, 0.0
  %v4887 = vadd.f32 %v4885, %v4886
  %v4888 = vsel %vm4575, %v4767, 0.0
  %v4889 = vadd.f32 %v4887, %v4888
  %v4890 = vsel %vm4575, %v4768, 0.0
  %v4891 = vadd.f32 %v4889, %v4890
  %v4892 = vsel %vm4575, %v4769, 0.0
  %v4893 = vadd.f32 %v4891, %v4892
  %v4894 = vsel %vm4575, %v4770, 0.0
  %v4895 = vadd.f32 %v4893, %v4894
  %v4896 = vsel %vm4575, %v4771, 0.0
  %v4897 = vadd.f32 %v4895, %v4896
  %v4898 = vsel %vm4575, %v4772, 0.0
  %v4899 = vadd.f32 %v4897, %v4898
  %v4900 = vrot.slane %v4899, 4
  %v4901 = vadd.f32 %v4899, %v4900
  %v4902 = vrot.slane %v4901, 2
  %v4903 = vadd.f32 %v4901, %v4902
  %v4904 = vrot.slane %v4903, 1
  %v4905 = vadd.f32 %v4903, %v4904
  %v4906 = vmul.f32 %v4708, 0.001953125
  %v4907 = vmul.f32 %v4905, 0.001953125
  %v4908 = vmul.f32 %v4906, %v4906
  %v4909 = vsub.f32 %v4907, %v4908
  %v4910 = vadd.f32 %v4909, 1e-05
  %v4911 = vrsqrt.pop %v4910
  %v4912 = vmul.f32 %v4911, %v4910
  %v4913 = vmul.f32 %v4912, %v4911
  %v4914 = vmul.f32 0.5, %v4913
  %v4915 = vsub.f32 1.5, %v4914
  %v4916 = vmul.f32 %v4911, %v4915
  %vm4917 = vweird.f32 %v4910
  %vm4918 = vweird.f32 %v4911
  %vm4919 = vmor %vm4917, %vm4918
  %v4920 = vsel %vm4919, %v4911, %v4916
  %v4921 = vsub.f32 %v4416, %v4906
  %v4922 = vsub.f32 %v4418, %v4906
  %v4923 = vsub.f32 %v4421, %v4906
  %v4924 = vsub.f32 %v4423, %v4906
  %v4925 = vsub.f32 %v4426, %v4906
  %v4926 = vsub.f32 %v4428, %v4906
  %v4927 = vsub.f32 %v4431, %v4906
  %v4928 = vsub.f32 %v4433, %v4906
  %v4929 = vsub.f32 %v4436, %v4906
  %v4930 = vsub.f32 %v4438, %v4906
  %v4931 = vsub.f32 %v4441, %v4906
  %v4932 = vsub.f32 %v4443, %v4906
  %v4933 = vsub.f32 %v4446, %v4906
  %v4934 = vsub.f32 %v4448, %v4906
  %v4935 = vsub.f32 %v4451, %v4906
  %v4936 = vsub.f32 %v4453, %v4906
  %v4937 = vsub.f32 %v4456, %v4906
  %v4938 = vsub.f32 %v4458, %v4906
  %v4939 = vsub.f32 %v4461, %v4906
  %v4940 = vsub.f32 %v4463, %v4906
  %v4941 = vsub.f32 %v4466, %v4906
  %v4942 = vsub.f32 %v4468, %v4906
  %v4943 = vsub.f32 %v4471, %v4906
  %v4944 = vsub.f32 %v4473, %v4906
  %v4945 = vsub.f32 %v4476, %v4906
  %v4946 = vsub.f32 %v4478, %v4906
  %v4947 = vsub.f32 %v4481, %v4906
  %v4948 = vsub.f32 %v4483, %v4906
  %v4949 = vsub.f32 %v4486, %v4906
  %v4950 = vsub.f32 %v4488, %v4906
  %v4951 = vsub.f32 %v4491, %v4906
  %v4952 = vsub.f32 %v4493, %v4906
  %v4953 = vsub.f32 %v4496, %v4906
  %v4954 = vsub.f32 %v4498, %v4906
  %v4955 = vsub.f32 %v4501, %v4906
  %v4956 = vsub.f32 %v4503, %v4906
  %v4957 = vsub.f32 %v4506, %v4906
  %v4958 = vsub.f32 %v4508, %v4906
  %v4959 = vsub.f32 %v4511, %v4906
  %v4960 = vsub.f32 %v4513, %v4906
  %v4961 = vsub.f32 %v4516, %v4906
  %v4962 = vsub.f32 %v4518, %v4906
  %v4963 = vsub.f32 %v4521, %v4906
  %v4964 = vsub.f32 %v4523, %v4906
  %v4965 = vsub.f32 %v4526, %v4906
  %v4966 = vsub.f32 %v4528, %v4906
  %v4967 = vsub.f32 %v4531, %v4906
  %v4968 = vsub.f32 %v4533, %v4906
  %v4969 = vsub.f32 %v4536, %v4906
  %v4970 = vsub.f32 %v4538, %v4906
  %v4971 = vsub.f32 %v4541, %v4906
  %v4972 = vsub.f32 %v4543, %v4906
  %v4973 = vsub.f32 %v4546, %v4906
  %v4974 = vsub.f32 %v4548, %v4906
  %v4975 = vsub.f32 %v4551, %v4906
  %v4976 = vsub.f32 %v4553, %v4906
  %v4977 = vsub.f32 %v4556, %v4906
  %v4978 = vsub.f32 %v4558, %v4906
  %v4979 = vsub.f32 %v4561, %v4906
  %v4980 = vsub.f32 %v4563, %v4906
  %v4981 = vsub.f32 %v4566, %v4906
  %v4982 = vsub.f32 %v4568, %v4906
  %v4983 = vsub.f32 %v4571, %v4906
  %v4984 = vsub.f32 %v4573, %v4906
  %v4985 = vld [vmem:[%s2] sm:$0x1]
  %v4986 = vmul.f32 %v4920, %v4985
  %v4987 = vperm.slane %v4986, 0
  %v4988 = vmul.f32 %v4921, %v4987
  %v4989 = vmul.f32 %v4922, %v4987
  %v4990 = vmul.f32 %v4923, %v4987
  %v4991 = vmul.f32 %v4924, %v4987
  %v4992 = vmul.f32 %v4925, %v4987
  %v4993 = vmul.f32 %v4926, %v4987
  %v4994 = vmul.f32 %v4927, %v4987
  %v4995 = vmul.f32 %v4928, %v4987
  %v4996 = vmul.f32 %v4929, %v4987
  %v4997 = vmul.f32 %v4930, %v4987
  %v4998 = vmul.f32 %v4931, %v4987
  %v4999 = vmul.f32 %v4932, %v4987
  %v5000 = vmul.f32 %v4933, %v4987
  %v5001 = vmul.f32 %v4934, %v4987
  %v5002 = vmul.f32 %v4935, %v4987
  %v5003 = vmul.f32 %v4936, %v4987
  %v5004 = vmul.f32 %v4937, %v4987
  %v5005 = vmul.f32 %v4938, %v4987
  %v5006 = vmul.f32 %v4939, %v4987
  %v5007 = vmul.f32 %v4940, %v4987
  %v5008 = vmul.f32 %v4941, %v4987
  %v5009 = vmul.f32 %v4942, %v4987
  %v5010 = vmul.f32 %v4943, %v4987
  %v5011 = vmul.f32 %v4944, %v4987
  %v5012 = vmul.f32 %v4945, %v4987
  %v5013 = vmul.f32 %v4946, %v4987
  %v5014 = vmul.f32 %v4947, %v4987
  %v5015 = vmul.f32 %v4948, %v4987
  %v5016 = vmul.f32 %v4949, %v4987
  %v5017 = vmul.f32 %v4950, %v4987
  %v5018 = vmul.f32 %v4951, %v4987
  %v5019 = vmul.f32 %v4952, %v4987
  %v5020 = vmul.f32 %v4953, %v4987
  %v5021 = vmul.f32 %v4954, %v4987
  %v5022 = vmul.f32 %v4955, %v4987
  %v5023 = vmul.f32 %v4956, %v4987
  %v5024 = vmul.f32 %v4957, %v4987
  %v5025 = vmul.f32 %v4958, %v4987
  %v5026 = vmul.f32 %v4959, %v4987
  %v5027 = vmul.f32 %v4960, %v4987
  %v5028 = vmul.f32 %v4961, %v4987
  %v5029 = vmul.f32 %v4962, %v4987
  %v5030 = vmul.f32 %v4963, %v4987
  %v5031 = vmul.f32 %v4964, %v4987
  %v5032 = vmul.f32 %v4965, %v4987
  %v5033 = vmul.f32 %v4966, %v4987
  %v5034 = vmul.f32 %v4967, %v4987
  %v5035 = vmul.f32 %v4968, %v4987
  %v5036 = vmul.f32 %v4969, %v4987
  %v5037 = vmul.f32 %v4970, %v4987
  %v5038 = vmul.f32 %v4971, %v4987
  %v5039 = vmul.f32 %v4972, %v4987
  %v5040 = vmul.f32 %v4973, %v4987
  %v5041 = vmul.f32 %v4974, %v4987
  %v5042 = vmul.f32 %v4975, %v4987
  %v5043 = vmul.f32 %v4976, %v4987
  %v5044 = vmul.f32 %v4977, %v4987
  %v5045 = vmul.f32 %v4978, %v4987
  %v5046 = vmul.f32 %v4979, %v4987
  %v5047 = vmul.f32 %v4980, %v4987
  %v5048 = vmul.f32 %v4981, %v4987
  %v5049 = vmul.f32 %v4982, %v4987
  %v5050 = vmul.f32 %v4983, %v4987
  %v5051 = vmul.f32 %v4984, %v4987
  %v5052 = vld [vmem:[%s3] sm:$0x1]
  %v5054 = vperm.slane %v5052, 0
  %v5056 = vadd.f32 %v4988, %v5054
  %v5057 = vadd.f32 %v4989, %v5054
  %v5058 = vadd.f32 %v4990, %v5054
  %v5059 = vadd.f32 %v4991, %v5054
  %v5060 = vadd.f32 %v4992, %v5054
  %v5061 = vadd.f32 %v4993, %v5054
  %v5062 = vadd.f32 %v4994, %v5054
  %v5063 = vadd.f32 %v4995, %v5054
  %v5064 = vadd.f32 %v4996, %v5054
  %v5065 = vadd.f32 %v4997, %v5054
  %v5066 = vadd.f32 %v4998, %v5054
  %v5067 = vadd.f32 %v4999, %v5054
  %v5068 = vadd.f32 %v5000, %v5054
  %v5069 = vadd.f32 %v5001, %v5054
  %v5070 = vadd.f32 %v5002, %v5054
  %v5071 = vadd.f32 %v5003, %v5054
  %v5072 = vadd.f32 %v5004, %v5054
  %v5073 = vadd.f32 %v5005, %v5054
  %v5074 = vadd.f32 %v5006, %v5054
  %v5075 = vadd.f32 %v5007, %v5054
  %v5076 = vadd.f32 %v5008, %v5054
  %v5077 = vadd.f32 %v5009, %v5054
  %v5078 = vadd.f32 %v5010, %v5054
  %v5079 = vadd.f32 %v5011, %v5054
  %v5080 = vadd.f32 %v5012, %v5054
  %v5081 = vadd.f32 %v5013, %v5054
  %v5082 = vadd.f32 %v5014, %v5054
  %v5083 = vadd.f32 %v5015, %v5054
  %v5084 = vadd.f32 %v5016, %v5054
  %v5085 = vadd.f32 %v5017, %v5054
  %v5086 = vadd.f32 %v5018, %v5054
  %v5087 = vadd.f32 %v5019, %v5054
  %v5088 = vadd.f32 %v5020, %v5054
  %v5089 = vadd.f32 %v5021, %v5054
  %v5090 = vadd.f32 %v5022, %v5054
  %v5091 = vadd.f32 %v5023, %v5054
  %v5092 = vadd.f32 %v5024, %v5054
  %v5093 = vadd.f32 %v5025, %v5054
  %v5094 = vadd.f32 %v5026, %v5054
  %v5095 = vadd.f32 %v5027, %v5054
  %v5096 = vadd.f32 %v5028, %v5054
  %v5097 = vadd.f32 %v5029, %v5054
  %v5098 = vadd.f32 %v5030, %v5054
  %v5099 = vadd.f32 %v5031, %v5054
  %v5100 = vadd.f32 %v5032, %v5054
  %v5101 = vadd.f32 %v5033, %v5054
  %v5102 = vadd.f32 %v5034, %v5054
  %v5103 = vadd.f32 %v5035, %v5054
  %v5104 = vadd.f32 %v5036, %v5054
  %v5105 = vadd.f32 %v5037, %v5054
  %v5106 = vadd.f32 %v5038, %v5054
  %v5107 = vadd.f32 %v5039, %v5054
  %v5108 = vadd.f32 %v5040, %v5054
  %v5109 = vadd.f32 %v5041, %v5054
  %v5110 = vadd.f32 %v5042, %v5054
  %v5111 = vadd.f32 %v5043, %v5054
  %v5112 = vadd.f32 %v5044, %v5054
  %v5113 = vadd.f32 %v5045, %v5054
  %v5114 = vadd.f32 %v5046, %v5054
  %v5115 = vadd.f32 %v5047, %v5054
  %v5116 = vadd.f32 %v5048, %v5054
  %v5117 = vadd.f32 %v5049, %v5054
  %v5118 = vadd.f32 %v5050, %v5054
  %v5119 = vadd.f32 %v5051, %v5054
  %v5120 = vmax.f32 %v5056, 0.0
  %v5121 = vmax.f32 %v5057, 0.0
  %v5122 = vmax.f32 %v5058, 0.0
  %v5123 = vmax.f32 %v5059, 0.0
  %v5124 = vmax.f32 %v5060, 0.0
  %v5125 = vmax.f32 %v5061, 0.0
  %v5126 = vmax.f32 %v5062, 0.0
  %v5127 = vmax.f32 %v5063, 0.0
  %v5128 = vmax.f32 %v5064, 0.0
  %v5129 = vmax.f32 %v5065, 0.0
  %v5130 = vmax.f32 %v5066, 0.0
  %v5131 = vmax.f32 %v5067, 0.0
  %v5132 = vmax.f32 %v5068, 0.0
  %v5133 = vmax.f32 %v5069, 0.0
  %v5134 = vmax.f32 %v5070, 0.0
  %v5135 = vmax.f32 %v5071, 0.0
  %v5136 = vmax.f32 %v5072, 0.0
  %v5137 = vmax.f32 %v5073, 0.0
  %v5138 = vmax.f32 %v5074, 0.0
  %v5139 = vmax.f32 %v5075, 0.0
  %v5140 = vmax.f32 %v5076, 0.0
  %v5141 = vmax.f32 %v5077, 0.0
  %v5142 = vmax.f32 %v5078, 0.0
  %v5143 = vmax.f32 %v5079, 0.0
  %v5144 = vmax.f32 %v5080, 0.0
  %v5145 = vmax.f32 %v5081, 0.0
  %v5146 = vmax.f32 %v5082, 0.0
  %v5147 = vmax.f32 %v5083, 0.0
  %v5148 = vmax.f32 %v5084, 0.0
  %v5149 = vmax.f32 %v5085, 0.0
  %v5150 = vmax.f32 %v5086, 0.0
  %v5151 = vmax.f32 %v5087, 0.0
  %v5152 = vmax.f32 %v5088, 0.0
  %v5153 = vmax.f32 %v5089, 0.0
  %v5154 = vmax.f32 %v5090, 0.0
  %v5155 = vmax.f32 %v5091, 0.0
  %v5156 = vmax.f32 %v5092, 0.0
  %v5157 = vmax.f32 %v5093, 0.0
  %v5158 = vmax.f32 %v5094, 0.0
  %v5159 = vmax.f32 %v5095, 0.0
  %v5160 = vmax.f32 %v5096, 0.0
  %v5161 = vmax.f32 %v5097, 0.0
  %v5162 = vmax.f32 %v5098, 0.0
  %v5163 = vmax.f32 %v5099, 0.0
  %v5164 = vmax.f32 %v5100, 0.0
  %v5165 = vmax.f32 %v5101, 0.0
  %v5166 = vmax.f32 %v5102, 0.0
  %v5167 = vmax.f32 %v5103, 0.0
  %v5168 = vmax.f32 %v5104, 0.0
  %v5169 = vmax.f32 %v5105, 0.0
  %v5170 = vmax.f32 %v5106, 0.0
  %v5171 = vmax.f32 %v5107, 0.0
  %v5172 = vmax.f32 %v5108, 0.0
  %v5173 = vmax.f32 %v5109, 0.0
  %v5174 = vmax.f32 %v5110, 0.0
  %v5175 = vmax.f32 %v5111, 0.0
  %v5176 = vmax.f32 %v5112, 0.0
  %v5177 = vmax.f32 %v5113, 0.0
  %v5178 = vmax.f32 %v5114, 0.0
  %v5179 = vmax.f32 %v5115, 0.0
  %v5180 = vmax.f32 %v5116, 0.0
  %v5181 = vmax.f32 %v5117, 0.0
  %v5182 = vmax.f32 %v5118, 0.0
  %v5183 = vmax.f32 %v5119, 0.0
  %5184 = vst.msk [vmem:[#allocation4] sm:$0xff] %vm4575, 0.0
  %5185 = vst.msk [vmem:[#allocation4 + $0x8] sm:$0xff] %vm4575, 0.0
  %vm5186 = vcmask 58368
  %5187 = vst.msk [vmem:[#allocation4 + $0x10] sm:$0x3] %vm5186, 0.0
  %5188 = vst.msk [vmem:[#allocation4 + $0x18] sm:$0xff] %vm4575, 0.0
  %5189 = vst.msk [vmem:[#allocation4 + $0x20] sm:$0xff] %vm4575, 0.0
  %5190 = vst.msk [vmem:[#allocation4 + $0x28] sm:$0x3] %vm5186, 0.0
  %5191 = vst.msk [vmem:[#allocation4 + $0x30] sm:$0xff] %vm4575, 0.0
  %5192 = vst.msk [vmem:[#allocation4 + $0x38] sm:$0xff] %vm4575, 0.0
  %5193 = vst.msk [vmem:[#allocation4 + $0x40] sm:$0x3] %vm5186, 0.0
  %5194 = vst.msk [vmem:[#allocation4 + $0x48] sm:$0xff] %vm4575, 0.0
  %5195 = vst.msk [vmem:[#allocation4 + $0x50] sm:$0xff] %vm4575, 0.0
  %5196 = vst.msk [vmem:[#allocation4 + $0x58] sm:$0x3] %vm5186, 0.0
  %5197 = vst.msk [vmem:[#allocation4 + $0x60] sm:$0xff] %vm4575, 0.0
  %5198 = vst.msk [vmem:[#allocation4 + $0x68] sm:$0xff] %vm4575, 0.0
  %5199 = vst.msk [vmem:[#allocation4 + $0x70] sm:$0x3] %vm5186, 0.0
  %5200 = vst.msk [vmem:[#allocation4 + $0x78] sm:$0xff] %vm4575, 0.0
  %5201 = vst.msk [vmem:[#allocation4 + $0x80] sm:$0xff] %vm4575, 0.0
  %5202 = vst.msk [vmem:[#allocation4 + $0x88] sm:$0x3] %vm5186, 0.0
  %5203 = vst.msk [vmem:[#allocation4 + $0x90] sm:$0xff] %vm4575, 0.0
  %5204 = vst.msk [vmem:[#allocation4 + $0x98] sm:$0xff] %vm4575, 0.0
  %5205 = vst.msk [vmem:[#allocation4 + $0xa0] sm:$0x3] %vm5186, 0.0
  %5206 = vst.msk [vmem:[#allocation4 + $0xa8] sm:$0xff] %vm4575, 0.0
  %5207 = vst.msk [vmem:[#allocation4 + $0xb0] sm:$0xff] %vm4575, 0.0
  %5208 = vst.msk [vmem:[#allocation4 + $0xb8] sm:$0x3] %vm5186, 0.0
  %5209 = vst.msk [vmem:[#allocation4 + $0xc0] sm:$0xff] %vm4575, 0.0
  %5210 = vst.msk [vmem:[#allocation4 + $0xc8] sm:$0xff] %vm4575, 0.0
  %5211 = vst.msk [vmem:[#allocation4 + $0xd0] sm:$0x3] %vm5186, 0.0
  %5212 = vst.msk [vmem:[#allocation4 + $0xd8] sm:$0xff] %vm4575, 0.0
  %5213 = vst.msk [vmem:[#allocation4 + $0xe0] sm:$0xff] %vm4575, 0.0
  %5214 = vst.msk [vmem:[#allocation4 + $0xe8] sm:$0x3] %vm5186, 0.0
  %5215 = vst.msk [vmem:[#allocation4 + $0xf0] sm:$0xff] %vm4575, 0.0
  %5216 = vst.msk [vmem:[#allocation4 + $0xf8] sm:$0xff] %vm4575, 0.0
  %5217 = vst.msk [vmem:[#allocation4 + $0x100] sm:$0x3] %vm5186, 0.0
  %5218 = vst.msk [vmem:[#allocation4 + $0x108] sm:$0xff] %vm4575, 0.0
  %5219 = vst.msk [vmem:[#allocation4 + $0x110] sm:$0xff] %vm4575, 0.0
  %5220 = vst.msk [vmem:[#allocation4 + $0x118] sm:$0x3] %vm5186, 0.0
  %5221 = vst.msk [vmem:[#allocation4 + $0x120] sm:$0xff] %vm4575, 0.0
  %5222 = vst.msk [vmem:[#allocation4 + $0x128] sm:$0xff] %vm4575, 0.0
  %5223 = vst.msk [vmem:[#allocation4 + $0x130] sm:$0x3] %vm5186, 0.0
  %5224 = vst.msk [vmem:[#allocation4 + $0x138] sm:$0xff] %vm4575, 0.0
  %5225 = vst.msk [vmem:[#allocation4 + $0x140] sm:$0xff] %vm4575, 0.0
  %5226 = vst.msk [vmem:[#allocation4 + $0x148] sm:$0x3] %vm5186, 0.0
  %5227 = vst.msk [vmem:[#allocation4 + $0x150] sm:$0xff] %vm4575, 0.0
  %5228 = vst.msk [vmem:[#allocation4 + $0x158] sm:$0xff] %vm4575, 0.0
  %5229 = vst.msk [vmem:[#allocation4 + $0x160] sm:$0x3] %vm5186, 0.0
  %5230 = vst.msk [vmem:[#allocation4 + $0x168] sm:$0xff] %vm4575, 0.0
  %5231 = vst.msk [vmem:[#allocation4 + $0x170] sm:$0xff] %vm4575, 0.0
  %5232 = vst.msk [vmem:[#allocation4 + $0x178] sm:$0x3] %vm5186, 0.0
  %5233 = vst.msk [vmem:[#allocation4 + $0x180] sm:$0xff] %vm4575, 0.0
  %5234 = vst.msk [vmem:[#allocation4 + $0x188] sm:$0xff] %vm4575, 0.0
  %5235 = vst.msk [vmem:[#allocation4 + $0x190] sm:$0x3] %vm5186, 0.0
  %5236 = vst.msk [vmem:[#allocation4 + $0x198] sm:$0xff] %vm4575, 0.0
  %5237 = vst.msk [vmem:[#allocation4 + $0x1a0] sm:$0xff] %vm4575, 0.0
  %5238 = vst.msk [vmem:[#allocation4 + $0x1a8] sm:$0x3] %vm5186, 0.0
  %5239 = vst.msk [vmem:[#allocation4 + $0x1b0] sm:$0xff] %vm4575, 0.0
  %5240 = vst.msk [vmem:[#allocation4 + $0x1b8] sm:$0xff] %vm4575, 0.0
  %5241 = vst.msk [vmem:[#allocation4 + $0x1c0] sm:$0x3] %vm5186, 0.0
  %5242 = vst.msk [vmem:[#allocation4 + $0x1c8] sm:$0xff] %vm4575, 0.0
  %5243 = vst.msk [vmem:[#allocation4 + $0x1d0] sm:$0xff] %vm4575, 0.0
  %5244 = vst.msk [vmem:[#allocation4 + $0x1d8] sm:$0x3] %vm5186, 0.0
  %5245 = vst.msk [vmem:[#allocation4 + $0x1e0] sm:$0xff] %vm4575, 0.0
  %5246 = vst.msk [vmem:[#allocation4 + $0x1e8] sm:$0xff] %vm4575, 0.0
  %5247 = vst.msk [vmem:[#allocation4 + $0x1f0] sm:$0x3] %vm5186, 0.0
  %5248 = vst.msk [vmem:[#allocation4 + $0x1f8] sm:$0xff] %vm4575, 0.0
  %5249 = vst.msk [vmem:[#allocation4 + $0x200] sm:$0xff] %vm4575, 0.0
  %5250 = vst.msk [vmem:[#allocation4 + $0x208] sm:$0x3] %vm5186, 0.0
  %5251 = vst.msk [vmem:[#allocation4 + $0x210] sm:$0xff] %vm4575, 0.0
  %5252 = vst.msk [vmem:[#allocation4 + $0x218] sm:$0xff] %vm4575, 0.0
  %5253 = vst.msk [vmem:[#allocation4 + $0x220] sm:$0x3] %vm5186, 0.0
  %5254 = vst.msk [vmem:[#allocation4 + $0x228] sm:$0xff] %vm4575, 0.0
  %5255 = vst.msk [vmem:[#allocation4 + $0x230] sm:$0xff] %vm4575, 0.0
  %5256 = vst.msk [vmem:[#allocation4 + $0x238] sm:$0x3] %vm5186, 0.0
  %5257 = vst.msk [vmem:[#allocation4 + $0x240] sm:$0xff] %vm4575, 0.0
  %5258 = vst.msk [vmem:[#allocation4 + $0x248] sm:$0xff] %vm4575, 0.0
  %5259 = vst.msk [vmem:[#allocation4 + $0x250] sm:$0x3] %vm5186, 0.0
  %5260 = vst.msk [vmem:[#allocation4 + $0x258] sm:$0xff] %vm4575, 0.0
  %5261 = vst.msk [vmem:[#allocation4 + $0x260] sm:$0xff] %vm4575, 0.0
  %5262 = vst.msk [vmem:[#allocation4 + $0x268] sm:$0x3] %vm5186, 0.0
  %5263 = vst.msk [vmem:[#allocation4 + $0x270] sm:$0xff] %vm4575, 0.0
  %5264 = vst.msk [vmem:[#allocation4 + $0x278] sm:$0xff] %vm4575, 0.0
  %5265 = vst.msk [vmem:[#allocation4 + $0x280] sm:$0x3] %vm5186, 0.0
  %5266 = vst.msk [vmem:[#allocation4 + $0x288] sm:$0xff] %vm4575, 0.0
  %5267 = vst.msk [vmem:[#allocation4 + $0x290] sm:$0xff] %vm4575, 0.0
  %5268 = vst.msk [vmem:[#allocation4 + $0x298] sm:$0x3] %vm5186, 0.0
  %5269 = vst.msk [vmem:[#allocation4 + $0x2a0] sm:$0xff] %vm4575, 0.0
  %5270 = vst.msk [vmem:[#allocation4 + $0x2a8] sm:$0xff] %vm4575, 0.0
  %5271 = vst.msk [vmem:[#allocation4 + $0x2b0] sm:$0x3] %vm5186, 0.0
  %5272 = vst.msk [vmem:[#allocation4 + $0x2b8] sm:$0xff] %vm4575, 0.0
  %5273 = vst.msk [vmem:[#allocation4 + $0x2c0] sm:$0xff] %vm4575, 0.0
  %5274 = vst.msk [vmem:[#allocation4 + $0x2c8] sm:$0x3] %vm5186, 0.0
  %5275 = vst.msk [vmem:[#allocation4 + $0x2d0] sm:$0xff] %vm4575, 0.0
  %5276 = vst.msk [vmem:[#allocation4 + $0x2d8] sm:$0xff] %vm4575, 0.0
  %5277 = vst.msk [vmem:[#allocation4 + $0x2e0] sm:$0x3] %vm5186, 0.0
  %5278 = vst.msk [vmem:[#allocation4 + $0x2e8] sm:$0xff] %vm4575, 0.0
  %5279 = vst.msk [vmem:[#allocation4 + $0x2f0] sm:$0xff] %vm4575, 0.0
  %5280 = vst.msk [vmem:[#allocation4 + $0x2f8] sm:$0x3] %vm5186, 0.0
  %5281 = vst.msk [vmem:[#allocation4 + $0x300] sm:$0xff] %vm4575, 0.0
  %5282 = vst.msk [vmem:[#allocation4 + $0x308] sm:$0xff] %vm4575, 0.0
  %5283 = vst.msk [vmem:[#allocation4 + $0x310] sm:$0x3] %vm5186, 0.0
  %5284 = vst.msk [vmem:[#allocation4 + $0x318] sm:$0xff] %vm4575, 0.0
  %5285 = vst.msk [vmem:[#allocation4 + $0x320] sm:$0xff] %vm4575, 0.0
  %5286 = vst.msk [vmem:[#allocation4 + $0x328] sm:$0x3] %vm5186, 0.0
  %5287 = vst.msk [vmem:[#allocation4 + $0x330] sm:$0xff] %vm4575, 0.0
  %5288 = vst.msk [vmem:[#allocation4 + $0x338] sm:$0xff] %vm4575, 0.0
  %5289 = vst.msk [vmem:[#allocation4 + $0x340] sm:$0x3] %vm5186, 0.0
  %5290 = vst.msk [vmem:[#allocation4 + $0x348] sm:$0xff] %vm4575, 0.0
  %5291 = vst.msk [vmem:[#allocation4 + $0x350] sm:$0xff] %vm4575, 0.0
  %5292 = vst.msk [vmem:[#allocation4 + $0x358] sm:$0x3] %vm5186, 0.0
  %s5293 = scalar_lea.vmem [#allocation4], 24
  %5294 = vst.msk [vmem:[%s5293 + $0x1] sm:$0xff] %vm4575, %v5120
  %5295 = vst.msk [vmem:[%s5293 + $0x9] sm:$0xff] %vm4575, %v5121
  %5296 = vst.msk [vmem:[%s5293 + $0x19] sm:$0xff] %vm4575, %v5122
  %5297 = vst.msk [vmem:[%s5293 + $0x21] sm:$0xff] %vm4575, %v5123
  %5298 = vst.msk [vmem:[%s5293 + $0x31] sm:$0xff] %vm4575, %v5124
  %5299 = vst.msk [vmem:[%s5293 + $0x39] sm:$0xff] %vm4575, %v5125
  %5300 = vst.msk [vmem:[%s5293 + $0x49] sm:$0xff] %vm4575, %v5126
  %5301 = vst.msk [vmem:[%s5293 + $0x51] sm:$0xff] %vm4575, %v5127
  %5302 = vst.msk [vmem:[%s5293 + $0x61] sm:$0xff] %vm4575, %v5128
  %5303 = vst.msk [vmem:[%s5293 + $0x69] sm:$0xff] %vm4575, %v5129
  %5304 = vst.msk [vmem:[%s5293 + $0x79] sm:$0xff] %vm4575, %v5130
  %5305 = vst.msk [vmem:[%s5293 + $0x81] sm:$0xff] %vm4575, %v5131
  %5306 = vst.msk [vmem:[%s5293 + $0x91] sm:$0xff] %vm4575, %v5132
  %5307 = vst.msk [vmem:[%s5293 + $0x99] sm:$0xff] %vm4575, %v5133
  %5308 = vst.msk [vmem:[%s5293 + $0xa9] sm:$0xff] %vm4575, %v5134
  %5309 = vst.msk [vmem:[%s5293 + $0xb1] sm:$0xff] %vm4575, %v5135
  %5310 = vst.msk [vmem:[%s5293 + $0xc1] sm:$0xff] %vm4575, %v5136
  %5311 = vst.msk [vmem:[%s5293 + $0xc9] sm:$0xff] %vm4575, %v5137
  %5312 = vst.msk [vmem:[%s5293 + $0xd9] sm:$0xff] %vm4575, %v5138
  %5313 = vst.msk [vmem:[%s5293 + $0xe1] sm:$0xff] %vm4575, %v5139
  %5314 = vst.msk [vmem:[%s5293 + $0xf1] sm:$0xff] %vm4575, %v5140
  %5315 = vst.msk [vmem:[%s5293 + $0xf9] sm:$0xff] %vm4575, %v5141
  %5316 = vst.msk [vmem:[%s5293 + $0x109] sm:$0xff] %vm4575, %v5142
  %5317 = vst.msk [vmem:[%s5293 + $0x111] sm:$0xff] %vm4575, %v5143
  %5318 = vst.msk [vmem:[%s5293 + $0x121] sm:$0xff] %vm4575, %v5144
  %5319 = vst.msk [vmem:[%s5293 + $0x129] sm:$0xff] %vm4575, %v5145
  %5320 = vst.msk [vmem:[%s5293 + $0x139] sm:$0xff] %vm4575, %v5146
  %5321 = vst.msk [vmem:[%s5293 + $0x141] sm:$0xff] %vm4575, %v5147
  %5322 = vst.msk [vmem:[%s5293 + $0x151] sm:$0xff] %vm4575, %v5148
  %5323 = vst.msk [vmem:[%s5293 + $0x159] sm:$0xff] %vm4575, %v5149
  %5324 = vst.msk [vmem:[%s5293 + $0x169] sm:$0xff] %vm4575, %v5150
  %5325 = vst.msk [vmem:[%s5293 + $0x171] sm:$0xff] %vm4575, %v5151
  %5326 = vst.msk [vmem:[%s5293 + $0x1b1] sm:$0xff] %vm4575, %v5152
  %5327 = vst.msk [vmem:[%s5293 + $0x1b9] sm:$0xff] %vm4575, %v5153
  %5328 = vst.msk [vmem:[%s5293 + $0x1c9] sm:$0xff] %vm4575, %v5154
  %5329 = vst.msk [vmem:[%s5293 + $0x1d1] sm:$0xff] %vm4575, %v5155
  %5330 = vst.msk [vmem:[%s5293 + $0x1e1] sm:$0xff] %vm4575, %v5156
  %5331 = vst.msk [vmem:[%s5293 + $0x1e9] sm:$0xff] %vm4575, %v5157
  %5332 = vst.msk [vmem:[%s5293 + $0x1f9] sm:$0xff] %vm4575, %v5158
  %5333 = vst.msk [vmem:[%s5293 + $0x201] sm:$0xff] %vm4575, %v5159
  %5334 = vst.msk [vmem:[%s5293 + $0x211] sm:$0xff] %vm4575, %v5160
  %5335 = vst.msk [vmem:[%s5293 + $0x219] sm:$0xff] %vm4575, %v5161
  %5336 = vst.msk [vmem:[%s5293 + $0x229] sm:$0xff] %vm4575, %v5162
  %5337 = vst.msk [vmem:[%s5293 + $0x231] sm:$0xff] %vm4575, %v5163
  %5338 = vst.msk [vmem:[%s5293 + $0x241] sm:$0xff] %vm4575, %v5164
  %5339 = vst.msk [vmem:[%s5293 + $0x249] sm:$0xff] %vm4575, %v5165
  %5340 = vst.msk [vmem:[%s5293 + $0x259] sm:$0xff] %vm4575, %v5166
  %5341 = vst.msk [vmem:[%s5293 + $0x261] sm:$0xff] %vm4575, %v5167
  %5342 = vst.msk [vmem:[%s5293 + $0x271] sm:$0xff] %vm4575, %v5168
  %5343 = vst.msk [vmem:[%s5293 + $0x279] sm:$0xff] %vm4575, %v5169
  %5344 = vst.msk [vmem:[%s5293 + $0x289] sm:$0xff] %vm4575, %v5170
  %5345 = vst.msk [vmem:[%s5293 + $0x291] sm:$0xff] %vm4575, %v5171
  %5346 = vst.msk [vmem:[%s5293 + $0x2a1] sm:$0xff] %vm4575, %v5172
  %5347 = vst.msk [vmem:[%s5293 + $0x2a9] sm:$0xff] %vm4575, %v5173
  %5348 = vst.msk [vmem:[%s5293 + $0x2b9] sm:$0xff] %vm4575, %v5174
  %5349 = vst.msk [vmem:[%s5293 + $0x2c1] sm:$0xff] %vm4575, %v5175
  %5350 = vst.msk [vmem:[%s5293 + $0x2d1] sm:$0xff] %vm4575, %v5176
  %5351 = vst.msk [vmem:[%s5293 + $0x2d9] sm:$0xff] %vm4575, %v5177
  %5352 = vst.msk [vmem:[%s5293 + $0x2e9] sm:$0xff] %vm4575, %v5178
  %5353 = vst.msk [vmem:[%s5293 + $0x2f1] sm:$0xff] %vm4575, %v5179
  %5354 = vst.msk [vmem:[%s5293 + $0x301] sm:$0xff] %vm4575, %v5180
  %5355 = vst.msk [vmem:[%s5293 + $0x309] sm:$0xff] %vm4575, %v5181
  %5356 = vst.msk [vmem:[%s5293 + $0x319] sm:$0xff] %vm4575, %v5182
  %5357 = vst.msk [vmem:[%s5293 + $0x321] sm:$0xff] %vm4575, %v5183
  %v5358 = vld [vmem:[#allocation4] sm:$0xff]
  %v5359 = vld [vmem:[#allocation4 + $0x8] sm:$0xff]
  %v5360 = vld [vmem:[#allocation4 + $0x18] sm:$0xff]
  %v5361 = vld [vmem:[#allocation4 + $0x20] sm:$0xff]
  %v5362 = vld [vmem:[#allocation4 + $0x30] sm:$0xff]
  %v5363 = vld [vmem:[#allocation4 + $0x38] sm:$0xff]
  %v5364 = vld [vmem:[#allocation4 + $0x48] sm:$0xff]
  %v5365 = vld [vmem:[#allocation4 + $0x50] sm:$0xff]
  %v5366 = vld [vmem:[#allocation4 + $0x60] sm:$0xff]
  %v5367 = vld [vmem:[#allocation4 + $0x68] sm:$0xff]
  %v5368 = vld [vmem:[#allocation4 + $0x78] sm:$0xff]
  %v5369 = vld [vmem:[#allocation4 + $0x80] sm:$0xff]
  %v5370 = vld [vmem:[#allocation4 + $0x90] sm:$0xff]
  %v5371 = vld [vmem:[#allocation4 + $0x98] sm:$0xff]
  %v5372 = vld [vmem:[#allocation4 + $0xa8] sm:$0xff]
  %v5373 = vld [vmem:[#allocation4 + $0xb0] sm:$0xff]
  %v5374 = vld [vmem:[#allocation4 + $0xc0] sm:$0xff]
  %v5375 = vld [vmem:[#allocation4 + $0xc8] sm:$0xff]
  %v5376 = vld [vmem:[#allocation4 + $0xd8] sm:$0xff]
  %v5377 = vld [vmem:[#allocation4 + $0xe0] sm:$0xff]
  %v5378 = vld [vmem:[#allocation4 + $0xf0] sm:$0xff]
  %v5379 = vld [vmem:[#allocation4 + $0xf8] sm:$0xff]
  %v5380 = vld [vmem:[#allocation4 + $0x108] sm:$0xff]
  %v5381 = vld [vmem:[#allocation4 + $0x110] sm:$0xff]
  %v5382 = vld [vmem:[#allocation4 + $0x120] sm:$0xff]
  %v5383 = vld [vmem:[#allocation4 + $0x128] sm:$0xff]
  %v5384 = vld [vmem:[#allocation4 + $0x138] sm:$0xff]
  %v5385 = vld [vmem:[#allocation4 + $0x140] sm:$0xff]
  %v5386 = vld [vmem:[#allocation4 + $0x150] sm:$0xff]
  %v5387 = vld [vmem:[#allocation4 + $0x158] sm:$0xff]
  %v5388 = vld [vmem:[#allocation4 + $0x168] sm:$0xff]
  %v5389 = vld [vmem:[#allocation4 + $0x170] sm:$0xff]
  %v5390 = vld [vmem:[#allocation4 + $0x1b0] sm:$0xff]
  %v5391 = vld [vmem:[#allocation4 + $0x1b8] sm:$0xff]
  %v5392 = vld [vmem:[#allocation4 + $0x1c8] sm:$0xff]
  %v5393 = vld [vmem:[#allocation4 + $0x1d0] sm:$0xff]
  %v5394 = vld [vmem:[#allocation4 + $0x1e0] sm:$0xff]
  %v5395 = vld [vmem:[#allocation4 + $0x1e8] sm:$0xff]
  %v5396 = vld [vmem:[#allocation4 + $0x1f8] sm:$0xff]
  %v5397 = vld [vmem:[#allocation4 + $0x200] sm:$0xff]
  %v5398 = vld [vmem:[#allocation4 + $0x210] sm:$0xff]
  %v5399 = vld [vmem:[#allocation4 + $0x218] sm:$0xff]
  %v5400 = vld [vmem:[#allocation4 + $0x228] sm:$0xff]
  %v5401 = vld [vmem:[#allocation4 + $0x230] sm:$0xff]
  %v5402 = vld [vmem:[#allocation4 + $0x240] sm:$0xff]
  %v5403 = vld [vmem:[#allocation4 + $0x248] sm:$0xff]
  %v5404 = vld [vmem:[#allocation4 + $0x258] sm:$0xff]
  %v5405 = vld [vmem:[#allocation4 + $0x260] sm:$0xff]
  %v5406 = vld [vmem:[#allocation4 + $0x270] sm:$0xff]
  %v5407 = vld [vmem:[#allocation4 + $0x278] sm:$0xff]
  %v5408 = vld [vmem:[#allocation4 + $0x288] sm:$0xff]
  %v5409 = vld [vmem:[#allocation4 + $0x290] sm:$0xff]
  %v5410 = vld [vmem:[#allocation4 + $0x2a0] sm:$0xff]
  %v5411 = vld [vmem:[#allocation4 + $0x2a8] sm:$0xff]
  %v5412 = vld [vmem:[#allocation4 + $0x2b8] sm:$0xff]
  %v5413 = vld [vmem:[#allocation4 + $0x2c0] sm:$0xff]
  %v5414 = vld [vmem:[#allocation4 + $0x2d0] sm:$0xff]
  %v5415 = vld [vmem:[#allocation4 + $0x2d8] sm:$0xff]
  %v5416 = vld [vmem:[#allocation4 + $0x2e8] sm:$0xff]
  %v5417 = vld [vmem:[#allocation4 + $0x2f0] sm:$0xff]
  %v5418 = vld [vmem:[#allocation4 + $0x300] sm:$0xff]
  %v5419 = vld [vmem:[#allocation4 + $0x308] sm:$0xff]
  %v5420 = vld [vmem:[#allocation4 + $0x318] sm:$0xff]
  %v5421 = vld [vmem:[#allocation4 + $0x320] sm:$0xff]
  %v5422 = vpack.c.bf16 %v5358, %v5358
  %v5423 = vpack.c.bf16 %v5359, %v5359
  %v5424 = vpack.c.bf16 %v5360, %v5360
  %v5425 = vpack.c.bf16 %v5361, %v5361
  %v5426 = vpack.c.bf16 %v5362, %v5362
  %v5427 = vpack.c.bf16 %v5363, %v5363
  %v5428 = vpack.c.bf16 %v5364, %v5364
  %v5429 = vpack.c.bf16 %v5365, %v5365
  %v5430 = vpack.c.bf16 %v5366, %v5366
  %v5431 = vpack.c.bf16 %v5367, %v5367
  %v5432 = vpack.c.bf16 %v5368, %v5368
  %v5433 = vpack.c.bf16 %v5369, %v5369
  %v5434 = vpack.c.bf16 %v5370, %v5370
  %v5435 = vpack.c.bf16 %v5371, %v5371
  %v5436 = vpack.c.bf16 %v5372, %v5372
  %v5437 = vpack.c.bf16 %v5373, %v5373
  %v5438 = vpack.c.bf16 %v5374, %v5374
  %v5439 = vpack.c.bf16 %v5375, %v5375
  %v5440 = vpack.c.bf16 %v5376, %v5376
  %v5441 = vpack.c.bf16 %v5377, %v5377
  %v5442 = vpack.c.bf16 %v5378, %v5378
  %v5443 = vpack.c.bf16 %v5379, %v5379
  %v5444 = vpack.c.bf16 %v5380, %v5380
  %v5445 = vpack.c.bf16 %v5381, %v5381
  %v5446 = vpack.c.bf16 %v5382, %v5382
  %v5447 = vpack.c.bf16 %v5383, %v5383
  %v5448 = vpack.c.bf16 %v5384, %v5384
  %v5449 = vpack.c.bf16 %v5385, %v5385
  %v5450 = vpack.c.bf16 %v5386, %v5386
  %v5451 = vpack.c.bf16 %v5387, %v5387
  %v5452 = vpack.c.bf16 %v5388, %v5388
  %v5453 = vpack.c.bf16 %v5389, %v5389
  %v5454 = vpack.c.bf16 %v5390, %v5390
  %v5455 = vpack.c.bf16 %v5391, %v5391
  %v5456 = vpack.c.bf16 %v5392, %v5392
  %v5457 = vpack.c.bf16 %v5393, %v5393
  %v5458 = vpack.c.bf16 %v5394, %v5394
  %v5459 = vpack.c.bf16 %v5395, %v5395
  %v5460 = vpack.c.bf16 %v5396, %v5396
  %v5461 = vpack.c.bf16 %v5397, %v5397
  %v5462 = vpack.c.bf16 %v5398, %v5398
  %v5463 = vpack.c.bf16 %v5399, %v5399
  %v5464 = vpack.c.bf16 %v5400, %v5400
  %v5465 = vpack.c.bf16 %v5401, %v5401
  %v5466 = vpack.c.bf16 %v5402, %v5402
  %v5467 = vpack.c.bf16 %v5403, %v5403
  %v5468 = vpack.c.bf16 %v5404, %v5404
  %v5469 = vpack.c.bf16 %v5405, %v5405
  %v5470 = vpack.c.bf16 %v5406, %v5406
  %v5471 = vpack.c.bf16 %v5407, %v5407
  %v5472 = vpack.c.bf16 %v5408, %v5408
  %v5473 = vpack.c.bf16 %v5409, %v5409
  %v5474 = vpack.c.bf16 %v5410, %v5410
  %v5475 = vpack.c.bf16 %v5411, %v5411
  %v5476 = vpack.c.bf16 %v5412, %v5412
  %v5477 = vpack.c.bf16 %v5413, %v5413
  %v5478 = vpack.c.bf16 %v5414, %v5414
  %v5479 = vpack.c.bf16 %v5415, %v5415
  %v5480 = vpack.c.bf16 %v5416, %v5416
  %v5481 = vpack.c.bf16 %v5417, %v5417
  %v5482 = vpack.c.bf16 %v5418, %v5418
  %v5483 = vpack.c.bf16 %v5419, %v5419
  %v5484 = vpack.c.bf16 %v5420, %v5420
  %v5485 = vpack.c.bf16 %v5421, %v5421
  %vm5486 = vcmask 60416
  %5487 = vst.msk [vmem:[#allocation5] sm:$0xf] %vm5486, %v5422
  %5488 = vst.msk [vmem:[#allocation5 + $0x4] sm:$0xf] %vm5486, %v5423
  %5489 = vst.msk [vmem:[#allocation5 + $0x8] sm:$0xf] %vm5486, %v5424
  %5490 = vst.msk [vmem:[#allocation5 + $0xc] sm:$0xf] %vm5486, %v5425
  %5491 = vst.msk [vmem:[#allocation5 + $0x10] sm:$0xf] %vm5486, %v5426
  %5492 = vst.msk [vmem:[#allocation5 + $0x14] sm:$0xf] %vm5486, %v5427
  %5493 = vst.msk [vmem:[#allocation5 + $0x18] sm:$0xf] %vm5486, %v5428
  %5494 = vst.msk [vmem:[#allocation5 + $0x1c] sm:$0xf] %vm5486, %v5429
  %5495 = vst.msk [vmem:[#allocation5 + $0x20] sm:$0xf] %vm5486, %v5430
  %5496 = vst.msk [vmem:[#allocation5 + $0x24] sm:$0xf] %vm5486, %v5431
  %5497 = vst.msk [vmem:[#allocation5 + $0x28] sm:$0xf] %vm5486, %v5432
  %5498 = vst.msk [vmem:[#allocation5 + $0x2c] sm:$0xf] %vm5486, %v5433
  %5499 = vst.msk [vmem:[#allocation5 + $0x30] sm:$0xf] %vm5486, %v5434
  %5500 = vst.msk [vmem:[#allocation5 + $0x34] sm:$0xf] %vm5486, %v5435
  %5501 = vst.msk [vmem:[#allocation5 + $0x38] sm:$0xf] %vm5486, %v5436
  %5502 = vst.msk [vmem:[#allocation5 + $0x3c] sm:$0xf] %vm5486, %v5437
  %5503 = vst.msk [vmem:[#allocation5 + $0x40] sm:$0xf] %vm5486, %v5438
  %5504 = vst.msk [vmem:[#allocation5 + $0x44] sm:$0xf] %vm5486, %v5439
  %5505 = vst.msk [vmem:[#allocation5 + $0x48] sm:$0xf] %vm5486, %v5440
  %5506 = vst.msk [vmem:[#allocation5 + $0x4c] sm:$0xf] %vm5486, %v5441
  %5507 = vst.msk [vmem:[#allocation5 + $0x50] sm:$0xf] %vm5486, %v5442
  %5508 = vst.msk [vmem:[#allocation5 + $0x54] sm:$0xf] %vm5486, %v5443
  %5509 = vst.msk [vmem:[#allocation5 + $0x58] sm:$0xf] %vm5486, %v5444
  %5510 = vst.msk [vmem:[#allocation5 + $0x5c] sm:$0xf] %vm5486, %v5445
  %5511 = vst.msk [vmem:[#allocation5 + $0x60] sm:$0xf] %vm5486, %v5446
  %5512 = vst.msk [vmem:[#allocation5 + $0x64] sm:$0xf] %vm5486, %v5447
  %5513 = vst.msk [vmem:[#allocation5 + $0x68] sm:$0xf] %vm5486, %v5448
  %5514 = vst.msk [vmem:[#allocation5 + $0x6c] sm:$0xf] %vm5486, %v5449
  %5515 = vst.msk [vmem:[#allocation5 + $0x70] sm:$0xf] %vm5486, %v5450
  %5516 = vst.msk [vmem:[#allocation5 + $0x74] sm:$0xf] %vm5486, %v5451
  %5517 = vst.msk [vmem:[#allocation5 + $0x78] sm:$0xf] %vm5486, %v5452
  %5518 = vst.msk [vmem:[#allocation5 + $0x7c] sm:$0xf] %vm5486, %v5453
  %5519 = vst.msk [vmem:[#allocation5 + $0x80] sm:$0xf] %vm5486, %v5454
  %5520 = vst.msk [vmem:[#allocation5 + $0x84] sm:$0xf] %vm5486, %v5455
  %5521 = vst.msk [vmem:[#allocation5 + $0x88] sm:$0xf] %vm5486, %v5456
  %5522 = vst.msk [vmem:[#allocation5 + $0x8c] sm:$0xf] %vm5486, %v5457
  %5523 = vst.msk [vmem:[#allocation5 + $0x90] sm:$0xf] %vm5486, %v5458
  %5524 = vst.msk [vmem:[#allocation5 + $0x94] sm:$0xf] %vm5486, %v5459
  %5525 = vst.msk [vmem:[#allocation5 + $0x98] sm:$0xf] %vm5486, %v5460
  %5526 = vst.msk [vmem:[#allocation5 + $0x9c] sm:$0xf] %vm5486, %v5461
  %5527 = vst.msk [vmem:[#allocation5 + $0xa0] sm:$0xf] %vm5486, %v5462
  %5528 = vst.msk [vmem:[#allocation5 + $0xa4] sm:$0xf] %vm5486, %v5463
  %5529 = vst.msk [vmem:[#allocation5 + $0xa8] sm:$0xf] %vm5486, %v5464
  %5530 = vst.msk [vmem:[#allocation5 + $0xac] sm:$0xf] %vm5486, %v5465
  %5531 = vst.msk [vmem:[#allocation5 + $0xb0] sm:$0xf] %vm5486, %v5466
  %5532 = vst.msk [vmem:[#allocation5 + $0xb4] sm:$0xf] %vm5486, %v5467
  %5533 = vst.msk [vmem:[#allocation5 + $0xb8] sm:$0xf] %vm5486, %v5468
  %5534 = vst.msk [vmem:[#allocation5 + $0xbc] sm:$0xf] %vm5486, %v5469
  %5535 = vst.msk [vmem:[#allocation5 + $0xc0] sm:$0xf] %vm5486, %v5470
  %5536 = vst.msk [vmem:[#allocation5 + $0xc4] sm:$0xf] %vm5486, %v5471
  %5537 = vst.msk [vmem:[#allocation5 + $0xc8] sm:$0xf] %vm5486, %v5472
  %5538 = vst.msk [vmem:[#allocation5 + $0xcc] sm:$0xf] %vm5486, %v5473
  %5539 = vst.msk [vmem:[#allocation5 + $0xd0] sm:$0xf] %vm5486, %v5474
  %5540 = vst.msk [vmem:[#allocation5 + $0xd4] sm:$0xf] %vm5486, %v5475
  %5541 = vst.msk [vmem:[#allocation5 + $0xd8] sm:$0xf] %vm5486, %v5476
  %5542 = vst.msk [vmem:[#allocation5 + $0xdc] sm:$0xf] %vm5486, %v5477
  %5543 = vst.msk [vmem:[#allocation5 + $0xe0] sm:$0xf] %vm5486, %v5478
  %5544 = vst.msk [vmem:[#allocation5 + $0xe4] sm:$0xf] %vm5486, %v5479
  %5545 = vst.msk [vmem:[#allocation5 + $0xe8] sm:$0xf] %vm5486, %v5480
  %5546 = vst.msk [vmem:[#allocation5 + $0xec] sm:$0xf] %vm5486, %v5481
  %5547 = vst.msk [vmem:[#allocation5 + $0xf0] sm:$0xf] %vm5486, %v5482
  %5548 = vst.msk [vmem:[#allocation5 + $0xf4] sm:$0xf] %vm5486, %v5483
  %5549 = vst.msk [vmem:[#allocation5 + $0xf8] sm:$0xf] %vm5486, %v5484
  %5550 = vst.msk [vmem:[#allocation5 + $0xfc] sm:$0xf] %vm5486, %v5485
  %v5551 = vld [vmem:[#allocation4 + $0x1] sm:$0xff]
  %v5552 = vld [vmem:[#allocation4 + $0x9] sm:$0xff]
  %v5553 = vld [vmem:[#allocation4 + $0x19] sm:$0xff]
  %v5554 = vld [vmem:[#allocation4 + $0x21] sm:$0xff]
  %v5555 = vld [vmem:[#allocation4 + $0x31] sm:$0xff]
  %v5556 = vld [vmem:[#allocation4 + $0x39] sm:$0xff]
  %v5557 = vld [vmem:[#allocation4 + $0x49] sm:$0xff]
  %v5558 = vld [vmem:[#allocation4 + $0x51] sm:$0xff]
  %v5559 = vld [vmem:[#allocation4 + $0x61] sm:$0xff]
  %v5560 = vld [vmem:[#allocation4 + $0x69] sm:$0xff]
  %v5561 = vld [vmem:[#allocation4 + $0x79] sm:$0xff]
  %v5562 = vld [vmem:[#allocation4 + $0x81] sm:$0xff]
  %v5563 = vld [vmem:[#allocation4 + $0x91] sm:$0xff]
  %v5564 = vld [vmem:[#allocation4 + $0x99] sm:$0xff]
  %v5565 = vld [vmem:[#allocation4 + $0xa9] sm:$0xff]
  %v5566 = vld [vmem:[#allocation4 + $0xb1] sm:$0xff]
  %v5567 = vld [vmem:[#allocation4 + $0xc1] sm:$0xff]
  %v5568 = vld [vmem:[#allocation4 + $0xc9] sm:$0xff]
  %v5569 = vld [vmem:[#allocation4 + $0xd9] sm:$0xff]
  %v5570 = vld [vmem:[#allocation4 + $0xe1] sm:$0xff]
  %v5571 = vld [vmem:[#allocation4 + $0xf1] sm:$0xff]
  %v5572 = vld [vmem:[#allocation4 + $0xf9] sm:$0xff]
  %v5573 = vld [vmem:[#allocation4 + $0x109] sm:$0xff]
  %v5574 = vld [vmem:[#allocation4 + $0x111] sm:$0xff]
  %v5575 = vld [vmem:[#allocation4 + $0x121] sm:$0xff]
  %v5576 = vld [vmem:[#allocation4 + $0x129] sm:$0xff]
  %v5577 = vld [vmem:[#allocation4 + $0x139] sm:$0xff]
  %v5578 = vld [vmem:[#allocation4 + $0x141] sm:$0xff]
  %v5579 = vld [vmem:[#allocation4 + $0x151] sm:$0xff]
  %v5580 = vld [vmem:[#allocation4 + $0x159] sm:$0xff]
  %v5581 = vld [vmem:[#allocation4 + $0x169] sm:$0xff]
  %v5582 = vld [vmem:[#allocation4 + $0x171] sm:$0xff]
  %v5583 = vld [vmem:[#allocation4 + $0x1b1] sm:$0xff]
  %v5584 = vld [vmem:[#allocation4 + $0x1b9] sm:$0xff]
  %v5585 = vld [vmem:[#allocation4 + $0x1c9] sm:$0xff]
  %v5586 = vld [vmem:[#allocation4 + $0x1d1] sm:$0xff]
  %v5587 = vld [vmem:[#allocation4 + $0x1e1] sm:$0xff]
  %v5588 = vld [vmem:[#allocation4 + $0x1e9] sm:$0xff]
  %v5589 = vld [vmem:[#allocation4 + $0x1f9] sm:$0xff]
  %v5590 = vld [vmem:[#allocation4 + $0x201] sm:$0xff]
  %v5591 = vld [vmem:[#allocation4 + $0x211] sm:$0xff]
  %v5592 = vld [vmem:[#allocation4 + $0x219] sm:$0xff]
  %v5593 = vld [vmem:[#allocation4 + $0x229] sm:$0xff]
  %v5594 = vld [vmem:[#allocation4 + $0x231] sm:$0xff]
  %v5595 = vld [vmem:[#allocation4 + $0x241] sm:$0xff]
  %v5596 = vld [vmem:[#allocation4 + $0x249] sm:$0xff]
  %v5597 = vld [vmem:[#allocation4 + $0x259] sm:$0xff]
  %v5598 = vld [vmem:[#allocation4 + $0x261] sm:$0xff]
  %v5599 = vld [vmem:[#allocation4 + $0x271] sm:$0xff]
  %v5600 = vld [vmem:[#allocation4 + $0x279] sm:$0xff]
  %v5601 = vld [vmem:[#allocation4 + $0x289] sm:$0xff]
  %v5602 = vld [vmem:[#allocation4 + $0x291] sm:$0xff]
  %v5603 = vld [vmem:[#allocation4 + $0x2a1] sm:$0xff]
  %v5604 = vld [vmem:[#allocation4 + $0x2a9] sm:$0xff]
  %v5605 = vld [vmem:[#allocation4 + $0x2b9] sm:$0xff]
  %v5606 = vld [vmem:[#allocation4 + $0x2c1] sm:$0xff]
  %v5607 = vld [vmem:[#allocation4 + $0x2d1] sm:$0xff]
  %v5608 = vld [vmem:[#allocation4 + $0x2d9] sm:$0xff]
  %v5609 = vld [vmem:[#allocation4 + $0x2e9] sm:$0xff]
  %v5610 = vld [vmem:[#allocation4 + $0x2f1] sm:$0xff]
  %v5611 = vld [vmem:[#allocation4 + $0x301] sm:$0xff]
  %v5612 = vld [vmem:[#allocation4 + $0x309] sm:$0xff]
  %v5613 = vld [vmem:[#allocation4 + $0x319] sm:$0xff]
  %v5614 = vld [vmem:[#allocation4 + $0x321] sm:$0xff]
  %v5615 = vpack.c.bf16 %v5551, %v5551
  %v5616 = vpack.c.bf16 %v5552, %v5552
  %v5617 = vpack.c.bf16 %v5553, %v5553
  %v5618 = vpack.c.bf16 %v5554, %v5554
  %v5619 = vpack.c.bf16 %v5555, %v5555
  %v5620 = vpack.c.bf16 %v5556, %v5556
  %v5621 = vpack.c.bf16 %v5557, %v5557
  %v5622 = vpack.c.bf16 %v5558, %v5558
  %v5623 = vpack.c.bf16 %v5559, %v5559
  %v5624 = vpack.c.bf16 %v5560, %v5560
  %v5625 = vpack.c.bf16 %v5561, %v5561
  %v5626 = vpack.c.bf16 %v5562, %v5562
  %v5627 = vpack.c.bf16 %v5563, %v5563
  %v5628 = vpack.c.bf16 %v5564, %v5564
  %v5629 = vpack.c.bf16 %v5565, %v5565
  %v5630 = vpack.c.bf16 %v5566, %v5566
  %v5631 = vpack.c.bf16 %v5567, %v5567
  %v5632 = vpack.c.bf16 %v5568, %v5568
  %v5633 = vpack.c.bf16 %v5569, %v5569
  %v5634 = vpack.c.bf16 %v5570, %v5570
  %v5635 = vpack.c.bf16 %v5571, %v5571
  %v5636 = vpack.c.bf16 %v5572, %v5572
  %v5637 = vpack.c.bf16 %v5573, %v5573
  %v5638 = vpack.c.bf16 %v5574, %v5574
  %v5639 = vpack.c.bf16 %v5575, %v5575
  %v5640 = vpack.c.bf16 %v5576, %v5576
  %v5641 = vpack.c.bf16 %v5577, %v5577
  %v5642 = vpack.c.bf16 %v5578, %v5578
  %v5643 = vpack.c.bf16 %v5579, %v5579
  %v5644 = vpack.c.bf16 %v5580, %v5580
  %v5645 = vpack.c.bf16 %v5581, %v5581
  %v5646 = vpack.c.bf16 %v5582, %v5582
  %v5647 = vpack.c.bf16 %v5583, %v5583
  %v5648 = vpack.c.bf16 %v5584, %v5584
  %v5649 = vpack.c.bf16 %v5585, %v5585
  %v5650 = vpack.c.bf16 %v5586, %v5586
  %v5651 = vpack.c.bf16 %v5587, %v5587
  %v5652 = vpack.c.bf16 %v5588, %v5588
  %v5653 = vpack.c.bf16 %v5589, %v5589
  %v5654 = vpack.c.bf16 %v5590, %v5590
  %v5655 = vpack.c.bf16 %v5591, %v5591
  %v5656 = vpack.c.bf16 %v5592, %v5592
  %v5657 = vpack.c.bf16 %v5593, %v5593
  %v5658 = vpack.c.bf16 %v5594, %v5594
  %v5659 = vpack.c.bf16 %v5595, %v5595
  %v5660 = vpack.c.bf16 %v5596, %v5596
  %v5661 = vpack.c.bf16 %v5597, %v5597
  %v5662 = vpack.c.bf16 %v5598, %v5598
  %v5663 = vpack.c.bf16 %v5599, %v5599
  %v5664 = vpack.c.bf16 %v5600, %v5600
  %v5665 = vpack.c.bf16 %v5601, %v5601
  %v5666 = vpack.c.bf16 %v5602, %v5602
  %v5667 = vpack.c.bf16 %v5603, %v5603
  %v5668 = vpack.c.bf16 %v5604, %v5604
  %v5669 = vpack.c.bf16 %v5605, %v5605
  %v5670 = vpack.c.bf16 %v5606, %v5606
  %v5671 = vpack.c.bf16 %v5607, %v5607
  %v5672 = vpack.c.bf16 %v5608, %v5608
  %v5673 = vpack.c.bf16 %v5609, %v5609
  %v5674 = vpack.c.bf16 %v5610, %v5610
  %v5675 = vpack.c.bf16 %v5611, %v5611
  %v5676 = vpack.c.bf16 %v5612, %v5612
  %v5677 = vpack.c.bf16 %v5613, %v5613
  %v5678 = vpack.c.bf16 %v5614, %v5614
  %5743 = vrot.lane.b32.xlu0 %v5615, 8
  %v5744 = vpop.permute.xlu0 %5743
  %5745 = vrot.lane.b32.xlu0 %v5616, 8
  %v5746 = vpop.permute.xlu0 %5745
  %5747 = vrot.lane.b32.xlu0 %v5617, 8
  %v5748 = vpop.permute.xlu0 %5747
  %5749 = vrot.lane.b32.xlu0 %v5618, 8
  %v5750 = vpop.permute.xlu0 %5749
  %5751 = vrot.lane.b32.xlu0 %v5619, 8
  %v5752 = vpop.permute.xlu0 %5751
  %5753 = vrot.lane.b32.xlu0 %v5620, 8
  %v5754 = vpop.permute.xlu0 %5753
  %5755 = vrot.lane.b32.xlu0 %v5621, 8
  %v5756 = vpop.permute.xlu0 %5755
  %5757 = vrot.lane.b32.xlu0 %v5622, 8
  %v5758 = vpop.permute.xlu0 %5757
  %5759 = vrot.lane.b32.xlu0 %v5623, 8
  %v5760 = vpop.permute.xlu0 %5759
  %5761 = vrot.lane.b32.xlu0 %v5624, 8
  %v5762 = vpop.permute.xlu0 %5761
  %5763 = vrot.lane.b32.xlu0 %v5625, 8
  %v5764 = vpop.permute.xlu0 %5763
  %5765 = vrot.lane.b32.xlu0 %v5626, 8
  %v5766 = vpop.permute.xlu0 %5765
  %5767 = vrot.lane.b32.xlu0 %v5627, 8
  %v5768 = vpop.permute.xlu0 %5767
  %5769 = vrot.lane.b32.xlu0 %v5628, 8
  %v5770 = vpop.permute.xlu0 %5769
  %5771 = vrot.lane.b32.xlu0 %v5629, 8
  %v5772 = vpop.permute.xlu0 %5771
  %5773 = vrot.lane.b32.xlu0 %v5630, 8
  %v5774 = vpop.permute.xlu0 %5773
  %5775 = vrot.lane.b32.xlu0 %v5631, 8
  %v5776 = vpop.permute.xlu0 %5775
  %5777 = vrot.lane.b32.xlu0 %v5632, 8
  %v5778 = vpop.permute.xlu0 %5777
  %5779 = vrot.lane.b32.xlu0 %v5633, 8
  %v5780 = vpop.permute.xlu0 %5779
  %5781 = vrot.lane.b32.xlu0 %v5634, 8
  %v5782 = vpop.permute.xlu0 %5781
  %5783 = vrot.lane.b32.xlu0 %v5635, 8
  %v5784 = vpop.permute.xlu0 %5783
  %5785 = vrot.lane.b32.xlu0 %v5636, 8
  %v5786 = vpop.permute.xlu0 %5785
  %5787 = vrot.lane.b32.xlu0 %v5637, 8
  %v5788 = vpop.permute.xlu0 %5787
  %5789 = vrot.lane.b32.xlu0 %v5638, 8
  %v5790 = vpop.permute.xlu0 %5789
  %5791 = vrot.lane.b32.xlu0 %v5639, 8
  %v5792 = vpop.permute.xlu0 %5791
  %5793 = vrot.lane.b32.xlu0 %v5640, 8
  %v5794 = vpop.permute.xlu0 %5793
  %5795 = vrot.lane.b32.xlu0 %v5641, 8
  %v5796 = vpop.permute.xlu0 %5795
  %5797 = vrot.lane.b32.xlu0 %v5642, 8
  %v5798 = vpop.permute.xlu0 %5797
  %5799 = vrot.lane.b32.xlu0 %v5643, 8
  %v5800 = vpop.permute.xlu0 %5799
  %5801 = vrot.lane.b32.xlu0 %v5644, 8
  %v5802 = vpop.permute.xlu0 %5801
  %5803 = vrot.lane.b32.xlu0 %v5645, 8
  %v5804 = vpop.permute.xlu0 %5803
  %5805 = vrot.lane.b32.xlu0 %v5646, 8
  %v5806 = vpop.permute.xlu0 %5805
  %5807 = vrot.lane.b32.xlu0 %v5647, 8
  %v5808 = vpop.permute.xlu0 %5807
  %5809 = vrot.lane.b32.xlu0 %v5648, 8
  %v5810 = vpop.permute.xlu0 %5809
  %5811 = vrot.lane.b32.xlu0 %v5649, 8
  %v5812 = vpop.permute.xlu0 %5811
  %5813 = vrot.lane.b32.xlu0 %v5650, 8
  %v5814 = vpop.permute.xlu0 %5813
  %5815 = vrot.lane.b32.xlu0 %v5651, 8
  %v5816 = vpop.permute.xlu0 %5815
  %5817 = vrot.lane.b32.xlu0 %v5652, 8
  %v5818 = vpop.permute.xlu0 %5817
  %5819 = vrot.lane.b32.xlu0 %v5653, 8
  %v5820 = vpop.permute.xlu0 %5819
  %5821 = vrot.lane.b32.xlu0 %v5654, 8
  %v5822 = vpop.permute.xlu0 %5821
  %5823 = vrot.lane.b32.xlu0 %v5655, 8
  %v5824 = vpop.permute.xlu0 %5823
  %5825 = vrot.lane.b32.xlu0 %v5656, 8
  %v5826 = vpop.permute.xlu0 %5825
  %5827 = vrot.lane.b32.xlu0 %v5657, 8
  %v5828 = vpop.permute.xlu0 %5827
  %5829 = vrot.lane.b32.xlu0 %v5658, 8
  %v5830 = vpop.permute.xlu0 %5829
  %5831 = vrot.lane.b32.xlu0 %v5659, 8
  %v5832 = vpop.permute.xlu0 %5831
  %5833 = vrot.lane.b32.xlu0 %v5660, 8
  %v5834 = vpop.permute.xlu0 %5833
  %5835 = vrot.lane.b32.xlu0 %v5661, 8
  %v5836 = vpop.permute.xlu0 %5835
  %5837 = vrot.lane.b32.xlu0 %v5662, 8
  %v5838 = vpop.permute.xlu0 %5837
  %5839 = vrot.lane.b32.xlu0 %v5663, 8
  %v5840 = vpop.permute.xlu0 %5839
  %5841 = vrot.lane.b32.xlu0 %v5664, 8
  %v5842 = vpop.permute.xlu0 %5841
  %5843 = vrot.lane.b32.xlu0 %v5665, 8
  %v5844 = vpop.permute.xlu0 %5843
  %5845 = vrot.lane.b32.xlu0 %v5666, 8
  %v5846 = vpop.permute.xlu0 %5845
  %5847 = vrot.lane.b32.xlu0 %v5667, 8
  %v5848 = vpop.permute.xlu0 %5847
  %5849 = vrot.lane.b32.xlu0 %v5668, 8
  %v5850 = vpop.permute.xlu0 %5849
  %5851 = vrot.lane.b32.xlu0 %v5669, 8
  %v5852 = vpop.permute.xlu0 %5851
  %5853 = vrot.lane.b32.xlu0 %v5670, 8
  %v5854 = vpop.permute.xlu0 %5853
  %5855 = vrot.lane.b32.xlu0 %v5671, 8
  %v5856 = vpop.permute.xlu0 %5855
  %5857 = vrot.lane.b32.xlu0 %v5672, 8
  %v5858 = vpop.permute.xlu0 %5857
  %5859 = vrot.lane.b32.xlu0 %v5673, 8
  %v5860 = vpop.permute.xlu0 %5859
  %5861 = vrot.lane.b32.xlu0 %v5674, 8
  %v5862 = vpop.permute.xlu0 %5861
  %5863 = vrot.lane.b32.xlu0 %v5675, 8
  %v5864 = vpop.permute.xlu0 %5863
  %5865 = vrot.lane.b32.xlu0 %v5676, 8
  %v5866 = vpop.permute.xlu0 %5865
  %5867 = vrot.lane.b32.xlu0 %v5677, 8
  %v5868 = vpop.permute.xlu0 %5867
  %5869 = vrot.lane.b32.xlu0 %v5678, 8
  %v5870 = vpop.permute.xlu0 %5869
  %vm5935 = vcmask 126016
  %5936 = vst.msk [vmem:[#allocation5] sm:$0xf] %vm5935, %v5744
  %5937 = vst.msk [vmem:[#allocation5 + $0x4] sm:$0xf] %vm5935, %v5746
  %5938 = vst.msk [vmem:[#allocation5 + $0x8] sm:$0xf] %vm5935, %v5748
  %5939 = vst.msk [vmem:[#allocation5 + $0xc] sm:$0xf] %vm5935, %v5750
  %5940 = vst.msk [vmem:[#allocation5 + $0x10] sm:$0xf] %vm5935, %v5752
  %5941 = vst.msk [vmem:[#allocation5 + $0x14] sm:$0xf] %vm5935, %v5754
  %5942 = vst.msk [vmem:[#allocation5 + $0x18] sm:$0xf] %vm5935, %v5756
  %5943 = vst.msk [vmem:[#allocation5 + $0x1c] sm:$0xf] %vm5935, %v5758
  %5944 = vst.msk [vmem:[#allocation5 + $0x20] sm:$0xf] %vm5935, %v5760
  %5945 = vst.msk [vmem:[#allocation5 + $0x24] sm:$0xf] %vm5935, %v5762
  %5946 = vst.msk [vmem:[#allocation5 + $0x28] sm:$0xf] %vm5935, %v5764
  %5947 = vst.msk [vmem:[#allocation5 + $0x2c] sm:$0xf] %vm5935, %v5766
  %5948 = vst.msk [vmem:[#allocation5 + $0x30] sm:$0xf] %vm5935, %v5768
  %5949 = vst.msk [vmem:[#allocation5 + $0x34] sm:$0xf] %vm5935, %v5770
  %5950 = vst.msk [vmem:[#allocation5 + $0x38] sm:$0xf] %vm5935, %v5772
  %5951 = vst.msk [vmem:[#allocation5 + $0x3c] sm:$0xf] %vm5935, %v5774
  %5952 = vst.msk [vmem:[#allocation5 + $0x40] sm:$0xf] %vm5935, %v5776
  %5953 = vst.msk [vmem:[#allocation5 + $0x44] sm:$0xf] %vm5935, %v5778
  %5954 = vst.msk [vmem:[#allocation5 + $0x48] sm:$0xf] %vm5935, %v5780
  %5955 = vst.msk [vmem:[#allocation5 + $0x4c] sm:$0xf] %vm5935, %v5782
  %5956 = vst.msk [vmem:[#allocation5 + $0x50] sm:$0xf] %vm5935, %v5784
  %5957 = vst.msk [vmem:[#allocation5 + $0x54] sm:$0xf] %vm5935, %v5786
  %5958 = vst.msk [vmem:[#allocation5 + $0x58] sm:$0xf] %vm5935, %v5788
  %5959 = vst.msk [vmem:[#allocation5 + $0x5c] sm:$0xf] %vm5935, %v5790
  %5960 = vst.msk [vmem:[#allocation5 + $0x60] sm:$0xf] %vm5935, %v5792
  %5961 = vst.msk [vmem:[#allocation5 + $0x64] sm:$0xf] %vm5935, %v5794
  %5962 = vst.msk [vmem:[#allocation5 + $0x68] sm:$0xf] %vm5935, %v5796
  %5963 = vst.msk [vmem:[#allocation5 + $0x6c] sm:$0xf] %vm5935, %v5798
  %5964 = vst.msk [vmem:[#allocation5 + $0x70] sm:$0xf] %vm5935, %v5800
  %5965 = vst.msk [vmem:[#allocation5 + $0x74] sm:$0xf] %vm5935, %v5802
  %5966 = vst.msk [vmem:[#allocation5 + $0x78] sm:$0xf] %vm5935, %v5804
  %5967 = vst.msk [vmem:[#allocation5 + $0x7c] sm:$0xf] %vm5935, %v5806
  %5968 = vst.msk [vmem:[#allocation5 + $0x80] sm:$0xf] %vm5935, %v5808
  %5969 = vst.msk [vmem:[#allocation5 + $0x84] sm:$0xf] %vm5935, %v5810
  %5970 = vst.msk [vmem:[#allocation5 + $0x88] sm:$0xf] %vm5935, %v5812
  %5971 = vst.msk [vmem:[#allocation5 + $0x8c] sm:$0xf] %vm5935, %v5814
  %5972 = vst.msk [vmem:[#allocation5 + $0x90] sm:$0xf] %vm5935, %v5816
  %5973 = vst.msk [vmem:[#allocation5 + $0x94] sm:$0xf] %vm5935, %v5818
  %5974 = vst.msk [vmem:[#allocation5 + $0x98] sm:$0xf] %vm5935, %v5820
  %5975 = vst.msk [vmem:[#allocation5 + $0x9c] sm:$0xf] %vm5935, %v5822
  %5976 = vst.msk [vmem:[#allocation5 + $0xa0] sm:$0xf] %vm5935, %v5824
  %5977 = vst.msk [vmem:[#allocation5 + $0xa4] sm:$0xf] %vm5935, %v5826
  %5978 = vst.msk [vmem:[#allocation5 + $0xa8] sm:$0xf] %vm5935, %v5828
  %5979 = vst.msk [vmem:[#allocation5 + $0xac] sm:$0xf] %vm5935, %v5830
  %5980 = vst.msk [vmem:[#allocation5 + $0xb0] sm:$0xf] %vm5935, %v5832
  %5981 = vst.msk [vmem:[#allocation5 + $0xb4] sm:$0xf] %vm5935, %v5834
  %5982 = vst.msk [vmem:[#allocation5 + $0xb8] sm:$0xf] %vm5935, %v5836
  %5983 = vst.msk [vmem:[#allocation5 + $0xbc] sm:$0xf] %vm5935, %v5838
  %5984 = vst.msk [vmem:[#allocation5 + $0xc0] sm:$0xf] %vm5935, %v5840
  %5985 = vst.msk [vmem:[#allocation5 + $0xc4] sm:$0xf] %vm5935, %v5842
  %5986 = vst.msk [vmem:[#allocation5 + $0xc8] sm:$0xf] %vm5935, %v5844
  %5987 = vst.msk [vmem:[#allocation5 + $0xcc] sm:$0xf] %vm5935, %v5846
  %5988 = vst.msk [vmem:[#allocation5 + $0xd0] sm:$0xf] %vm5935, %v5848
  %5989 = vst.msk [vmem:[#allocation5 + $0xd4] sm:$0xf] %vm5935, %v5850
  %5990 = vst.msk [vmem:[#allocation5 + $0xd8] sm:$0xf] %vm5935, %v5852
  %5991 = vst.msk [vmem:[#allocation5 + $0xdc] sm:$0xf] %vm5935, %v5854
  %5992 = vst.msk [vmem:[#allocation5 + $0xe0] sm:$0xf] %vm5935, %v5856
  %5993 = vst.msk [vmem:[#allocation5 + $0xe4] sm:$0xf] %vm5935, %v5858
  %5994 = vst.msk [vmem:[#allocation5 + $0xe8] sm:$0xf] %vm5935, %v5860
  %5995 = vst.msk [vmem:[#allocation5 + $0xec] sm:$0xf] %vm5935, %v5862
  %5996 = vst.msk [vmem:[#allocation5 + $0xf0] sm:$0xf] %vm5935, %v5864
  %5997 = vst.msk [vmem:[#allocation5 + $0xf4] sm:$0xf] %vm5935, %v5866
  %5998 = vst.msk [vmem:[#allocation5 + $0xf8] sm:$0xf] %vm5935, %v5868
  %5999 = vst.msk [vmem:[#allocation5 + $0xfc] sm:$0xf] %vm5935, %v5870
  %v6000 = vld [vmem:[#allocation4 + $0x2] sm:$0xff]
  %v6001 = vld [vmem:[#allocation4 + $0xa] sm:$0xff]
  %v6002 = vld [vmem:[#allocation4 + $0x1a] sm:$0xff]
  %v6003 = vld [vmem:[#allocation4 + $0x22] sm:$0xff]
  %v6004 = vld [vmem:[#allocation4 + $0x32] sm:$0xff]
  %v6005 = vld [vmem:[#allocation4 + $0x3a] sm:$0xff]
  %v6006 = vld [vmem:[#allocation4 + $0x4a] sm:$0xff]
  %v6007 = vld [vmem:[#allocation4 + $0x52] sm:$0xff]
  %v6008 = vld [vmem:[#allocation4 + $0x62] sm:$0xff]
  %v6009 = vld [vmem:[#allocation4 + $0x6a] sm:$0xff]
  %v6010 = vld [vmem:[#allocation4 + $0x7a] sm:$0xff]
  %v6011 = vld [vmem:[#allocation4 + $0x82] sm:$0xff]
  %v6012 = vld [vmem:[#allocation4 + $0x92] sm:$0xff]
  %v6013 = vld [vmem:[#allocation4 + $0x9a] sm:$0xff]
  %v6014 = vld [vmem:[#allocation4 + $0xaa] sm:$0xff]
  %v6015 = vld [vmem:[#allocation4 + $0xb2] sm:$0xff]
  %v6016 = vld [vmem:[#allocation4 + $0xc2] sm:$0xff]
  %v6017 = vld [vmem:[#allocation4 + $0xca] sm:$0xff]
  %v6018 = vld [vmem:[#allocation4 + $0xda] sm:$0xff]
  %v6019 = vld [vmem:[#allocation4 + $0xe2] sm:$0xff]
  %v6020 = vld [vmem:[#allocation4 + $0xf2] sm:$0xff]
  %v6021 = vld [vmem:[#allocation4 + $0xfa] sm:$0xff]
  %v6022 = vld [vmem:[#allocation4 + $0x10a] sm:$0xff]
  %v6023 = vld [vmem:[#allocation4 + $0x112] sm:$0xff]
  %v6024 = vld [vmem:[#allocation4 + $0x122] sm:$0xff]
  %v6025 = vld [vmem:[#allocation4 + $0x12a] sm:$0xff]
  %v6026 = vld [vmem:[#allocation4 + $0x13a] sm:$0xff]
  %v6027 = vld [vmem:[#allocation4 + $0x142] sm:$0xff]
  %v6028 = vld [vmem:[#allocation4 + $0x152] sm:$0xff]
  %v6029 = vld [vmem:[#allocation4 + $0x15a] sm:$0xff]
  %v6030 = vld [vmem:[#allocation4 + $0x16a] sm:$0xff]
  %v6031 = vld [vmem:[#allocation4 + $0x172] sm:$0xff]
  %v6032 = vld [vmem:[#allocation4 + $0x1b2] sm:$0xff]
  %v6033 = vld [vmem:[#allocation4 + $0x1ba] sm:$0xff]
  %v6034 = vld [vmem:[#allocation4 + $0x1ca] sm:$0xff]
  %v6035 = vld [vmem:[#allocation4 + $0x1d2] sm:$0xff]
  %v6036 = vld [vmem:[#allocation4 + $0x1e2] sm:$0xff]
  %v6037 = vld [vmem:[#allocation4 + $0x1ea] sm:$0xff]
  %v6038 = vld [vmem:[#allocation4 + $0x1fa] sm:$0xff]
  %v6039 = vld [vmem:[#allocation4 + $0x202] sm:$0xff]
  %v6040 = vld [vmem:[#allocation4 + $0x212] sm:$0xff]
  %v6041 = vld [vmem:[#allocation4 + $0x21a] sm:$0xff]
  %v6042 = vld [vmem:[#allocation4 + $0x22a] sm:$0xff]
  %v6043 = vld [vmem:[#allocation4 + $0x232] sm:$0xff]
  %v6044 = vld [vmem:[#allocation4 + $0x242] sm:$0xff]
  %v6045 = vld [vmem:[#allocation4 + $0x24a] sm:$0xff]
  %v6046 = vld [vmem:[#allocation4 + $0x25a] sm:$0xff]
  %v6047 = vld [vmem:[#allocation4 + $0x262] sm:$0xff]
  %v6048 = vld [vmem:[#allocation4 + $0x272] sm:$0xff]
  %v6049 = vld [vmem:[#allocation4 + $0x27a] sm:$0xff]
  %v6050 = vld [vmem:[#allocation4 + $0x28a] sm:$0xff]
  %v6051 = vld [vmem:[#allocation4 + $0x292] sm:$0xff]
  %v6052 = vld [vmem:[#allocation4 + $0x2a2] sm:$0xff]
  %v6053 = vld [vmem:[#allocation4 + $0x2aa] sm:$0xff]
  %v6054 = vld [vmem:[#allocation4 + $0x2ba] sm:$0xff]
  %v6055 = vld [vmem:[#allocation4 + $0x2c2] sm:$0xff]
  %v6056 = vld [vmem:[#allocation4 + $0x2d2] sm:$0xff]
  %v6057 = vld [vmem:[#allocation4 + $0x2da] sm:$0xff]
  %v6058 = vld [vmem:[#allocation4 + $0x2ea] sm:$0xff]
  %v6059 = vld [vmem:[#allocation4 + $0x2f2] sm:$0xff]
  %v6060 = vld [vmem:[#allocation4 + $0x302] sm:$0xff]
  %v6061 = vld [vmem:[#allocation4 + $0x30a] sm:$0xff]
  %v6062 = vld [vmem:[#allocation4 + $0x31a] sm:$0xff]
  %v6063 = vld [vmem:[#allocation4 + $0x322] sm:$0xff]
  %v6064 = vpack.c.bf16 %v6000, %v6000
  %v6065 = vpack.c.bf16 %v6001, %v6001
  %v6066 = vpack.c.bf16 %v6002, %v6002
  %v6067 = vpack.c.bf16 %v6003, %v6003
  %v6068 = vpack.c.bf16 %v6004, %v6004
  %v6069 = vpack.c.bf16 %v6005, %v6005
  %v6070 = vpack.c.bf16 %v6006, %v6006
  %v6071 = vpack.c.bf16 %v6007, %v6007
  %v6072 = vpack.c.bf16 %v6008, %v6008
  %v6073 = vpack.c.bf16 %v6009, %v6009
  %v6074 = vpack.c.bf16 %v6010, %v6010
  %v6075 = vpack.c.bf16 %v6011, %v6011
  %v6076 = vpack.c.bf16 %v6012, %v6012
  %v6077 = vpack.c.bf16 %v6013, %v6013
  %v6078 = vpack.c.bf16 %v6014, %v6014
  %v6079 = vpack.c.bf16 %v6015, %v6015
  %v6080 = vpack.c.bf16 %v6016, %v6016
  %v6081 = vpack.c.bf16 %v6017, %v6017
  %v6082 = vpack.c.bf16 %v6018, %v6018
  %v6083 = vpack.c.bf16 %v6019, %v6019
  %v6084 = vpack.c.bf16 %v6020, %v6020
  %v6085 = vpack.c.bf16 %v6021, %v6021
  %v6086 = vpack.c.bf16 %v6022, %v6022
  %v6087 = vpack.c.bf16 %v6023, %v6023
  %v6088 = vpack.c.bf16 %v6024, %v6024
  %v6089 = vpack.c.bf16 %v6025, %v6025
  %v6090 = vpack.c.bf16 %v6026, %v6026
  %v6091 = vpack.c.bf16 %v6027, %v6027
  %v6092 = vpack.c.bf16 %v6028, %v6028
  %v6093 = vpack.c.bf16 %v6029, %v6029
  %v6094 = vpack.c.bf16 %v6030, %v6030
  %v6095 = vpack.c.bf16 %v6031, %v6031
  %v6096 = vpack.c.bf16 %v6032, %v6032
  %v6097 = vpack.c.bf16 %v6033, %v6033
  %v6098 = vpack.c.bf16 %v6034, %v6034
  %v6099 = vpack.c.bf16 %v6035, %v6035
  %v6100 = vpack.c.bf16 %v6036, %v6036
  %v6101 = vpack.c.bf16 %v6037, %v6037
  %v6102 = vpack.c.bf16 %v6038, %v6038
  %v6103 = vpack.c.bf16 %v6039, %v6039
  %v6104 = vpack.c.bf16 %v6040, %v6040
  %v6105 = vpack.c.bf16 %v6041, %v6041
  %v6106 = vpack.c.bf16 %v6042, %v6042
  %v6107 = vpack.c.bf16 %v6043, %v6043
  %v6108 = vpack.c.bf16 %v6044, %v6044
  %v6109 = vpack.c.bf16 %v6045, %v6045
  %v6110 = vpack.c.bf16 %v6046, %v6046
  %v6111 = vpack.c.bf16 %v6047, %v6047
  %v6112 = vpack.c.bf16 %v6048, %v6048
  %v6113 = vpack.c.bf16 %v6049, %v6049
  %v6114 = vpack.c.bf16 %v6050, %v6050
  %v6115 = vpack.c.bf16 %v6051, %v6051
  %v6116 = vpack.c.bf16 %v6052, %v6052
  %v6117 = vpack.c.bf16 %v6053, %v6053
  %v6118 = vpack.c.bf16 %v6054, %v6054
  %v6119 = vpack.c.bf16 %v6055, %v6055
  %v6120 = vpack.c.bf16 %v6056, %v6056
  %v6121 = vpack.c.bf16 %v6057, %v6057
  %v6122 = vpack.c.bf16 %v6058, %v6058
  %v6123 = vpack.c.bf16 %v6059, %v6059
  %v6124 = vpack.c.bf16 %v6060, %v6060
  %v6125 = vpack.c.bf16 %v6061, %v6061
  %v6126 = vpack.c.bf16 %v6062, %v6062
  %v6127 = vpack.c.bf16 %v6063, %v6063
  %6192 = vrot.lane.b32.xlu0 %v6064, 16
  %v6193 = vpop.permute.xlu0 %6192
  %6194 = vrot.lane.b32.xlu0 %v6065, 16
  %v6195 = vpop.permute.xlu0 %6194
  %6196 = vrot.lane.b32.xlu0 %v6066, 16
  %v6197 = vpop.permute.xlu0 %6196
  %6198 = vrot.lane.b32.xlu0 %v6067, 16
  %v6199 = vpop.permute.xlu0 %6198
  %6200 = vrot.lane.b32.xlu0 %v6068, 16
  %v6201 = vpop.permute.xlu0 %6200
  %6202 = vrot.lane.b32.xlu0 %v6069, 16
  %v6203 = vpop.permute.xlu0 %6202
  %6204 = vrot.lane.b32.xlu0 %v6070, 16
  %v6205 = vpop.permute.xlu0 %6204
  %6206 = vrot.lane.b32.xlu0 %v6071, 16
  %v6207 = vpop.permute.xlu0 %6206
  %6208 = vrot.lane.b32.xlu0 %v6072, 16
  %v6209 = vpop.permute.xlu0 %6208
  %6210 = vrot.lane.b32.xlu0 %v6073, 16
  %v6211 = vpop.permute.xlu0 %6210
  %6212 = vrot.lane.b32.xlu0 %v6074, 16
  %v6213 = vpop.permute.xlu0 %6212
  %6214 = vrot.lane.b32.xlu0 %v6075, 16
  %v6215 = vpop.permute.xlu0 %6214
  %6216 = vrot.lane.b32.xlu0 %v6076, 16
  %v6217 = vpop.permute.xlu0 %6216
  %6218 = vrot.lane.b32.xlu0 %v6077, 16
  %v6219 = vpop.permute.xlu0 %6218
  %6220 = vrot.lane.b32.xlu0 %v6078, 16
  %v6221 = vpop.permute.xlu0 %6220
  %6222 = vrot.lane.b32.xlu0 %v6079, 16
  %v6223 = vpop.permute.xlu0 %6222
  %6224 = vrot.lane.b32.xlu0 %v6080, 16
  %v6225 = vpop.permute.xlu0 %6224
  %6226 = vrot.lane.b32.xlu0 %v6081, 16
  %v6227 = vpop.permute.xlu0 %6226
  %6228 = vrot.lane.b32.xlu0 %v6082, 16
  %v6229 = vpop.permute.xlu0 %6228
  %6230 = vrot.lane.b32.xlu0 %v6083, 16
  %v6231 = vpop.permute.xlu0 %6230
  %6232 = vrot.lane.b32.xlu0 %v6084, 16
  %v6233 = vpop.permute.xlu0 %6232
  %6234 = vrot.lane.b32.xlu0 %v6085, 16
  %v6235 = vpop.permute.xlu0 %6234
  %6236 = vrot.lane.b32.xlu0 %v6086, 16
  %v6237 = vpop.permute.xlu0 %6236
  %6238 = vrot.lane.b32.xlu0 %v6087, 16
  %v6239 = vpop.permute.xlu0 %6238
  %6240 = vrot.lane.b32.xlu0 %v6088, 16
  %v6241 = vpop.permute.xlu0 %6240
  %6242 = vrot.lane.b32.xlu0 %v6089, 16
  %v6243 = vpop.permute.xlu0 %6242
  %6244 = vrot.lane.b32.xlu0 %v6090, 16
  %v6245 = vpop.permute.xlu0 %6244
  %6246 = vrot.lane.b32.xlu0 %v6091, 16
  %v6247 = vpop.permute.xlu0 %6246
  %6248 = vrot.lane.b32.xlu0 %v6092, 16
  %v6249 = vpop.permute.xlu0 %6248
  %6250 = vrot.lane.b32.xlu0 %v6093, 16
  %v6251 = vpop.permute.xlu0 %6250
  %6252 = vrot.lane.b32.xlu0 %v6094, 16
  %v6253 = vpop.permute.xlu0 %6252
  %6254 = vrot.lane.b32.xlu0 %v6095, 16
  %v6255 = vpop.permute.xlu0 %6254
  %6256 = vrot.lane.b32.xlu0 %v6096, 16
  %v6257 = vpop.permute.xlu0 %6256
  %6258 = vrot.lane.b32.xlu0 %v6097, 16
  %v6259 = vpop.permute.xlu0 %6258
  %6260 = vrot.lane.b32.xlu0 %v6098, 16
  %v6261 = vpop.permute.xlu0 %6260
  %6262 = vrot.lane.b32.xlu0 %v6099, 16
  %v6263 = vpop.permute.xlu0 %6262
  %6264 = vrot.lane.b32.xlu0 %v6100, 16
  %v6265 = vpop.permute.xlu0 %6264
  %6266 = vrot.lane.b32.xlu0 %v6101, 16
  %v6267 = vpop.permute.xlu0 %6266
  %6268 = vrot.lane.b32.xlu0 %v6102, 16
  %v6269 = vpop.permute.xlu0 %6268
  %6270 = vrot.lane.b32.xlu0 %v6103, 16
  %v6271 = vpop.permute.xlu0 %6270
  %6272 = vrot.lane.b32.xlu0 %v6104, 16
  %v6273 = vpop.permute.xlu0 %6272
  %6274 = vrot.lane.b32.xlu0 %v6105, 16
  %v6275 = vpop.permute.xlu0 %6274
  %6276 = vrot.lane.b32.xlu0 %v6106, 16
  %v6277 = vpop.permute.xlu0 %6276
  %6278 = vrot.lane.b32.xlu0 %v6107, 16
  %v6279 = vpop.permute.xlu0 %6278
  %6280 = vrot.lane.b32.xlu0 %v6108, 16
  %v6281 = vpop.permute.xlu0 %6280
  %6282 = vrot.lane.b32.xlu0 %v6109, 16
  %v6283 = vpop.permute.xlu0 %6282
  %6284 = vrot.lane.b32.xlu0 %v6110, 16
  %v6285 = vpop.permute.xlu0 %6284
  %6286 = vrot.lane.b32.xlu0 %v6111, 16
  %v6287 = vpop.permute.xlu0 %6286
  %6288 = vrot.lane.b32.xlu0 %v6112, 16
  %v6289 = vpop.permute.xlu0 %6288
  %6290 = vrot.lane.b32.xlu0 %v6113, 16
  %v6291 = vpop.permute.xlu0 %6290
  %6292 = vrot.lane.b32.xlu0 %v6114, 16
  %v6293 = vpop.permute.xlu0 %6292
  %6294 = vrot.lane.b32.xlu0 %v6115, 16
  %v6295 = vpop.permute.xlu0 %6294
  %6296 = vrot.lane.b32.xlu0 %v6116, 16
  %v6297 = vpop.permute.xlu0 %6296
  %6298 = vrot.lane.b32.xlu0 %v6117, 16
  %v6299 = vpop.permute.xlu0 %6298
  %6300 = vrot.lane.b32.xlu0 %v6118, 16
  %v6301 = vpop.permute.xlu0 %6300
  %6302 = vrot.lane.b32.xlu0 %v6119, 16
  %v6303 = vpop.permute.xlu0 %6302
  %6304 = vrot.lane.b32.xlu0 %v6120, 16
  %v6305 = vpop.permute.xlu0 %6304
  %6306 = vrot.lane.b32.xlu0 %v6121, 16
  %v6307 = vpop.permute.xlu0 %6306
  %6308 = vrot.lane.b32.xlu0 %v6122, 16
  %v6309 = vpop.permute.xlu0 %6308
  %6310 = vrot.lane.b32.xlu0 %v6123, 16
  %v6311 = vpop.permute.xlu0 %6310
  %6312 = vrot.lane.b32.xlu0 %v6124, 16
  %v6313 = vpop.permute.xlu0 %6312
  %6314 = vrot.lane.b32.xlu0 %v6125, 16
  %v6315 = vpop.permute.xlu0 %6314
  %6316 = vrot.lane.b32.xlu0 %v6126, 16
  %v6317 = vpop.permute.xlu0 %6316
  %6318 = vrot.lane.b32.xlu0 %v6127, 16
  %v6319 = vpop.permute.xlu0 %6318
  %vm6384 = vcmask 191616
  %6385 = vst.msk [vmem:[#allocation5] sm:$0xf] %vm6384, %v6193
  %6386 = vst.msk [vmem:[#allocation5 + $0x4] sm:$0xf] %vm6384, %v6195
  %6387 = vst.msk [vmem:[#allocation5 + $0x8] sm:$0xf] %vm6384, %v6197
  %6388 = vst.msk [vmem:[#allocation5 + $0xc] sm:$0xf] %vm6384, %v6199
  %6389 = vst.msk [vmem:[#allocation5 + $0x10] sm:$0xf] %vm6384, %v6201
  %6390 = vst.msk [vmem:[#allocation5 + $0x14] sm:$0xf] %vm6384, %v6203
  %6391 = vst.msk [vmem:[#allocation5 + $0x18] sm:$0xf] %vm6384, %v6205
  %6392 = vst.msk [vmem:[#allocation5 + $0x1c] sm:$0xf] %vm6384, %v6207
  %6393 = vst.msk [vmem:[#allocation5 + $0x20] sm:$0xf] %vm6384, %v6209
  %6394 = vst.msk [vmem:[#allocation5 + $0x24] sm:$0xf] %vm6384, %v6211
  %6395 = vst.msk [vmem:[#allocation5 + $0x28] sm:$0xf] %vm6384, %v6213
  %6396 = vst.msk [vmem:[#allocation5 + $0x2c] sm:$0xf] %vm6384, %v6215
  %6397 = vst.msk [vmem:[#allocation5 + $0x30] sm:$0xf] %vm6384, %v6217
  %6398 = vst.msk [vmem:[#allocation5 + $0x34] sm:$0xf] %vm6384, %v6219
  %6399 = vst.msk [vmem:[#allocation5 + $0x38] sm:$0xf] %vm6384, %v6221
  %6400 = vst.msk [vmem:[#allocation5 + $0x3c] sm:$0xf] %vm6384, %v6223
  %6401 = vst.msk [vmem:[#allocation5 + $0x40] sm:$0xf] %vm6384, %v6225
  %6402 = vst.msk [vmem:[#allocation5 + $0x44] sm:$0xf] %vm6384, %v6227
  %6403 = vst.msk [vmem:[#allocation5 + $0x48] sm:$0xf] %vm6384, %v6229
  %6404 = vst.msk [vmem:[#allocation5 + $0x4c] sm:$0xf] %vm6384, %v6231
  %6405 = vst.msk [vmem:[#allocation5 + $0x50] sm:$0xf] %vm6384, %v6233
  %6406 = vst.msk [vmem:[#allocation5 + $0x54] sm:$0xf] %vm6384, %v6235
  %6407 = vst.msk [vmem:[#allocation5 + $0x58] sm:$0xf] %vm6384, %v6237
  %6408 = vst.msk [vmem:[#allocation5 + $0x5c] sm:$0xf] %vm6384, %v6239
  %6409 = vst.msk [vmem:[#allocation5 + $0x60] sm:$0xf] %vm6384, %v6241
  %6410 = vst.msk [vmem:[#allocation5 + $0x64] sm:$0xf] %vm6384, %v6243
  %6411 = vst.msk [vmem:[#allocation5 + $0x68] sm:$0xf] %vm6384, %v6245
  %6412 = vst.msk [vmem:[#allocation5 + $0x6c] sm:$0xf] %vm6384, %v6247
  %6413 = vst.msk [vmem:[#allocation5 + $0x70] sm:$0xf] %vm6384, %v6249
  %6414 = vst.msk [vmem:[#allocation5 + $0x74] sm:$0xf] %vm6384, %v6251
  %6415 = vst.msk [vmem:[#allocation5 + $0x78] sm:$0xf] %vm6384, %v6253
  %6416 = vst.msk [vmem:[#allocation5 + $0x7c] sm:$0xf] %vm6384, %v6255
  %6417 = vst.msk [vmem:[#allocation5 + $0x80] sm:$0xf] %vm6384, %v6257
  %6418 = vst.msk [vmem:[#allocation5 + $0x84] sm:$0xf] %vm6384, %v6259
  %6419 = vst.msk [vmem:[#allocation5 + $0x88] sm:$0xf] %vm6384, %v6261
  %6420 = vst.msk [vmem:[#allocation5 + $0x8c] sm:$0xf] %vm6384, %v6263
  %6421 = vst.msk [vmem:[#allocation5 + $0x90] sm:$0xf] %vm6384, %v6265
  %6422 = vst.msk [vmem:[#allocation5 + $0x94] sm:$0xf] %vm6384, %v6267
  %6423 = vst.msk [vmem:[#allocation5 + $0x98] sm:$0xf] %vm6384, %v6269
  %6424 = vst.msk [vmem:[#allocation5 + $0x9c] sm:$0xf] %vm6384, %v6271
  %6425 = vst.msk [vmem:[#allocation5 + $0xa0] sm:$0xf] %vm6384, %v6273
  %6426 = vst.msk [vmem:[#allocation5 + $0xa4] sm:$0xf] %vm6384, %v6275
  %6427 = vst.msk [vmem:[#allocation5 + $0xa8] sm:$0xf] %vm6384, %v6277
  %6428 = vst.msk [vmem:[#allocation5 + $0xac] sm:$0xf] %vm6384, %v6279
  %6429 = vst.msk [vmem:[#allocation5 + $0xb0] sm:$0xf] %vm6384, %v6281
  %6430 = vst.msk [vmem:[#allocation5 + $0xb4] sm:$0xf] %vm6384, %v6283
  %6431 = vst.msk [vmem:[#allocation5 + $0xb8] sm:$0xf] %vm6384, %v6285
  %6432 = vst.msk [vmem:[#allocation5 + $0xbc] sm:$0xf] %vm6384, %v6287
  %6433 = vst.msk [vmem:[#allocation5 + $0xc0] sm:$0xf] %vm6384, %v6289
  %6434 = vst.msk [vmem:[#allocation5 + $0xc4] sm:$0xf] %vm6384, %v6291
  %6435 = vst.msk [vmem:[#allocation5 + $0xc8] sm:$0xf] %vm6384, %v6293
  %6436 = vst.msk [vmem:[#allocation5 + $0xcc] sm:$0xf] %vm6384, %v6295
  %6437 = vst.msk [vmem:[#allocation5 + $0xd0] sm:$0xf] %vm6384, %v6297
  %6438 = vst.msk [vmem:[#allocation5 + $0xd4] sm:$0xf] %vm6384, %v6299
  %6439 = vst.msk [vmem:[#allocation5 + $0xd8] sm:$0xf] %vm6384, %v6301
  %6440 = vst.msk [vmem:[#allocation5 + $0xdc] sm:$0xf] %vm6384, %v6303
  %6441 = vst.msk [vmem:[#allocation5 + $0xe0] sm:$0xf] %vm6384, %v6305
  %6442 = vst.msk [vmem:[#allocation5 + $0xe4] sm:$0xf] %vm6384, %v6307
  %6443 = vst.msk [vmem:[#allocation5 + $0xe8] sm:$0xf] %vm6384, %v6309
  %6444 = vst.msk [vmem:[#allocation5 + $0xec] sm:$0xf] %vm6384, %v6311
  %6445 = vst.msk [vmem:[#allocation5 + $0xf0] sm:$0xf] %vm6384, %v6313
  %6446 = vst.msk [vmem:[#allocation5 + $0xf4] sm:$0xf] %vm6384, %v6315
  %6447 = vst.msk [vmem:[#allocation5 + $0xf8] sm:$0xf] %vm6384, %v6317
  %6448 = vst.msk [vmem:[#allocation5 + $0xfc] sm:$0xf] %vm6384, %v6319
  %v6449 = vld [vmem:[%s5293] sm:$0xff]
  %v6450 = vld [vmem:[%s5293 + $0x8] sm:$0xff]
  %v6451 = vld [vmem:[%s5293 + $0x18] sm:$0xff]
  %v6452 = vld [vmem:[%s5293 + $0x20] sm:$0xff]
  %v6453 = vld [vmem:[%s5293 + $0x30] sm:$0xff]
  %v6454 = vld [vmem:[%s5293 + $0x38] sm:$0xff]
  %v6455 = vld [vmem:[%s5293 + $0x48] sm:$0xff]
  %v6456 = vld [vmem:[%s5293 + $0x50] sm:$0xff]
  %v6457 = vld [vmem:[%s5293 + $0x60] sm:$0xff]
  %v6458 = vld [vmem:[%s5293 + $0x68] sm:$0xff]
  %v6459 = vld [vmem:[%s5293 + $0x78] sm:$0xff]
  %v6460 = vld [vmem:[%s5293 + $0x80] sm:$0xff]
  %v6461 = vld [vmem:[%s5293 + $0x90] sm:$0xff]
  %v6462 = vld [vmem:[%s5293 + $0x98] sm:$0xff]
  %v6463 = vld [vmem:[%s5293 + $0xa8] sm:$0xff]
  %v6464 = vld [vmem:[%s5293 + $0xb0] sm:$0xff]
  %v6465 = vld [vmem:[%s5293 + $0xc0] sm:$0xff]
  %v6466 = vld [vmem:[%s5293 + $0xc8] sm:$0xff]
  %v6467 = vld [vmem:[%s5293 + $0xd8] sm:$0xff]
  %v6468 = vld [vmem:[%s5293 + $0xe0] sm:$0xff]
  %v6469 = vld [vmem:[%s5293 + $0xf0] sm:$0xff]
  %v6470 = vld [vmem:[%s5293 + $0xf8] sm:$0xff]
  %v6471 = vld [vmem:[%s5293 + $0x108] sm:$0xff]
  %v6472 = vld [vmem:[%s5293 + $0x110] sm:$0xff]
  %v6473 = vld [vmem:[%s5293 + $0x120] sm:$0xff]
  %v6474 = vld [vmem:[%s5293 + $0x128] sm:$0xff]
  %v6475 = vld [vmem:[%s5293 + $0x138] sm:$0xff]
  %v6476 = vld [vmem:[%s5293 + $0x140] sm:$0xff]
  %v6477 = vld [vmem:[%s5293 + $0x150] sm:$0xff]
  %v6478 = vld [vmem:[%s5293 + $0x158] sm:$0xff]
  %v6479 = vld [vmem:[%s5293 + $0x168] sm:$0xff]
  %v6480 = vld [vmem:[%s5293 + $0x170] sm:$0xff]
  %v6481 = vld [vmem:[%s5293 + $0x1b0] sm:$0xff]
  %v6482 = vld [vmem:[%s5293 + $0x1b8] sm:$0xff]
  %v6483 = vld [vmem:[%s5293 + $0x1c8] sm:$0xff]
  %v6484 = vld [vmem:[%s5293 + $0x1d0] sm:$0xff]
  %v6485 = vld [vmem:[%s5293 + $0x1e0] sm:$0xff]
  %v6486 = vld [vmem:[%s5293 + $0x1e8] sm:$0xff]
  %v6487 = vld [vmem:[%s5293 + $0x1f8] sm:$0xff]
  %v6488 = vld [vmem:[%s5293 + $0x200] sm:$0xff]
  %v6489 = vld [vmem:[%s5293 + $0x210] sm:$0xff]
  %v6490 = vld [vmem:[%s5293 + $0x218] sm:$0xff]
  %v6491 = vld [vmem:[%s5293 + $0x228] sm:$0xff]
  %v6492 = vld [vmem:[%s5293 + $0x230] sm:$0xff]
  %v6493 = vld [vmem:[%s5293 + $0x240] sm:$0xff]
  %v6494 = vld [vmem:[%s5293 + $0x248] sm:$0xff]
  %v6495 = vld [vmem:[%s5293 + $0x258] sm:$0xff]
  %v6496 = vld [vmem:[%s5293 + $0x260] sm:$0xff]
  %v6497 = vld [vmem:[%s5293 + $0x270] sm:$0xff]
  %v6498 = vld [vmem:[%s5293 + $0x278] sm:$0xff]
  %v6499 = vld [vmem:[%s5293 + $0x288] sm:$0xff]
  %v6500 = vld [vmem:[%s5293 + $0x290] sm:$0xff]
  %v6501 = vld [vmem:[%s5293 + $0x2a0] sm:$0xff]
  %v6502 = vld [vmem:[%s5293 + $0x2a8] sm:$0xff]
  %v6503 = vld [vmem:[%s5293 + $0x2b8] sm:$0xff]
  %v6504 = vld [vmem:[%s5293 + $0x2c0] sm:$0xff]
  %v6505 = vld [vmem:[%s5293 + $0x2d0] sm:$0xff]
  %v6506 = vld [vmem:[%s5293 + $0x2d8] sm:$0xff]
  %v6507 = vld [vmem:[%s5293 + $0x2e8] sm:$0xff]
  %v6508 = vld [vmem:[%s5293 + $0x2f0] sm:$0xff]
  %v6509 = vld [vmem:[%s5293 + $0x300] sm:$0xff]
  %v6510 = vld [vmem:[%s5293 + $0x308] sm:$0xff]
  %v6511 = vld [vmem:[%s5293 + $0x318] sm:$0xff]
  %v6512 = vld [vmem:[%s5293 + $0x320] sm:$0xff]
  %v6513 = vpack.c.bf16 %v6449, %v6449
  %v6514 = vpack.c.bf16 %v6450, %v6450
  %v6515 = vpack.c.bf16 %v6451, %v6451
  %v6516 = vpack.c.bf16 %v6452, %v6452
  %v6517 = vpack.c.bf16 %v6453, %v6453
  %v6518 = vpack.c.bf16 %v6454, %v6454
  %v6519 = vpack.c.bf16 %v6455, %v6455
  %v6520 = vpack.c.bf16 %v6456, %v6456
  %v6521 = vpack.c.bf16 %v6457, %v6457
  %v6522 = vpack.c.bf16 %v6458, %v6458
  %v6523 = vpack.c.bf16 %v6459, %v6459
  %v6524 = vpack.c.bf16 %v6460, %v6460
  %v6525 = vpack.c.bf16 %v6461, %v6461
  %v6526 = vpack.c.bf16 %v6462, %v6462
  %v6527 = vpack.c.bf16 %v6463, %v6463
  %v6528 = vpack.c.bf16 %v6464, %v6464
  %v6529 = vpack.c.bf16 %v6465, %v6465
  %v6530 = vpack.c.bf16 %v6466, %v6466
  %v6531 = vpack.c.bf16 %v6467, %v6467
  %v6532 = vpack.c.bf16 %v6468, %v6468
  %v6533 = vpack.c.bf16 %v6469, %v6469
  %v6534 = vpack.c.bf16 %v6470, %v6470
  %v6535 = vpack.c.bf16 %v6471, %v6471
  %v6536 = vpack.c.bf16 %v6472, %v6472
  %v6537 = vpack.c.bf16 %v6473, %v6473
  %v6538 = vpack.c.bf16 %v6474, %v6474
  %v6539 = vpack.c.bf16 %v6475, %v6475
  %v6540 = vpack.c.bf16 %v6476, %v6476
  %v6541 = vpack.c.bf16 %v6477, %v6477
  %v6542 = vpack.c.bf16 %v6478, %v6478
  %v6543 = vpack.c.bf16 %v6479, %v6479
  %v6544 = vpack.c.bf16 %v6480, %v6480
  %v6545 = vpack.c.bf16 %v6481, %v6481
  %v6546 = vpack.c.bf16 %v6482, %v6482
  %v6547 = vpack.c.bf16 %v6483, %v6483
  %v6548 = vpack.c.bf16 %v6484, %v6484
  %v6549 = vpack.c.bf16 %v6485, %v6485
  %v6550 = vpack.c.bf16 %v6486, %v6486
  %v6551 = vpack.c.bf16 %v6487, %v6487
  %v6552 = vpack.c.bf16 %v6488, %v6488
  %v6553 = vpack.c.bf16 %v6489, %v6489
  %v6554 = vpack.c.bf16 %v6490, %v6490
  %v6555 = vpack.c.bf16 %v6491, %v6491
  %v6556 = vpack.c.bf16 %v6492, %v6492
  %v6557 = vpack.c.bf16 %v6493, %v6493
  %v6558 = vpack.c.bf16 %v6494, %v6494
  %v6559 = vpack.c.bf16 %v6495, %v6495
  %v6560 = vpack.c.bf16 %v6496, %v6496
  %v6561 = vpack.c.bf16 %v6497, %v6497
  %v6562 = vpack.c.bf16 %v6498, %v6498
  %v6563 = vpack.c.bf16 %v6499, %v6499
  %v6564 = vpack.c.bf16 %v6500, %v6500
  %v6565 = vpack.c.bf16 %v6501, %v6501
  %v6566 = vpack.c.bf16 %v6502, %v6502
  %v6567 = vpack.c.bf16 %v6503, %v6503
  %v6568 = vpack.c.bf16 %v6504, %v6504
  %v6569 = vpack.c.bf16 %v6505, %v6505
  %v6570 = vpack.c.bf16 %v6506, %v6506
  %v6571 = vpack.c.bf16 %v6507, %v6507
  %v6572 = vpack.c.bf16 %v6508, %v6508
  %v6573 = vpack.c.bf16 %v6509, %v6509
  %v6574 = vpack.c.bf16 %v6510, %v6510
  %v6575 = vpack.c.bf16 %v6511, %v6511
  %v6576 = vpack.c.bf16 %v6512, %v6512
  %6641 = vrot.lane.b32.xlu0 %v6513, 24
  %v6642 = vpop.permute.xlu0 %6641
  %6643 = vrot.lane.b32.xlu0 %v6514, 24
  %v6644 = vpop.permute.xlu0 %6643
  %6645 = vrot.lane.b32.xlu0 %v6515, 24
  %v6646 = vpop.permute.xlu0 %6645
  %6647 = vrot.lane.b32.xlu0 %v6516, 24
  %v6648 = vpop.permute.xlu0 %6647
  %6649 = vrot.lane.b32.xlu0 %v6517, 24
  %v6650 = vpop.permute.xlu0 %6649
  %6651 = vrot.lane.b32.xlu0 %v6518, 24
  %v6652 = vpop.permute.xlu0 %6651
  %6653 = vrot.lane.b32.xlu0 %v6519, 24
  %v6654 = vpop.permute.xlu0 %6653
  %6655 = vrot.lane.b32.xlu0 %v6520, 24
  %v6656 = vpop.permute.xlu0 %6655
  %6657 = vrot.lane.b32.xlu0 %v6521, 24
  %v6658 = vpop.permute.xlu0 %6657
  %6659 = vrot.lane.b32.xlu0 %v6522, 24
  %v6660 = vpop.permute.xlu0 %6659
  %6661 = vrot.lane.b32.xlu0 %v6523, 24
  %v6662 = vpop.permute.xlu0 %6661
  %6663 = vrot.lane.b32.xlu0 %v6524, 24
  %v6664 = vpop.permute.xlu0 %6663
  %6665 = vrot.lane.b32.xlu0 %v6525, 24
  %v6666 = vpop.permute.xlu0 %6665
  %6667 = vrot.lane.b32.xlu0 %v6526, 24
  %v6668 = vpop.permute.xlu0 %6667
  %6669 = vrot.lane.b32.xlu0 %v6527, 24
  %v6670 = vpop.permute.xlu0 %6669
  %6671 = vrot.lane.b32.xlu0 %v6528, 24
  %v6672 = vpop.permute.xlu0 %6671
  %6673 = vrot.lane.b32.xlu0 %v6529, 24
  %v6674 = vpop.permute.xlu0 %6673
  %6675 = vrot.lane.b32.xlu0 %v6530, 24
  %v6676 = vpop.permute.xlu0 %6675
  %6677 = vrot.lane.b32.xlu0 %v6531, 24
  %v6678 = vpop.permute.xlu0 %6677
  %6679 = vrot.lane.b32.xlu0 %v6532, 24
  %v6680 = vpop.permute.xlu0 %6679
  %6681 = vrot.lane.b32.xlu0 %v6533, 24
  %v6682 = vpop.permute.xlu0 %6681
  %6683 = vrot.lane.b32.xlu0 %v6534, 24
  %v6684 = vpop.permute.xlu0 %6683
  %6685 = vrot.lane.b32.xlu0 %v6535, 24
  %v6686 = vpop.permute.xlu0 %6685
  %6687 = vrot.lane.b32.xlu0 %v6536, 24
  %v6688 = vpop.permute.xlu0 %6687
  %6689 = vrot.lane.b32.xlu0 %v6537, 24
  %v6690 = vpop.permute.xlu0 %6689
  %6691 = vrot.lane.b32.xlu0 %v6538, 24
  %v6692 = vpop.permute.xlu0 %6691
  %6693 = vrot.lane.b32.xlu0 %v6539, 24
  %v6694 = vpop.permute.xlu0 %6693
  %6695 = vrot.lane.b32.xlu0 %v6540, 24
  %v6696 = vpop.permute.xlu0 %6695
  %6697 = vrot.lane.b32.xlu0 %v6541, 24
  %v6698 = vpop.permute.xlu0 %6697
  %6699 = vrot.lane.b32.xlu0 %v6542, 24
  %v6700 = vpop.permute.xlu0 %6699
  %6701 = vrot.lane.b32.xlu0 %v6543, 24
  %v6702 = vpop.permute.xlu0 %6701
  %6703 = vrot.lane.b32.xlu0 %v6544, 24
  %v6704 = vpop.permute.xlu0 %6703
  %6705 = vrot.lane.b32.xlu0 %v6545, 24
  %v6706 = vpop.permute.xlu0 %6705
  %6707 = vrot.lane.b32.xlu0 %v6546, 24
  %v6708 = vpop.permute.xlu0 %6707
  %6709 = vrot.lane.b32.xlu0 %v6547, 24
  %v6710 = vpop.permute.xlu0 %6709
  %6711 = vrot.lane.b32.xlu0 %v6548, 24
  %v6712 = vpop.permute.xlu0 %6711
  %6713 = vrot.lane.b32.xlu0 %v6549, 24
  %v6714 = vpop.permute.xlu0 %6713
  %6715 = vrot.lane.b32.xlu0 %v6550, 24
  %v6716 = vpop.permute.xlu0 %6715
  %6717 = vrot.lane.b32.xlu0 %v6551, 24
  %v6718 = vpop.permute.xlu0 %6717
  %6719 = vrot.lane.b32.xlu0 %v6552, 24
  %v6720 = vpop.permute.xlu0 %6719
  %6721 = vrot.lane.b32.xlu0 %v6553, 24
  %v6722 = vpop.permute.xlu0 %6721
  %6723 = vrot.lane.b32.xlu0 %v6554, 24
  %v6724 = vpop.permute.xlu0 %6723
  %6725 = vrot.lane.b32.xlu0 %v6555, 24
  %v6726 = vpop.permute.xlu0 %6725
  %6727 = vrot.lane.b32.xlu0 %v6556, 24
  %v6728 = vpop.permute.xlu0 %6727
  %6729 = vrot.lane.b32.xlu0 %v6557, 24
  %v6730 = vpop.permute.xlu0 %6729
  %6731 = vrot.lane.b32.xlu0 %v6558, 24
  %v6732 = vpop.permute.xlu0 %6731
  %6733 = vrot.lane.b32.xlu0 %v6559, 24
  %v6734 = vpop.permute.xlu0 %6733
  %6735 = vrot.lane.b32.xlu0 %v6560, 24
  %v6736 = vpop.permute.xlu0 %6735
  %6737 = vrot.lane.b32.xlu0 %v6561, 24
  %v6738 = vpop.permute.xlu0 %6737
  %6739 = vrot.lane.b32.xlu0 %v6562, 24
  %v6740 = vpop.permute.xlu0 %6739
  %6741 = vrot.lane.b32.xlu0 %v6563, 24
  %v6742 = vpop.permute.xlu0 %6741
  %6743 = vrot.lane.b32.xlu0 %v6564, 24
  %v6744 = vpop.permute.xlu0 %6743
  %6745 = vrot.lane.b32.xlu0 %v6565, 24
  %v6746 = vpop.permute.xlu0 %6745
  %6747 = vrot.lane.b32.xlu0 %v6566, 24
  %v6748 = vpop.permute.xlu0 %6747
  %6749 = vrot.lane.b32.xlu0 %v6567, 24
  %v6750 = vpop.permute.xlu0 %6749
  %6751 = vrot.lane.b32.xlu0 %v6568, 24
  %v6752 = vpop.permute.xlu0 %6751
  %6753 = vrot.lane.b32.xlu0 %v6569, 24
  %v6754 = vpop.permute.xlu0 %6753
  %6755 = vrot.lane.b32.xlu0 %v6570, 24
  %v6756 = vpop.permute.xlu0 %6755
  %6757 = vrot.lane.b32.xlu0 %v6571, 24
  %v6758 = vpop.permute.xlu0 %6757
  %6759 = vrot.lane.b32.xlu0 %v6572, 24
  %v6760 = vpop.permute.xlu0 %6759
  %6761 = vrot.lane.b32.xlu0 %v6573, 24
  %v6762 = vpop.permute.xlu0 %6761
  %6763 = vrot.lane.b32.xlu0 %v6574, 24
  %v6764 = vpop.permute.xlu0 %6763
  %6765 = vrot.lane.b32.xlu0 %v6575, 24
  %v6766 = vpop.permute.xlu0 %6765
  %6767 = vrot.lane.b32.xlu0 %v6576, 24
  %v6768 = vpop.permute.xlu0 %6767
  %vm6833 = vcmask 257216
  %6834 = vst.msk [vmem:[#allocation5] sm:$0xf] %vm6833, %v6642
  %6835 = vst.msk [vmem:[#allocation5 + $0x4] sm:$0xf] %vm6833, %v6644
  %6836 = vst.msk [vmem:[#allocation5 + $0x8] sm:$0xf] %vm6833, %v6646
  %6837 = vst.msk [vmem:[#allocation5 + $0xc] sm:$0xf] %vm6833, %v6648
  %6838 = vst.msk [vmem:[#allocation5 + $0x10] sm:$0xf] %vm6833, %v6650
  %6839 = vst.msk [vmem:[#allocation5 + $0x14] sm:$0xf] %vm6833, %v6652
  %6840 = vst.msk [vmem:[#allocation5 + $0x18] sm:$0xf] %vm6833, %v6654
  %6841 = vst.msk [vmem:[#allocation5 + $0x1c] sm:$0xf] %vm6833, %v6656
  %6842 = vst.msk [vmem:[#allocation5 + $0x20] sm:$0xf] %vm6833, %v6658
  %6843 = vst.msk [vmem:[#allocation5 + $0x24] sm:$0xf] %vm6833, %v6660
  %6844 = vst.msk [vmem:[#allocation5 + $0x28] sm:$0xf] %vm6833, %v6662
  %6845 = vst.msk [vmem:[#allocation5 + $0x2c] sm:$0xf] %vm6833, %v6664
  %6846 = vst.msk [vmem:[#allocation5 + $0x30] sm:$0xf] %vm6833, %v6666
  %6847 = vst.msk [vmem:[#allocation5 + $0x34] sm:$0xf] %vm6833, %v6668
  %6848 = vst.msk [vmem:[#allocation5 + $0x38] sm:$0xf] %vm6833, %v6670
  %6849 = vst.msk [vmem:[#allocation5 + $0x3c] sm:$0xf] %vm6833, %v6672
  %6850 = vst.msk [vmem:[#allocation5 + $0x40] sm:$0xf] %vm6833, %v6674
  %6851 = vst.msk [vmem:[#allocation5 + $0x44] sm:$0xf] %vm6833, %v6676
  %6852 = vst.msk [vmem:[#allocation5 + $0x48] sm:$0xf] %vm6833, %v6678
  %6853 = vst.msk [vmem:[#allocation5 + $0x4c] sm:$0xf] %vm6833, %v6680
  %6854 = vst.msk [vmem:[#allocation5 + $0x50] sm:$0xf] %vm6833, %v6682
  %6855 = vst.msk [vmem:[#allocation5 + $0x54] sm:$0xf] %vm6833, %v6684
  %6856 = vst.msk [vmem:[#allocation5 + $0x58] sm:$0xf] %vm6833, %v6686
  %6857 = vst.msk [vmem:[#allocation5 + $0x5c] sm:$0xf] %vm6833, %v6688
  %6858 = vst.msk [vmem:[#allocation5 + $0x60] sm:$0xf] %vm6833, %v6690
  %6859 = vst.msk [vmem:[#allocation5 + $0x64] sm:$0xf] %vm6833, %v6692
  %6860 = vst.msk [vmem:[#allocation5 + $0x68] sm:$0xf] %vm6833, %v6694
  %6861 = vst.msk [vmem:[#allocation5 + $0x6c] sm:$0xf] %vm6833, %v6696
  %6862 = vst.msk [vmem:[#allocation5 + $0x70] sm:$0xf] %vm6833, %v6698
  %6863 = vst.msk [vmem:[#allocation5 + $0x74] sm:$0xf] %vm6833, %v6700
  %6864 = vst.msk [vmem:[#allocation5 + $0x78] sm:$0xf] %vm6833, %v6702
  %6865 = vst.msk [vmem:[#allocation5 + $0x7c] sm:$0xf] %vm6833, %v6704
  %6866 = vst.msk [vmem:[#allocation5 + $0x80] sm:$0xf] %vm6833, %v6706
  %6867 = vst.msk [vmem:[#allocation5 + $0x84] sm:$0xf] %vm6833, %v6708
  %6868 = vst.msk [vmem:[#allocation5 + $0x88] sm:$0xf] %vm6833, %v6710
  %6869 = vst.msk [vmem:[#allocation5 + $0x8c] sm:$0xf] %vm6833, %v6712
  %6870 = vst.msk [vmem:[#allocation5 + $0x90] sm:$0xf] %vm6833, %v6714
  %6871 = vst.msk [vmem:[#allocation5 + $0x94] sm:$0xf] %vm6833, %v6716
  %6872 = vst.msk [vmem:[#allocation5 + $0x98] sm:$0xf] %vm6833, %v6718
  %6873 = vst.msk [vmem:[#allocation5 + $0x9c] sm:$0xf] %vm6833, %v6720
  %6874 = vst.msk [vmem:[#allocation5 + $0xa0] sm:$0xf] %vm6833, %v6722
  %6875 = vst.msk [vmem:[#allocation5 + $0xa4] sm:$0xf] %vm6833, %v6724
  %6876 = vst.msk [vmem:[#allocation5 + $0xa8] sm:$0xf] %vm6833, %v6726
  %6877 = vst.msk [vmem:[#allocation5 + $0xac] sm:$0xf] %vm6833, %v6728
  %6878 = vst.msk [vmem:[#allocation5 + $0xb0] sm:$0xf] %vm6833, %v6730
  %6879 = vst.msk [vmem:[#allocation5 + $0xb4] sm:$0xf] %vm6833, %v6732
  %6880 = vst.msk [vmem:[#allocation5 + $0xb8] sm:$0xf] %vm6833, %v6734
  %6881 = vst.msk [vmem:[#allocation5 + $0xbc] sm:$0xf] %vm6833, %v6736
  %6882 = vst.msk [vmem:[#allocation5 + $0xc0] sm:$0xf] %vm6833, %v6738
  %6883 = vst.msk [vmem:[#allocation5 + $0xc4] sm:$0xf] %vm6833, %v6740
  %6884 = vst.msk [vmem:[#allocation5 + $0xc8] sm:$0xf] %vm6833, %v6742
  %6885 = vst.msk [vmem:[#allocation5 + $0xcc] sm:$0xf] %vm6833, %v6744
  %6886 = vst.msk [vmem:[#allocation5 + $0xd0] sm:$0xf] %vm6833, %v6746
  %6887 = vst.msk [vmem:[#allocation5 + $0xd4] sm:$0xf] %vm6833, %v6748
  %6888 = vst.msk [vmem:[#allocation5 + $0xd8] sm:$0xf] %vm6833, %v6750
  %6889 = vst.msk [vmem:[#allocation5 + $0xdc] sm:$0xf] %vm6833, %v6752
  %6890 = vst.msk [vmem:[#allocation5 + $0xe0] sm:$0xf] %vm6833, %v6754
  %6891 = vst.msk [vmem:[#allocation5 + $0xe4] sm:$0xf] %vm6833, %v6756
  %6892 = vst.msk [vmem:[#allocation5 + $0xe8] sm:$0xf] %vm6833, %v6758
  %6893 = vst.msk [vmem:[#allocation5 + $0xec] sm:$0xf] %vm6833, %v6760
  %6894 = vst.msk [vmem:[#allocation5 + $0xf0] sm:$0xf] %vm6833, %v6762
  %6895 = vst.msk [vmem:[#allocation5 + $0xf4] sm:$0xf] %vm6833, %v6764
  %6896 = vst.msk [vmem:[#allocation5 + $0xf8] sm:$0xf] %vm6833, %v6766
  %6897 = vst.msk [vmem:[#allocation5 + $0xfc] sm:$0xf] %vm6833, %v6768
  %v6898 = vld [vmem:[%s5293 + $0x1] sm:$0xff]
  %v6899 = vld [vmem:[%s5293 + $0x9] sm:$0xff]
  %v6900 = vld [vmem:[%s5293 + $0x19] sm:$0xff]
  %v6901 = vld [vmem:[%s5293 + $0x21] sm:$0xff]
  %v6902 = vld [vmem:[%s5293 + $0x31] sm:$0xff]
  %v6903 = vld [vmem:[%s5293 + $0x39] sm:$0xff]
  %v6904 = vld [vmem:[%s5293 + $0x49] sm:$0xff]
  %v6905 = vld [vmem:[%s5293 + $0x51] sm:$0xff]
  %v6906 = vld [vmem:[%s5293 + $0x61] sm:$0xff]
  %v6907 = vld [vmem:[%s5293 + $0x69] sm:$0xff]
  %v6908 = vld [vmem:[%s5293 + $0x79] sm:$0xff]
  %v6909 = vld [vmem:[%s5293 + $0x81] sm:$0xff]
  %v6910 = vld [vmem:[%s5293 + $0x91] sm:$0xff]
  %v6911 = vld [vmem:[%s5293 + $0x99] sm:$0xff]
  %v6912 = vld [vmem:[%s5293 + $0xa9] sm:$0xff]
  %v6913 = vld [vmem:[%s5293 + $0xb1] sm:$0xff]
  %v6914 = vld [vmem:[%s5293 + $0xc1] sm:$0xff]
  %v6915 = vld [vmem:[%s5293 + $0xc9] sm:$0xff]
  %v6916 = vld [vmem:[%s5293 + $0xd9] sm:$0xff]
  %v6917 = vld [vmem:[%s5293 + $0xe1] sm:$0xff]
  %v6918 = vld [vmem:[%s5293 + $0xf1] sm:$0xff]
  %v6919 = vld [vmem:[%s5293 + $0xf9] sm:$0xff]
  %v6920 = vld [vmem:[%s5293 + $0x109] sm:$0xff]
  %v6921 = vld [vmem:[%s5293 + $0x111] sm:$0xff]
  %v6922 = vld [vmem:[%s5293 + $0x121] sm:$0xff]
  %v6923 = vld [vmem:[%s5293 + $0x129] sm:$0xff]
  %v6924 = vld [vmem:[%s5293 + $0x139] sm:$0xff]
  %v6925 = vld [vmem:[%s5293 + $0x141] sm:$0xff]
  %v6926 = vld [vmem:[%s5293 + $0x151] sm:$0xff]
  %v6927 = vld [vmem:[%s5293 + $0x159] sm:$0xff]
  %v6928 = vld [vmem:[%s5293 + $0x169] sm:$0xff]
  %v6929 = vld [vmem:[%s5293 + $0x171] sm:$0xff]
  %v6930 = vld [vmem:[%s5293 + $0x1b1] sm:$0xff]
  %v6931 = vld [vmem:[%s5293 + $0x1b9] sm:$0xff]
  %v6932 = vld [vmem:[%s5293 + $0x1c9] sm:$0xff]
  %v6933 = vld [vmem:[%s5293 + $0x1d1] sm:$0xff]
  %v6934 = vld [vmem:[%s5293 + $0x1e1] sm:$0xff]
  %v6935 = vld [vmem:[%s5293 + $0x1e9] sm:$0xff]
  %v6936 = vld [vmem:[%s5293 + $0x1f9] sm:$0xff]
  %v6937 = vld [vmem:[%s5293 + $0x201] sm:$0xff]
  %v6938 = vld [vmem:[%s5293 + $0x211] sm:$0xff]
  %v6939 = vld [vmem:[%s5293 + $0x219] sm:$0xff]
  %v6940 = vld [vmem:[%s5293 + $0x229] sm:$0xff]
  %v6941 = vld [vmem:[%s5293 + $0x231] sm:$0xff]
  %v6942 = vld [vmem:[%s5293 + $0x241] sm:$0xff]
  %v6943 = vld [vmem:[%s5293 + $0x249] sm:$0xff]
  %v6944 = vld [vmem:[%s5293 + $0x259] sm:$0xff]
  %v6945 = vld [vmem:[%s5293 + $0x261] sm:$0xff]
  %v6946 = vld [vmem:[%s5293 + $0x271] sm:$0xff]
  %v6947 = vld [vmem:[%s5293 + $0x279] sm:$0xff]
  %v6948 = vld [vmem:[%s5293 + $0x289] sm:$0xff]
  %v6949 = vld [vmem:[%s5293 + $0x291] sm:$0xff]
  %v6950 = vld [vmem:[%s5293 + $0x2a1] sm:$0xff]
  %v6951 = vld [vmem:[%s5293 + $0x2a9] sm:$0xff]
  %v6952 = vld [vmem:[%s5293 + $0x2b9] sm:$0xff]
  %v6953 = vld [vmem:[%s5293 + $0x2c1] sm:$0xff]
  %v6954 = vld [vmem:[%s5293 + $0x2d1] sm:$0xff]
  %v6955 = vld [vmem:[%s5293 + $0x2d9] sm:$0xff]
  %v6956 = vld [vmem:[%s5293 + $0x2e9] sm:$0xff]
  %v6957 = vld [vmem:[%s5293 + $0x2f1] sm:$0xff]
  %v6958 = vld [vmem:[%s5293 + $0x301] sm:$0xff]
  %v6959 = vld [vmem:[%s5293 + $0x309] sm:$0xff]
  %v6960 = vld [vmem:[%s5293 + $0x319] sm:$0xff]
  %v6961 = vld [vmem:[%s5293 + $0x321] sm:$0xff]
  %v6962 = vpack.c.bf16 %v6898, %v6898
  %v6963 = vpack.c.bf16 %v6899, %v6899
  %v6964 = vpack.c.bf16 %v6900, %v6900
  %v6965 = vpack.c.bf16 %v6901, %v6901
  %v6966 = vpack.c.bf16 %v6902, %v6902
  %v6967 = vpack.c.bf16 %v6903, %v6903
  %v6968 = vpack.c.bf16 %v6904, %v6904
  %v6969 = vpack.c.bf16 %v6905, %v6905
  %v6970 = vpack.c.bf16 %v6906, %v6906
  %v6971 = vpack.c.bf16 %v6907, %v6907
  %v6972 = vpack.c.bf16 %v6908, %v6908
  %v6973 = vpack.c.bf16 %v6909, %v6909
  %v6974 = vpack.c.bf16 %v6910, %v6910
  %v6975 = vpack.c.bf16 %v6911, %v6911
  %v6976 = vpack.c.bf16 %v6912, %v6912
  %v6977 = vpack.c.bf16 %v6913, %v6913
  %v6978 = vpack.c.bf16 %v6914, %v6914
  %v6979 = vpack.c.bf16 %v6915, %v6915
  %v6980 = vpack.c.bf16 %v6916, %v6916
  %v6981 = vpack.c.bf16 %v6917, %v6917
  %v6982 = vpack.c.bf16 %v6918, %v6918
  %v6983 = vpack.c.bf16 %v6919, %v6919
  %v6984 = vpack.c.bf16 %v6920, %v6920
  %v6985 = vpack.c.bf16 %v6921, %v6921
  %v6986 = vpack.c.bf16 %v6922, %v6922
  %v6987 = vpack.c.bf16 %v6923, %v6923
  %v6988 = vpack.c.bf16 %v6924, %v6924
  %v6989 = vpack.c.bf16 %v6925, %v6925
  %v6990 = vpack.c.bf16 %v6926, %v6926
  %v6991 = vpack.c.bf16 %v6927, %v6927
  %v6992 = vpack.c.bf16 %v6928, %v6928
  %v6993 = vpack.c.bf16 %v6929, %v6929
  %v6994 = vpack.c.bf16 %v6930, %v6930
  %v6995 = vpack.c.bf16 %v6931, %v6931
  %v6996 = vpack.c.bf16 %v6932, %v6932
  %v6997 = vpack.c.bf16 %v6933, %v6933
  %v6998 = vpack.c.bf16 %v6934, %v6934
  %v6999 = vpack.c.bf16 %v6935, %v6935
  %v7000 = vpack.c.bf16 %v6936, %v6936
  %v7001 = vpack.c.bf16 %v6937, %v6937
  %v7002 = vpack.c.bf16 %v6938, %v6938
  %v7003 = vpack.c.bf16 %v6939, %v6939
  %v7004 = vpack.c.bf16 %v6940, %v6940
  %v7005 = vpack.c.bf16 %v6941, %v6941
  %v7006 = vpack.c.bf16 %v6942, %v6942
  %v7007 = vpack.c.bf16 %v6943, %v6943
  %v7008 = vpack.c.bf16 %v6944, %v6944
  %v7009 = vpack.c.bf16 %v6945, %v6945
  %v7010 = vpack.c.bf16 %v6946, %v6946
  %v7011 = vpack.c.bf16 %v6947, %v6947
  %v7012 = vpack.c.bf16 %v6948, %v6948
  %v7013 = vpack.c.bf16 %v6949, %v6949
  %v7014 = vpack.c.bf16 %v6950, %v6950
  %v7015 = vpack.c.bf16 %v6951, %v6951
  %v7016 = vpack.c.bf16 %v6952, %v6952
  %v7017 = vpack.c.bf16 %v6953, %v6953
  %v7018 = vpack.c.bf16 %v6954, %v6954
  %v7019 = vpack.c.bf16 %v6955, %v6955
  %v7020 = vpack.c.bf16 %v6956, %v6956
  %v7021 = vpack.c.bf16 %v6957, %v6957
  %v7022 = vpack.c.bf16 %v6958, %v6958
  %v7023 = vpack.c.bf16 %v6959, %v6959
  %v7024 = vpack.c.bf16 %v6960, %v6960
  %v7025 = vpack.c.bf16 %v6961, %v6961
  %7090 = vrot.lane.b32.xlu0 %v6962, 32
  %v7091 = vpop.permute.xlu0 %7090
  %7092 = vrot.lane.b32.xlu0 %v6963, 32
  %v7093 = vpop.permute.xlu0 %7092
  %7094 = vrot.lane.b32.xlu0 %v6964, 32
  %v7095 = vpop.permute.xlu0 %7094
  %7096 = vrot.lane.b32.xlu0 %v6965, 32
  %v7097 = vpop.permute.xlu0 %7096
  %7098 = vrot.lane.b32.xlu0 %v6966, 32
  %v7099 = vpop.permute.xlu0 %7098
  %7100 = vrot.lane.b32.xlu0 %v6967, 32
  %v7101 = vpop.permute.xlu0 %7100
  %7102 = vrot.lane.b32.xlu0 %v6968, 32
  %v7103 = vpop.permute.xlu0 %7102
  %7104 = vrot.lane.b32.xlu0 %v6969, 32
  %v7105 = vpop.permute.xlu0 %7104
  %7106 = vrot.lane.b32.xlu0 %v6970, 32
  %v7107 = vpop.permute.xlu0 %7106
  %7108 = vrot.lane.b32.xlu0 %v6971, 32
  %v7109 = vpop.permute.xlu0 %7108
  %7110 = vrot.lane.b32.xlu0 %v6972, 32
  %v7111 = vpop.permute.xlu0 %7110
  %7112 = vrot.lane.b32.xlu0 %v6973, 32
  %v7113 = vpop.permute.xlu0 %7112
  %7114 = vrot.lane.b32.xlu0 %v6974, 32
  %v7115 = vpop.permute.xlu0 %7114
  %7116 = vrot.lane.b32.xlu0 %v6975, 32
  %v7117 = vpop.permute.xlu0 %7116
  %7118 = vrot.lane.b32.xlu0 %v6976, 32
  %v7119 = vpop.permute.xlu0 %7118
  %7120 = vrot.lane.b32.xlu0 %v6977, 32
  %v7121 = vpop.permute.xlu0 %7120
  %7122 = vrot.lane.b32.xlu0 %v6978, 32
  %v7123 = vpop.permute.xlu0 %7122
  %7124 = vrot.lane.b32.xlu0 %v6979, 32
  %v7125 = vpop.permute.xlu0 %7124
  %7126 = vrot.lane.b32.xlu0 %v6980, 32
  %v7127 = vpop.permute.xlu0 %7126
  %7128 = vrot.lane.b32.xlu0 %v6981, 32
  %v7129 = vpop.permute.xlu0 %7128
  %7130 = vrot.lane.b32.xlu0 %v6982, 32
  %v7131 = vpop.permute.xlu0 %7130
  %7132 = vrot.lane.b32.xlu0 %v6983, 32
  %v7133 = vpop.permute.xlu0 %7132
  %7134 = vrot.lane.b32.xlu0 %v6984, 32
  %v7135 = vpop.permute.xlu0 %7134
  %7136 = vrot.lane.b32.xlu0 %v6985, 32
  %v7137 = vpop.permute.xlu0 %7136
  %7138 = vrot.lane.b32.xlu0 %v6986, 32
  %v7139 = vpop.permute.xlu0 %7138
  %7140 = vrot.lane.b32.xlu0 %v6987, 32
  %v7141 = vpop.permute.xlu0 %7140
  %7142 = vrot.lane.b32.xlu0 %v6988, 32
  %v7143 = vpop.permute.xlu0 %7142
  %7144 = vrot.lane.b32.xlu0 %v6989, 32
  %v7145 = vpop.permute.xlu0 %7144
  %7146 = vrot.lane.b32.xlu0 %v6990, 32
  %v7147 = vpop.permute.xlu0 %7146
  %7148 = vrot.lane.b32.xlu0 %v6991, 32
  %v7149 = vpop.permute.xlu0 %7148
  %7150 = vrot.lane.b32.xlu0 %v6992, 32
  %v7151 = vpop.permute.xlu0 %7150
  %7152 = vrot.lane.b32.xlu0 %v6993, 32
  %v7153 = vpop.permute.xlu0 %7152
  %7154 = vrot.lane.b32.xlu0 %v6994, 32
  %v7155 = vpop.permute.xlu0 %7154
  %7156 = vrot.lane.b32.xlu0 %v6995, 32
  %v7157 = vpop.permute.xlu0 %7156
  %7158 = vrot.lane.b32.xlu0 %v6996, 32
  %v7159 = vpop.permute.xlu0 %7158
  %7160 = vrot.lane.b32.xlu0 %v6997, 32
  %v7161 = vpop.permute.xlu0 %7160
  %7162 = vrot.lane.b32.xlu0 %v6998, 32
  %v7163 = vpop.permute.xlu0 %7162
  %7164 = vrot.lane.b32.xlu0 %v6999, 32
  %v7165 = vpop.permute.xlu0 %7164
  %7166 = vrot.lane.b32.xlu0 %v7000, 32
  %v7167 = vpop.permute.xlu0 %7166
  %7168 = vrot.lane.b32.xlu0 %v7001, 32
  %v7169 = vpop.permute.xlu0 %7168
  %7170 = vrot.lane.b32.xlu0 %v7002, 32
  %v7171 = vpop.permute.xlu0 %7170
  %7172 = vrot.lane.b32.xlu0 %v7003, 32
  %v7173 = vpop.permute.xlu0 %7172
  %7174 = vrot.lane.b32.xlu0 %v7004, 32
  %v7175 = vpop.permute.xlu0 %7174
  %7176 = vrot.lane.b32.xlu0 %v7005, 32
  %v7177 = vpop.permute.xlu0 %7176
  %7178 = vrot.lane.b32.xlu0 %v7006, 32
  %v7179 = vpop.permute.xlu0 %7178
  %7180 = vrot.lane.b32.xlu0 %v7007, 32
  %v7181 = vpop.permute.xlu0 %7180
  %7182 = vrot.lane.b32.xlu0 %v7008, 32
  %v7183 = vpop.permute.xlu0 %7182
  %7184 = vrot.lane.b32.xlu0 %v7009, 32
  %v7185 = vpop.permute.xlu0 %7184
  %7186 = vrot.lane.b32.xlu0 %v7010, 32
  %v7187 = vpop.permute.xlu0 %7186
  %7188 = vrot.lane.b32.xlu0 %v7011, 32
  %v7189 = vpop.permute.xlu0 %7188
  %7190 = vrot.lane.b32.xlu0 %v7012, 32
  %v7191 = vpop.permute.xlu0 %7190
  %7192 = vrot.lane.b32.xlu0 %v7013, 32
  %v7193 = vpop.permute.xlu0 %7192
  %7194 = vrot.lane.b32.xlu0 %v7014, 32
  %v7195 = vpop.permute.xlu0 %7194
  %7196 = vrot.lane.b32.xlu0 %v7015, 32
  %v7197 = vpop.permute.xlu0 %7196
  %7198 = vrot.lane.b32.xlu0 %v7016, 32
  %v7199 = vpop.permute.xlu0 %7198
  %7200 = vrot.lane.b32.xlu0 %v7017, 32
  %v7201 = vpop.permute.xlu0 %7200
  %7202 = vrot.lane.b32.xlu0 %v7018, 32
  %v7203 = vpop.permute.xlu0 %7202
  %7204 = vrot.lane.b32.xlu0 %v7019, 32
  %v7205 = vpop.permute.xlu0 %7204
  %7206 = vrot.lane.b32.xlu0 %v7020, 32
  %v7207 = vpop.permute.xlu0 %7206
  %7208 = vrot.lane.b32.xlu0 %v7021, 32
  %v7209 = vpop.permute.xlu0 %7208
  %7210 = vrot.lane.b32.xlu0 %v7022, 32
  %v7211 = vpop.permute.xlu0 %7210
  %7212 = vrot.lane.b32.xlu0 %v7023, 32
  %v7213 = vpop.permute.xlu0 %7212
  %7214 = vrot.lane.b32.xlu0 %v7024, 32
  %v7215 = vpop.permute.xlu0 %7214
  %7216 = vrot.lane.b32.xlu0 %v7025, 32
  %v7217 = vpop.permute.xlu0 %7216
  %vm7282 = vcmask 322816
  %7283 = vst.msk [vmem:[#allocation5] sm:$0xf] %vm7282, %v7091
  %7284 = vst.msk [vmem:[#allocation5 + $0x4] sm:$0xf] %vm7282, %v7093
  %7285 = vst.msk [vmem:[#allocation5 + $0x8] sm:$0xf] %vm7282, %v7095
  %7286 = vst.msk [vmem:[#allocation5 + $0xc] sm:$0xf] %vm7282, %v7097
  %7287 = vst.msk [vmem:[#allocation5 + $0x10] sm:$0xf] %vm7282, %v7099
  %7288 = vst.msk [vmem:[#allocation5 + $0x14] sm:$0xf] %vm7282, %v7101
  %7289 = vst.msk [vmem:[#allocation5 + $0x18] sm:$0xf] %vm7282, %v7103
  %7290 = vst.msk [vmem:[#allocation5 + $0x1c] sm:$0xf] %vm7282, %v7105
  %7291 = vst.msk [vmem:[#allocation5 + $0x20] sm:$0xf] %vm7282, %v7107
  %7292 = vst.msk [vmem:[#allocation5 + $0x24] sm:$0xf] %vm7282, %v7109
  %7293 = vst.msk [vmem:[#allocation5 + $0x28] sm:$0xf] %vm7282, %v7111
  %7294 = vst.msk [vmem:[#allocation5 + $0x2c] sm:$0xf] %vm7282, %v7113
  %7295 = vst.msk [vmem:[#allocation5 + $0x30] sm:$0xf] %vm7282, %v7115
  %7296 = vst.msk [vmem:[#allocation5 + $0x34] sm:$0xf] %vm7282, %v7117
  %7297 = vst.msk [vmem:[#allocation5 + $0x38] sm:$0xf] %vm7282, %v7119
  %7298 = vst.msk [vmem:[#allocation5 + $0x3c] sm:$0xf] %vm7282, %v7121
  %7299 = vst.msk [vmem:[#allocation5 + $0x40] sm:$0xf] %vm7282, %v7123
  %7300 = vst.msk [vmem:[#allocation5 + $0x44] sm:$0xf] %vm7282, %v7125
  %7301 = vst.msk [vmem:[#allocation5 + $0x48] sm:$0xf] %vm7282, %v7127
  %7302 = vst.msk [vmem:[#allocation5 + $0x4c] sm:$0xf] %vm7282, %v7129
  %7303 = vst.msk [vmem:[#allocation5 + $0x50] sm:$0xf] %vm7282, %v7131
  %7304 = vst.msk [vmem:[#allocation5 + $0x54] sm:$0xf] %vm7282, %v7133
  %7305 = vst.msk [vmem:[#allocation5 + $0x58] sm:$0xf] %vm7282, %v7135
  %7306 = vst.msk [vmem:[#allocation5 + $0x5c] sm:$0xf] %vm7282, %v7137
  %7307 = vst.msk [vmem:[#allocation5 + $0x60] sm:$0xf] %vm7282, %v7139
  %7308 = vst.msk [vmem:[#allocation5 + $0x64] sm:$0xf] %vm7282, %v7141
  %7309 = vst.msk [vmem:[#allocation5 + $0x68] sm:$0xf] %vm7282, %v7143
  %7310 = vst.msk [vmem:[#allocation5 + $0x6c] sm:$0xf] %vm7282, %v7145
  %7311 = vst.msk [vmem:[#allocation5 + $0x70] sm:$0xf] %vm7282, %v7147
  %7312 = vst.msk [vmem:[#allocation5 + $0x74] sm:$0xf] %vm7282, %v7149
  %7313 = vst.msk [vmem:[#allocation5 + $0x78] sm:$0xf] %vm7282, %v7151
  %7314 = vst.msk [vmem:[#allocation5 + $0x7c] sm:$0xf] %vm7282, %v7153
  %7315 = vst.msk [vmem:[#allocation5 + $0x80] sm:$0xf] %vm7282, %v7155
  %7316 = vst.msk [vmem:[#allocation5 + $0x84] sm:$0xf] %vm7282, %v7157
  %7317 = vst.msk [vmem:[#allocation5 + $0x88] sm:$0xf] %vm7282, %v7159
  %7318 = vst.msk [vmem:[#allocation5 + $0x8c] sm:$0xf] %vm7282, %v7161
  %7319 = vst.msk [vmem:[#allocation5 + $0x90] sm:$0xf] %vm7282, %v7163
  %7320 = vst.msk [vmem:[#allocation5 + $0x94] sm:$0xf] %vm7282, %v7165
  %7321 = vst.msk [vmem:[#allocation5 + $0x98] sm:$0xf] %vm7282, %v7167
  %7322 = vst.msk [vmem:[#allocation5 + $0x9c] sm:$0xf] %vm7282, %v7169
  %7323 = vst.msk [vmem:[#allocation5 + $0xa0] sm:$0xf] %vm7282, %v7171
  %7324 = vst.msk [vmem:[#allocation5 + $0xa4] sm:$0xf] %vm7282, %v7173
  %7325 = vst.msk [vmem:[#allocation5 + $0xa8] sm:$0xf] %vm7282, %v7175
  %7326 = vst.msk [vmem:[#allocation5 + $0xac] sm:$0xf] %vm7282, %v7177
  %7327 = vst.msk [vmem:[#allocation5 + $0xb0] sm:$0xf] %vm7282, %v7179
  %7328 = vst.msk [vmem:[#allocation5 + $0xb4] sm:$0xf] %vm7282, %v7181
  %7329 = vst.msk [vmem:[#allocation5 + $0xb8] sm:$0xf] %vm7282, %v7183
  %7330 = vst.msk [vmem:[#allocation5 + $0xbc] sm:$0xf] %vm7282, %v7185
  %7331 = vst.msk [vmem:[#allocation5 + $0xc0] sm:$0xf] %vm7282, %v7187
  %7332 = vst.msk [vmem:[#allocation5 + $0xc4] sm:$0xf] %vm7282, %v7189
  %7333 = vst.msk [vmem:[#allocation5 + $0xc8] sm:$0xf] %vm7282, %v7191
  %7334 = vst.msk [vmem:[#allocation5 + $0xcc] sm:$0xf] %vm7282, %v7193
  %7335 = vst.msk [vmem:[#allocation5 + $0xd0] sm:$0xf] %vm7282, %v7195
  %7336 = vst.msk [vmem:[#allocation5 + $0xd4] sm:$0xf] %vm7282, %v7197
  %7337 = vst.msk [vmem:[#allocation5 + $0xd8] sm:$0xf] %vm7282, %v7199
  %7338 = vst.msk [vmem:[#allocation5 + $0xdc] sm:$0xf] %vm7282, %v7201
  %7339 = vst.msk [vmem:[#allocation5 + $0xe0] sm:$0xf] %vm7282, %v7203
  %7340 = vst.msk [vmem:[#allocation5 + $0xe4] sm:$0xf] %vm7282, %v7205
  %7341 = vst.msk [vmem:[#allocation5 + $0xe8] sm:$0xf] %vm7282, %v7207
  %7342 = vst.msk [vmem:[#allocation5 + $0xec] sm:$0xf] %vm7282, %v7209
  %7343 = vst.msk [vmem:[#allocation5 + $0xf0] sm:$0xf] %vm7282, %v7211
  %7344 = vst.msk [vmem:[#allocation5 + $0xf4] sm:$0xf] %vm7282, %v7213
  %7345 = vst.msk [vmem:[#allocation5 + $0xf8] sm:$0xf] %vm7282, %v7215
  %7346 = vst.msk [vmem:[#allocation5 + $0xfc] sm:$0xf] %vm7282, %v7217
  %v7347 = vld [vmem:[%s5293 + $0x2] sm:$0xff]
  %v7348 = vld [vmem:[%s5293 + $0xa] sm:$0xff]
  %v7349 = vld [vmem:[%s5293 + $0x1a] sm:$0xff]
  %v7350 = vld [vmem:[%s5293 + $0x22] sm:$0xff]
  %v7351 = vld [vmem:[%s5293 + $0x32] sm:$0xff]
  %v7352 = vld [vmem:[%s5293 + $0x3a] sm:$0xff]
  %v7353 = vld [vmem:[%s5293 + $0x4a] sm:$0xff]
  %v7354 = vld [vmem:[%s5293 + $0x52] sm:$0xff]
  %v7355 = vld [vmem:[%s5293 + $0x62] sm:$0xff]
  %v7356 = vld [vmem:[%s5293 + $0x6a] sm:$0xff]
  %v7357 = vld [vmem:[%s5293 + $0x7a] sm:$0xff]
  %v7358 = vld [vmem:[%s5293 + $0x82] sm:$0xff]
  %v7359 = vld [vmem:[%s5293 + $0x92] sm:$0xff]
  %v7360 = vld [vmem:[%s5293 + $0x9a] sm:$0xff]
  %v7361 = vld [vmem:[%s5293 + $0xaa] sm:$0xff]
  %v7362 = vld [vmem:[%s5293 + $0xb2] sm:$0xff]
  %v7363 = vld [vmem:[%s5293 + $0xc2] sm:$0xff]
  %v7364 = vld [vmem:[%s5293 + $0xca] sm:$0xff]
  %v7365 = vld [vmem:[%s5293 + $0xda] sm:$0xff]
  %v7366 = vld [vmem:[%s5293 + $0xe2] sm:$0xff]
  %v7367 = vld [vmem:[%s5293 + $0xf2] sm:$0xff]
  %v7368 = vld [vmem:[%s5293 + $0xfa] sm:$0xff]
  %v7369 = vld [vmem:[%s5293 + $0x10a] sm:$0xff]
  %v7370 = vld [vmem:[%s5293 + $0x112] sm:$0xff]
  %v7371 = vld [vmem:[%s5293 + $0x122] sm:$0xff]
  %v7372 = vld [vmem:[%s5293 + $0x12a] sm:$0xff]
  %v7373 = vld [vmem:[%s5293 + $0x13a] sm:$0xff]
  %v7374 = vld [vmem:[%s5293 + $0x142] sm:$0xff]
  %v7375 = vld [vmem:[%s5293 + $0x152] sm:$0xff]
  %v7376 = vld [vmem:[%s5293 + $0x15a] sm:$0xff]
  %v7377 = vld [vmem:[%s5293 + $0x16a] sm:$0xff]
  %v7378 = vld [vmem:[%s5293 + $0x172] sm:$0xff]
  %v7379 = vld [vmem:[%s5293 + $0x1b2] sm:$0xff]
  %v7380 = vld [vmem:[%s5293 + $0x1ba] sm:$0xff]
  %v7381 = vld [vmem:[%s5293 + $0x1ca] sm:$0xff]
  %v7382 = vld [vmem:[%s5293 + $0x1d2] sm:$0xff]
  %v7383 = vld [vmem:[%s5293 + $0x1e2] sm:$0xff]
  %v7384 = vld [vmem:[%s5293 + $0x1ea] sm:$0xff]
  %v7385 = vld [vmem:[%s5293 + $0x1fa] sm:$0xff]
  %v7386 = vld [vmem:[%s5293 + $0x202] sm:$0xff]
  %v7387 = vld [vmem:[%s5293 + $0x212] sm:$0xff]
  %v7388 = vld [vmem:[%s5293 + $0x21a] sm:$0xff]
  %v7389 = vld [vmem:[%s5293 + $0x22a] sm:$0xff]
  %v7390 = vld [vmem:[%s5293 + $0x232] sm:$0xff]
  %v7391 = vld [vmem:[%s5293 + $0x242] sm:$0xff]
  %v7392 = vld [vmem:[%s5293 + $0x24a] sm:$0xff]
  %v7393 = vld [vmem:[%s5293 + $0x25a] sm:$0xff]
  %v7394 = vld [vmem:[%s5293 + $0x262] sm:$0xff]
  %v7395 = vld [vmem:[%s5293 + $0x272] sm:$0xff]
  %v7396 = vld [vmem:[%s5293 + $0x27a] sm:$0xff]
  %v7397 = vld [vmem:[%s5293 + $0x28a] sm:$0xff]
  %v7398 = vld [vmem:[%s5293 + $0x292] sm:$0xff]
  %v7399 = vld [vmem:[%s5293 + $0x2a2] sm:$0xff]
  %v7400 = vld [vmem:[%s5293 + $0x2aa] sm:$0xff]
  %v7401 = vld [vmem:[%s5293 + $0x2ba] sm:$0xff]
  %v7402 = vld [vmem:[%s5293 + $0x2c2] sm:$0xff]
  %v7403 = vld [vmem:[%s5293 + $0x2d2] sm:$0xff]
  %v7404 = vld [vmem:[%s5293 + $0x2da] sm:$0xff]
  %v7405 = vld [vmem:[%s5293 + $0x2ea] sm:$0xff]
  %v7406 = vld [vmem:[%s5293 + $0x2f2] sm:$0xff]
  %v7407 = vld [vmem:[%s5293 + $0x302] sm:$0xff]
  %v7408 = vld [vmem:[%s5293 + $0x30a] sm:$0xff]
  %v7409 = vld [vmem:[%s5293 + $0x31a] sm:$0xff]
  %v7410 = vld [vmem:[%s5293 + $0x322] sm:$0xff]
  %v7411 = vpack.c.bf16 %v7347, %v7347
  %v7412 = vpack.c.bf16 %v7348, %v7348
  %v7413 = vpack.c.bf16 %v7349, %v7349
  %v7414 = vpack.c.bf16 %v7350, %v7350
  %v7415 = vpack.c.bf16 %v7351, %v7351
  %v7416 = vpack.c.bf16 %v7352, %v7352
  %v7417 = vpack.c.bf16 %v7353, %v7353
  %v7418 = vpack.c.bf16 %v7354, %v7354
  %v7419 = vpack.c.bf16 %v7355, %v7355
  %v7420 = vpack.c.bf16 %v7356, %v7356
  %v7421 = vpack.c.bf16 %v7357, %v7357
  %v7422 = vpack.c.bf16 %v7358, %v7358
  %v7423 = vpack.c.bf16 %v7359, %v7359
  %v7424 = vpack.c.bf16 %v7360, %v7360
  %v7425 = vpack.c.bf16 %v7361, %v7361
  %v7426 = vpack.c.bf16 %v7362, %v7362
  %v7427 = vpack.c.bf16 %v7363, %v7363
  %v7428 = vpack.c.bf16 %v7364, %v7364
  %v7429 = vpack.c.bf16 %v7365, %v7365
  %v7430 = vpack.c.bf16 %v7366, %v7366
  %v7431 = vpack.c.bf16 %v7367, %v7367
  %v7432 = vpack.c.bf16 %v7368, %v7368
  %v7433 = vpack.c.bf16 %v7369, %v7369
  %v7434 = vpack.c.bf16 %v7370, %v7370
  %v7435 = vpack.c.bf16 %v7371, %v7371
  %v7436 = vpack.c.bf16 %v7372, %v7372
  %v7437 = vpack.c.bf16 %v7373, %v7373
  %v7438 = vpack.c.bf16 %v7374, %v7374
  %v7439 = vpack.c.bf16 %v7375, %v7375
  %v7440 = vpack.c.bf16 %v7376, %v7376
  %v7441 = vpack.c.bf16 %v7377, %v7377
  %v7442 = vpack.c.bf16 %v7378, %v7378
  %v7443 = vpack.c.bf16 %v7379, %v7379
  %v7444 = vpack.c.bf16 %v7380, %v7380
  %v7445 = vpack.c.bf16 %v7381, %v7381
  %v7446 = vpack.c.bf16 %v7382, %v7382
  %v7447 = vpack.c.bf16 %v7383, %v7383
  %v7448 = vpack.c.bf16 %v7384, %v7384
  %v7449 = vpack.c.bf16 %v7385, %v7385
  %v7450 = vpack.c.bf16 %v7386, %v7386
  %v7451 = vpack.c.bf16 %v7387, %v7387
  %v7452 = vpack.c.bf16 %v7388, %v7388
  %v7453 = vpack.c.bf16 %v7389, %v7389
  %v7454 = vpack.c.bf16 %v7390, %v7390
  %v7455 = vpack.c.bf16 %v7391, %v7391
  %v7456 = vpack.c.bf16 %v7392, %v7392
  %v7457 = vpack.c.bf16 %v7393, %v7393
  %v7458 = vpack.c.bf16 %v7394, %v7394
  %v7459 = vpack.c.bf16 %v7395, %v7395
  %v7460 = vpack.c.bf16 %v7396, %v7396
  %v7461 = vpack.c.bf16 %v7397, %v7397
  %v7462 = vpack.c.bf16 %v7398, %v7398
  %v7463 = vpack.c.bf16 %v7399, %v7399
  %v7464 = vpack.c.bf16 %v7400, %v7400
  %v7465 = vpack.c.bf16 %v7401, %v7401
  %v7466 = vpack.c.bf16 %v7402, %v7402
  %v7467 = vpack.c.bf16 %v7403, %v7403
  %v7468 = vpack.c.bf16 %v7404, %v7404
  %v7469 = vpack.c.bf16 %v7405, %v7405
  %v7470 = vpack.c.bf16 %v7406, %v7406
  %v7471 = vpack.c.bf16 %v7407, %v7407
  %v7472 = vpack.c.bf16 %v7408, %v7408
  %v7473 = vpack.c.bf16 %v7409, %v7409
  %v7474 = vpack.c.bf16 %v7410, %v7410
  %7539 = vrot.lane.b32.xlu0 %v7411, 40
  %v7540 = vpop.permute.xlu0 %7539
  %7541 = vrot.lane.b32.xlu0 %v7412, 40
  %v7542 = vpop.permute.xlu0 %7541
  %7543 = vrot.lane.b32.xlu0 %v7413, 40
  %v7544 = vpop.permute.xlu0 %7543
  %7545 = vrot.lane.b32.xlu0 %v7414, 40
  %v7546 = vpop.permute.xlu0 %7545
  %7547 = vrot.lane.b32.xlu0 %v7415, 40
  %v7548 = vpop.permute.xlu0 %7547
  %7549 = vrot.lane.b32.xlu0 %v7416, 40
  %v7550 = vpop.permute.xlu0 %7549
  %7551 = vrot.lane.b32.xlu0 %v7417, 40
  %v7552 = vpop.permute.xlu0 %7551
  %7553 = vrot.lane.b32.xlu0 %v7418, 40
  %v7554 = vpop.permute.xlu0 %7553
  %7555 = vrot.lane.b32.xlu0 %v7419, 40
  %v7556 = vpop.permute.xlu0 %7555
  %7557 = vrot.lane.b32.xlu0 %v7420, 40
  %v7558 = vpop.permute.xlu0 %7557
  %7559 = vrot.lane.b32.xlu0 %v7421, 40
  %v7560 = vpop.permute.xlu0 %7559
  %7561 = vrot.lane.b32.xlu0 %v7422, 40
  %v7562 = vpop.permute.xlu0 %7561
  %7563 = vrot.lane.b32.xlu0 %v7423, 40
  %v7564 = vpop.permute.xlu0 %7563
  %7565 = vrot.lane.b32.xlu0 %v7424, 40
  %v7566 = vpop.permute.xlu0 %7565
  %7567 = vrot.lane.b32.xlu0 %v7425, 40
  %v7568 = vpop.permute.xlu0 %7567
  %7569 = vrot.lane.b32.xlu0 %v7426, 40
  %v7570 = vpop.permute.xlu0 %7569
  %7571 = vrot.lane.b32.xlu0 %v7427, 40
  %v7572 = vpop.permute.xlu0 %7571
  %7573 = vrot.lane.b32.xlu0 %v7428, 40
  %v7574 = vpop.permute.xlu0 %7573
  %7575 = vrot.lane.b32.xlu0 %v7429, 40
  %v7576 = vpop.permute.xlu0 %7575
  %7577 = vrot.lane.b32.xlu0 %v7430, 40
  %v7578 = vpop.permute.xlu0 %7577
  %7579 = vrot.lane.b32.xlu0 %v7431, 40
  %v7580 = vpop.permute.xlu0 %7579
  %7581 = vrot.lane.b32.xlu0 %v7432, 40
  %v7582 = vpop.permute.xlu0 %7581
  %7583 = vrot.lane.b32.xlu0 %v7433, 40
  %v7584 = vpop.permute.xlu0 %7583
  %7585 = vrot.lane.b32.xlu0 %v7434, 40
  %v7586 = vpop.permute.xlu0 %7585
  %7587 = vrot.lane.b32.xlu0 %v7435, 40
  %v7588 = vpop.permute.xlu0 %7587
  %7589 = vrot.lane.b32.xlu0 %v7436, 40
  %v7590 = vpop.permute.xlu0 %7589
  %7591 = vrot.lane.b32.xlu0 %v7437, 40
  %v7592 = vpop.permute.xlu0 %7591
  %7593 = vrot.lane.b32.xlu0 %v7438, 40
  %v7594 = vpop.permute.xlu0 %7593
  %7595 = vrot.lane.b32.xlu0 %v7439, 40
  %v7596 = vpop.permute.xlu0 %7595
  %7597 = vrot.lane.b32.xlu0 %v7440, 40
  %v7598 = vpop.permute.xlu0 %7597
  %7599 = vrot.lane.b32.xlu0 %v7441, 40
  %v7600 = vpop.permute.xlu0 %7599
  %7601 = vrot.lane.b32.xlu0 %v7442, 40
  %v7602 = vpop.permute.xlu0 %7601
  %7603 = vrot.lane.b32.xlu0 %v7443, 40
  %v7604 = vpop.permute.xlu0 %7603
  %7605 = vrot.lane.b32.xlu0 %v7444, 40
  %v7606 = vpop.permute.xlu0 %7605
  %7607 = vrot.lane.b32.xlu0 %v7445, 40
  %v7608 = vpop.permute.xlu0 %7607
  %7609 = vrot.lane.b32.xlu0 %v7446, 40
  %v7610 = vpop.permute.xlu0 %7609
  %7611 = vrot.lane.b32.xlu0 %v7447, 40
  %v7612 = vpop.permute.xlu0 %7611
  %7613 = vrot.lane.b32.xlu0 %v7448, 40
  %v7614 = vpop.permute.xlu0 %7613
  %7615 = vrot.lane.b32.xlu0 %v7449, 40
  %v7616 = vpop.permute.xlu0 %7615
  %7617 = vrot.lane.b32.xlu0 %v7450, 40
  %v7618 = vpop.permute.xlu0 %7617
  %7619 = vrot.lane.b32.xlu0 %v7451, 40
  %v7620 = vpop.permute.xlu0 %7619
  %7621 = vrot.lane.b32.xlu0 %v7452, 40
  %v7622 = vpop.permute.xlu0 %7621
  %7623 = vrot.lane.b32.xlu0 %v7453, 40
  %v7624 = vpop.permute.xlu0 %7623
  %7625 = vrot.lane.b32.xlu0 %v7454, 40
  %v7626 = vpop.permute.xlu0 %7625
  %7627 = vrot.lane.b32.xlu0 %v7455, 40
  %v7628 = vpop.permute.xlu0 %7627
  %7629 = vrot.lane.b32.xlu0 %v7456, 40
  %v7630 = vpop.permute.xlu0 %7629
  %7631 = vrot.lane.b32.xlu0 %v7457, 40
  %v7632 = vpop.permute.xlu0 %7631
  %7633 = vrot.lane.b32.xlu0 %v7458, 40
  %v7634 = vpop.permute.xlu0 %7633
  %7635 = vrot.lane.b32.xlu0 %v7459, 40
  %v7636 = vpop.permute.xlu0 %7635
  %7637 = vrot.lane.b32.xlu0 %v7460, 40
  %v7638 = vpop.permute.xlu0 %7637
  %7639 = vrot.lane.b32.xlu0 %v7461, 40
  %v7640 = vpop.permute.xlu0 %7639
  %7641 = vrot.lane.b32.xlu0 %v7462, 40
  %v7642 = vpop.permute.xlu0 %7641
  %7643 = vrot.lane.b32.xlu0 %v7463, 40
  %v7644 = vpop.permute.xlu0 %7643
  %7645 = vrot.lane.b32.xlu0 %v7464, 40
  %v7646 = vpop.permute.xlu0 %7645
  %7647 = vrot.lane.b32.xlu0 %v7465, 40
  %v7648 = vpop.permute.xlu0 %7647
  %7649 = vrot.lane.b32.xlu0 %v7466, 40
  %v7650 = vpop.permute.xlu0 %7649
  %7651 = vrot.lane.b32.xlu0 %v7467, 40
  %v7652 = vpop.permute.xlu0 %7651
  %7653 = vrot.lane.b32.xlu0 %v7468, 40
  %v7654 = vpop.permute.xlu0 %7653
  %7655 = vrot.lane.b32.xlu0 %v7469, 40
  %v7656 = vpop.permute.xlu0 %7655
  %7657 = vrot.lane.b32.xlu0 %v7470, 40
  %v7658 = vpop.permute.xlu0 %7657
  %7659 = vrot.lane.b32.xlu0 %v7471, 40
  %v7660 = vpop.permute.xlu0 %7659
  %7661 = vrot.lane.b32.xlu0 %v7472, 40
  %v7662 = vpop.permute.xlu0 %7661
  %7663 = vrot.lane.b32.xlu0 %v7473, 40
  %v7664 = vpop.permute.xlu0 %7663
  %7665 = vrot.lane.b32.xlu0 %v7474, 40
  %v7666 = vpop.permute.xlu0 %7665
  %vm7731 = vcmask 388416
  %7732 = vst.msk [vmem:[#allocation5] sm:$0xf] %vm7731, %v7540
  %7733 = vst.msk [vmem:[#allocation5 + $0x4] sm:$0xf] %vm7731, %v7542
  %7734 = vst.msk [vmem:[#allocation5 + $0x8] sm:$0xf] %vm7731, %v7544
  %7735 = vst.msk [vmem:[#allocation5 + $0xc] sm:$0xf] %vm7731, %v7546
  %7736 = vst.msk [vmem:[#allocation5 + $0x10] sm:$0xf] %vm7731, %v7548
  %7737 = vst.msk [vmem:[#allocation5 + $0x14] sm:$0xf] %vm7731, %v7550
  %7738 = vst.msk [vmem:[#allocation5 + $0x18] sm:$0xf] %vm7731, %v7552
  %7739 = vst.msk [vmem:[#allocation5 + $0x1c] sm:$0xf] %vm7731, %v7554
  %7740 = vst.msk [vmem:[#allocation5 + $0x20] sm:$0xf] %vm7731, %v7556
  %7741 = vst.msk [vmem:[#allocation5 + $0x24] sm:$0xf] %vm7731, %v7558
  %7742 = vst.msk [vmem:[#allocation5 + $0x28] sm:$0xf] %vm7731, %v7560
  %7743 = vst.msk [vmem:[#allocation5 + $0x2c] sm:$0xf] %vm7731, %v7562
  %7744 = vst.msk [vmem:[#allocation5 + $0x30] sm:$0xf] %vm7731, %v7564
  %7745 = vst.msk [vmem:[#allocation5 + $0x34] sm:$0xf] %vm7731, %v7566
  %7746 = vst.msk [vmem:[#allocation5 + $0x38] sm:$0xf] %vm7731, %v7568
  %7747 = vst.msk [vmem:[#allocation5 + $0x3c] sm:$0xf] %vm7731, %v7570
  %7748 = vst.msk [vmem:[#allocation5 + $0x40] sm:$0xf] %vm7731, %v7572
  %7749 = vst.msk [vmem:[#allocation5 + $0x44] sm:$0xf] %vm7731, %v7574
  %7750 = vst.msk [vmem:[#allocation5 + $0x48] sm:$0xf] %vm7731, %v7576
  %7751 = vst.msk [vmem:[#allocation5 + $0x4c] sm:$0xf] %vm7731, %v7578
  %7752 = vst.msk [vmem:[#allocation5 + $0x50] sm:$0xf] %vm7731, %v7580
  %7753 = vst.msk [vmem:[#allocation5 + $0x54] sm:$0xf] %vm7731, %v7582
  %7754 = vst.msk [vmem:[#allocation5 + $0x58] sm:$0xf] %vm7731, %v7584
  %7755 = vst.msk [vmem:[#allocation5 + $0x5c] sm:$0xf] %vm7731, %v7586
  %7756 = vst.msk [vmem:[#allocation5 + $0x60] sm:$0xf] %vm7731, %v7588
  %7757 = vst.msk [vmem:[#allocation5 + $0x64] sm:$0xf] %vm7731, %v7590
  %7758 = vst.msk [vmem:[#allocation5 + $0x68] sm:$0xf] %vm7731, %v7592
  %7759 = vst.msk [vmem:[#allocation5 + $0x6c] sm:$0xf] %vm7731, %v7594
  %7760 = vst.msk [vmem:[#allocation5 + $0x70] sm:$0xf] %vm7731, %v7596
  %7761 = vst.msk [vmem:[#allocation5 + $0x74] sm:$0xf] %vm7731, %v7598
  %7762 = vst.msk [vmem:[#allocation5 + $0x78] sm:$0xf] %vm7731, %v7600
  %7763 = vst.msk [vmem:[#allocation5 + $0x7c] sm:$0xf] %vm7731, %v7602
  %7764 = vst.msk [vmem:[#allocation5 + $0x80] sm:$0xf] %vm7731, %v7604
  %7765 = vst.msk [vmem:[#allocation5 + $0x84] sm:$0xf] %vm7731, %v7606
  %7766 = vst.msk [vmem:[#allocation5 + $0x88] sm:$0xf] %vm7731, %v7608
  %7767 = vst.msk [vmem:[#allocation5 + $0x8c] sm:$0xf] %vm7731, %v7610
  %7768 = vst.msk [vmem:[#allocation5 + $0x90] sm:$0xf] %vm7731, %v7612
  %7769 = vst.msk [vmem:[#allocation5 + $0x94] sm:$0xf] %vm7731, %v7614
  %7770 = vst.msk [vmem:[#allocation5 + $0x98] sm:$0xf] %vm7731, %v7616
  %7771 = vst.msk [vmem:[#allocation5 + $0x9c] sm:$0xf] %vm7731, %v7618
  %7772 = vst.msk [vmem:[#allocation5 + $0xa0] sm:$0xf] %vm7731, %v7620
  %7773 = vst.msk [vmem:[#allocation5 + $0xa4] sm:$0xf] %vm7731, %v7622
  %7774 = vst.msk [vmem:[#allocation5 + $0xa8] sm:$0xf] %vm7731, %v7624
  %7775 = vst.msk [vmem:[#allocation5 + $0xac] sm:$0xf] %vm7731, %v7626
  %7776 = vst.msk [vmem:[#allocation5 + $0xb0] sm:$0xf] %vm7731, %v7628
  %7777 = vst.msk [vmem:[#allocation5 + $0xb4] sm:$0xf] %vm7731, %v7630
  %7778 = vst.msk [vmem:[#allocation5 + $0xb8] sm:$0xf] %vm7731, %v7632
  %7779 = vst.msk [vmem:[#allocation5 + $0xbc] sm:$0xf] %vm7731, %v7634
  %7780 = vst.msk [vmem:[#allocation5 + $0xc0] sm:$0xf] %vm7731, %v7636
  %7781 = vst.msk [vmem:[#allocation5 + $0xc4] sm:$0xf] %vm7731, %v7638
  %7782 = vst.msk [vmem:[#allocation5 + $0xc8] sm:$0xf] %vm7731, %v7640
  %7783 = vst.msk [vmem:[#allocation5 + $0xcc] sm:$0xf] %vm7731, %v7642
  %7784 = vst.msk [vmem:[#allocation5 + $0xd0] sm:$0xf] %vm7731, %v7644
  %7785 = vst.msk [vmem:[#allocation5 + $0xd4] sm:$0xf] %vm7731, %v7646
  %7786 = vst.msk [vmem:[#allocation5 + $0xd8] sm:$0xf] %vm7731, %v7648
  %7787 = vst.msk [vmem:[#allocation5 + $0xdc] sm:$0xf] %vm7731, %v7650
  %7788 = vst.msk [vmem:[#allocation5 + $0xe0] sm:$0xf] %vm7731, %v7652
  %7789 = vst.msk [vmem:[#allocation5 + $0xe4] sm:$0xf] %vm7731, %v7654
  %7790 = vst.msk [vmem:[#allocation5 + $0xe8] sm:$0xf] %vm7731, %v7656
  %7791 = vst.msk [vmem:[#allocation5 + $0xec] sm:$0xf] %vm7731, %v7658
  %7792 = vst.msk [vmem:[#allocation5 + $0xf0] sm:$0xf] %vm7731, %v7660
  %7793 = vst.msk [vmem:[#allocation5 + $0xf4] sm:$0xf] %vm7731, %v7662
  %7794 = vst.msk [vmem:[#allocation5 + $0xf8] sm:$0xf] %vm7731, %v7664
  %7795 = vst.msk [vmem:[#allocation5 + $0xfc] sm:$0xf] %vm7731, %v7666
  %s7796 = scalar_lea.vmem [#allocation4], 48
  %v7797 = vld [vmem:[%s7796] sm:$0xff]
  %v7798 = vld [vmem:[%s7796 + $0x8] sm:$0xff]
  %v7799 = vld [vmem:[%s7796 + $0x18] sm:$0xff]
  %v7800 = vld [vmem:[%s7796 + $0x20] sm:$0xff]
  %v7801 = vld [vmem:[%s7796 + $0x30] sm:$0xff]
  %v7802 = vld [vmem:[%s7796 + $0x38] sm:$0xff]
  %v7803 = vld [vmem:[%s7796 + $0x48] sm:$0xff]
  %v7804 = vld [vmem:[%s7796 + $0x50] sm:$0xff]
  %v7805 = vld [vmem:[%s7796 + $0x60] sm:$0xff]
  %v7806 = vld [vmem:[%s7796 + $0x68] sm:$0xff]
  %v7807 = vld [vmem:[%s7796 + $0x78] sm:$0xff]
  %v7808 = vld [vmem:[%s7796 + $0x80] sm:$0xff]
  %v7809 = vld [vmem:[%s7796 + $0x90] sm:$0xff]
  %v7810 = vld [vmem:[%s7796 + $0x98] sm:$0xff]
  %v7811 = vld [vmem:[%s7796 + $0xa8] sm:$0xff]
  %v7812 = vld [vmem:[%s7796 + $0xb0] sm:$0xff]
  %v7813 = vld [vmem:[%s7796 + $0xc0] sm:$0xff]
  %v7814 = vld [vmem:[%s7796 + $0xc8] sm:$0xff]
  %v7815 = vld [vmem:[%s7796 + $0xd8] sm:$0xff]
  %v7816 = vld [vmem:[%s7796 + $0xe0] sm:$0xff]
  %v7817 = vld [vmem:[%s7796 + $0xf0] sm:$0xff]
  %v7818 = vld [vmem:[%s7796 + $0xf8] sm:$0xff]
  %v7819 = vld [vmem:[%s7796 + $0x108] sm:$0xff]
  %v7820 = vld [vmem:[%s7796 + $0x110] sm:$0xff]
  %v7821 = vld [vmem:[%s7796 + $0x120] sm:$0xff]
  %v7822 = vld [vmem:[%s7796 + $0x128] sm:$0xff]
  %v7823 = vld [vmem:[%s7796 + $0x138] sm:$0xff]
  %v7824 = vld [vmem:[%s7796 + $0x140] sm:$0xff]
  %v7825 = vld [vmem:[%s7796 + $0x150] sm:$0xff]
  %v7826 = vld [vmem:[%s7796 + $0x158] sm:$0xff]
  %v7827 = vld [vmem:[%s7796 + $0x168] sm:$0xff]
  %v7828 = vld [vmem:[%s7796 + $0x170] sm:$0xff]
  %v7829 = vld [vmem:[%s7796 + $0x1b0] sm:$0xff]
  %v7830 = vld [vmem:[%s7796 + $0x1b8] sm:$0xff]
  %v7831 = vld [vmem:[%s7796 + $0x1c8] sm:$0xff]
  %v7832 = vld [vmem:[%s7796 + $0x1d0] sm:$0xff]
  %v7833 = vld [vmem:[%s7796 + $0x1e0] sm:$0xff]
  %v7834 = vld [vmem:[%s7796 + $0x1e8] sm:$0xff]
  %v7835 = vld [vmem:[%s7796 + $0x1f8] sm:$0xff]
  %v7836 = vld [vmem:[%s7796 + $0x200] sm:$0xff]
  %v7837 = vld [vmem:[%s7796 + $0x210] sm:$0xff]
  %v7838 = vld [vmem:[%s7796 + $0x218] sm:$0xff]
  %v7839 = vld [vmem:[%s7796 + $0x228] sm:$0xff]
  %v7840 = vld [vmem:[%s7796 + $0x230] sm:$0xff]
  %v7841 = vld [vmem:[%s7796 + $0x240] sm:$0xff]
  %v7842 = vld [vmem:[%s7796 + $0x248] sm:$0xff]
  %v7843 = vld [vmem:[%s7796 + $0x258] sm:$0xff]
  %v7844 = vld [vmem:[%s7796 + $0x260] sm:$0xff]
  %v7845 = vld [vmem:[%s7796 + $0x270] sm:$0xff]
  %v7846 = vld [vmem:[%s7796 + $0x278] sm:$0xff]
  %v7847 = vld [vmem:[%s7796 + $0x288] sm:$0xff]
  %v7848 = vld [vmem:[%s7796 + $0x290] sm:$0xff]
  %v7849 = vld [vmem:[%s7796 + $0x2a0] sm:$0xff]
  %v7850 = vld [vmem:[%s7796 + $0x2a8] sm:$0xff]
  %v7851 = vld [vmem:[%s7796 + $0x2b8] sm:$0xff]
  %v7852 = vld [vmem:[%s7796 + $0x2c0] sm:$0xff]
  %v7853 = vld [vmem:[%s7796 + $0x2d0] sm:$0xff]
  %v7854 = vld [vmem:[%s7796 + $0x2d8] sm:$0xff]
  %v7855 = vld [vmem:[%s7796 + $0x2e8] sm:$0xff]
  %v7856 = vld [vmem:[%s7796 + $0x2f0] sm:$0xff]
  %v7857 = vld [vmem:[%s7796 + $0x300] sm:$0xff]
  %v7858 = vld [vmem:[%s7796 + $0x308] sm:$0xff]
  %v7859 = vld [vmem:[%s7796 + $0x318] sm:$0xff]
  %v7860 = vld [vmem:[%s7796 + $0x320] sm:$0xff]
  %v7861 = vpack.c.bf16 %v7797, %v7797
  %v7862 = vpack.c.bf16 %v7798, %v7798
  %v7863 = vpack.c.bf16 %v7799, %v7799
  %v7864 = vpack.c.bf16 %v7800, %v7800
  %v7865 = vpack.c.bf16 %v7801, %v7801
  %v7866 = vpack.c.bf16 %v7802, %v7802
  %v7867 = vpack.c.bf16 %v7803, %v7803
  %v7868 = vpack.c.bf16 %v7804, %v7804
  %v7869 = vpack.c.bf16 %v7805, %v7805
  %v7870 = vpack.c.bf16 %v7806, %v7806
  %v7871 = vpack.c.bf16 %v7807, %v7807
  %v7872 = vpack.c.bf16 %v7808, %v7808
  %v7873 = vpack.c.bf16 %v7809, %v7809
  %v7874 = vpack.c.bf16 %v7810, %v7810
  %v7875 = vpack.c.bf16 %v7811, %v7811
  %v7876 = vpack.c.bf16 %v7812, %v7812
  %v7877 = vpack.c.bf16 %v7813, %v7813
  %v7878 = vpack.c.bf16 %v7814, %v7814
  %v7879 = vpack.c.bf16 %v7815, %v7815
  %v7880 = vpack.c.bf16 %v7816, %v7816
  %v7881 = vpack.c.bf16 %v7817, %v7817
  %v7882 = vpack.c.bf16 %v7818, %v7818
  %v7883 = vpack.c.bf16 %v7819, %v7819
  %v7884 = vpack.c.bf16 %v7820, %v7820
  %v7885 = vpack.c.bf16 %v7821, %v7821
  %v7886 = vpack.c.bf16 %v7822, %v7822
  %v7887 = vpack.c.bf16 %v7823, %v7823
  %v7888 = vpack.c.bf16 %v7824, %v7824
  %v7889 = vpack.c.bf16 %v7825, %v7825
  %v7890 = vpack.c.bf16 %v7826, %v7826
  %v7891 = vpack.c.bf16 %v7827, %v7827
  %v7892 = vpack.c.bf16 %v7828, %v7828
  %v7893 = vpack.c.bf16 %v7829, %v7829
  %v7894 = vpack.c.bf16 %v7830, %v7830
  %v7895 = vpack.c.bf16 %v7831, %v7831
  %v7896 = vpack.c.bf16 %v7832, %v7832
  %v7897 = vpack.c.bf16 %v7833, %v7833
  %v7898 = vpack.c.bf16 %v7834, %v7834
  %v7899 = vpack.c.bf16 %v7835, %v7835
  %v7900 = vpack.c.bf16 %v7836, %v7836
  %v7901 = vpack.c.bf16 %v7837, %v7837
  %v7902 = vpack.c.bf16 %v7838, %v7838
  %v7903 = vpack.c.bf16 %v7839, %v7839
  %v7904 = vpack.c.bf16 %v7840, %v7840
  %v7905 = vpack.c.bf16 %v7841, %v7841
  %v7906 = vpack.c.bf16 %v7842, %v7842
  %v7907 = vpack.c.bf16 %v7843, %v7843
  %v7908 = vpack.c.bf16 %v7844, %v7844
  %v7909 = vpack.c.bf16 %v7845, %v7845
  %v7910 = vpack.c.bf16 %v7846, %v7846
  %v7911 = vpack.c.bf16 %v7847, %v7847
  %v7912 = vpack.c.bf16 %v7848, %v7848
  %v7913 = vpack.c.bf16 %v7849, %v7849
  %v7914 = vpack.c.bf16 %v7850, %v7850
  %v7915 = vpack.c.bf16 %v7851, %v7851
  %v7916 = vpack.c.bf16 %v7852, %v7852
  %v7917 = vpack.c.bf16 %v7853, %v7853
  %v7918 = vpack.c.bf16 %v7854, %v7854
  %v7919 = vpack.c.bf16 %v7855, %v7855
  %v7920 = vpack.c.bf16 %v7856, %v7856
  %v7921 = vpack.c.bf16 %v7857, %v7857
  %v7922 = vpack.c.bf16 %v7858, %v7858
  %v7923 = vpack.c.bf16 %v7859, %v7859
  %v7924 = vpack.c.bf16 %v7860, %v7860
  %7989 = vrot.lane.b32.xlu0 %v7861, 48
  %v7990 = vpop.permute.xlu0 %7989
  %7991 = vrot.lane.b32.xlu0 %v7862, 48
  %v7992 = vpop.permute.xlu0 %7991
  %7993 = vrot.lane.b32.xlu0 %v7863, 48
  %v7994 = vpop.permute.xlu0 %7993
  %7995 = vrot.lane.b32.xlu0 %v7864, 48
  %v7996 = vpop.permute.xlu0 %7995
  %7997 = vrot.lane.b32.xlu0 %v7865, 48
  %v7998 = vpop.permute.xlu0 %7997
  %7999 = vrot.lane.b32.xlu0 %v7866, 48
  %v8000 = vpop.permute.xlu0 %7999
  %8001 = vrot.lane.b32.xlu0 %v7867, 48
  %v8002 = vpop.permute.xlu0 %8001
  %8003 = vrot.lane.b32.xlu0 %v7868, 48
  %v8004 = vpop.permute.xlu0 %8003
  %8005 = vrot.lane.b32.xlu0 %v7869, 48
  %v8006 = vpop.permute.xlu0 %8005
  %8007 = vrot.lane.b32.xlu0 %v7870, 48
  %v8008 = vpop.permute.xlu0 %8007
  %8009 = vrot.lane.b32.xlu0 %v7871, 48
  %v8010 = vpop.permute.xlu0 %8009
  %8011 = vrot.lane.b32.xlu0 %v7872, 48
  %v8012 = vpop.permute.xlu0 %8011
  %8013 = vrot.lane.b32.xlu0 %v7873, 48
  %v8014 = vpop.permute.xlu0 %8013
  %8015 = vrot.lane.b32.xlu0 %v7874, 48
  %v8016 = vpop.permute.xlu0 %8015
  %8017 = vrot.lane.b32.xlu0 %v7875, 48
  %v8018 = vpop.permute.xlu0 %8017
  %8019 = vrot.lane.b32.xlu0 %v7876, 48
  %v8020 = vpop.permute.xlu0 %8019
  %8021 = vrot.lane.b32.xlu0 %v7877, 48
  %v8022 = vpop.permute.xlu0 %8021
  %8023 = vrot.lane.b32.xlu0 %v7878, 48
  %v8024 = vpop.permute.xlu0 %8023
  %8025 = vrot.lane.b32.xlu0 %v7879, 48
  %v8026 = vpop.permute.xlu0 %8025
  %8027 = vrot.lane.b32.xlu0 %v7880, 48
  %v8028 = vpop.permute.xlu0 %8027
  %8029 = vrot.lane.b32.xlu0 %v7881, 48
  %v8030 = vpop.permute.xlu0 %8029
  %8031 = vrot.lane.b32.xlu0 %v7882, 48
  %v8032 = vpop.permute.xlu0 %8031
  %8033 = vrot.lane.b32.xlu0 %v7883, 48
  %v8034 = vpop.permute.xlu0 %8033
  %8035 = vrot.lane.b32.xlu0 %v7884, 48
  %v8036 = vpop.permute.xlu0 %8035
  %8037 = vrot.lane.b32.xlu0 %v7885, 48
  %v8038 = vpop.permute.xlu0 %8037
  %8039 = vrot.lane.b32.xlu0 %v7886, 48
  %v8040 = vpop.permute.xlu0 %8039
  %8041 = vrot.lane.b32.xlu0 %v7887, 48
  %v8042 = vpop.permute.xlu0 %8041
  %8043 = vrot.lane.b32.xlu0 %v7888, 48
  %v8044 = vpop.permute.xlu0 %8043
  %8045 = vrot.lane.b32.xlu0 %v7889, 48
  %v8046 = vpop.permute.xlu0 %8045
  %8047 = vrot.lane.b32.xlu0 %v7890, 48
  %v8048 = vpop.permute.xlu0 %8047
  %8049 = vrot.lane.b32.xlu0 %v7891, 48
  %v8050 = vpop.permute.xlu0 %8049
  %8051 = vrot.lane.b32.xlu0 %v7892, 48
  %v8052 = vpop.permute.xlu0 %8051
  %8053 = vrot.lane.b32.xlu0 %v7893, 48
  %v8054 = vpop.permute.xlu0 %8053
  %8055 = vrot.lane.b32.xlu0 %v7894, 48
  %v8056 = vpop.permute.xlu0 %8055
  %8057 = vrot.lane.b32.xlu0 %v7895, 48
  %v8058 = vpop.permute.xlu0 %8057
  %8059 = vrot.lane.b32.xlu0 %v7896, 48
  %v8060 = vpop.permute.xlu0 %8059
  %8061 = vrot.lane.b32.xlu0 %v7897, 48
  %v8062 = vpop.permute.xlu0 %8061
  %8063 = vrot.lane.b32.xlu0 %v7898, 48
  %v8064 = vpop.permute.xlu0 %8063
  %8065 = vrot.lane.b32.xlu0 %v7899, 48
  %v8066 = vpop.permute.xlu0 %8065
  %8067 = vrot.lane.b32.xlu0 %v7900, 48
  %v8068 = vpop.permute.xlu0 %8067
  %8069 = vrot.lane.b32.xlu0 %v7901, 48
  %v8070 = vpop.permute.xlu0 %8069
  %8071 = vrot.lane.b32.xlu0 %v7902, 48
  %v8072 = vpop.permute.xlu0 %8071
  %8073 = vrot.lane.b32.xlu0 %v7903, 48
  %v8074 = vpop.permute.xlu0 %8073
  %8075 = vrot.lane.b32.xlu0 %v7904, 48
  %v8076 = vpop.permute.xlu0 %8075
  %8077 = vrot.lane.b32.xlu0 %v7905, 48
  %v8078 = vpop.permute.xlu0 %8077
  %8079 = vrot.lane.b32.xlu0 %v7906, 48
  %v8080 = vpop.permute.xlu0 %8079
  %8081 = vrot.lane.b32.xlu0 %v7907, 48
  %v8082 = vpop.permute.xlu0 %8081
  %8083 = vrot.lane.b32.xlu0 %v7908, 48
  %v8084 = vpop.permute.xlu0 %8083
  %8085 = vrot.lane.b32.xlu0 %v7909, 48
  %v8086 = vpop.permute.xlu0 %8085
  %8087 = vrot.lane.b32.xlu0 %v7910, 48
  %v8088 = vpop.permute.xlu0 %8087
  %8089 = vrot.lane.b32.xlu0 %v7911, 48
  %v8090 = vpop.permute.xlu0 %8089
  %8091 = vrot.lane.b32.xlu0 %v7912, 48
  %v8092 = vpop.permute.xlu0 %8091
  %8093 = vrot.lane.b32.xlu0 %v7913, 48
  %v8094 = vpop.permute.xlu0 %8093
  %8095 = vrot.lane.b32.xlu0 %v7914, 48
  %v8096 = vpop.permute.xlu0 %8095
  %8097 = vrot.lane.b32.xlu0 %v7915, 48
  %v8098 = vpop.permute.xlu0 %8097
  %8099 = vrot.lane.b32.xlu0 %v7916, 48
  %v8100 = vpop.permute.xlu0 %8099
  %8101 = vrot.lane.b32.xlu0 %v7917, 48
  %v8102 = vpop.permute.xlu0 %8101
  %8103 = vrot.lane.b32.xlu0 %v7918, 48
  %v8104 = vpop.permute.xlu0 %8103
  %8105 = vrot.lane.b32.xlu0 %v7919, 48
  %v8106 = vpop.permute.xlu0 %8105
  %8107 = vrot.lane.b32.xlu0 %v7920, 48
  %v8108 = vpop.permute.xlu0 %8107
  %8109 = vrot.lane.b32.xlu0 %v7921, 48
  %v8110 = vpop.permute.xlu0 %8109
  %8111 = vrot.lane.b32.xlu0 %v7922, 48
  %v8112 = vpop.permute.xlu0 %8111
  %8113 = vrot.lane.b32.xlu0 %v7923, 48
  %v8114 = vpop.permute.xlu0 %8113
  %8115 = vrot.lane.b32.xlu0 %v7924, 48
  %v8116 = vpop.permute.xlu0 %8115
  %vm8181 = vcmask 454016
  %8182 = vst.msk [vmem:[#allocation5] sm:$0xf] %vm8181, %v7990
  %8183 = vst.msk [vmem:[#allocation5 + $0x4] sm:$0xf] %vm8181, %v7992
  %8184 = vst.msk [vmem:[#allocation5 + $0x8] sm:$0xf] %vm8181, %v7994
  %8185 = vst.msk [vmem:[#allocation5 + $0xc] sm:$0xf] %vm8181, %v7996
  %8186 = vst.msk [vmem:[#allocation5 + $0x10] sm:$0xf] %vm8181, %v7998
  %8187 = vst.msk [vmem:[#allocation5 + $0x14] sm:$0xf] %vm8181, %v8000
  %8188 = vst.msk [vmem:[#allocation5 + $0x18] sm:$0xf] %vm8181, %v8002
  %8189 = vst.msk [vmem:[#allocation5 + $0x1c] sm:$0xf] %vm8181, %v8004
  %8190 = vst.msk [vmem:[#allocation5 + $0x20] sm:$0xf] %vm8181, %v8006
  %8191 = vst.msk [vmem:[#allocation5 + $0x24] sm:$0xf] %vm8181, %v8008
  %8192 = vst.msk [vmem:[#allocation5 + $0x28] sm:$0xf] %vm8181, %v8010
  %8193 = vst.msk [vmem:[#allocation5 + $0x2c] sm:$0xf] %vm8181, %v8012
  %8194 = vst.msk [vmem:[#allocation5 + $0x30] sm:$0xf] %vm8181, %v8014
  %8195 = vst.msk [vmem:[#allocation5 + $0x34] sm:$0xf] %vm8181, %v8016
  %8196 = vst.msk [vmem:[#allocation5 + $0x38] sm:$0xf] %vm8181, %v8018
  %8197 = vst.msk [vmem:[#allocation5 + $0x3c] sm:$0xf] %vm8181, %v8020
  %8198 = vst.msk [vmem:[#allocation5 + $0x40] sm:$0xf] %vm8181, %v8022
  %8199 = vst.msk [vmem:[#allocation5 + $0x44] sm:$0xf] %vm8181, %v8024
  %8200 = vst.msk [vmem:[#allocation5 + $0x48] sm:$0xf] %vm8181, %v8026
  %8201 = vst.msk [vmem:[#allocation5 + $0x4c] sm:$0xf] %vm8181, %v8028
  %8202 = vst.msk [vmem:[#allocation5 + $0x50] sm:$0xf] %vm8181, %v8030
  %8203 = vst.msk [vmem:[#allocation5 + $0x54] sm:$0xf] %vm8181, %v8032
  %8204 = vst.msk [vmem:[#allocation5 + $0x58] sm:$0xf] %vm8181, %v8034
  %8205 = vst.msk [vmem:[#allocation5 + $0x5c] sm:$0xf] %vm8181, %v8036
  %8206 = vst.msk [vmem:[#allocation5 + $0x60] sm:$0xf] %vm8181, %v8038
  %8207 = vst.msk [vmem:[#allocation5 + $0x64] sm:$0xf] %vm8181, %v8040
  %8208 = vst.msk [vmem:[#allocation5 + $0x68] sm:$0xf] %vm8181, %v8042
  %8209 = vst.msk [vmem:[#allocation5 + $0x6c] sm:$0xf] %vm8181, %v8044
  %8210 = vst.msk [vmem:[#allocation5 + $0x70] sm:$0xf] %vm8181, %v8046
  %8211 = vst.msk [vmem:[#allocation5 + $0x74] sm:$0xf] %vm8181, %v8048
  %8212 = vst.msk [vmem:[#allocation5 + $0x78] sm:$0xf] %vm8181, %v8050
  %8213 = vst.msk [vmem:[#allocation5 + $0x7c] sm:$0xf] %vm8181, %v8052
  %8214 = vst.msk [vmem:[#allocation5 + $0x80] sm:$0xf] %vm8181, %v8054
  %8215 = vst.msk [vmem:[#allocation5 + $0x84] sm:$0xf] %vm8181, %v8056
  %8216 = vst.msk [vmem:[#allocation5 + $0x88] sm:$0xf] %vm8181, %v8058
  %8217 = vst.msk [vmem:[#allocation5 + $0x8c] sm:$0xf] %vm8181, %v8060
  %8218 = vst.msk [vmem:[#allocation5 + $0x90] sm:$0xf] %vm8181, %v8062
  %8219 = vst.msk [vmem:[#allocation5 + $0x94] sm:$0xf] %vm8181, %v8064
  %8220 = vst.msk [vmem:[#allocation5 + $0x98] sm:$0xf] %vm8181, %v8066
  %8221 = vst.msk [vmem:[#allocation5 + $0x9c] sm:$0xf] %vm8181, %v8068
  %8222 = vst.msk [vmem:[#allocation5 + $0xa0] sm:$0xf] %vm8181, %v8070
  %8223 = vst.msk [vmem:[#allocation5 + $0xa4] sm:$0xf] %vm8181, %v8072
  %8224 = vst.msk [vmem:[#allocation5 + $0xa8] sm:$0xf] %vm8181, %v8074
  %8225 = vst.msk [vmem:[#allocation5 + $0xac] sm:$0xf] %vm8181, %v8076
  %8226 = vst.msk [vmem:[#allocation5 + $0xb0] sm:$0xf] %vm8181, %v8078
  %8227 = vst.msk [vmem:[#allocation5 + $0xb4] sm:$0xf] %vm8181, %v8080
  %8228 = vst.msk [vmem:[#allocation5 + $0xb8] sm:$0xf] %vm8181, %v8082
  %8229 = vst.msk [vmem:[#allocation5 + $0xbc] sm:$0xf] %vm8181, %v8084
  %8230 = vst.msk [vmem:[#allocation5 + $0xc0] sm:$0xf] %vm8181, %v8086
  %8231 = vst.msk [vmem:[#allocation5 + $0xc4] sm:$0xf] %vm8181, %v8088
  %8232 = vst.msk [vmem:[#allocation5 + $0xc8] sm:$0xf] %vm8181, %v8090
  %8233 = vst.msk [vmem:[#allocation5 + $0xcc] sm:$0xf] %vm8181, %v8092
  %8234 = vst.msk [vmem:[#allocation5 + $0xd0] sm:$0xf] %vm8181, %v8094
  %8235 = vst.msk [vmem:[#allocation5 + $0xd4] sm:$0xf] %vm8181, %v8096
  %8236 = vst.msk [vmem:[#allocation5 + $0xd8] sm:$0xf] %vm8181, %v8098
  %8237 = vst.msk [vmem:[#allocation5 + $0xdc] sm:$0xf] %vm8181, %v8100
  %8238 = vst.msk [vmem:[#allocation5 + $0xe0] sm:$0xf] %vm8181, %v8102
  %8239 = vst.msk [vmem:[#allocation5 + $0xe4] sm:$0xf] %vm8181, %v8104
  %8240 = vst.msk [vmem:[#allocation5 + $0xe8] sm:$0xf] %vm8181, %v8106
  %8241 = vst.msk [vmem:[#allocation5 + $0xec] sm:$0xf] %vm8181, %v8108
  %8242 = vst.msk [vmem:[#allocation5 + $0xf0] sm:$0xf] %vm8181, %v8110
  %8243 = vst.msk [vmem:[#allocation5 + $0xf4] sm:$0xf] %vm8181, %v8112
  %8244 = vst.msk [vmem:[#allocation5 + $0xf8] sm:$0xf] %vm8181, %v8114
  %8245 = vst.msk [vmem:[#allocation5 + $0xfc] sm:$0xf] %vm8181, %v8116
  %v8246 = vld [vmem:[%s7796 + $0x1] sm:$0xff]
  %v8247 = vld [vmem:[%s7796 + $0x9] sm:$0xff]
  %v8248 = vld [vmem:[%s7796 + $0x19] sm:$0xff]
  %v8249 = vld [vmem:[%s7796 + $0x21] sm:$0xff]
  %v8250 = vld [vmem:[%s7796 + $0x31] sm:$0xff]
  %v8251 = vld [vmem:[%s7796 + $0x39] sm:$0xff]
  %v8252 = vld [vmem:[%s7796 + $0x49] sm:$0xff]
  %v8253 = vld [vmem:[%s7796 + $0x51] sm:$0xff]
  %v8254 = vld [vmem:[%s7796 + $0x61] sm:$0xff]
  %v8255 = vld [vmem:[%s7796 + $0x69] sm:$0xff]
  %v8256 = vld [vmem:[%s7796 + $0x79] sm:$0xff]
  %v8257 = vld [vmem:[%s7796 + $0x81] sm:$0xff]
  %v8258 = vld [vmem:[%s7796 + $0x91] sm:$0xff]
  %v8259 = vld [vmem:[%s7796 + $0x99] sm:$0xff]
  %v8260 = vld [vmem:[%s7796 + $0xa9] sm:$0xff]
  %v8261 = vld [vmem:[%s7796 + $0xb1] sm:$0xff]
  %v8262 = vld [vmem:[%s7796 + $0xc1] sm:$0xff]
  %v8263 = vld [vmem:[%s7796 + $0xc9] sm:$0xff]
  %v8264 = vld [vmem:[%s7796 + $0xd9] sm:$0xff]
  %v8265 = vld [vmem:[%s7796 + $0xe1] sm:$0xff]
  %v8266 = vld [vmem:[%s7796 + $0xf1] sm:$0xff]
  %v8267 = vld [vmem:[%s7796 + $0xf9] sm:$0xff]
  %v8268 = vld [vmem:[%s7796 + $0x109] sm:$0xff]
  %v8269 = vld [vmem:[%s7796 + $0x111] sm:$0xff]
  %v8270 = vld [vmem:[%s7796 + $0x121] sm:$0xff]
  %v8271 = vld [vmem:[%s7796 + $0x129] sm:$0xff]
  %v8272 = vld [vmem:[%s7796 + $0x139] sm:$0xff]
  %v8273 = vld [vmem:[%s7796 + $0x141] sm:$0xff]
  %v8274 = vld [vmem:[%s7796 + $0x151] sm:$0xff]
  %v8275 = vld [vmem:[%s7796 + $0x159] sm:$0xff]
  %v8276 = vld [vmem:[%s7796 + $0x169] sm:$0xff]
  %v8277 = vld [vmem:[%s7796 + $0x171] sm:$0xff]
  %v8278 = vld [vmem:[%s7796 + $0x1b1] sm:$0xff]
  %v8279 = vld [vmem:[%s7796 + $0x1b9] sm:$0xff]
  %v8280 = vld [vmem:[%s7796 + $0x1c9] sm:$0xff]
  %v8281 = vld [vmem:[%s7796 + $0x1d1] sm:$0xff]
  %v8282 = vld [vmem:[%s7796 + $0x1e1] sm:$0xff]
  %v8283 = vld [vmem:[%s7796 + $0x1e9] sm:$0xff]
  %v8284 = vld [vmem:[%s7796 + $0x1f9] sm:$0xff]
  %v8285 = vld [vmem:[%s7796 + $0x201] sm:$0xff]
  %v8286 = vld [vmem:[%s7796 + $0x211] sm:$0xff]
  %v8287 = vld [vmem:[%s7796 + $0x219] sm:$0xff]
  %v8288 = vld [vmem:[%s7796 + $0x229] sm:$0xff]
  %v8289 = vld [vmem:[%s7796 + $0x231] sm:$0xff]
  %v8290 = vld [vmem:[%s7796 + $0x241] sm:$0xff]
  %v8291 = vld [vmem:[%s7796 + $0x249] sm:$0xff]
  %v8292 = vld [vmem:[%s7796 + $0x259] sm:$0xff]
  %v8293 = vld [vmem:[%s7796 + $0x261] sm:$0xff]
  %v8294 = vld [vmem:[%s7796 + $0x271] sm:$0xff]
  %v8295 = vld [vmem:[%s7796 + $0x279] sm:$0xff]
  %v8296 = vld [vmem:[%s7796 + $0x289] sm:$0xff]
  %v8297 = vld [vmem:[%s7796 + $0x291] sm:$0xff]
  %v8298 = vld [vmem:[%s7796 + $0x2a1] sm:$0xff]
  %v8299 = vld [vmem:[%s7796 + $0x2a9] sm:$0xff]
  %v8300 = vld [vmem:[%s7796 + $0x2b9] sm:$0xff]
  %v8301 = vld [vmem:[%s7796 + $0x2c1] sm:$0xff]
  %v8302 = vld [vmem:[%s7796 + $0x2d1] sm:$0xff]
  %v8303 = vld [vmem:[%s7796 + $0x2d9] sm:$0xff]
  %v8304 = vld [vmem:[%s7796 + $0x2e9] sm:$0xff]
  %v8305 = vld [vmem:[%s7796 + $0x2f1] sm:$0xff]
  %v8306 = vld [vmem:[%s7796 + $0x301] sm:$0xff]
  %v8307 = vld [vmem:[%s7796 + $0x309] sm:$0xff]
  %v8308 = vld [vmem:[%s7796 + $0x319] sm:$0xff]
  %v8309 = vld [vmem:[%s7796 + $0x321] sm:$0xff]
  %v8310 = vpack.c.bf16 %v8246, %v8246
  %v8311 = vpack.c.bf16 %v8247, %v8247
  %v8312 = vpack.c.bf16 %v8248, %v8248
  %v8313 = vpack.c.bf16 %v8249, %v8249
  %v8314 = vpack.c.bf16 %v8250, %v8250
  %v8315 = vpack.c.bf16 %v8251, %v8251
  %v8316 = vpack.c.bf16 %v8252, %v8252
  %v8317 = vpack.c.bf16 %v8253, %v8253
  %v8318 = vpack.c.bf16 %v8254, %v8254
  %v8319 = vpack.c.bf16 %v8255, %v8255
  %v8320 = vpack.c.bf16 %v8256, %v8256
  %v8321 = vpack.c.bf16 %v8257, %v8257
  %v8322 = vpack.c.bf16 %v8258, %v8258
  %v8323 = vpack.c.bf16 %v8259, %v8259
  %v8324 = vpack.c.bf16 %v8260, %v8260
  %v8325 = vpack.c.bf16 %v8261, %v8261
  %v8326 = vpack.c.bf16 %v8262, %v8262
  %v8327 = vpack.c.bf16 %v8263, %v8263
  %v8328 = vpack.c.bf16 %v8264, %v8264
  %v8329 = vpack.c.bf16 %v8265, %v8265
  %v8330 = vpack.c.bf16 %v8266, %v8266
  %v8331 = vpack.c.bf16 %v8267, %v8267
  %v8332 = vpack.c.bf16 %v8268, %v8268
  %v8333 = vpack.c.bf16 %v8269, %v8269
  %v8334 = vpack.c.bf16 %v8270, %v8270
  %v8335 = vpack.c.bf16 %v8271, %v8271
  %v8336 = vpack.c.bf16 %v8272, %v8272
  %v8337 = vpack.c.bf16 %v8273, %v8273
  %v8338 = vpack.c.bf16 %v8274, %v8274
  %v8339 = vpack.c.bf16 %v8275, %v8275
  %v8340 = vpack.c.bf16 %v8276, %v8276
  %v8341 = vpack.c.bf16 %v8277, %v8277
  %v8342 = vpack.c.bf16 %v8278, %v8278
  %v8343 = vpack.c.bf16 %v8279, %v8279
  %v8344 = vpack.c.bf16 %v8280, %v8280
  %v8345 = vpack.c.bf16 %v8281, %v8281
  %v8346 = vpack.c.bf16 %v8282, %v8282
  %v8347 = vpack.c.bf16 %v8283, %v8283
  %v8348 = vpack.c.bf16 %v8284, %v8284
  %v8349 = vpack.c.bf16 %v8285, %v8285
  %v8350 = vpack.c.bf16 %v8286, %v8286
  %v8351 = vpack.c.bf16 %v8287, %v8287
  %v8352 = vpack.c.bf16 %v8288, %v8288
  %v8353 = vpack.c.bf16 %v8289, %v8289
  %v8354 = vpack.c.bf16 %v8290, %v8290
  %v8355 = vpack.c.bf16 %v8291, %v8291
  %v8356 = vpack.c.bf16 %v8292, %v8292
  %v8357 = vpack.c.bf16 %v8293, %v8293
  %v8358 = vpack.c.bf16 %v8294, %v8294
  %v8359 = vpack.c.bf16 %v8295, %v8295
  %v8360 = vpack.c.bf16 %v8296, %v8296
  %v8361 = vpack.c.bf16 %v8297, %v8297
  %v8362 = vpack.c.bf16 %v8298, %v8298
  %v8363 = vpack.c.bf16 %v8299, %v8299
  %v8364 = vpack.c.bf16 %v8300, %v8300
  %v8365 = vpack.c.bf16 %v8301, %v8301
  %v8366 = vpack.c.bf16 %v8302, %v8302
  %v8367 = vpack.c.bf16 %v8303, %v8303
  %v8368 = vpack.c.bf16 %v8304, %v8304
  %v8369 = vpack.c.bf16 %v8305, %v8305
  %v8370 = vpack.c.bf16 %v8306, %v8306
  %v8371 = vpack.c.bf16 %v8307, %v8307
  %v8372 = vpack.c.bf16 %v8308, %v8308
  %v8373 = vpack.c.bf16 %v8309, %v8309
  %8438 = vrot.lane.b32.xlu0 %v8310, 56
  %v8439 = vpop.permute.xlu0 %8438
  %8440 = vrot.lane.b32.xlu0 %v8311, 56
  %v8441 = vpop.permute.xlu0 %8440
  %8442 = vrot.lane.b32.xlu0 %v8312, 56
  %v8443 = vpop.permute.xlu0 %8442
  %8444 = vrot.lane.b32.xlu0 %v8313, 56
  %v8445 = vpop.permute.xlu0 %8444
  %8446 = vrot.lane.b32.xlu0 %v8314, 56
  %v8447 = vpop.permute.xlu0 %8446
  %8448 = vrot.lane.b32.xlu0 %v8315, 56
  %v8449 = vpop.permute.xlu0 %8448
  %8450 = vrot.lane.b32.xlu0 %v8316, 56
  %v8451 = vpop.permute.xlu0 %8450
  %8452 = vrot.lane.b32.xlu0 %v8317, 56
  %v8453 = vpop.permute.xlu0 %8452
  %8454 = vrot.lane.b32.xlu0 %v8318, 56
  %v8455 = vpop.permute.xlu0 %8454
  %8456 = vrot.lane.b32.xlu0 %v8319, 56
  %v8457 = vpop.permute.xlu0 %8456
  %8458 = vrot.lane.b32.xlu0 %v8320, 56
  %v8459 = vpop.permute.xlu0 %8458
  %8460 = vrot.lane.b32.xlu0 %v8321, 56
  %v8461 = vpop.permute.xlu0 %8460
  %8462 = vrot.lane.b32.xlu0 %v8322, 56
  %v8463 = vpop.permute.xlu0 %8462
  %8464 = vrot.lane.b32.xlu0 %v8323, 56
  %v8465 = vpop.permute.xlu0 %8464
  %8466 = vrot.lane.b32.xlu0 %v8324, 56
  %v8467 = vpop.permute.xlu0 %8466
  %8468 = vrot.lane.b32.xlu0 %v8325, 56
  %v8469 = vpop.permute.xlu0 %8468
  %8470 = vrot.lane.b32.xlu0 %v8326, 56
  %v8471 = vpop.permute.xlu0 %8470
  %8472 = vrot.lane.b32.xlu0 %v8327, 56
  %v8473 = vpop.permute.xlu0 %8472
  %8474 = vrot.lane.b32.xlu0 %v8328, 56
  %v8475 = vpop.permute.xlu0 %8474
  %8476 = vrot.lane.b32.xlu0 %v8329, 56
  %v8477 = vpop.permute.xlu0 %8476
  %8478 = vrot.lane.b32.xlu0 %v8330, 56
  %v8479 = vpop.permute.xlu0 %8478
  %8480 = vrot.lane.b32.xlu0 %v8331, 56
  %v8481 = vpop.permute.xlu0 %8480
  %8482 = vrot.lane.b32.xlu0 %v8332, 56
  %v8483 = vpop.permute.xlu0 %8482
  %8484 = vrot.lane.b32.xlu0 %v8333, 56
  %v8485 = vpop.permute.xlu0 %8484
  %8486 = vrot.lane.b32.xlu0 %v8334, 56
  %v8487 = vpop.permute.xlu0 %8486
  %8488 = vrot.lane.b32.xlu0 %v8335, 56
  %v8489 = vpop.permute.xlu0 %8488
  %8490 = vrot.lane.b32.xlu0 %v8336, 56
  %v8491 = vpop.permute.xlu0 %8490
  %8492 = vrot.lane.b32.xlu0 %v8337, 56
  %v8493 = vpop.permute.xlu0 %8492
  %8494 = vrot.lane.b32.xlu0 %v8338, 56
  %v8495 = vpop.permute.xlu0 %8494
  %8496 = vrot.lane.b32.xlu0 %v8339, 56
  %v8497 = vpop.permute.xlu0 %8496
  %8498 = vrot.lane.b32.xlu0 %v8340, 56
  %v8499 = vpop.permute.xlu0 %8498
  %8500 = vrot.lane.b32.xlu0 %v8341, 56
  %v8501 = vpop.permute.xlu0 %8500
  %8502 = vrot.lane.b32.xlu0 %v8342, 56
  %v8503 = vpop.permute.xlu0 %8502
  %8504 = vrot.lane.b32.xlu0 %v8343, 56
  %v8505 = vpop.permute.xlu0 %8504
  %8506 = vrot.lane.b32.xlu0 %v8344, 56
  %v8507 = vpop.permute.xlu0 %8506
  %8508 = vrot.lane.b32.xlu0 %v8345, 56
  %v8509 = vpop.permute.xlu0 %8508
  %8510 = vrot.lane.b32.xlu0 %v8346, 56
  %v8511 = vpop.permute.xlu0 %8510
  %8512 = vrot.lane.b32.xlu0 %v8347, 56
  %v8513 = vpop.permute.xlu0 %8512
  %8514 = vrot.lane.b32.xlu0 %v8348, 56
  %v8515 = vpop.permute.xlu0 %8514
  %8516 = vrot.lane.b32.xlu0 %v8349, 56
  %v8517 = vpop.permute.xlu0 %8516
  %8518 = vrot.lane.b32.xlu0 %v8350, 56
  %v8519 = vpop.permute.xlu0 %8518
  %8520 = vrot.lane.b32.xlu0 %v8351, 56
  %v8521 = vpop.permute.xlu0 %8520
  %8522 = vrot.lane.b32.xlu0 %v8352, 56
  %v8523 = vpop.permute.xlu0 %8522
  %8524 = vrot.lane.b32.xlu0 %v8353, 56
  %v8525 = vpop.permute.xlu0 %8524
  %8526 = vrot.lane.b32.xlu0 %v8354, 56
  %v8527 = vpop.permute.xlu0 %8526
  %8528 = vrot.lane.b32.xlu0 %v8355, 56
  %v8529 = vpop.permute.xlu0 %8528
  %8530 = vrot.lane.b32.xlu0 %v8356, 56
  %v8531 = vpop.permute.xlu0 %8530
  %8532 = vrot.lane.b32.xlu0 %v8357, 56
  %v8533 = vpop.permute.xlu0 %8532
  %8534 = vrot.lane.b32.xlu0 %v8358, 56
  %v8535 = vpop.permute.xlu0 %8534
  %8536 = vrot.lane.b32.xlu0 %v8359, 56
  %v8537 = vpop.permute.xlu0 %8536
  %8538 = vrot.lane.b32.xlu0 %v8360, 56
  %v8539 = vpop.permute.xlu0 %8538
  %8540 = vrot.lane.b32.xlu0 %v8361, 56
  %v8541 = vpop.permute.xlu0 %8540
  %8542 = vrot.lane.b32.xlu0 %v8362, 56
  %v8543 = vpop.permute.xlu0 %8542
  %8544 = vrot.lane.b32.xlu0 %v8363, 56
  %v8545 = vpop.permute.xlu0 %8544
  %8546 = vrot.lane.b32.xlu0 %v8364, 56
  %v8547 = vpop.permute.xlu0 %8546
  %8548 = vrot.lane.b32.xlu0 %v8365, 56
  %v8549 = vpop.permute.xlu0 %8548
  %8550 = vrot.lane.b32.xlu0 %v8366, 56
  %v8551 = vpop.permute.xlu0 %8550
  %8552 = vrot.lane.b32.xlu0 %v8367, 56
  %v8553 = vpop.permute.xlu0 %8552
  %8554 = vrot.lane.b32.xlu0 %v8368, 56
  %v8555 = vpop.permute.xlu0 %8554
  %8556 = vrot.lane.b32.xlu0 %v8369, 56
  %v8557 = vpop.permute.xlu0 %8556
  %8558 = vrot.lane.b32.xlu0 %v8370, 56
  %v8559 = vpop.permute.xlu0 %8558
  %8560 = vrot.lane.b32.xlu0 %v8371, 56
  %v8561 = vpop.permute.xlu0 %8560
  %8562 = vrot.lane.b32.xlu0 %v8372, 56
  %v8563 = vpop.permute.xlu0 %8562
  %8564 = vrot.lane.b32.xlu0 %v8373, 56
  %v8565 = vpop.permute.xlu0 %8564
  %vm8630 = vcmask 519616
  %8631 = vst.msk [vmem:[#allocation5] sm:$0xf] %vm8630, %v8439
  %8632 = vst.msk [vmem:[#allocation5 + $0x4] sm:$0xf] %vm8630, %v8441
  %8633 = vst.msk [vmem:[#allocation5 + $0x8] sm:$0xf] %vm8630, %v8443
  %8634 = vst.msk [vmem:[#allocation5 + $0xc] sm:$0xf] %vm8630, %v8445
  %8635 = vst.msk [vmem:[#allocation5 + $0x10] sm:$0xf] %vm8630, %v8447
  %8636 = vst.msk [vmem:[#allocation5 + $0x14] sm:$0xf] %vm8630, %v8449
  %8637 = vst.msk [vmem:[#allocation5 + $0x18] sm:$0xf] %vm8630, %v8451
  %8638 = vst.msk [vmem:[#allocation5 + $0x1c] sm:$0xf] %vm8630, %v8453
  %8639 = vst.msk [vmem:[#allocation5 + $0x20] sm:$0xf] %vm8630, %v8455
  %8640 = vst.msk [vmem:[#allocation5 + $0x24] sm:$0xf] %vm8630, %v8457
  %8641 = vst.msk [vmem:[#allocation5 + $0x28] sm:$0xf] %vm8630, %v8459
  %8642 = vst.msk [vmem:[#allocation5 + $0x2c] sm:$0xf] %vm8630, %v8461
  %8643 = vst.msk [vmem:[#allocation5 + $0x30] sm:$0xf] %vm8630, %v8463
  %8644 = vst.msk [vmem:[#allocation5 + $0x34] sm:$0xf] %vm8630, %v8465
  %8645 = vst.msk [vmem:[#allocation5 + $0x38] sm:$0xf] %vm8630, %v8467
  %8646 = vst.msk [vmem:[#allocation5 + $0x3c] sm:$0xf] %vm8630, %v8469
  %8647 = vst.msk [vmem:[#allocation5 + $0x40] sm:$0xf] %vm8630, %v8471
  %8648 = vst.msk [vmem:[#allocation5 + $0x44] sm:$0xf] %vm8630, %v8473
  %8649 = vst.msk [vmem:[#allocation5 + $0x48] sm:$0xf] %vm8630, %v8475
  %8650 = vst.msk [vmem:[#allocation5 + $0x4c] sm:$0xf] %vm8630, %v8477
  %8651 = vst.msk [vmem:[#allocation5 + $0x50] sm:$0xf] %vm8630, %v8479
  %8652 = vst.msk [vmem:[#allocation5 + $0x54] sm:$0xf] %vm8630, %v8481
  %8653 = vst.msk [vmem:[#allocation5 + $0x58] sm:$0xf] %vm8630, %v8483
  %8654 = vst.msk [vmem:[#allocation5 + $0x5c] sm:$0xf] %vm8630, %v8485
  %8655 = vst.msk [vmem:[#allocation5 + $0x60] sm:$0xf] %vm8630, %v8487
  %8656 = vst.msk [vmem:[#allocation5 + $0x64] sm:$0xf] %vm8630, %v8489
  %8657 = vst.msk [vmem:[#allocation5 + $0x68] sm:$0xf] %vm8630, %v8491
  %8658 = vst.msk [vmem:[#allocation5 + $0x6c] sm:$0xf] %vm8630, %v8493
  %8659 = vst.msk [vmem:[#allocation5 + $0x70] sm:$0xf] %vm8630, %v8495
  %8660 = vst.msk [vmem:[#allocation5 + $0x74] sm:$0xf] %vm8630, %v8497
  %8661 = vst.msk [vmem:[#allocation5 + $0x78] sm:$0xf] %vm8630, %v8499
  %8662 = vst.msk [vmem:[#allocation5 + $0x7c] sm:$0xf] %vm8630, %v8501
  %8663 = vst.msk [vmem:[#allocation5 + $0x80] sm:$0xf] %vm8630, %v8503
  %8664 = vst.msk [vmem:[#allocation5 + $0x84] sm:$0xf] %vm8630, %v8505
  %8665 = vst.msk [vmem:[#allocation5 + $0x88] sm:$0xf] %vm8630, %v8507
  %8666 = vst.msk [vmem:[#allocation5 + $0x8c] sm:$0xf] %vm8630, %v8509
  %8667 = vst.msk [vmem:[#allocation5 + $0x90] sm:$0xf] %vm8630, %v8511
  %8668 = vst.msk [vmem:[#allocation5 + $0x94] sm:$0xf] %vm8630, %v8513
  %8669 = vst.msk [vmem:[#allocation5 + $0x98] sm:$0xf] %vm8630, %v8515
  %8670 = vst.msk [vmem:[#allocation5 + $0x9c] sm:$0xf] %vm8630, %v8517
  %8671 = vst.msk [vmem:[#allocation5 + $0xa0] sm:$0xf] %vm8630, %v8519
  %8672 = vst.msk [vmem:[#allocation5 + $0xa4] sm:$0xf] %vm8630, %v8521
  %8673 = vst.msk [vmem:[#allocation5 + $0xa8] sm:$0xf] %vm8630, %v8523
  %8674 = vst.msk [vmem:[#allocation5 + $0xac] sm:$0xf] %vm8630, %v8525
  %8675 = vst.msk [vmem:[#allocation5 + $0xb0] sm:$0xf] %vm8630, %v8527
  %8676 = vst.msk [vmem:[#allocation5 + $0xb4] sm:$0xf] %vm8630, %v8529
  %8677 = vst.msk [vmem:[#allocation5 + $0xb8] sm:$0xf] %vm8630, %v8531
  %8678 = vst.msk [vmem:[#allocation5 + $0xbc] sm:$0xf] %vm8630, %v8533
  %8679 = vst.msk [vmem:[#allocation5 + $0xc0] sm:$0xf] %vm8630, %v8535
  %8680 = vst.msk [vmem:[#allocation5 + $0xc4] sm:$0xf] %vm8630, %v8537
  %8681 = vst.msk [vmem:[#allocation5 + $0xc8] sm:$0xf] %vm8630, %v8539
  %8682 = vst.msk [vmem:[#allocation5 + $0xcc] sm:$0xf] %vm8630, %v8541
  %8683 = vst.msk [vmem:[#allocation5 + $0xd0] sm:$0xf] %vm8630, %v8543
  %8684 = vst.msk [vmem:[#allocation5 + $0xd4] sm:$0xf] %vm8630, %v8545
  %8685 = vst.msk [vmem:[#allocation5 + $0xd8] sm:$0xf] %vm8630, %v8547
  %8686 = vst.msk [vmem:[#allocation5 + $0xdc] sm:$0xf] %vm8630, %v8549
  %8687 = vst.msk [vmem:[#allocation5 + $0xe0] sm:$0xf] %vm8630, %v8551
  %8688 = vst.msk [vmem:[#allocation5 + $0xe4] sm:$0xf] %vm8630, %v8553
  %8689 = vst.msk [vmem:[#allocation5 + $0xe8] sm:$0xf] %vm8630, %v8555
  %8690 = vst.msk [vmem:[#allocation5 + $0xec] sm:$0xf] %vm8630, %v8557
  %8691 = vst.msk [vmem:[#allocation5 + $0xf0] sm:$0xf] %vm8630, %v8559
  %8692 = vst.msk [vmem:[#allocation5 + $0xf4] sm:$0xf] %vm8630, %v8561
  %8693 = vst.msk [vmem:[#allocation5 + $0xf8] sm:$0xf] %vm8630, %v8563
  %8694 = vst.msk [vmem:[#allocation5 + $0xfc] sm:$0xf] %vm8630, %v8565
  %v8695 = vld [vmem:[%s7796 + $0x2] sm:$0xff]
  %v8696 = vld [vmem:[%s7796 + $0xa] sm:$0xff]
  %v8697 = vld [vmem:[%s7796 + $0x1a] sm:$0xff]
  %v8698 = vld [vmem:[%s7796 + $0x22] sm:$0xff]
  %v8699 = vld [vmem:[%s7796 + $0x32] sm:$0xff]
  %v8700 = vld [vmem:[%s7796 + $0x3a] sm:$0xff]
  %v8701 = vld [vmem:[%s7796 + $0x4a] sm:$0xff]
  %v8702 = vld [vmem:[%s7796 + $0x52] sm:$0xff]
  %v8703 = vld [vmem:[%s7796 + $0x62] sm:$0xff]
  %v8704 = vld [vmem:[%s7796 + $0x6a] sm:$0xff]
  %v8705 = vld [vmem:[%s7796 + $0x7a] sm:$0xff]
  %v8706 = vld [vmem:[%s7796 + $0x82] sm:$0xff]
  %v8707 = vld [vmem:[%s7796 + $0x92] sm:$0xff]
  %v8708 = vld [vmem:[%s7796 + $0x9a] sm:$0xff]
  %v8709 = vld [vmem:[%s7796 + $0xaa] sm:$0xff]
  %v8710 = vld [vmem:[%s7796 + $0xb2] sm:$0xff]
  %v8711 = vld [vmem:[%s7796 + $0xc2] sm:$0xff]
  %v8712 = vld [vmem:[%s7796 + $0xca] sm:$0xff]
  %v8713 = vld [vmem:[%s7796 + $0xda] sm:$0xff]
  %v8714 = vld [vmem:[%s7796 + $0xe2] sm:$0xff]
  %v8715 = vld [vmem:[%s7796 + $0xf2] sm:$0xff]
  %v8716 = vld [vmem:[%s7796 + $0xfa] sm:$0xff]
  %v8717 = vld [vmem:[%s7796 + $0x10a] sm:$0xff]
  %v8718 = vld [vmem:[%s7796 + $0x112] sm:$0xff]
  %v8719 = vld [vmem:[%s7796 + $0x122] sm:$0xff]
  %v8720 = vld [vmem:[%s7796 + $0x12a] sm:$0xff]
  %v8721 = vld [vmem:[%s7796 + $0x13a] sm:$0xff]
  %v8722 = vld [vmem:[%s7796 + $0x142] sm:$0xff]
  %v8723 = vld [vmem:[%s7796 + $0x152] sm:$0xff]
  %v8724 = vld [vmem:[%s7796 + $0x15a] sm:$0xff]
  %v8725 = vld [vmem:[%s7796 + $0x16a] sm:$0xff]
  %v8726 = vld [vmem:[%s7796 + $0x172] sm:$0xff]
  %v8727 = vld [vmem:[%s7796 + $0x1b2] sm:$0xff]
  %v8728 = vld [vmem:[%s7796 + $0x1ba] sm:$0xff]
  %v8729 = vld [vmem:[%s7796 + $0x1ca] sm:$0xff]
  %v8730 = vld [vmem:[%s7796 + $0x1d2] sm:$0xff]
  %v8731 = vld [vmem:[%s7796 + $0x1e2] sm:$0xff]
  %v8732 = vld [vmem:[%s7796 + $0x1ea] sm:$0xff]
  %v8733 = vld [vmem:[%s7796 + $0x1fa] sm:$0xff]
  %v8734 = vld [vmem:[%s7796 + $0x202] sm:$0xff]
  %v8735 = vld [vmem:[%s7796 + $0x212] sm:$0xff]
  %v8736 = vld [vmem:[%s7796 + $0x21a] sm:$0xff]
  %v8737 = vld [vmem:[%s7796 + $0x22a] sm:$0xff]
  %v8738 = vld [vmem:[%s7796 + $0x232] sm:$0xff]
  %v8739 = vld [vmem:[%s7796 + $0x242] sm:$0xff]
  %v8740 = vld [vmem:[%s7796 + $0x24a] sm:$0xff]
  %v8741 = vld [vmem:[%s7796 + $0x25a] sm:$0xff]
  %v8742 = vld [vmem:[%s7796 + $0x262] sm:$0xff]
  %v8743 = vld [vmem:[%s7796 + $0x272] sm:$0xff]
  %v8744 = vld [vmem:[%s7796 + $0x27a] sm:$0xff]
  %v8745 = vld [vmem:[%s7796 + $0x28a] sm:$0xff]
  %v8746 = vld [vmem:[%s7796 + $0x292] sm:$0xff]
  %v8747 = vld [vmem:[%s7796 + $0x2a2] sm:$0xff]
  %v8748 = vld [vmem:[%s7796 + $0x2aa] sm:$0xff]
  %v8749 = vld [vmem:[%s7796 + $0x2ba] sm:$0xff]
  %v8750 = vld [vmem:[%s7796 + $0x2c2] sm:$0xff]
  %v8751 = vld [vmem:[%s7796 + $0x2d2] sm:$0xff]
  %v8752 = vld [vmem:[%s7796 + $0x2da] sm:$0xff]
  %v8753 = vld [vmem:[%s7796 + $0x2ea] sm:$0xff]
  %v8754 = vld [vmem:[%s7796 + $0x2f2] sm:$0xff]
  %v8755 = vld [vmem:[%s7796 + $0x302] sm:$0xff]
  %v8756 = vld [vmem:[%s7796 + $0x30a] sm:$0xff]
  %v8757 = vld [vmem:[%s7796 + $0x31a] sm:$0xff]
  %v8758 = vld [vmem:[%s7796 + $0x322] sm:$0xff]
  %v8759 = vpack.c.bf16 %v8695, %v8695
  %v8760 = vpack.c.bf16 %v8696, %v8696
  %v8761 = vpack.c.bf16 %v8697, %v8697
  %v8762 = vpack.c.bf16 %v8698, %v8698
  %v8763 = vpack.c.bf16 %v8699, %v8699
  %v8764 = vpack.c.bf16 %v8700, %v8700
  %v8765 = vpack.c.bf16 %v8701, %v8701
  %v8766 = vpack.c.bf16 %v8702, %v8702
  %v8767 = vpack.c.bf16 %v8703, %v8703
  %v8768 = vpack.c.bf16 %v8704, %v8704
  %v8769 = vpack.c.bf16 %v8705, %v8705
  %v8770 = vpack.c.bf16 %v8706, %v8706
  %v8771 = vpack.c.bf16 %v8707, %v8707
  %v8772 = vpack.c.bf16 %v8708, %v8708
  %v8773 = vpack.c.bf16 %v8709, %v8709
  %v8774 = vpack.c.bf16 %v8710, %v8710
  %v8775 = vpack.c.bf16 %v8711, %v8711
  %v8776 = vpack.c.bf16 %v8712, %v8712
  %v8777 = vpack.c.bf16 %v8713, %v8713
  %v8778 = vpack.c.bf16 %v8714, %v8714
  %v8779 = vpack.c.bf16 %v8715, %v8715
  %v8780 = vpack.c.bf16 %v8716, %v8716
  %v8781 = vpack.c.bf16 %v8717, %v8717
  %v8782 = vpack.c.bf16 %v8718, %v8718
  %v8783 = vpack.c.bf16 %v8719, %v8719
  %v8784 = vpack.c.bf16 %v8720, %v8720
  %v8785 = vpack.c.bf16 %v8721, %v8721
  %v8786 = vpack.c.bf16 %v8722, %v8722
  %v8787 = vpack.c.bf16 %v8723, %v8723
  %v8788 = vpack.c.bf16 %v8724, %v8724
  %v8789 = vpack.c.bf16 %v8725, %v8725
  %v8790 = vpack.c.bf16 %v8726, %v8726
  %v8791 = vpack.c.bf16 %v8727, %v8727
  %v8792 = vpack.c.bf16 %v8728, %v8728
  %v8793 = vpack.c.bf16 %v8729, %v8729
  %v8794 = vpack.c.bf16 %v8730, %v8730
  %v8795 = vpack.c.bf16 %v8731, %v8731
  %v8796 = vpack.c.bf16 %v8732, %v8732
  %v8797 = vpack.c.bf16 %v8733, %v8733
  %v8798 = vpack.c.bf16 %v8734, %v8734
  %v8799 = vpack.c.bf16 %v8735, %v8735
  %v8800 = vpack.c.bf16 %v8736, %v8736
  %v8801 = vpack.c.bf16 %v8737, %v8737
  %v8802 = vpack.c.bf16 %v8738, %v8738
  %v8803 = vpack.c.bf16 %v8739, %v8739
  %v8804 = vpack.c.bf16 %v8740, %v8740
  %v8805 = vpack.c.bf16 %v8741, %v8741
  %v8806 = vpack.c.bf16 %v8742, %v8742
  %v8807 = vpack.c.bf16 %v8743, %v8743
  %v8808 = vpack.c.bf16 %v8744, %v8744
  %v8809 = vpack.c.bf16 %v8745, %v8745
  %v8810 = vpack.c.bf16 %v8746, %v8746
  %v8811 = vpack.c.bf16 %v8747, %v8747
  %v8812 = vpack.c.bf16 %v8748, %v8748
  %v8813 = vpack.c.bf16 %v8749, %v8749
  %v8814 = vpack.c.bf16 %v8750, %v8750
  %v8815 = vpack.c.bf16 %v8751, %v8751
  %v8816 = vpack.c.bf16 %v8752, %v8752
  %v8817 = vpack.c.bf16 %v8753, %v8753
  %v8818 = vpack.c.bf16 %v8754, %v8754
  %v8819 = vpack.c.bf16 %v8755, %v8755
  %v8820 = vpack.c.bf16 %v8756, %v8756
  %v8821 = vpack.c.bf16 %v8757, %v8757
  %v8822 = vpack.c.bf16 %v8758, %v8758
  %8887 = vrot.lane.b32.xlu0 %v8759, 64
  %v8888 = vpop.permute.xlu0 %8887
  %8889 = vrot.lane.b32.xlu0 %v8760, 64
  %v8890 = vpop.permute.xlu0 %8889
  %8891 = vrot.lane.b32.xlu0 %v8761, 64
  %v8892 = vpop.permute.xlu0 %8891
  %8893 = vrot.lane.b32.xlu0 %v8762, 64
  %v8894 = vpop.permute.xlu0 %8893
  %8895 = vrot.lane.b32.xlu0 %v8763, 64
  %v8896 = vpop.permute.xlu0 %8895
  %8897 = vrot.lane.b32.xlu0 %v8764, 64
  %v8898 = vpop.permute.xlu0 %8897
  %8899 = vrot.lane.b32.xlu0 %v8765, 64
  %v8900 = vpop.permute.xlu0 %8899
  %8901 = vrot.lane.b32.xlu0 %v8766, 64
  %v8902 = vpop.permute.xlu0 %8901
  %8903 = vrot.lane.b32.xlu0 %v8767, 64
  %v8904 = vpop.permute.xlu0 %8903
  %8905 = vrot.lane.b32.xlu0 %v8768, 64
  %v8906 = vpop.permute.xlu0 %8905
  %8907 = vrot.lane.b32.xlu0 %v8769, 64
  %v8908 = vpop.permute.xlu0 %8907
  %8909 = vrot.lane.b32.xlu0 %v8770, 64
  %v8910 = vpop.permute.xlu0 %8909
  %8911 = vrot.lane.b32.xlu0 %v8771, 64
  %v8912 = vpop.permute.xlu0 %8911
  %8913 = vrot.lane.b32.xlu0 %v8772, 64
  %v8914 = vpop.permute.xlu0 %8913
  %8915 = vrot.lane.b32.xlu0 %v8773, 64
  %v8916 = vpop.permute.xlu0 %8915
  %8917 = vrot.lane.b32.xlu0 %v8774, 64
  %v8918 = vpop.permute.xlu0 %8917
  %8919 = vrot.lane.b32.xlu0 %v8775, 64
  %v8920 = vpop.permute.xlu0 %8919
  %8921 = vrot.lane.b32.xlu0 %v8776, 64
  %v8922 = vpop.permute.xlu0 %8921
  %8923 = vrot.lane.b32.xlu0 %v8777, 64
  %v8924 = vpop.permute.xlu0 %8923
  %8925 = vrot.lane.b32.xlu0 %v8778, 64
  %v8926 = vpop.permute.xlu0 %8925
  %8927 = vrot.lane.b32.xlu0 %v8779, 64
  %v8928 = vpop.permute.xlu0 %8927
  %8929 = vrot.lane.b32.xlu0 %v8780, 64
  %v8930 = vpop.permute.xlu0 %8929
  %8931 = vrot.lane.b32.xlu0 %v8781, 64
  %v8932 = vpop.permute.xlu0 %8931
  %8933 = vrot.lane.b32.xlu0 %v8782, 64
  %v8934 = vpop.permute.xlu0 %8933
  %8935 = vrot.lane.b32.xlu0 %v8783, 64
  %v8936 = vpop.permute.xlu0 %8935
  %8937 = vrot.lane.b32.xlu0 %v8784, 64
  %v8938 = vpop.permute.xlu0 %8937
  %8939 = vrot.lane.b32.xlu0 %v8785, 64
  %v8940 = vpop.permute.xlu0 %8939
  %8941 = vrot.lane.b32.xlu0 %v8786, 64
  %v8942 = vpop.permute.xlu0 %8941
  %8943 = vrot.lane.b32.xlu0 %v8787, 64
  %v8944 = vpop.permute.xlu0 %8943
  %8945 = vrot.lane.b32.xlu0 %v8788, 64
  %v8946 = vpop.permute.xlu0 %8945
  %8947 = vrot.lane.b32.xlu0 %v8789, 64
  %v8948 = vpop.permute.xlu0 %8947
  %8949 = vrot.lane.b32.xlu0 %v8790, 64
  %v8950 = vpop.permute.xlu0 %8949
  %8951 = vrot.lane.b32.xlu0 %v8791, 64
  %v8952 = vpop.permute.xlu0 %8951
  %8953 = vrot.lane.b32.xlu0 %v8792, 64
  %v8954 = vpop.permute.xlu0 %8953
  %8955 = vrot.lane.b32.xlu0 %v8793, 64
  %v8956 = vpop.permute.xlu0 %8955
  %8957 = vrot.lane.b32.xlu0 %v8794, 64
  %v8958 = vpop.permute.xlu0 %8957
  %8959 = vrot.lane.b32.xlu0 %v8795, 64
  %v8960 = vpop.permute.xlu0 %8959
  %8961 = vrot.lane.b32.xlu0 %v8796, 64
  %v8962 = vpop.permute.xlu0 %8961
  %8963 = vrot.lane.b32.xlu0 %v8797, 64
  %v8964 = vpop.permute.xlu0 %8963
  %8965 = vrot.lane.b32.xlu0 %v8798, 64
  %v8966 = vpop.permute.xlu0 %8965
  %8967 = vrot.lane.b32.xlu0 %v8799, 64
  %v8968 = vpop.permute.xlu0 %8967
  %8969 = vrot.lane.b32.xlu0 %v8800, 64
  %v8970 = vpop.permute.xlu0 %8969
  %8971 = vrot.lane.b32.xlu0 %v8801, 64
  %v8972 = vpop.permute.xlu0 %8971
  %8973 = vrot.lane.b32.xlu0 %v8802, 64
  %v8974 = vpop.permute.xlu0 %8973
  %8975 = vrot.lane.b32.xlu0 %v8803, 64
  %v8976 = vpop.permute.xlu0 %8975
  %8977 = vrot.lane.b32.xlu0 %v8804, 64
  %v8978 = vpop.permute.xlu0 %8977
  %8979 = vrot.lane.b32.xlu0 %v8805, 64
  %v8980 = vpop.permute.xlu0 %8979
  %8981 = vrot.lane.b32.xlu0 %v8806, 64
  %v8982 = vpop.permute.xlu0 %8981
  %8983 = vrot.lane.b32.xlu0 %v8807, 64
  %v8984 = vpop.permute.xlu0 %8983
  %8985 = vrot.lane.b32.xlu0 %v8808, 64
  %v8986 = vpop.permute.xlu0 %8985
  %8987 = vrot.lane.b32.xlu0 %v8809, 64
  %v8988 = vpop.permute.xlu0 %8987
  %8989 = vrot.lane.b32.xlu0 %v8810, 64
  %v8990 = vpop.permute.xlu0 %8989
  %8991 = vrot.lane.b32.xlu0 %v8811, 64
  %v8992 = vpop.permute.xlu0 %8991
  %8993 = vrot.lane.b32.xlu0 %v8812, 64
  %v8994 = vpop.permute.xlu0 %8993
  %8995 = vrot.lane.b32.xlu0 %v8813, 64
  %v8996 = vpop.permute.xlu0 %8995
  %8997 = vrot.lane.b32.xlu0 %v8814, 64
  %v8998 = vpop.permute.xlu0 %8997
  %8999 = vrot.lane.b32.xlu0 %v8815, 64
  %v9000 = vpop.permute.xlu0 %8999
  %9001 = vrot.lane.b32.xlu0 %v8816, 64
  %v9002 = vpop.permute.xlu0 %9001
  %9003 = vrot.lane.b32.xlu0 %v8817, 64
  %v9004 = vpop.permute.xlu0 %9003
  %9005 = vrot.lane.b32.xlu0 %v8818, 64
  %v9006 = vpop.permute.xlu0 %9005
  %9007 = vrot.lane.b32.xlu0 %v8819, 64
  %v9008 = vpop.permute.xlu0 %9007
  %9009 = vrot.lane.b32.xlu0 %v8820, 64
  %v9010 = vpop.permute.xlu0 %9009
  %9011 = vrot.lane.b32.xlu0 %v8821, 64
  %v9012 = vpop.permute.xlu0 %9011
  %9013 = vrot.lane.b32.xlu0 %v8822, 64
  %v9014 = vpop.permute.xlu0 %9013
  %vm9079 = vcmask 585216
  %9080 = vst.msk [vmem:[#allocation5] sm:$0xf] %vm9079, %v8888
  %9081 = vst.msk [vmem:[#allocation5 + $0x4] sm:$0xf] %vm9079, %v8890
  %9082 = vst.msk [vmem:[#allocation5 + $0x8] sm:$0xf] %vm9079, %v8892
  %9083 = vst.msk [vmem:[#allocation5 + $0xc] sm:$0xf] %vm9079, %v8894
  %9084 = vst.msk [vmem:[#allocation5 + $0x10] sm:$0xf] %vm9079, %v8896
  %9085 = vst.msk [vmem:[#allocation5 + $0x14] sm:$0xf] %vm9079, %v8898
  %9086 = vst.msk [vmem:[#allocation5 + $0x18] sm:$0xf] %vm9079, %v8900
  %9087 = vst.msk [vmem:[#allocation5 + $0x1c] sm:$0xf] %vm9079, %v8902
  %9088 = vst.msk [vmem:[#allocation5 + $0x20] sm:$0xf] %vm9079, %v8904
  %9089 = vst.msk [vmem:[#allocation5 + $0x24] sm:$0xf] %vm9079, %v8906
  %9090 = vst.msk [vmem:[#allocation5 + $0x28] sm:$0xf] %vm9079, %v8908
  %9091 = vst.msk [vmem:[#allocation5 + $0x2c] sm:$0xf] %vm9079, %v8910
  %9092 = vst.msk [vmem:[#allocation5 + $0x30] sm:$0xf] %vm9079, %v8912
  %9093 = vst.msk [vmem:[#allocation5 + $0x34] sm:$0xf] %vm9079, %v8914
  %9094 = vst.msk [vmem:[#allocation5 + $0x38] sm:$0xf] %vm9079, %v8916
  %9095 = vst.msk [vmem:[#allocation5 + $0x3c] sm:$0xf] %vm9079, %v8918
  %9096 = vst.msk [vmem:[#allocation5 + $0x40] sm:$0xf] %vm9079, %v8920
  %9097 = vst.msk [vmem:[#allocation5 + $0x44] sm:$0xf] %vm9079, %v8922
  %9098 = vst.msk [vmem:[#allocation5 + $0x48] sm:$0xf] %vm9079, %v8924
  %9099 = vst.msk [vmem:[#allocation5 + $0x4c] sm:$0xf] %vm9079, %v8926
  %9100 = vst.msk [vmem:[#allocation5 + $0x50] sm:$0xf] %vm9079, %v8928
  %9101 = vst.msk [vmem:[#allocation5 + $0x54] sm:$0xf] %vm9079, %v8930
  %9102 = vst.msk [vmem:[#allocation5 + $0x58] sm:$0xf] %vm9079, %v8932
  %9103 = vst.msk [vmem:[#allocation5 + $0x5c] sm:$0xf] %vm9079, %v8934
  %9104 = vst.msk [vmem:[#allocation5 + $0x60] sm:$0xf] %vm9079, %v8936
  %9105 = vst.msk [vmem:[#allocation5 + $0x64] sm:$0xf] %vm9079, %v8938
  %9106 = vst.msk [vmem:[#allocation5 + $0x68] sm:$0xf] %vm9079, %v8940
  %9107 = vst.msk [vmem:[#allocation5 + $0x6c] sm:$0xf] %vm9079, %v8942
  %9108 = vst.msk [vmem:[#allocation5 + $0x70] sm:$0xf] %vm9079, %v8944
  %9109 = vst.msk [vmem:[#allocation5 + $0x74] sm:$0xf] %vm9079, %v8946
  %9110 = vst.msk [vmem:[#allocation5 + $0x78] sm:$0xf] %vm9079, %v8948
  %9111 = vst.msk [vmem:[#allocation5 + $0x7c] sm:$0xf] %vm9079, %v8950
  %9112 = vst.msk [vmem:[#allocation5 + $0x80] sm:$0xf] %vm9079, %v8952
  %9113 = vst.msk [vmem:[#allocation5 + $0x84] sm:$0xf] %vm9079, %v8954
  %9114 = vst.msk [vmem:[#allocation5 + $0x88] sm:$0xf] %vm9079, %v8956
  %9115 = vst.msk [vmem:[#allocation5 + $0x8c] sm:$0xf] %vm9079, %v8958
  %9116 = vst.msk [vmem:[#allocation5 + $0x90] sm:$0xf] %vm9079, %v8960
  %9117 = vst.msk [vmem:[#allocation5 + $0x94] sm:$0xf] %vm9079, %v8962
  %9118 = vst.msk [vmem:[#allocation5 + $0x98] sm:$0xf] %vm9079, %v8964
  %9119 = vst.msk [vmem:[#allocation5 + $0x9c] sm:$0xf] %vm9079, %v8966
  %9120 = vst.msk [vmem:[#allocation5 + $0xa0] sm:$0xf] %vm9079, %v8968
  %9121 = vst.msk [vmem:[#allocation5 + $0xa4] sm:$0xf] %vm9079, %v8970
  %9122 = vst.msk [vmem:[#allocation5 + $0xa8] sm:$0xf] %vm9079, %v8972
  %9123 = vst.msk [vmem:[#allocation5 + $0xac] sm:$0xf] %vm9079, %v8974
  %9124 = vst.msk [vmem:[#allocation5 + $0xb0] sm:$0xf] %vm9079, %v8976
  %9125 = vst.msk [vmem:[#allocation5 + $0xb4] sm:$0xf] %vm9079, %v8978
  %9126 = vst.msk [vmem:[#allocation5 + $0xb8] sm:$0xf] %vm9079, %v8980
  %9127 = vst.msk [vmem:[#allocation5 + $0xbc] sm:$0xf] %vm9079, %v8982
  %9128 = vst.msk [vmem:[#allocation5 + $0xc0] sm:$0xf] %vm9079, %v8984
  %9129 = vst.msk [vmem:[#allocation5 + $0xc4] sm:$0xf] %vm9079, %v8986
  %9130 = vst.msk [vmem:[#allocation5 + $0xc8] sm:$0xf] %vm9079, %v8988
  %9131 = vst.msk [vmem:[#allocation5 + $0xcc] sm:$0xf] %vm9079, %v8990
  %9132 = vst.msk [vmem:[#allocation5 + $0xd0] sm:$0xf] %vm9079, %v8992
  %9133 = vst.msk [vmem:[#allocation5 + $0xd4] sm:$0xf] %vm9079, %v8994
  %9134 = vst.msk [vmem:[#allocation5 + $0xd8] sm:$0xf] %vm9079, %v8996
  %9135 = vst.msk [vmem:[#allocation5 + $0xdc] sm:$0xf] %vm9079, %v8998
  %9136 = vst.msk [vmem:[#allocation5 + $0xe0] sm:$0xf] %vm9079, %v9000
  %9137 = vst.msk [vmem:[#allocation5 + $0xe4] sm:$0xf] %vm9079, %v9002
  %9138 = vst.msk [vmem:[#allocation5 + $0xe8] sm:$0xf] %vm9079, %v9004
  %9139 = vst.msk [vmem:[#allocation5 + $0xec] sm:$0xf] %vm9079, %v9006
  %9140 = vst.msk [vmem:[#allocation5 + $0xf0] sm:$0xf] %vm9079, %v9008
  %9141 = vst.msk [vmem:[#allocation5 + $0xf4] sm:$0xf] %vm9079, %v9010
  %9142 = vst.msk [vmem:[#allocation5 + $0xf8] sm:$0xf] %vm9079, %v9012
  %9143 = vst.msk [vmem:[#allocation5 + $0xfc] sm:$0xf] %vm9079, %v9014
  %v9144 = vld [vmem:[#allocation5] sm:$0xf]
  %v9145 = vld [vmem:[#allocation5 + $0x4] sm:$0xf]
  %v9146 = vld [vmem:[#allocation5 + $0x8] sm:$0xf]
  %v9147 = vld [vmem:[#allocation5 + $0xc] sm:$0xf]
  %v9148 = vld [vmem:[#allocation5 + $0x10] sm:$0xf]
  %v9149 = vld [vmem:[#allocation5 + $0x14] sm:$0xf]
  %v9150 = vld [vmem:[#allocation5 + $0x18] sm:$0xf]
  %v9151 = vld [vmem:[#allocation5 + $0x1c] sm:$0xf]
  %v9152 = vld [vmem:[#allocation5 + $0x20] sm:$0xf]
  %v9153 = vld [vmem:[#allocation5 + $0x24] sm:$0xf]
  %v9154 = vld [vmem:[#allocation5 + $0x28] sm:$0xf]
  %v9155 = vld [vmem:[#allocation5 + $0x2c] sm:$0xf]
  %v9156 = vld [vmem:[#allocation5 + $0x30] sm:$0xf]
  %v9157 = vld [vmem:[#allocation5 + $0x34] sm:$0xf]
  %v9158 = vld [vmem:[#allocation5 + $0x38] sm:$0xf]
  %v9159 = vld [vmem:[#allocation5 + $0x3c] sm:$0xf]
  %v9160 = vld [vmem:[#allocation5 + $0x40] sm:$0xf]
  %v9161 = vld [vmem:[#allocation5 + $0x44] sm:$0xf]
  %v9162 = vld [vmem:[#allocation5 + $0x48] sm:$0xf]
  %v9163 = vld [vmem:[#allocation5 + $0x4c] sm:$0xf]
  %v9164 = vld [vmem:[#allocation5 + $0x50] sm:$0xf]
  %v9165 = vld [vmem:[#allocation5 + $0x54] sm:$0xf]
  %v9166 = vld [vmem:[#allocation5 + $0x58] sm:$0xf]
  %v9167 = vld [vmem:[#allocation5 + $0x5c] sm:$0xf]
  %v9168 = vld [vmem:[#allocation5 + $0x60] sm:$0xf]
  %v9169 = vld [vmem:[#allocation5 + $0x64] sm:$0xf]
  %v9170 = vld [vmem:[#allocation5 + $0x68] sm:$0xf]
  %v9171 = vld [vmem:[#allocation5 + $0x6c] sm:$0xf]
  %v9172 = vld [vmem:[#allocation5 + $0x70] sm:$0xf]
  %v9173 = vld [vmem:[#allocation5 + $0x74] sm:$0xf]
  %v9174 = vld [vmem:[#allocation5 + $0x78] sm:$0xf]
  %v9175 = vld [vmem:[#allocation5 + $0x7c] sm:$0xf]
  %v9176 = vld [vmem:[#allocation5 + $0x80] sm:$0xf]
  %v9177 = vld [vmem:[#allocation5 + $0x84] sm:$0xf]
  %v9178 = vld [vmem:[#allocation5 + $0x88] sm:$0xf]
  %v9179 = vld [vmem:[#allocation5 + $0x8c] sm:$0xf]
  %v9180 = vld [vmem:[#allocation5 + $0x90] sm:$0xf]
  %v9181 = vld [vmem:[#allocation5 + $0x94] sm:$0xf]
  %v9182 = vld [vmem:[#allocation5 + $0x98] sm:$0xf]
  %v9183 = vld [vmem:[#allocation5 + $0x9c] sm:$0xf]
  %v9184 = vld [vmem:[#allocation5 + $0xa0] sm:$0xf]
  %v9185 = vld [vmem:[#allocation5 + $0xa4] sm:$0xf]
  %v9186 = vld [vmem:[#allocation5 + $0xa8] sm:$0xf]
  %v9187 = vld [vmem:[#allocation5 + $0xac] sm:$0xf]
  %v9188 = vld [vmem:[#allocation5 + $0xb0] sm:$0xf]
  %v9189 = vld [vmem:[#allocation5 + $0xb4] sm:$0xf]
  %v9190 = vld [vmem:[#allocation5 + $0xb8] sm:$0xf]
  %v9191 = vld [vmem:[#allocation5 + $0xbc] sm:$0xf]
  %v9192 = vld [vmem:[#allocation5 + $0xc0] sm:$0xf]
  %v9193 = vld [vmem:[#allocation5 + $0xc4] sm:$0xf]
  %v9194 = vld [vmem:[#allocation5 + $0xc8] sm:$0xf]
  %v9195 = vld [vmem:[#allocation5 + $0xcc] sm:$0xf]
  %v9196 = vld [vmem:[#allocation5 + $0xd0] sm:$0xf]
  %v9197 = vld [vmem:[#allocation5 + $0xd4] sm:$0xf]
  %v9198 = vld [vmem:[#allocation5 + $0xd8] sm:$0xf]
  %v9199 = vld [vmem:[#allocation5 + $0xdc] sm:$0xf]
  %v9200 = vld [vmem:[#allocation5 + $0xe0] sm:$0xf]
  %v9201 = vld [vmem:[#allocation5 + $0xe4] sm:$0xf]
  %v9202 = vld [vmem:[#allocation5 + $0xe8] sm:$0xf]
  %v9203 = vld [vmem:[#allocation5 + $0xec] sm:$0xf]
  %v9204 = vld [vmem:[#allocation5 + $0xf0] sm:$0xf]
  %v9205 = vld [vmem:[#allocation5 + $0xf4] sm:$0xf]
  %v9206 = vld [vmem:[#allocation5 + $0xf8] sm:$0xf]
  %v9207 = vld [vmem:[#allocation5 + $0xfc] sm:$0xf]
  %v9208 = vld [vmem:[%s4] sm:$0xf]
  %v9209 = vld [vmem:[%s4 + $0x4] sm:$0xf]
  %v9210 = vld [vmem:[%s4 + $0x8] sm:$0xf]
  %v9211 = vld [vmem:[%s4 + $0xc] sm:$0xf]
  %v9212 = vld [vmem:[%s4 + $0x10] sm:$0xf]
  %v9213 = vld [vmem:[%s4 + $0x14] sm:$0xf]
  %v9214 = vld [vmem:[%s4 + $0x18] sm:$0xf]
  %v9215 = vld [vmem:[%s4 + $0x1c] sm:$0xf]
  %v9216 = vld [vmem:[%s4 + $0x20] sm:$0xf]
  %v9281 = vunpack.c.l.b16 %v9144
  %v9282 = vunpack.c.l.b16 %v9145
  %v9283 = vunpack.c.l.b16 %v9146
  %v9284 = vunpack.c.l.b16 %v9147
  %v9285 = vunpack.c.l.b16 %v9148
  %v9286 = vunpack.c.l.b16 %v9149
  %v9287 = vunpack.c.l.b16 %v9150
  %v9288 = vunpack.c.l.b16 %v9151
  %v9289 = vunpack.c.l.b16 %v9152
  %v9290 = vunpack.c.l.b16 %v9153
  %v9291 = vunpack.c.l.b16 %v9154
  %v9292 = vunpack.c.l.b16 %v9155
  %v9293 = vunpack.c.l.b16 %v9156
  %v9294 = vunpack.c.l.b16 %v9157
  %v9295 = vunpack.c.l.b16 %v9158
  %v9296 = vunpack.c.l.b16 %v9159
  %v9297 = vunpack.c.l.b16 %v9160
  %v9298 = vunpack.c.l.b16 %v9161
  %v9299 = vunpack.c.l.b16 %v9162
  %v9300 = vunpack.c.l.b16 %v9163
  %v9301 = vunpack.c.l.b16 %v9164
  %v9302 = vunpack.c.l.b16 %v9165
  %v9303 = vunpack.c.l.b16 %v9166
  %v9304 = vunpack.c.l.b16 %v9167
  %v9305 = vunpack.c.l.b16 %v9168
  %v9306 = vunpack.c.l.b16 %v9169
  %v9307 = vunpack.c.l.b16 %v9170
  %v9308 = vunpack.c.l.b16 %v9171
  %v9309 = vunpack.c.l.b16 %v9172
  %v9310 = vunpack.c.l.b16 %v9173
  %v9311 = vunpack.c.l.b16 %v9174
  %v9312 = vunpack.c.l.b16 %v9175
  %v9313 = vunpack.c.l.b16 %v9176
  %v9314 = vunpack.c.l.b16 %v9177
  %v9315 = vunpack.c.l.b16 %v9178
  %v9316 = vunpack.c.l.b16 %v9179
  %v9317 = vunpack.c.l.b16 %v9180
  %v9318 = vunpack.c.l.b16 %v9181
  %v9319 = vunpack.c.l.b16 %v9182
  %v9320 = vunpack.c.l.b16 %v9183
  %v9321 = vunpack.c.l.b16 %v9184
  %v9322 = vunpack.c.l.b16 %v9185
  %v9323 = vunpack.c.l.b16 %v9186
  %v9324 = vunpack.c.l.b16 %v9187
  %v9325 = vunpack.c.l.b16 %v9188
  %v9326 = vunpack.c.l.b16 %v9189
  %v9327 = vunpack.c.l.b16 %v9190
  %v9328 = vunpack.c.l.b16 %v9191
  %v9329 = vunpack.c.l.b16 %v9192
  %v9330 = vunpack.c.l.b16 %v9193
  %v9331 = vunpack.c.l.b16 %v9194
  %v9332 = vunpack.c.l.b16 %v9195
  %v9333 = vunpack.c.l.b16 %v9196
  %v9334 = vunpack.c.l.b16 %v9197
  %v9335 = vunpack.c.l.b16 %v9198
  %v9336 = vunpack.c.l.b16 %v9199
  %v9337 = vunpack.c.l.b16 %v9200
  %v9338 = vunpack.c.l.b16 %v9201
  %v9339 = vunpack.c.l.b16 %v9202
  %v9340 = vunpack.c.l.b16 %v9203
  %v9341 = vunpack.c.l.b16 %v9204
  %v9342 = vunpack.c.l.b16 %v9205
  %v9343 = vunpack.c.l.b16 %v9206
  %v9344 = vunpack.c.l.b16 %v9207
  %v9345 = vpack.c.b16 %v9282, %v9281
  %v9346 = vpack.c.b16 %v9284, %v9283
  %v9347 = vpack.c.b16 %v9286, %v9285
  %v9348 = vpack.c.b16 %v9288, %v9287
  %v9349 = vpack.c.b16 %v9290, %v9289
  %v9350 = vpack.c.b16 %v9292, %v9291
  %v9351 = vpack.c.b16 %v9294, %v9293
  %v9352 = vpack.c.b16 %v9296, %v9295
  %v9353 = vpack.c.b16 %v9298, %v9297
  %v9354 = vpack.c.b16 %v9300, %v9299
  %v9355 = vpack.c.b16 %v9302, %v9301
  %v9356 = vpack.c.b16 %v9304, %v9303
  %v9357 = vpack.c.b16 %v9306, %v9305
  %v9358 = vpack.c.b16 %v9308, %v9307
  %v9359 = vpack.c.b16 %v9310, %v9309
  %v9360 = vpack.c.b16 %v9312, %v9311
  %v9361 = vpack.c.b16 %v9314, %v9313
  %v9362 = vpack.c.b16 %v9316, %v9315
  %v9363 = vpack.c.b16 %v9318, %v9317
  %v9364 = vpack.c.b16 %v9320, %v9319
  %v9365 = vpack.c.b16 %v9322, %v9321
  %v9366 = vpack.c.b16 %v9324, %v9323
  %v9367 = vpack.c.b16 %v9326, %v9325
  %v9368 = vpack.c.b16 %v9328, %v9327
  %v9369 = vpack.c.b16 %v9330, %v9329
  %v9370 = vpack.c.b16 %v9332, %v9331
  %v9371 = vpack.c.b16 %v9334, %v9333
  %v9372 = vpack.c.b16 %v9336, %v9335
  %v9373 = vpack.c.b16 %v9338, %v9337
  %v9374 = vpack.c.b16 %v9340, %v9339
  %v9375 = vpack.c.b16 %v9342, %v9341
  %v9376 = vpack.c.b16 %v9344, %v9343
  %v9386 = vunpack.c.l.b16 %v9208
  %v9387 = vunpack.c.l.b16 %v9209
  %v9388 = vunpack.c.l.b16 %v9210
  %v9389 = vunpack.c.l.b16 %v9211
  %v9390 = vunpack.c.l.b16 %v9212
  %v9391 = vunpack.c.l.b16 %v9213
  %v9392 = vunpack.c.l.b16 %v9214
  %v9393 = vunpack.c.l.b16 %v9215
  %v9394 = vunpack.c.l.b16 %v9216
  %v9395 = vpack.c.b16 %v9387, %v9386
  %v9396 = vpack.c.b16 %v9389, %v9388
  %v9397 = vpack.c.b16 %v9391, %v9390
  %v9398 = vpack.c.b16 %v9393, %v9392
  %v9399 = vpack.c.b16 %v9394, %v9394
  %vm9404 = vcmask 588800
  %v9406 = vsel %vm9404, %v9345, 0
  %v9409 = vsel %vm9404, %v9346, 0
  %v9412 = vsel %vm9404, %v9347, 0
  %v9415 = vsel %vm9404, %v9348, 0
  %v9418 = vsel %vm9404, %v9349, 0
  %v9421 = vsel %vm9404, %v9350, 0
  %v9424 = vsel %vm9404, %v9351, 0
  %v9427 = vsel %vm9404, %v9352, 0
  %v9430 = vsel %vm9404, %v9353, 0
  %v9433 = vsel %vm9404, %v9354, 0
  %v9436 = vsel %vm9404, %v9355, 0
  %v9439 = vsel %vm9404, %v9356, 0
  %v9442 = vsel %vm9404, %v9357, 0
  %v9445 = vsel %vm9404, %v9358, 0
  %v9448 = vsel %vm9404, %v9359, 0
  %v9451 = vsel %vm9404, %v9360, 0
  %v9454 = vsel %vm9404, %v9361, 0
  %v9457 = vsel %vm9404, %v9362, 0
  %v9460 = vsel %vm9404, %v9363, 0
  %v9463 = vsel %vm9404, %v9364, 0
  %v9466 = vsel %vm9404, %v9365, 0
  %v9469 = vsel %vm9404, %v9366, 0
  %v9472 = vsel %vm9404, %v9367, 0
  %v9475 = vsel %vm9404, %v9368, 0
  %v9478 = vsel %vm9404, %v9369, 0
  %v9481 = vsel %vm9404, %v9370, 0
  %v9484 = vsel %vm9404, %v9371, 0
  %v9487 = vsel %vm9404, %v9372, 0
  %v9490 = vsel %vm9404, %v9373, 0
  %v9493 = vsel %vm9404, %v9374, 0
  %v9496 = vsel %vm9404, %v9375, 0
  %v9499 = vsel %vm9404, %v9376, 0
  %vm9501 = vcmask 1043456
  %v9503 = vsel %vm9501, %v9399, 0
  %9505 = vmatpush.bf16.msra.mxu0 0
  %9506 = vmatpush.bf16.msra.mxu0 0
  %9507 = vmatpush.bf16.msra.mxu0 0
  %9508 = vmatpush.bf16.msra.mxu0 %v9503
  %9509 = vmatpush.bf16.msra.mxu0 %v9398
  %9510 = vmatpush.bf16.msra.mxu0 %v9397
  %9511 = vmatpush.bf16.msra.mxu0 %v9396
  %9512 = vmatpush.bf16.msra.mxu0 %v9395
  %9513 = vmatmul.bf16.gmra.mxu0 %v9406
  %v9514 = vpop.f32.mrf.mxu0
  %v9515 = vadd.f32 0.0, %v9514
  %v9516 = vpop.f32.mrf.mxu0
  %v9517 = vadd.f32 0.0, %v9516
  %9518 = vmatmul.bf16.gmra.mxu0 %v9409
  %v9519 = vpop.f32.mrf.mxu0
  %v9520 = vadd.f32 0.0, %v9519
  %v9521 = vpop.f32.mrf.mxu0
  %v9522 = vadd.f32 0.0, %v9521
  %9523 = vmatmul.bf16.gmra.mxu0 %v9412
  %v9524 = vpop.f32.mrf.mxu0
  %v9525 = vadd.f32 0.0, %v9524
  %v9526 = vpop.f32.mrf.mxu0
  %v9527 = vadd.f32 0.0, %v9526
  %9528 = vmatmul.bf16.gmra.mxu0 %v9415
  %v9529 = vpop.f32.mrf.mxu0
  %v9530 = vadd.f32 0.0, %v9529
  %v9531 = vpop.f32.mrf.mxu0
  %v9532 = vadd.f32 0.0, %v9531
  %9533 = vmatmul.bf16.gmra.mxu0 %v9418
  %v9534 = vpop.f32.mrf.mxu0
  %v9535 = vadd.f32 0.0, %v9534
  %v9536 = vpop.f32.mrf.mxu0
  %v9537 = vadd.f32 0.0, %v9536
  %9538 = vmatmul.bf16.gmra.mxu0 %v9421
  %v9539 = vpop.f32.mrf.mxu0
  %v9540 = vadd.f32 0.0, %v9539
  %v9541 = vpop.f32.mrf.mxu0
  %v9542 = vadd.f32 0.0, %v9541
  %9543 = vmatmul.bf16.gmra.mxu0 %v9424
  %v9544 = vpop.f32.mrf.mxu0
  %v9545 = vadd.f32 0.0, %v9544
  %v9546 = vpop.f32.mrf.mxu0
  %v9547 = vadd.f32 0.0, %v9546
  %9548 = vmatmul.bf16.gmra.mxu0 %v9427
  %v9549 = vpop.f32.mrf.mxu0
  %v9550 = vadd.f32 0.0, %v9549
  %v9551 = vpop.f32.mrf.mxu0
  %v9552 = vadd.f32 0.0, %v9551
  %9553 = vmatmul.bf16.gmra.mxu0 %v9430
  %v9554 = vpop.f32.mrf.mxu0
  %v9555 = vadd.f32 0.0, %v9554
  %v9556 = vpop.f32.mrf.mxu0
  %v9557 = vadd.f32 0.0, %v9556
  %9558 = vmatmul.bf16.gmra.mxu0 %v9433
  %v9559 = vpop.f32.mrf.mxu0
  %v9560 = vadd.f32 0.0, %v9559
  %v9561 = vpop.f32.mrf.mxu0
  %v9562 = vadd.f32 0.0, %v9561
  %9563 = vmatmul.bf16.gmra.mxu0 %v9436
  %v9564 = vpop.f32.mrf.mxu0
  %v9565 = vadd.f32 0.0, %v9564
  %v9566 = vpop.f32.mrf.mxu0
  %v9567 = vadd.f32 0.0, %v9566
  %9568 = vmatmul.bf16.gmra.mxu0 %v9439
  %v9569 = vpop.f32.mrf.mxu0
  %v9570 = vadd.f32 0.0, %v9569
  %v9571 = vpop.f32.mrf.mxu0
  %v9572 = vadd.f32 0.0, %v9571
  %9573 = vmatmul.bf16.gmra.mxu0 %v9442
  %v9574 = vpop.f32.mrf.mxu0
  %v9575 = vadd.f32 0.0, %v9574
  %v9576 = vpop.f32.mrf.mxu0
  %v9577 = vadd.f32 0.0, %v9576
  %9578 = vmatmul.bf16.gmra.mxu0 %v9445
  %v9579 = vpop.f32.mrf.mxu0
  %v9580 = vadd.f32 0.0, %v9579
  %v9581 = vpop.f32.mrf.mxu0
  %v9582 = vadd.f32 0.0, %v9581
  %9583 = vmatmul.bf16.gmra.mxu0 %v9448
  %v9584 = vpop.f32.mrf.mxu0
  %v9585 = vadd.f32 0.0, %v9584
  %v9586 = vpop.f32.mrf.mxu0
  %v9587 = vadd.f32 0.0, %v9586
  %9588 = vmatmul.bf16.gmra.mxu0 %v9451
  %v9589 = vpop.f32.mrf.mxu0
  %v9590 = vadd.f32 0.0, %v9589
  %v9591 = vpop.f32.mrf.mxu0
  %v9592 = vadd.f32 0.0, %v9591
  %9593 = vmatmul.bf16.gmra.mxu0 %v9454
  %v9594 = vpop.f32.mrf.mxu0
  %v9595 = vadd.f32 0.0, %v9594
  %v9596 = vpop.f32.mrf.mxu0
  %v9597 = vadd.f32 0.0, %v9596
  %9598 = vmatmul.bf16.gmra.mxu0 %v9457
  %v9599 = vpop.f32.mrf.mxu0
  %v9600 = vadd.f32 0.0, %v9599
  %v9601 = vpop.f32.mrf.mxu0
  %v9602 = vadd.f32 0.0, %v9601
  %9603 = vmatmul.bf16.gmra.mxu0 %v9460
  %v9604 = vpop.f32.mrf.mxu0
  %v9605 = vadd.f32 0.0, %v9604
  %v9606 = vpop.f32.mrf.mxu0
  %v9607 = vadd.f32 0.0, %v9606
  %9608 = vmatmul.bf16.gmra.mxu0 %v9463
  %v9609 = vpop.f32.mrf.mxu0
  %v9610 = vadd.f32 0.0, %v9609
  %v9611 = vpop.f32.mrf.mxu0
  %v9612 = vadd.f32 0.0, %v9611
  %9613 = vmatmul.bf16.gmra.mxu0 %v9466
  %v9614 = vpop.f32.mrf.mxu0
  %v9615 = vadd.f32 0.0, %v9614
  %v9616 = vpop.f32.mrf.mxu0
  %v9617 = vadd.f32 0.0, %v9616
  %9618 = vmatmul.bf16.gmra.mxu0 %v9469
  %v9619 = vpop.f32.mrf.mxu0
  %v9620 = vadd.f32 0.0, %v9619
  %v9621 = vpop.f32.mrf.mxu0
  %v9622 = vadd.f32 0.0, %v9621
  %9623 = vmatmul.bf16.gmra.mxu0 %v9472
  %v9624 = vpop.f32.mrf.mxu0
  %v9625 = vadd.f32 0.0, %v9624
  %v9626 = vpop.f32.mrf.mxu0
  %v9627 = vadd.f32 0.0, %v9626
  %9628 = vmatmul.bf16.gmra.mxu0 %v9475
  %v9629 = vpop.f32.mrf.mxu0
  %v9630 = vadd.f32 0.0, %v9629
  %v9631 = vpop.f32.mrf.mxu0
  %v9632 = vadd.f32 0.0, %v9631
  %9633 = vmatmul.bf16.gmra.mxu0 %v9478
  %v9634 = vpop.f32.mrf.mxu0
  %v9635 = vadd.f32 0.0, %v9634
  %v9636 = vpop.f32.mrf.mxu0
  %v9637 = vadd.f32 0.0, %v9636
  %9638 = vmatmul.bf16.gmra.mxu0 %v9481
  %v9639 = vpop.f32.mrf.mxu0
  %v9640 = vadd.f32 0.0, %v9639
  %v9641 = vpop.f32.mrf.mxu0
  %v9642 = vadd.f32 0.0, %v9641
  %9643 = vmatmul.bf16.gmra.mxu0 %v9484
  %v9644 = vpop.f32.mrf.mxu0
  %v9645 = vadd.f32 0.0, %v9644
  %v9646 = vpop.f32.mrf.mxu0
  %v9647 = vadd.f32 0.0, %v9646
  %9648 = vmatmul.bf16.gmra.mxu0 %v9487
  %v9649 = vpop.f32.mrf.mxu0
  %v9650 = vadd.f32 0.0, %v9649
  %v9651 = vpop.f32.mrf.mxu0
  %v9652 = vadd.f32 0.0, %v9651
  %9653 = vmatmul.bf16.gmra.mxu0 %v9490
  %v9654 = vpop.f32.mrf.mxu0
  %v9655 = vadd.f32 0.0, %v9654
  %v9656 = vpop.f32.mrf.mxu0
  %v9657 = vadd.f32 0.0, %v9656
  %9658 = vmatmul.bf16.gmra.mxu0 %v9493
  %v9659 = vpop.f32.mrf.mxu0
  %v9660 = vadd.f32 0.0, %v9659
  %v9661 = vpop.f32.mrf.mxu0
  %v9662 = vadd.f32 0.0, %v9661
  %9663 = vmatmul.bf16.gmra.mxu0 %v9496
  %v9664 = vpop.f32.mrf.mxu0
  %v9665 = vadd.f32 0.0, %v9664
  %v9666 = vpop.f32.mrf.mxu0
  %v9667 = vadd.f32 0.0, %v9666
  %9668 = vmatmul.bf16.gmra.mxu0 %v9499
  %v9669 = vpop.f32.mrf.mxu0
  %v9670 = vadd.f32 0.0, %v9669
  %v9671 = vpop.f32.mrf.mxu0
  %v9672 = vadd.f32 0.0, %v9671
  %9673 = vdwg.mxu0
  %v9674 = vsel %vm4575, %v9515, 0.0
  %v9675 = vsel %vm4575, %v9517, 0.0
  %v9676 = vadd.f32 %v9674, %v9675
  %v9677 = vsel %vm4575, %v9520, 0.0
  %v9678 = vadd.f32 %v9676, %v9677
  %v9679 = vsel %vm4575, %v9522, 0.0
  %v9680 = vadd.f32 %v9678, %v9679
  %v9681 = vsel %vm4575, %v9525, 0.0
  %v9682 = vadd.f32 %v9680, %v9681
  %v9683 = vsel %vm4575, %v9527, 0.0
  %v9684 = vadd.f32 %v9682, %v9683
  %v9685 = vsel %vm4575, %v9530, 0.0
  %v9686 = vadd.f32 %v9684, %v9685
  %v9687 = vsel %vm4575, %v9532, 0.0
  %v9688 = vadd.f32 %v9686, %v9687
  %v9689 = vsel %vm4575, %v9535, 0.0
  %v9690 = vadd.f32 %v9688, %v9689
  %v9691 = vsel %vm4575, %v9537, 0.0
  %v9692 = vadd.f32 %v9690, %v9691
  %v9693 = vsel %vm4575, %v9540, 0.0
  %v9694 = vadd.f32 %v9692, %v9693
  %v9695 = vsel %vm4575, %v9542, 0.0
  %v9696 = vadd.f32 %v9694, %v9695
  %v9697 = vsel %vm4575, %v9545, 0.0
  %v9698 = vadd.f32 %v9696, %v9697
  %v9699 = vsel %vm4575, %v9547, 0.0
  %v9700 = vadd.f32 %v9698, %v9699
  %v9701 = vsel %vm4575, %v9550, 0.0
  %v9702 = vadd.f32 %v9700, %v9701
  %v9703 = vsel %vm4575, %v9552, 0.0
  %v9704 = vadd.f32 %v9702, %v9703
  %v9705 = vsel %vm4575, %v9555, 0.0
  %v9706 = vadd.f32 %v9704, %v9705
  %v9707 = vsel %vm4575, %v9557, 0.0
  %v9708 = vadd.f32 %v9706, %v9707
  %v9709 = vsel %vm4575, %v9560, 0.0
  %v9710 = vadd.f32 %v9708, %v9709
  %v9711 = vsel %vm4575, %v9562, 0.0
  %v9712 = vadd.f32 %v9710, %v9711
  %v9713 = vsel %vm4575, %v9565, 0.0
  %v9714 = vadd.f32 %v9712, %v9713
  %v9715 = vsel %vm4575, %v9567, 0.0
  %v9716 = vadd.f32 %v9714, %v9715
  %v9717 = vsel %vm4575, %v9570, 0.0
  %v9718 = vadd.f32 %v9716, %v9717
  %v9719 = vsel %vm4575, %v9572, 0.0
  %v9720 = vadd.f32 %v9718, %v9719
  %v9721 = vsel %vm4575, %v9575, 0.0
  %v9722 = vadd.f32 %v9720, %v9721
  %v9723 = vsel %vm4575, %v9577, 0.0
  %v9724 = vadd.f32 %v9722, %v9723
  %v9725 = vsel %vm4575, %v9580, 0.0
  %v9726 = vadd.f32 %v9724, %v9725
  %v9727 = vsel %vm4575, %v9582, 0.0
  %v9728 = vadd.f32 %v9726, %v9727
  %v9729 = vsel %vm4575, %v9585, 0.0
  %v9730 = vadd.f32 %v9728, %v9729
  %v9731 = vsel %vm4575, %v9587, 0.0
  %v9732 = vadd.f32 %v9730, %v9731
  %v9733 = vsel %vm4575, %v9590, 0.0
  %v9734 = vadd.f32 %v9732, %v9733
  %v9735 = vsel %vm4575, %v9592, 0.0
  %v9736 = vadd.f32 %v9734, %v9735
  %v9737 = vsel %vm4575, %v9595, 0.0
  %v9738 = vadd.f32 %v9736, %v9737
  %v9739 = vsel %vm4575, %v9597, 0.0
  %v9740 = vadd.f32 %v9738, %v9739
  %v9741 = vsel %vm4575, %v9600, 0.0
  %v9742 = vadd.f32 %v9740, %v9741
  %v9743 = vsel %vm4575, %v9602, 0.0
  %v9744 = vadd.f32 %v9742, %v9743
  %v9745 = vsel %vm4575, %v9605, 0.0
  %v9746 = vadd.f32 %v9744, %v9745
  %v9747 = vsel %vm4575, %v9607, 0.0
  %v9748 = vadd.f32 %v9746, %v9747
  %v9749 = vsel %vm4575, %v9610, 0.0
  %v9750 = vadd.f32 %v9748, %v9749
  %v9751 = vsel %vm4575, %v9612, 0.0
  %v9752 = vadd.f32 %v9750, %v9751
  %v9753 = vsel %vm4575, %v9615, 0.0
  %v9754 = vadd.f32 %v9752, %v9753
  %v9755 = vsel %vm4575, %v9617, 0.0
  %v9756 = vadd.f32 %v9754, %v9755
  %v9757 = vsel %vm4575, %v9620, 0.0
  %v9758 = vadd.f32 %v9756, %v9757
  %v9759 = vsel %vm4575, %v9622, 0.0
  %v9760 = vadd.f32 %v9758, %v9759
  %v9761 = vsel %vm4575, %v9625, 0.0
  %v9762 = vadd.f32 %v9760, %v9761
  %v9763 = vsel %vm4575, %v9627, 0.0
  %v9764 = vadd.f32 %v9762, %v9763
  %v9765 = vsel %vm4575, %v9630, 0.0
  %v9766 = vadd.f32 %v9764, %v9765
  %v9767 = vsel %vm4575, %v9632, 0.0
  %v9768 = vadd.f32 %v9766, %v9767
  %v9769 = vsel %vm4575, %v9635, 0.0
  %v9770 = vadd.f32 %v9768, %v9769
  %v9771 = vsel %vm4575, %v9637, 0.0
  %v9772 = vadd.f32 %v9770, %v9771
  %v9773 = vsel %vm4575, %v9640, 0.0
  %v9774 = vadd.f32 %v9772, %v9773
  %v9775 = vsel %vm4575, %v9642, 0.0
  %v9776 = vadd.f32 %v9774, %v9775
  %v9777 = vsel %vm4575, %v9645, 0.0
  %v9778 = vadd.f32 %v9776, %v9777
  %v9779 = vsel %vm4575, %v9647, 0.0
  %v9780 = vadd.f32 %v9778, %v9779
  %v9781 = vsel %vm4575, %v9650, 0.0
  %v9782 = vadd.f32 %v9780, %v9781
  %v9783 = vsel %vm4575, %v9652, 0.0
  %v9784 = vadd.f32 %v9782, %v9783
  %v9785 = vsel %vm4575, %v9655, 0.0
  %v9786 = vadd.f32 %v9784, %v9785
  %v9787 = vsel %vm4575, %v9657, 0.0
  %v9788 = vadd.f32 %v9786, %v9787
  %v9789 = vsel %vm4575, %v9660, 0.0
  %v9790 = vadd.f32 %v9788, %v9789
  %v9791 = vsel %vm4575, %v9662, 0.0
  %v9792 = vadd.f32 %v9790, %v9791
  %v9793 = vsel %vm4575, %v9665, 0.0
  %v9794 = vadd.f32 %v9792, %v9793
  %v9795 = vsel %vm4575, %v9667, 0.0
  %v9796 = vadd.f32 %v9794, %v9795
  %v9797 = vsel %vm4575, %v9670, 0.0
  %v9798 = vadd.f32 %v9796, %v9797
  %v9799 = vsel %vm4575, %v9672, 0.0
  %v9800 = vadd.f32 %v9798, %v9799
  %v9801 = vrot.slane %v9800, 4
  %v9802 = vadd.f32 %v9800, %v9801
  %v9803 = vrot.slane %v9802, 2
  %v9804 = vadd.f32 %v9802, %v9803
  %v9805 = vrot.slane %v9804, 1
  %v9806 = vadd.f32 %v9804, %v9805
  %v9807 = vmul.f32 %v9515, %v9515
  %v9808 = vmul.f32 %v9517, %v9517
  %v9809 = vmul.f32 %v9520, %v9520
  %v9810 = vmul.f32 %v9522, %v9522
  %v9811 = vmul.f32 %v9525, %v9525
  %v9812 = vmul.f32 %v9527, %v9527
  %v9813 = vmul.f32 %v9530, %v9530
  %v9814 = vmul.f32 %v9532, %v9532
  %v9815 = vmul.f32 %v9535, %v9535
  %v9816 = vmul.f32 %v9537, %v9537
  %v9817 = vmul.f32 %v9540, %v9540
  %v9818 = vmul.f32 %v9542, %v9542
  %v9819 = vmul.f32 %v9545, %v9545
  %v9820 = vmul.f32 %v9547, %v9547
  %v9821 = vmul.f32 %v9550, %v9550
  %v9822 = vmul.f32 %v9552, %v9552
  %v9823 = vmul.f32 %v9555, %v9555
  %v9824 = vmul.f32 %v9557, %v9557
  %v9825 = vmul.f32 %v9560, %v9560
  %v9826 = vmul.f32 %v9562, %v9562
  %v9827 = vmul.f32 %v9565, %v9565
  %v9828 = vmul.f32 %v9567, %v9567
  %v9829 = vmul.f32 %v9570, %v9570
  %v9830 = vmul.f32 %v9572, %v9572
  %v9831 = vmul.f32 %v9575, %v9575
  %v9832 = vmul.f32 %v9577, %v9577
  %v9833 = vmul.f32 %v9580, %v9580
  %v9834 = vmul.f32 %v9582, %v9582
  %v9835 = vmul.f32 %v9585, %v9585
  %v9836 = vmul.f32 %v9587, %v9587
  %v9837 = vmul.f32 %v9590, %v9590
  %v9838 = vmul.f32 %v9592, %v9592
  %v9839 = vmul.f32 %v9595, %v9595
  %v9840 = vmul.f32 %v9597, %v9597
  %v9841 = vmul.f32 %v9600, %v9600
  %v9842 = vmul.f32 %v9602, %v9602
  %v9843 = vmul.f32 %v9605, %v9605
  %v9844 = vmul.f32 %v9607, %v9607
  %v9845 = vmul.f32 %v9610, %v9610
  %v9846 = vmul.f32 %v9612, %v9612
  %v9847 = vmul.f32 %v9615, %v9615
  %v9848 = vmul.f32 %v9617, %v9617
  %v9849 = vmul.f32 %v9620, %v9620
  %v9850 = vmul.f32 %v9622, %v9622
  %v9851 = vmul.f32 %v9625, %v9625
  %v9852 = vmul.f32 %v9627, %v9627
  %v9853 = vmul.f32 %v9630, %v9630
  %v9854 = vmul.f32 %v9632, %v9632
  %v9855 = vmul.f32 %v9635, %v9635
  %v9856 = vmul.f32 %v9637, %v9637
  %v9857 = vmul.f32 %v9640, %v9640
  %v9858 = vmul.f32 %v9642, %v9642
  %v9859 = vmul.f32 %v9645, %v9645
  %v9860 = vmul.f32 %v9647, %v9647
  %v9861 = vmul.f32 %v9650, %v9650
  %v9862 = vmul.f32 %v9652, %v9652
  %v9863 = vmul.f32 %v9655, %v9655
  %v9864 = vmul.f32 %v9657, %v9657
  %v9865 = vmul.f32 %v9660, %v9660
  %v9866 = vmul.f32 %v9662, %v9662
  %v9867 = vmul.f32 %v9665, %v9665
  %v9868 = vmul.f32 %v9667, %v9667
  %v9869 = vmul.f32 %v9670, %v9670
  %v9870 = vmul.f32 %v9672, %v9672
  %v9871 = vsel %vm4575, %v9807, 0.0
  %v9872 = vsel %vm4575, %v9808, 0.0
  %v9873 = vadd.f32 %v9871, %v9872
  %v9874 = vsel %vm4575, %v9809, 0.0
  %v9875 = vadd.f32 %v9873, %v9874
  %v9876 = vsel %vm4575, %v9810, 0.0
  %v9877 = vadd.f32 %v9875, %v9876
  %v9878 = vsel %vm4575, %v9811, 0.0
  %v9879 = vadd.f32 %v9877, %v9878
  %v9880 = vsel %vm4575, %v9812, 0.0
  %v9881 = vadd.f32 %v9879, %v9880
  %v9882 = vsel %vm4575, %v9813, 0.0
  %v9883 = vadd.f32 %v9881, %v9882
  %v9884 = vsel %vm4575, %v9814, 0.0
  %v9885 = vadd.f32 %v9883, %v9884
  %v9886 = vsel %vm4575, %v9815, 0.0
  %v9887 = vadd.f32 %v9885, %v9886
  %v9888 = vsel %vm4575, %v9816, 0.0
  %v9889 = vadd.f32 %v9887, %v9888
  %v9890 = vsel %vm4575, %v9817, 0.0
  %v9891 = vadd.f32 %v9889, %v9890
  %v9892 = vsel %vm4575, %v9818, 0.0
  %v9893 = vadd.f32 %v9891, %v9892
  %v9894 = vsel %vm4575, %v9819, 0.0
  %v9895 = vadd.f32 %v9893, %v9894
  %v9896 = vsel %vm4575, %v9820, 0.0
  %v9897 = vadd.f32 %v9895, %v9896
  %v9898 = vsel %vm4575, %v9821, 0.0
  %v9899 = vadd.f32 %v9897, %v9898
  %v9900 = vsel %vm4575, %v9822, 0.0
  %v9901 = vadd.f32 %v9899, %v9900
  %v9902 = vsel %vm4575, %v9823, 0.0
  %v9903 = vadd.f32 %v9901, %v9902
  %v9904 = vsel %vm4575, %v9824, 0.0
  %v9905 = vadd.f32 %v9903, %v9904
  %v9906 = vsel %vm4575, %v9825, 0.0
  %v9907 = vadd.f32 %v9905, %v9906
  %v9908 = vsel %vm4575, %v9826, 0.0
  %v9909 = vadd.f32 %v9907, %v9908
  %v9910 = vsel %vm4575, %v9827, 0.0
  %v9911 = vadd.f32 %v9909, %v9910
  %v9912 = vsel %vm4575, %v9828, 0.0
  %v9913 = vadd.f32 %v9911, %v9912
  %v9914 = vsel %vm4575, %v9829, 0.0
  %v9915 = vadd.f32 %v9913, %v9914
  %v9916 = vsel %vm4575, %v9830, 0.0
  %v9917 = vadd.f32 %v9915, %v9916
  %v9918 = vsel %vm4575, %v9831, 0.0
  %v9919 = vadd.f32 %v9917, %v9918
  %v9920 = vsel %vm4575, %v9832, 0.0
  %v9921 = vadd.f32 %v9919, %v9920
  %v9922 = vsel %vm4575, %v9833, 0.0
  %v9923 = vadd.f32 %v9921, %v9922
  %v9924 = vsel %vm4575, %v9834, 0.0
  %v9925 = vadd.f32 %v9923, %v9924
  %v9926 = vsel %vm4575, %v9835, 0.0
  %v9927 = vadd.f32 %v9925, %v9926
  %v9928 = vsel %vm4575, %v9836, 0.0
  %v9929 = vadd.f32 %v9927, %v9928
  %v9930 = vsel %vm4575, %v9837, 0.0
  %v9931 = vadd.f32 %v9929, %v9930
  %v9932 = vsel %vm4575, %v9838, 0.0
  %v9933 = vadd.f32 %v9931, %v9932
  %v9934 = vsel %vm4575, %v9839, 0.0
  %v9935 = vadd.f32 %v9933, %v9934
  %v9936 = vsel %vm4575, %v9840, 0.0
  %v9937 = vadd.f32 %v9935, %v9936
  %v9938 = vsel %vm4575, %v9841, 0.0
  %v9939 = vadd.f32 %v9937, %v9938
  %v9940 = vsel %vm4575, %v9842, 0.0
  %v9941 = vadd.f32 %v9939, %v9940
  %v9942 = vsel %vm4575, %v9843, 0.0
  %v9943 = vadd.f32 %v9941, %v9942
  %v9944 = vsel %vm4575, %v9844, 0.0
  %v9945 = vadd.f32 %v9943, %v9944
  %v9946 = vsel %vm4575, %v9845, 0.0
  %v9947 = vadd.f32 %v9945, %v9946
  %v9948 = vsel %vm4575, %v9846, 0.0
  %v9949 = vadd.f32 %v9947, %v9948
  %v9950 = vsel %vm4575, %v9847, 0.0
  %v9951 = vadd.f32 %v9949, %v9950
  %v9952 = vsel %vm4575, %v9848, 0.0
  %v9953 = vadd.f32 %v9951, %v9952
  %v9954 = vsel %vm4575, %v9849, 0.0
  %v9955 = vadd.f32 %v9953, %v9954
  %v9956 = vsel %vm4575, %v9850, 0.0
  %v9957 = vadd.f32 %v9955, %v9956
  %v9958 = vsel %vm4575, %v9851, 0.0
  %v9959 = vadd.f32 %v9957, %v9958
  %v9960 = vsel %vm4575, %v9852, 0.0
  %v9961 = vadd.f32 %v9959, %v9960
  %v9962 = vsel %vm4575, %v9853, 0.0
  %v9963 = vadd.f32 %v9961, %v9962
  %v9964 = vsel %vm4575, %v9854, 0.0
  %v9965 = vadd.f32 %v9963, %v9964
  %v9966 = vsel %vm4575, %v9855, 0.0
  %v9967 = vadd.f32 %v9965, %v9966
  %v9968 = vsel %vm4575, %v9856, 0.0
  %v9969 = vadd.f32 %v9967, %v9968
  %v9970 = vsel %vm4575, %v9857, 0.0
  %v9971 = vadd.f32 %v9969, %v9970
  %v9972 = vsel %vm4575, %v9858, 0.0
  %v9973 = vadd.f32 %v9971, %v9972
  %v9974 = vsel %vm4575, %v9859, 0.0
  %v9975 = vadd.f32 %v9973, %v9974
  %v9976 = vsel %vm4575, %v9860, 0.0
  %v9977 = vadd.f32 %v9975, %v9976
  %v9978 = vsel %vm4575, %v9861, 0.0
  %v9979 = vadd.f32 %v9977, %v9978
  %v9980 = vsel %vm4575, %v9862, 0.0
  %v9981 = vadd.f32 %v9979, %v9980
  %v9982 = vsel %vm4575, %v9863, 0.0
  %v9983 = vadd.f32 %v9981, %v9982
  %v9984 = vsel %vm4575, %v9864, 0.0
  %v9985 = vadd.f32 %v9983, %v9984
  %v9986 = vsel %vm4575, %v9865, 0.0
  %v9987 = vadd.f32 %v9985, %v9986
  %v9988 = vsel %vm4575, %v9866, 0.0
  %v9989 = vadd.f32 %v9987, %v9988
  %v9990 = vsel %vm4575, %v9867, 0.0
  %v9991 = vadd.f32 %v9989, %v9990
  %v9992 = vsel %vm4575, %v9868, 0.0
  %v9993 = vadd.f32 %v9991, %v9992
  %v9994 = vsel %vm4575, %v9869, 0.0
  %v9995 = vadd.f32 %v9993, %v9994
  %v9996 = vsel %vm4575, %v9870, 0.0
  %v9997 = vadd.f32 %v9995, %v9996
  %v9998 = vrot.slane %v9997, 4
  %v9999 = vadd.f32 %v9997, %v9998
  %v10000 = vrot.slane %v9999, 2
  %v10001 = vadd.f32 %v9999, %v10000
  %v10002 = vrot.slane %v10001, 1
  %v10003 = vadd.f32 %v10001, %v10002
  %v10004 = vmul.f32 %v9806, 0.001953125
  %v10005 = vmul.f32 %v10003, 0.001953125
  %v10006 = vmul.f32 %v10004, %v10004
  %v10007 = vsub.f32 %v10005, %v10006
  %v10008 = vadd.f32 %v10007, 1e-05
  %v10009 = vrsqrt.pop %v10008
  %v10010 = vmul.f32 %v10009, %v10008
  %v10011 = vmul.f32 %v10010, %v10009
  %v10012 = vmul.f32 0.5, %v10011
  %v10013 = vsub.f32 1.5, %v10012
  %v10014 = vmul.f32 %v10009, %v10013
  %vm10015 = vweird.f32 %v10008
  %vm10016 = vweird.f32 %v10009
  %vm10017 = vmor %vm10015, %vm10016
  %v10018 = vsel %vm10017, %v10009, %v10014
  %v10019 = vsub.f32 %v9515, %v10004
  %v10020 = vsub.f32 %v9517, %v10004
  %v10021 = vsub.f32 %v9520, %v10004
  %v10022 = vsub.f32 %v9522, %v10004
  %v10023 = vsub.f32 %v9525, %v10004
  %v10024 = vsub.f32 %v9527, %v10004
  %v10025 = vsub.f32 %v9530, %v10004
  %v10026 = vsub.f32 %v9532, %v10004
  %v10027 = vsub.f32 %v9535, %v10004
  %v10028 = vsub.f32 %v9537, %v10004
  %v10029 = vsub.f32 %v9540, %v10004
  %v10030 = vsub.f32 %v9542, %v10004
  %v10031 = vsub.f32 %v9545, %v10004
  %v10032 = vsub.f32 %v9547, %v10004
  %v10033 = vsub.f32 %v9550, %v10004
  %v10034 = vsub.f32 %v9552, %v10004
  %v10035 = vsub.f32 %v9555, %v10004
  %v10036 = vsub.f32 %v9557, %v10004
  %v10037 = vsub.f32 %v9560, %v10004
  %v10038 = vsub.f32 %v9562, %v10004
  %v10039 = vsub.f32 %v9565, %v10004
  %v10040 = vsub.f32 %v9567, %v10004
  %v10041 = vsub.f32 %v9570, %v10004
  %v10042 = vsub.f32 %v9572, %v10004
  %v10043 = vsub.f32 %v9575, %v10004
  %v10044 = vsub.f32 %v9577, %v10004
  %v10045 = vsub.f32 %v9580, %v10004
  %v10046 = vsub.f32 %v9582, %v10004
  %v10047 = vsub.f32 %v9585, %v10004
  %v10048 = vsub.f32 %v9587, %v10004
  %v10049 = vsub.f32 %v9590, %v10004
  %v10050 = vsub.f32 %v9592, %v10004
  %v10051 = vsub.f32 %v9595, %v10004
  %v10052 = vsub.f32 %v9597, %v10004
  %v10053 = vsub.f32 %v9600, %v10004
  %v10054 = vsub.f32 %v9602, %v10004
  %v10055 = vsub.f32 %v9605, %v10004
  %v10056 = vsub.f32 %v9607, %v10004
  %v10057 = vsub.f32 %v9610, %v10004
  %v10058 = vsub.f32 %v9612, %v10004
  %v10059 = vsub.f32 %v9615, %v10004
  %v10060 = vsub.f32 %v9617, %v10004
  %v10061 = vsub.f32 %v9620, %v10004
  %v10062 = vsub.f32 %v9622, %v10004
  %v10063 = vsub.f32 %v9625, %v10004
  %v10064 = vsub.f32 %v9627, %v10004
  %v10065 = vsub.f32 %v9630, %v10004
  %v10066 = vsub.f32 %v9632, %v10004
  %v10067 = vsub.f32 %v9635, %v10004
  %v10068 = vsub.f32 %v9637, %v10004
  %v10069 = vsub.f32 %v9640, %v10004
  %v10070 = vsub.f32 %v9642, %v10004
  %v10071 = vsub.f32 %v9645, %v10004
  %v10072 = vsub.f32 %v9647, %v10004
  %v10073 = vsub.f32 %v9650, %v10004
  %v10074 = vsub.f32 %v9652, %v10004
  %v10075 = vsub.f32 %v9655, %v10004
  %v10076 = vsub.f32 %v9657, %v10004
  %v10077 = vsub.f32 %v9660, %v10004
  %v10078 = vsub.f32 %v9662, %v10004
  %v10079 = vsub.f32 %v9665, %v10004
  %v10080 = vsub.f32 %v9667, %v10004
  %v10081 = vsub.f32 %v9670, %v10004
  %v10082 = vsub.f32 %v9672, %v10004
  %v10083 = vld [vmem:[%s5] sm:$0x1]
  %v10084 = vmul.f32 %v10018, %v10083
  %v10085 = vperm.slane %v10084, 0
  %v10086 = vmul.f32 %v10019, %v10085
  %v10087 = vmul.f32 %v10020, %v10085
  %v10088 = vmul.f32 %v10021, %v10085
  %v10089 = vmul.f32 %v10022, %v10085
  %v10090 = vmul.f32 %v10023, %v10085
  %v10091 = vmul.f32 %v10024, %v10085
  %v10092 = vmul.f32 %v10025, %v10085
  %v10093 = vmul.f32 %v10026, %v10085
  %v10094 = vmul.f32 %v10027, %v10085
  %v10095 = vmul.f32 %v10028, %v10085
  %v10096 = vmul.f32 %v10029, %v10085
  %v10097 = vmul.f32 %v10030, %v10085
  %v10098 = vmul.f32 %v10031, %v10085
  %v10099 = vmul.f32 %v10032, %v10085
  %v10100 = vmul.f32 %v10033, %v10085
  %v10101 = vmul.f32 %v10034, %v10085
  %v10102 = vmul.f32 %v10035, %v10085
  %v10103 = vmul.f32 %v10036, %v10085
  %v10104 = vmul.f32 %v10037, %v10085
  %v10105 = vmul.f32 %v10038, %v10085
  %v10106 = vmul.f32 %v10039, %v10085
  %v10107 = vmul.f32 %v10040, %v10085
  %v10108 = vmul.f32 %v10041, %v10085
  %v10109 = vmul.f32 %v10042, %v10085
  %v10110 = vmul.f32 %v10043, %v10085
  %v10111 = vmul.f32 %v10044, %v10085
  %v10112 = vmul.f32 %v10045, %v10085
  %v10113 = vmul.f32 %v10046, %v10085
  %v10114 = vmul.f32 %v10047, %v10085
  %v10115 = vmul.f32 %v10048, %v10085
  %v10116 = vmul.f32 %v10049, %v10085
  %v10117 = vmul.f32 %v10050, %v10085
  %v10118 = vmul.f32 %v10051, %v10085
  %v10119 = vmul.f32 %v10052, %v10085
  %v10120 = vmul.f32 %v10053, %v10085
  %v10121 = vmul.f32 %v10054, %v10085
  %v10122 = vmul.f32 %v10055, %v10085
  %v10123 = vmul.f32 %v10056, %v10085
  %v10124 = vmul.f32 %v10057, %v10085
  %v10125 = vmul.f32 %v10058, %v10085
  %v10126 = vmul.f32 %v10059, %v10085
  %v10127 = vmul.f32 %v10060, %v10085
  %v10128 = vmul.f32 %v10061, %v10085
  %v10129 = vmul.f32 %v10062, %v10085
  %v10130 = vmul.f32 %v10063, %v10085
  %v10131 = vmul.f32 %v10064, %v10085
  %v10132 = vmul.f32 %v10065, %v10085
  %v10133 = vmul.f32 %v10066, %v10085
  %v10134 = vmul.f32 %v10067, %v10085
  %v10135 = vmul.f32 %v10068, %v10085
  %v10136 = vmul.f32 %v10069, %v10085
  %v10137 = vmul.f32 %v10070, %v10085
  %v10138 = vmul.f32 %v10071, %v10085
  %v10139 = vmul.f32 %v10072, %v10085
  %v10140 = vmul.f32 %v10073, %v10085
  %v10141 = vmul.f32 %v10074, %v10085
  %v10142 = vmul.f32 %v10075, %v10085
  %v10143 = vmul.f32 %v10076, %v10085
  %v10144 = vmul.f32 %v10077, %v10085
  %v10145 = vmul.f32 %v10078, %v10085
  %v10146 = vmul.f32 %v10079, %v10085
  %v10147 = vmul.f32 %v10080, %v10085
  %v10148 = vmul.f32 %v10081, %v10085
  %v10149 = vmul.f32 %v10082, %v10085
  %v10150 = vld [vmem:[%s6] sm:$0x1]
  %v10152 = vperm.slane %v10150, 0
  %v10154 = vadd.f32 %v10086, %v10152
  %v10155 = vadd.f32 %v10087, %v10152
  %v10156 = vadd.f32 %v10088, %v10152
  %v10157 = vadd.f32 %v10089, %v10152
  %v10158 = vadd.f32 %v10090, %v10152
  %v10159 = vadd.f32 %v10091, %v10152
  %v10160 = vadd.f32 %v10092, %v10152
  %v10161 = vadd.f32 %v10093, %v10152
  %v10162 = vadd.f32 %v10094, %v10152
  %v10163 = vadd.f32 %v10095, %v10152
  %v10164 = vadd.f32 %v10096, %v10152
  %v10165 = vadd.f32 %v10097, %v10152
  %v10166 = vadd.f32 %v10098, %v10152
  %v10167 = vadd.f32 %v10099, %v10152
  %v10168 = vadd.f32 %v10100, %v10152
  %v10169 = vadd.f32 %v10101, %v10152
  %v10170 = vadd.f32 %v10102, %v10152
  %v10171 = vadd.f32 %v10103, %v10152
  %v10172 = vadd.f32 %v10104, %v10152
  %v10173 = vadd.f32 %v10105, %v10152
  %v10174 = vadd.f32 %v10106, %v10152
  %v10175 = vadd.f32 %v10107, %v10152
  %v10176 = vadd.f32 %v10108, %v10152
  %v10177 = vadd.f32 %v10109, %v10152
  %v10178 = vadd.f32 %v10110, %v10152
  %v10179 = vadd.f32 %v10111, %v10152
  %v10180 = vadd.f32 %v10112, %v10152
  %v10181 = vadd.f32 %v10113, %v10152
  %v10182 = vadd.f32 %v10114, %v10152
  %v10183 = vadd.f32 %v10115, %v10152
  %v10184 = vadd.f32 %v10116, %v10152
  %v10185 = vadd.f32 %v10117, %v10152
  %v10186 = vadd.f32 %v10118, %v10152
  %v10187 = vadd.f32 %v10119, %v10152
  %v10188 = vadd.f32 %v10120, %v10152
  %v10189 = vadd.f32 %v10121, %v10152
  %v10190 = vadd.f32 %v10122, %v10152
  %v10191 = vadd.f32 %v10123, %v10152
  %v10192 = vadd.f32 %v10124, %v10152
  %v10193 = vadd.f32 %v10125, %v10152
  %v10194 = vadd.f32 %v10126, %v10152
  %v10195 = vadd.f32 %v10127, %v10152
  %v10196 = vadd.f32 %v10128, %v10152
  %v10197 = vadd.f32 %v10129, %v10152
  %v10198 = vadd.f32 %v10130, %v10152
  %v10199 = vadd.f32 %v10131, %v10152
  %v10200 = vadd.f32 %v10132, %v10152
  %v10201 = vadd.f32 %v10133, %v10152
  %v10202 = vadd.f32 %v10134, %v10152
  %v10203 = vadd.f32 %v10135, %v10152
  %v10204 = vadd.f32 %v10136, %v10152
  %v10205 = vadd.f32 %v10137, %v10152
  %v10206 = vadd.f32 %v10138, %v10152
  %v10207 = vadd.f32 %v10139, %v10152
  %v10208 = vadd.f32 %v10140, %v10152
  %v10209 = vadd.f32 %v10141, %v10152
  %v10210 = vadd.f32 %v10142, %v10152
  %v10211 = vadd.f32 %v10143, %v10152
  %v10212 = vadd.f32 %v10144, %v10152
  %v10213 = vadd.f32 %v10145, %v10152
  %v10214 = vadd.f32 %v10146, %v10152
  %v10215 = vadd.f32 %v10147, %v10152
  %v10216 = vadd.f32 %v10148, %v10152
  %v10217 = vadd.f32 %v10149, %v10152
  %v10218 = vpack.c.bf16 %v37, %v36
  %v10219 = vpack.c.bf16 %v39, %v38
  %v10220 = vpack.c.bf16 %v41, %v40
  %v10221 = vpack.c.bf16 %v43, %v42
  %v10222 = vpack.c.bf16 %v45, %v44
  %v10223 = vpack.c.bf16 %v47, %v46
  %v10224 = vpack.c.bf16 %v49, %v48
  %v10225 = vpack.c.bf16 %v51, %v50
  %v10226 = vpack.c.bf16 %v53, %v52
  %v10227 = vpack.c.bf16 %v55, %v54
  %v10228 = vpack.c.bf16 %v57, %v56
  %v10229 = vpack.c.bf16 %v59, %v58
  %v10230 = vpack.c.bf16 %v61, %v60
  %v10231 = vpack.c.bf16 %v63, %v62
  %v10232 = vpack.c.bf16 %v65, %v64
  %v10233 = vpack.c.bf16 %v67, %v66
  %v10234 = vpack.c.bf16 %v69, %v68
  %v10235 = vpack.c.bf16 %v71, %v70
  %v10236 = vpack.c.bf16 %v73, %v72
  %v10237 = vpack.c.bf16 %v75, %v74
  %v10238 = vpack.c.bf16 %v77, %v76
  %v10239 = vpack.c.bf16 %v79, %v78
  %v10240 = vpack.c.bf16 %v81, %v80
  %v10241 = vpack.c.bf16 %v83, %v82
  %v10242 = vpack.c.bf16 %v85, %v84
  %v10243 = vpack.c.bf16 %v87, %v86
  %v10244 = vpack.c.bf16 %v89, %v88
  %v10245 = vpack.c.bf16 %v91, %v90
  %v10246 = vpack.c.bf16 %v93, %v92
  %v10247 = vpack.c.bf16 %v95, %v94
  %v10248 = vpack.c.bf16 %v97, %v96
  %v10249 = vpack.c.bf16 %v99, %v98
  %v10250 = vld [vmem:[%s7] sm:$0x3]
  %v10252 = vsel %vm100, %v10218, 0
  %v10255 = vsel %vm100, %v10219, 0
  %v10258 = vsel %vm100, %v10220, 0
  %v10261 = vsel %vm100, %v10221, 0
  %v10264 = vsel %vm100, %v10222, 0
  %v10267 = vsel %vm100, %v10223, 0
  %v10270 = vsel %vm100, %v10224, 0
  %v10273 = vsel %vm100, %v10225, 0
  %v10276 = vsel %vm100, %v10226, 0
  %v10279 = vsel %vm100, %v10227, 0
  %v10282 = vsel %vm100, %v10228, 0
  %v10285 = vsel %vm100, %v10229, 0
  %v10288 = vsel %vm100, %v10230, 0
  %v10291 = vsel %vm100, %v10231, 0
  %v10294 = vsel %vm100, %v10232, 0
  %v10297 = vsel %vm100, %v10233, 0
  %v10300 = vsel %vm100, %v10234, 0
  %v10303 = vsel %vm100, %v10235, 0
  %v10306 = vsel %vm100, %v10236, 0
  %v10309 = vsel %vm100, %v10237, 0
  %v10312 = vsel %vm100, %v10238, 0
  %v10315 = vsel %vm100, %v10239, 0
  %v10318 = vsel %vm100, %v10240, 0
  %v10321 = vsel %vm100, %v10241, 0
  %v10324 = vsel %vm100, %v10242, 0
  %v10327 = vsel %vm100, %v10243, 0
  %v10330 = vsel %vm100, %v10244, 0
  %v10333 = vsel %vm100, %v10245, 0
  %v10336 = vsel %vm100, %v10246, 0
  %v10339 = vsel %vm100, %v10247, 0
  %v10342 = vsel %vm100, %v10248, 0
  %v10345 = vsel %vm100, %v10249, 0
  %v10348 = vsel %vm4402, %v10250, 0
  %10350 = vmatpush.bf16.msra.mxu0 0
  %10351 = vmatpush.bf16.msra.mxu0 0
  %10352 = vmatpush.bf16.msra.mxu0 0
  %10353 = vmatpush.bf16.msra.mxu0 0
  %10354 = vmatpush.bf16.msra.mxu0 0
  %10355 = vmatpush.bf16.msra.mxu0 0
  %10356 = vmatpush.bf16.msra.mxu0 0
  %10357 = vmatpush.bf16.msra.mxu0 %v10348
  %10358 = vmatmul.bf16.gmra.mxu0 %v10252
  %v10359 = vpop.f32.mrf.mxu0
  %v10360 = vadd.f32 0.0, %v10359
  %v10361 = vpop.f32.mrf.mxu0
  %v10362 = vadd.f32 0.0, %v10361
  %10363 = vmatmul.bf16.gmra.mxu0 %v10255
  %v10364 = vpop.f32.mrf.mxu0
  %v10365 = vadd.f32 0.0, %v10364
  %v10366 = vpop.f32.mrf.mxu0
  %v10367 = vadd.f32 0.0, %v10366
  %10368 = vmatmul.bf16.gmra.mxu0 %v10258
  %v10369 = vpop.f32.mrf.mxu0
  %v10370 = vadd.f32 0.0, %v10369
  %v10371 = vpop.f32.mrf.mxu0
  %v10372 = vadd.f32 0.0, %v10371
  %10373 = vmatmul.bf16.gmra.mxu0 %v10261
  %v10374 = vpop.f32.mrf.mxu0
  %v10375 = vadd.f32 0.0, %v10374
  %v10376 = vpop.f32.mrf.mxu0
  %v10377 = vadd.f32 0.0, %v10376
  %10378 = vmatmul.bf16.gmra.mxu0 %v10264
  %v10379 = vpop.f32.mrf.mxu0
  %v10380 = vadd.f32 0.0, %v10379
  %v10381 = vpop.f32.mrf.mxu0
  %v10382 = vadd.f32 0.0, %v10381
  %10383 = vmatmul.bf16.gmra.mxu0 %v10267
  %v10384 = vpop.f32.mrf.mxu0
  %v10385 = vadd.f32 0.0, %v10384
  %v10386 = vpop.f32.mrf.mxu0
  %v10387 = vadd.f32 0.0, %v10386
  %10388 = vmatmul.bf16.gmra.mxu0 %v10270
  %v10389 = vpop.f32.mrf.mxu0
  %v10390 = vadd.f32 0.0, %v10389
  %v10391 = vpop.f32.mrf.mxu0
  %v10392 = vadd.f32 0.0, %v10391
  %10393 = vmatmul.bf16.gmra.mxu0 %v10273
  %v10394 = vpop.f32.mrf.mxu0
  %v10395 = vadd.f32 0.0, %v10394
  %v10396 = vpop.f32.mrf.mxu0
  %v10397 = vadd.f32 0.0, %v10396
  %10398 = vmatmul.bf16.gmra.mxu0 %v10276
  %v10399 = vpop.f32.mrf.mxu0
  %v10400 = vadd.f32 0.0, %v10399
  %v10401 = vpop.f32.mrf.mxu0
  %v10402 = vadd.f32 0.0, %v10401
  %10403 = vmatmul.bf16.gmra.mxu0 %v10279
  %v10404 = vpop.f32.mrf.mxu0
  %v10405 = vadd.f32 0.0, %v10404
  %v10406 = vpop.f32.mrf.mxu0
  %v10407 = vadd.f32 0.0, %v10406
  %10408 = vmatmul.bf16.gmra.mxu0 %v10282
  %v10409 = vpop.f32.mrf.mxu0
  %v10410 = vadd.f32 0.0, %v10409
  %v10411 = vpop.f32.mrf.mxu0
  %v10412 = vadd.f32 0.0, %v10411
  %10413 = vmatmul.bf16.gmra.mxu0 %v10285
  %v10414 = vpop.f32.mrf.mxu0
  %v10415 = vadd.f32 0.0, %v10414
  %v10416 = vpop.f32.mrf.mxu0
  %v10417 = vadd.f32 0.0, %v10416
  %10418 = vmatmul.bf16.gmra.mxu0 %v10288
  %v10419 = vpop.f32.mrf.mxu0
  %v10420 = vadd.f32 0.0, %v10419
  %v10421 = vpop.f32.mrf.mxu0
  %v10422 = vadd.f32 0.0, %v10421
  %10423 = vmatmul.bf16.gmra.mxu0 %v10291
  %v10424 = vpop.f32.mrf.mxu0
  %v10425 = vadd.f32 0.0, %v10424
  %v10426 = vpop.f32.mrf.mxu0
  %v10427 = vadd.f32 0.0, %v10426
  %10428 = vmatmul.bf16.gmra.mxu0 %v10294
  %v10429 = vpop.f32.mrf.mxu0
  %v10430 = vadd.f32 0.0, %v10429
  %v10431 = vpop.f32.mrf.mxu0
  %v10432 = vadd.f32 0.0, %v10431
  %10433 = vmatmul.bf16.gmra.mxu0 %v10297
  %v10434 = vpop.f32.mrf.mxu0
  %v10435 = vadd.f32 0.0, %v10434
  %v10436 = vpop.f32.mrf.mxu0
  %v10437 = vadd.f32 0.0, %v10436
  %10438 = vmatmul.bf16.gmra.mxu0 %v10300
  %v10439 = vpop.f32.mrf.mxu0
  %v10440 = vadd.f32 0.0, %v10439
  %v10441 = vpop.f32.mrf.mxu0
  %v10442 = vadd.f32 0.0, %v10441
  %10443 = vmatmul.bf16.gmra.mxu0 %v10303
  %v10444 = vpop.f32.mrf.mxu0
  %v10445 = vadd.f32 0.0, %v10444
  %v10446 = vpop.f32.mrf.mxu0
  %v10447 = vadd.f32 0.0, %v10446
  %10448 = vmatmul.bf16.gmra.mxu0 %v10306
  %v10449 = vpop.f32.mrf.mxu0
  %v10450 = vadd.f32 0.0, %v10449
  %v10451 = vpop.f32.mrf.mxu0
  %v10452 = vadd.f32 0.0, %v10451
  %10453 = vmatmul.bf16.gmra.mxu0 %v10309
  %v10454 = vpop.f32.mrf.mxu0
  %v10455 = vadd.f32 0.0, %v10454
  %v10456 = vpop.f32.mrf.mxu0
  %v10457 = vadd.f32 0.0, %v10456
  %10458 = vmatmul.bf16.gmra.mxu0 %v10312
  %v10459 = vpop.f32.mrf.mxu0
  %v10460 = vadd.f32 0.0, %v10459
  %v10461 = vpop.f32.mrf.mxu0
  %v10462 = vadd.f32 0.0, %v10461
  %10463 = vmatmul.bf16.gmra.mxu0 %v10315
  %v10464 = vpop.f32.mrf.mxu0
  %v10465 = vadd.f32 0.0, %v10464
  %v10466 = vpop.f32.mrf.mxu0
  %v10467 = vadd.f32 0.0, %v10466
  %10468 = vmatmul.bf16.gmra.mxu0 %v10318
  %v10469 = vpop.f32.mrf.mxu0
  %v10470 = vadd.f32 0.0, %v10469
  %v10471 = vpop.f32.mrf.mxu0
  %v10472 = vadd.f32 0.0, %v10471
  %10473 = vmatmul.bf16.gmra.mxu0 %v10321
  %v10474 = vpop.f32.mrf.mxu0
  %v10475 = vadd.f32 0.0, %v10474
  %v10476 = vpop.f32.mrf.mxu0
  %v10477 = vadd.f32 0.0, %v10476
  %10478 = vmatmul.bf16.gmra.mxu0 %v10324
  %v10479 = vpop.f32.mrf.mxu0
  %v10480 = vadd.f32 0.0, %v10479
  %v10481 = vpop.f32.mrf.mxu0
  %v10482 = vadd.f32 0.0, %v10481
  %10483 = vmatmul.bf16.gmra.mxu0 %v10327
  %v10484 = vpop.f32.mrf.mxu0
  %v10485 = vadd.f32 0.0, %v10484
  %v10486 = vpop.f32.mrf.mxu0
  %v10487 = vadd.f32 0.0, %v10486
  %10488 = vmatmul.bf16.gmra.mxu0 %v10330
  %v10489 = vpop.f32.mrf.mxu0
  %v10490 = vadd.f32 0.0, %v10489
  %v10491 = vpop.f32.mrf.mxu0
  %v10492 = vadd.f32 0.0, %v10491
  %10493 = vmatmul.bf16.gmra.mxu0 %v10333
  %v10494 = vpop.f32.mrf.mxu0
  %v10495 = vadd.f32 0.0, %v10494
  %v10496 = vpop.f32.mrf.mxu0
  %v10497 = vadd.f32 0.0, %v10496
  %10498 = vmatmul.bf16.gmra.mxu0 %v10336
  %v10499 = vpop.f32.mrf.mxu0
  %v10500 = vadd.f32 0.0, %v10499
  %v10501 = vpop.f32.mrf.mxu0
  %v10502 = vadd.f32 0.0, %v10501
  %10503 = vmatmul.bf16.gmra.mxu0 %v10339
  %v10504 = vpop.f32.mrf.mxu0
  %v10505 = vadd.f32 0.0, %v10504
  %v10506 = vpop.f32.mrf.mxu0
  %v10507 = vadd.f32 0.0, %v10506
  %10508 = vmatmul.bf16.gmra.mxu0 %v10342
  %v10509 = vpop.f32.mrf.mxu0
  %v10510 = vadd.f32 0.0, %v10509
  %v10511 = vpop.f32.mrf.mxu0
  %v10512 = vadd.f32 0.0, %v10511
  %10513 = vmatmul.bf16.gmra.mxu0 %v10345
  %v10514 = vpop.f32.mrf.mxu0
  %v10515 = vadd.f32 0.0, %v10514
  %v10516 = vpop.f32.mrf.mxu0
  %v10517 = vadd.f32 0.0, %v10516
  %10518 = vdwg.mxu0
  %v10519 = vsel %vm4575, %v10360, 0.0
  %v10520 = vsel %vm4575, %v10362, 0.0
  %v10521 = vadd.f32 %v10519, %v10520
  %v10522 = vsel %vm4575, %v10365, 0.0
  %v10523 = vadd.f32 %v10521, %v10522
  %v10524 = vsel %vm4575, %v10367, 0.0
  %v10525 = vadd.f32 %v10523, %v10524
  %v10526 = vsel %vm4575, %v10370, 0.0
  %v10527 = vadd.f32 %v10525, %v10526
  %v10528 = vsel %vm4575, %v10372, 0.0
  %v10529 = vadd.f32 %v10527, %v10528
  %v10530 = vsel %vm4575, %v10375, 0.0
  %v10531 = vadd.f32 %v10529, %v10530
  %v10532 = vsel %vm4575, %v10377, 0.0
  %v10533 = vadd.f32 %v10531, %v10532
  %v10534 = vsel %vm4575, %v10380, 0.0
  %v10535 = vadd.f32 %v10533, %v10534
  %v10536 = vsel %vm4575, %v10382, 0.0
  %v10537 = vadd.f32 %v10535, %v10536
  %v10538 = vsel %vm4575, %v10385, 0.0
  %v10539 = vadd.f32 %v10537, %v10538
  %v10540 = vsel %vm4575, %v10387, 0.0
  %v10541 = vadd.f32 %v10539, %v10540
  %v10542 = vsel %vm4575, %v10390, 0.0
  %v10543 = vadd.f32 %v10541, %v10542
  %v10544 = vsel %vm4575, %v10392, 0.0
  %v10545 = vadd.f32 %v10543, %v10544
  %v10546 = vsel %vm4575, %v10395, 0.0
  %v10547 = vadd.f32 %v10545, %v10546
  %v10548 = vsel %vm4575, %v10397, 0.0
  %v10549 = vadd.f32 %v10547, %v10548
  %v10550 = vsel %vm4575, %v10400, 0.0
  %v10551 = vadd.f32 %v10549, %v10550
  %v10552 = vsel %vm4575, %v10402, 0.0
  %v10553 = vadd.f32 %v10551, %v10552
  %v10554 = vsel %vm4575, %v10405, 0.0
  %v10555 = vadd.f32 %v10553, %v10554
  %v10556 = vsel %vm4575, %v10407, 0.0
  %v10557 = vadd.f32 %v10555, %v10556
  %v10558 = vsel %vm4575, %v10410, 0.0
  %v10559 = vadd.f32 %v10557, %v10558
  %v10560 = vsel %vm4575, %v10412, 0.0
  %v10561 = vadd.f32 %v10559, %v10560
  %v10562 = vsel %vm4575, %v10415, 0.0
  %v10563 = vadd.f32 %v10561, %v10562
  %v10564 = vsel %vm4575, %v10417, 0.0
  %v10565 = vadd.f32 %v10563, %v10564
  %v10566 = vsel %vm4575, %v10420, 0.0
  %v10567 = vadd.f32 %v10565, %v10566
  %v10568 = vsel %vm4575, %v10422, 0.0
  %v10569 = vadd.f32 %v10567, %v10568
  %v10570 = vsel %vm4575, %v10425, 0.0
  %v10571 = vadd.f32 %v10569, %v10570
  %v10572 = vsel %vm4575, %v10427, 0.0
  %v10573 = vadd.f32 %v10571, %v10572
  %v10574 = vsel %vm4575, %v10430, 0.0
  %v10575 = vadd.f32 %v10573, %v10574
  %v10576 = vsel %vm4575, %v10432, 0.0
  %v10577 = vadd.f32 %v10575, %v10576
  %v10578 = vsel %vm4575, %v10435, 0.0
  %v10579 = vadd.f32 %v10577, %v10578
  %v10580 = vsel %vm4575, %v10437, 0.0
  %v10581 = vadd.f32 %v10579, %v10580
  %v10582 = vsel %vm4575, %v10440, 0.0
  %v10583 = vadd.f32 %v10581, %v10582
  %v10584 = vsel %vm4575, %v10442, 0.0
  %v10585 = vadd.f32 %v10583, %v10584
  %v10586 = vsel %vm4575, %v10445, 0.0
  %v10587 = vadd.f32 %v10585, %v10586
  %v10588 = vsel %vm4575, %v10447, 0.0
  %v10589 = vadd.f32 %v10587, %v10588
  %v10590 = vsel %vm4575, %v10450, 0.0
  %v10591 = vadd.f32 %v10589, %v10590
  %v10592 = vsel %vm4575, %v10452, 0.0
  %v10593 = vadd.f32 %v10591, %v10592
  %v10594 = vsel %vm4575, %v10455, 0.0
  %v10595 = vadd.f32 %v10593, %v10594
  %v10596 = vsel %vm4575, %v10457, 0.0
  %v10597 = vadd.f32 %v10595, %v10596
  %v10598 = vsel %vm4575, %v10460, 0.0
  %v10599 = vadd.f32 %v10597, %v10598
  %v10600 = vsel %vm4575, %v10462, 0.0
  %v10601 = vadd.f32 %v10599, %v10600
  %v10602 = vsel %vm4575, %v10465, 0.0
  %v10603 = vadd.f32 %v10601, %v10602
  %v10604 = vsel %vm4575, %v10467, 0.0
  %v10605 = vadd.f32 %v10603, %v10604
  %v10606 = vsel %vm4575, %v10470, 0.0
  %v10607 = vadd.f32 %v10605, %v10606
  %v10608 = vsel %vm4575, %v10472, 0.0
  %v10609 = vadd.f32 %v10607, %v10608
  %v10610 = vsel %vm4575, %v10475, 0.0
  %v10611 = vadd.f32 %v10609, %v10610
  %v10612 = vsel %vm4575, %v10477, 0.0
  %v10613 = vadd.f32 %v10611, %v10612
  %v10614 = vsel %vm4575, %v10480, 0.0
  %v10615 = vadd.f32 %v10613, %v10614
  %v10616 = vsel %vm4575, %v10482, 0.0
  %v10617 = vadd.f32 %v10615, %v10616
  %v10618 = vsel %vm4575, %v10485, 0.0
  %v10619 = vadd.f32 %v10617, %v10618
  %v10620 = vsel %vm4575, %v10487, 0.0
  %v10621 = vadd.f32 %v10619, %v10620
  %v10622 = vsel %vm4575, %v10490, 0.0
  %v10623 = vadd.f32 %v10621, %v10622
  %v10624 = vsel %vm4575, %v10492, 0.0
  %v10625 = vadd.f32 %v10623, %v10624
  %v10626 = vsel %vm4575, %v10495, 0.0
  %v10627 = vadd.f32 %v10625, %v10626
  %v10628 = vsel %vm4575, %v10497, 0.0
  %v10629 = vadd.f32 %v10627, %v10628
  %v10630 = vsel %vm4575, %v10500, 0.0
  %v10631 = vadd.f32 %v10629, %v10630
  %v10632 = vsel %vm4575, %v10502, 0.0
  %v10633 = vadd.f32 %v10631, %v10632
  %v10634 = vsel %vm4575, %v10505, 0.0
  %v10635 = vadd.f32 %v10633, %v10634
  %v10636 = vsel %vm4575, %v10507, 0.0
  %v10637 = vadd.f32 %v10635, %v10636
  %v10638 = vsel %vm4575, %v10510, 0.0
  %v10639 = vadd.f32 %v10637, %v10638
  %v10640 = vsel %vm4575, %v10512, 0.0
  %v10641 = vadd.f32 %v10639, %v10640
  %v10642 = vsel %vm4575, %v10515, 0.0
  %v10643 = vadd.f32 %v10641, %v10642
  %v10644 = vsel %vm4575, %v10517, 0.0
  %v10645 = vadd.f32 %v10643, %v10644
  %v10646 = vrot.slane %v10645, 4
  %v10647 = vadd.f32 %v10645, %v10646
  %v10648 = vrot.slane %v10647, 2
  %v10649 = vadd.f32 %v10647, %v10648
  %v10650 = vrot.slane %v10649, 1
  %v10651 = vadd.f32 %v10649, %v10650
  %v10652 = vmul.f32 %v10360, %v10360
  %v10653 = vmul.f32 %v10362, %v10362
  %v10654 = vmul.f32 %v10365, %v10365
  %v10655 = vmul.f32 %v10367, %v10367
  %v10656 = vmul.f32 %v10370, %v10370
  %v10657 = vmul.f32 %v10372, %v10372
  %v10658 = vmul.f32 %v10375, %v10375
  %v10659 = vmul.f32 %v10377, %v10377
  %v10660 = vmul.f32 %v10380, %v10380
  %v10661 = vmul.f32 %v10382, %v10382
  %v10662 = vmul.f32 %v10385, %v10385
  %v10663 = vmul.f32 %v10387, %v10387
  %v10664 = vmul.f32 %v10390, %v10390
  %v10665 = vmul.f32 %v10392, %v10392
  %v10666 = vmul.f32 %v10395, %v10395
  %v10667 = vmul.f32 %v10397, %v10397
  %v10668 = vmul.f32 %v10400, %v10400
  %v10669 = vmul.f32 %v10402, %v10402
  %v10670 = vmul.f32 %v10405, %v10405
  %v10671 = vmul.f32 %v10407, %v10407
  %v10672 = vmul.f32 %v10410, %v10410
  %v10673 = vmul.f32 %v10412, %v10412
  %v10674 = vmul.f32 %v10415, %v10415
  %v10675 = vmul.f32 %v10417, %v10417
  %v10676 = vmul.f32 %v10420, %v10420
  %v10677 = vmul.f32 %v10422, %v10422
  %v10678 = vmul.f32 %v10425, %v10425
  %v10679 = vmul.f32 %v10427, %v10427
  %v10680 = vmul.f32 %v10430, %v10430
  %v10681 = vmul.f32 %v10432, %v10432
  %v10682 = vmul.f32 %v10435, %v10435
  %v10683 = vmul.f32 %v10437, %v10437
  %v10684 = vmul.f32 %v10440, %v10440
  %v10685 = vmul.f32 %v10442, %v10442
  %v10686 = vmul.f32 %v10445, %v10445
  %v10687 = vmul.f32 %v10447, %v10447
  %v10688 = vmul.f32 %v10450, %v10450
  %v10689 = vmul.f32 %v10452, %v10452
  %v10690 = vmul.f32 %v10455, %v10455
  %v10691 = vmul.f32 %v10457, %v10457
  %v10692 = vmul.f32 %v10460, %v10460
  %v10693 = vmul.f32 %v10462, %v10462
  %v10694 = vmul.f32 %v10465, %v10465
  %v10695 = vmul.f32 %v10467, %v10467
  %v10696 = vmul.f32 %v10470, %v10470
  %v10697 = vmul.f32 %v10472, %v10472
  %v10698 = vmul.f32 %v10475, %v10475
  %v10699 = vmul.f32 %v10477, %v10477
  %v10700 = vmul.f32 %v10480, %v10480
  %v10701 = vmul.f32 %v10482, %v10482
  %v10702 = vmul.f32 %v10485, %v10485
  %v10703 = vmul.f32 %v10487, %v10487
  %v10704 = vmul.f32 %v10490, %v10490
  %v10705 = vmul.f32 %v10492, %v10492
  %v10706 = vmul.f32 %v10495, %v10495
  %v10707 = vmul.f32 %v10497, %v10497
  %v10708 = vmul.f32 %v10500, %v10500
  %v10709 = vmul.f32 %v10502, %v10502
  %v10710 = vmul.f32 %v10505, %v10505
  %v10711 = vmul.f32 %v10507, %v10507
  %v10712 = vmul.f32 %v10510, %v10510
  %v10713 = vmul.f32 %v10512, %v10512
  %v10714 = vmul.f32 %v10515, %v10515
  %v10715 = vmul.f32 %v10517, %v10517
  %v10716 = vsel %vm4575, %v10652, 0.0
  %v10717 = vsel %vm4575, %v10653, 0.0
  %v10718 = vadd.f32 %v10716, %v10717
  %v10719 = vsel %vm4575, %v10654, 0.0
  %v10720 = vadd.f32 %v10718, %v10719
  %v10721 = vsel %vm4575, %v10655, 0.0
  %v10722 = vadd.f32 %v10720, %v10721
  %v10723 = vsel %vm4575, %v10656, 0.0
  %v10724 = vadd.f32 %v10722, %v10723
  %v10725 = vsel %vm4575, %v10657, 0.0
  %v10726 = vadd.f32 %v10724, %v10725
  %v10727 = vsel %vm4575, %v10658, 0.0
  %v10728 = vadd.f32 %v10726, %v10727
  %v10729 = vsel %vm4575, %v10659, 0.0
  %v10730 = vadd.f32 %v10728, %v10729
  %v10731 = vsel %vm4575, %v10660, 0.0
  %v10732 = vadd.f32 %v10730, %v10731
  %v10733 = vsel %vm4575, %v10661, 0.0
  %v10734 = vadd.f32 %v10732, %v10733
  %v10735 = vsel %vm4575, %v10662, 0.0
  %v10736 = vadd.f32 %v10734, %v10735
  %v10737 = vsel %vm4575, %v10663, 0.0
  %v10738 = vadd.f32 %v10736, %v10737
  %v10739 = vsel %vm4575, %v10664, 0.0
  %v10740 = vadd.f32 %v10738, %v10739
  %v10741 = vsel %vm4575, %v10665, 0.0
  %v10742 = vadd.f32 %v10740, %v10741
  %v10743 = vsel %vm4575, %v10666, 0.0
  %v10744 = vadd.f32 %v10742, %v10743
  %v10745 = vsel %vm4575, %v10667, 0.0
  %v10746 = vadd.f32 %v10744, %v10745
  %v10747 = vsel %vm4575, %v10668, 0.0
  %v10748 = vadd.f32 %v10746, %v10747
  %v10749 = vsel %vm4575, %v10669, 0.0
  %v10750 = vadd.f32 %v10748, %v10749
  %v10751 = vsel %vm4575, %v10670, 0.0
  %v10752 = vadd.f32 %v10750, %v10751
  %v10753 = vsel %vm4575, %v10671, 0.0
  %v10754 = vadd.f32 %v10752, %v10753
  %v10755 = vsel %vm4575, %v10672, 0.0
  %v10756 = vadd.f32 %v10754, %v10755
  %v10757 = vsel %vm4575, %v10673, 0.0
  %v10758 = vadd.f32 %v10756, %v10757
  %v10759 = vsel %vm4575, %v10674, 0.0
  %v10760 = vadd.f32 %v10758, %v10759
  %v10761 = vsel %vm4575, %v10675, 0.0
  %v10762 = vadd.f32 %v10760, %v10761
  %v10763 = vsel %vm4575, %v10676, 0.0
  %v10764 = vadd.f32 %v10762, %v10763
  %v10765 = vsel %vm4575, %v10677, 0.0
  %v10766 = vadd.f32 %v10764, %v10765
  %v10767 = vsel %vm4575, %v10678, 0.0
  %v10768 = vadd.f32 %v10766, %v10767
  %v10769 = vsel %vm4575, %v10679, 0.0
  %v10770 = vadd.f32 %v10768, %v10769
  %v10771 = vsel %vm4575, %v10680, 0.0
  %v10772 = vadd.f32 %v10770, %v10771
  %v10773 = vsel %vm4575, %v10681, 0.0
  %v10774 = vadd.f32 %v10772, %v10773
  %v10775 = vsel %vm4575, %v10682, 0.0
  %v10776 = vadd.f32 %v10774, %v10775
  %v10777 = vsel %vm4575, %v10683, 0.0
  %v10778 = vadd.f32 %v10776, %v10777
  %v10779 = vsel %vm4575, %v10684, 0.0
  %v10780 = vadd.f32 %v10778, %v10779
  %v10781 = vsel %vm4575, %v10685, 0.0
  %v10782 = vadd.f32 %v10780, %v10781
  %v10783 = vsel %vm4575, %v10686, 0.0
  %v10784 = vadd.f32 %v10782, %v10783
  %v10785 = vsel %vm4575, %v10687, 0.0
  %v10786 = vadd.f32 %v10784, %v10785
  %v10787 = vsel %vm4575, %v10688, 0.0
  %v10788 = vadd.f32 %v10786, %v10787
  %v10789 = vsel %vm4575, %v10689, 0.0
  %v10790 = vadd.f32 %v10788, %v10789
  %v10791 = vsel %vm4575, %v10690, 0.0
  %v10792 = vadd.f32 %v10790, %v10791
  %v10793 = vsel %vm4575, %v10691, 0.0
  %v10794 = vadd.f32 %v10792, %v10793
  %v10795 = vsel %vm4575, %v10692, 0.0
  %v10796 = vadd.f32 %v10794, %v10795
  %v10797 = vsel %vm4575, %v10693, 0.0
  %v10798 = vadd.f32 %v10796, %v10797
  %v10799 = vsel %vm4575, %v10694, 0.0
  %v10800 = vadd.f32 %v10798, %v10799
  %v10801 = vsel %vm4575, %v10695, 0.0
  %v10802 = vadd.f32 %v10800, %v10801
  %v10803 = vsel %vm4575, %v10696, 0.0
  %v10804 = vadd.f32 %v10802, %v10803
  %v10805 = vsel %vm4575, %v10697, 0.0
  %v10806 = vadd.f32 %v10804, %v10805
  %v10807 = vsel %vm4575, %v10698, 0.0
  %v10808 = vadd.f32 %v10806, %v10807
  %v10809 = vsel %vm4575, %v10699, 0.0
  %v10810 = vadd.f32 %v10808, %v10809
  %v10811 = vsel %vm4575, %v10700, 0.0
  %v10812 = vadd.f32 %v10810, %v10811
  %v10813 = vsel %vm4575, %v10701, 0.0
  %v10814 = vadd.f32 %v10812, %v10813
  %v10815 = vsel %vm4575, %v10702, 0.0
  %v10816 = vadd.f32 %v10814, %v10815
  %v10817 = vsel %vm4575, %v10703, 0.0
  %v10818 = vadd.f32 %v10816, %v10817
  %v10819 = vsel %vm4575, %v10704, 0.0
  %v10820 = vadd.f32 %v10818, %v10819
  %v10821 = vsel %vm4575, %v10705, 0.0
  %v10822 = vadd.f32 %v10820, %v10821
  %v10823 = vsel %vm4575, %v10706, 0.0
  %v10824 = vadd.f32 %v10822, %v10823
  %v10825 = vsel %vm4575, %v10707, 0.0
  %v10826 = vadd.f32 %v10824, %v10825
  %v10827 = vsel %vm4575, %v10708, 0.0
  %v10828 = vadd.f32 %v10826, %v10827
  %v10829 = vsel %vm4575, %v10709, 0.0
  %v10830 = vadd.f32 %v10828, %v10829
  %v10831 = vsel %vm4575, %v10710, 0.0
  %v10832 = vadd.f32 %v10830, %v10831
  %v10833 = vsel %vm4575, %v10711, 0.0
  %v10834 = vadd.f32 %v10832, %v10833
  %v10835 = vsel %vm4575, %v10712, 0.0
  %v10836 = vadd.f32 %v10834, %v10835
  %v10837 = vsel %vm4575, %v10713, 0.0
  %v10838 = vadd.f32 %v10836, %v10837
  %v10839 = vsel %vm4575, %v10714, 0.0
  %v10840 = vadd.f32 %v10838, %v10839
  %v10841 = vsel %vm4575, %v10715, 0.0
  %v10842 = vadd.f32 %v10840, %v10841
  %v10843 = vrot.slane %v10842, 4
  %v10844 = vadd.f32 %v10842, %v10843
  %v10845 = vrot.slane %v10844, 2
  %v10846 = vadd.f32 %v10844, %v10845
  %v10847 = vrot.slane %v10846, 1
  %v10848 = vadd.f32 %v10846, %v10847
  %v10849 = vmul.f32 %v10651, 0.001953125
  %v10850 = vmul.f32 %v10848, 0.001953125
  %v10851 = vmul.f32 %v10849, %v10849
  %v10852 = vsub.f32 %v10850, %v10851
  %v10853 = vadd.f32 %v10852, 1e-05
  %v10854 = vrsqrt.pop %v10853
  %v10855 = vmul.f32 %v10854, %v10853
  %v10856 = vmul.f32 %v10855, %v10854
  %v10857 = vmul.f32 0.5, %v10856
  %v10858 = vsub.f32 1.5, %v10857
  %v10859 = vmul.f32 %v10854, %v10858
  %vm10860 = vweird.f32 %v10853
  %vm10861 = vweird.f32 %v10854
  %vm10862 = vmor %vm10860, %vm10861
  %v10863 = vsel %vm10862, %v10854, %v10859
  %v10864 = vsub.f32 %v10360, %v10849
  %v10865 = vsub.f32 %v10362, %v10849
  %v10866 = vsub.f32 %v10365, %v10849
  %v10867 = vsub.f32 %v10367, %v10849
  %v10868 = vsub.f32 %v10370, %v10849
  %v10869 = vsub.f32 %v10372, %v10849
  %v10870 = vsub.f32 %v10375, %v10849
  %v10871 = vsub.f32 %v10377, %v10849
  %v10872 = vsub.f32 %v10380, %v10849
  %v10873 = vsub.f32 %v10382, %v10849
  %v10874 = vsub.f32 %v10385, %v10849
  %v10875 = vsub.f32 %v10387, %v10849
  %v10876 = vsub.f32 %v10390, %v10849
  %v10877 = vsub.f32 %v10392, %v10849
  %v10878 = vsub.f32 %v10395, %v10849
  %v10879 = vsub.f32 %v10397, %v10849
  %v10880 = vsub.f32 %v10400, %v10849
  %v10881 = vsub.f32 %v10402, %v10849
  %v10882 = vsub.f32 %v10405, %v10849
  %v10883 = vsub.f32 %v10407, %v10849
  %v10884 = vsub.f32 %v10410, %v10849
  %v10885 = vsub.f32 %v10412, %v10849
  %v10886 = vsub.f32 %v10415, %v10849
  %v10887 = vsub.f32 %v10417, %v10849
  %v10888 = vsub.f32 %v10420, %v10849
  %v10889 = vsub.f32 %v10422, %v10849
  %v10890 = vsub.f32 %v10425, %v10849
  %v10891 = vsub.f32 %v10427, %v10849
  %v10892 = vsub.f32 %v10430, %v10849
  %v10893 = vsub.f32 %v10432, %v10849
  %v10894 = vsub.f32 %v10435, %v10849
  %v10895 = vsub.f32 %v10437, %v10849
  %v10896 = vsub.f32 %v10440, %v10849
  %v10897 = vsub.f32 %v10442, %v10849
  %v10898 = vsub.f32 %v10445, %v10849
  %v10899 = vsub.f32 %v10447, %v10849
  %v10900 = vsub.f32 %v10450, %v10849
  %v10901 = vsub.f32 %v10452, %v10849
  %v10902 = vsub.f32 %v10455, %v10849
  %v10903 = vsub.f32 %v10457, %v10849
  %v10904 = vsub.f32 %v10460, %v10849
  %v10905 = vsub.f32 %v10462, %v10849
  %v10906 = vsub.f32 %v10465, %v10849
  %v10907 = vsub.f32 %v10467, %v10849
  %v10908 = vsub.f32 %v10470, %v10849
  %v10909 = vsub.f32 %v10472, %v10849
  %v10910 = vsub.f32 %v10475, %v10849
  %v10911 = vsub.f32 %v10477, %v10849
  %v10912 = vsub.f32 %v10480, %v10849
  %v10913 = vsub.f32 %v10482, %v10849
  %v10914 = vsub.f32 %v10485, %v10849
  %v10915 = vsub.f32 %v10487, %v10849
  %v10916 = vsub.f32 %v10490, %v10849
  %v10917 = vsub.f32 %v10492, %v10849
  %v10918 = vsub.f32 %v10495, %v10849
  %v10919 = vsub.f32 %v10497, %v10849
  %v10920 = vsub.f32 %v10500, %v10849
  %v10921 = vsub.f32 %v10502, %v10849
  %v10922 = vsub.f32 %v10505, %v10849
  %v10923 = vsub.f32 %v10507, %v10849
  %v10924 = vsub.f32 %v10510, %v10849
  %v10925 = vsub.f32 %v10512, %v10849
  %v10926 = vsub.f32 %v10515, %v10849
  %v10927 = vsub.f32 %v10517, %v10849
  %v10928 = vld [vmem:[%s8] sm:$0x1]
  %v10929 = vmul.f32 %v10863, %v10928
  %v10930 = vperm.slane %v10929, 0
  %v10931 = vmul.f32 %v10864, %v10930
  %v10932 = vmul.f32 %v10865, %v10930
  %v10933 = vmul.f32 %v10866, %v10930
  %v10934 = vmul.f32 %v10867, %v10930
  %v10935 = vmul.f32 %v10868, %v10930
  %v10936 = vmul.f32 %v10869, %v10930
  %v10937 = vmul.f32 %v10870, %v10930
  %v10938 = vmul.f32 %v10871, %v10930
  %v10939 = vmul.f32 %v10872, %v10930
  %v10940 = vmul.f32 %v10873, %v10930
  %v10941 = vmul.f32 %v10874, %v10930
  %v10942 = vmul.f32 %v10875, %v10930
  %v10943 = vmul.f32 %v10876, %v10930
  %v10944 = vmul.f32 %v10877, %v10930
  %v10945 = vmul.f32 %v10878, %v10930
  %v10946 = vmul.f32 %v10879, %v10930
  %v10947 = vmul.f32 %v10880, %v10930
  %v10948 = vmul.f32 %v10881, %v10930
  %v10949 = vmul.f32 %v10882, %v10930
  %v10950 = vmul.f32 %v10883, %v10930
  %v10951 = vmul.f32 %v10884, %v10930
  %v10952 = vmul.f32 %v10885, %v10930
  %v10953 = vmul.f32 %v10886, %v10930
  %v10954 = vmul.f32 %v10887, %v10930
  %v10955 = vmul.f32 %v10888, %v10930
  %v10956 = vmul.f32 %v10889, %v10930
  %v10957 = vmul.f32 %v10890, %v10930
  %v10958 = vmul.f32 %v10891, %v10930
  %v10959 = vmul.f32 %v10892, %v10930
  %v10960 = vmul.f32 %v10893, %v10930
  %v10961 = vmul.f32 %v10894, %v10930
  %v10962 = vmul.f32 %v10895, %v10930
  %v10963 = vmul.f32 %v10896, %v10930
  %v10964 = vmul.f32 %v10897, %v10930
  %v10965 = vmul.f32 %v10898, %v10930
  %v10966 = vmul.f32 %v10899, %v10930
  %v10967 = vmul.f32 %v10900, %v10930
  %v10968 = vmul.f32 %v10901, %v10930
  %v10969 = vmul.f32 %v10902, %v10930
  %v10970 = vmul.f32 %v10903, %v10930
  %v10971 = vmul.f32 %v10904, %v10930
  %v10972 = vmul.f32 %v10905, %v10930
  %v10973 = vmul.f32 %v10906, %v10930
  %v10974 = vmul.f32 %v10907, %v10930
  %v10975 = vmul.f32 %v10908, %v10930
  %v10976 = vmul.f32 %v10909, %v10930
  %v10977 = vmul.f32 %v10910, %v10930
  %v10978 = vmul.f32 %v10911, %v10930
  %v10979 = vmul.f32 %v10912, %v10930
  %v10980 = vmul.f32 %v10913, %v10930
  %v10981 = vmul.f32 %v10914, %v10930
  %v10982 = vmul.f32 %v10915, %v10930
  %v10983 = vmul.f32 %v10916, %v10930
  %v10984 = vmul.f32 %v10917, %v10930
  %v10985 = vmul.f32 %v10918, %v10930
  %v10986 = vmul.f32 %v10919, %v10930
  %v10987 = vmul.f32 %v10920, %v10930
  %v10988 = vmul.f32 %v10921, %v10930
  %v10989 = vmul.f32 %v10922, %v10930
  %v10990 = vmul.f32 %v10923, %v10930
  %v10991 = vmul.f32 %v10924, %v10930
  %v10992 = vmul.f32 %v10925, %v10930
  %v10993 = vmul.f32 %v10926, %v10930
  %v10994 = vmul.f32 %v10927, %v10930
  %v10995 = vld [vmem:[%s9] sm:$0x1]
  %v10997 = vperm.slane %v10995, 0
  %v10999 = vadd.f32 %v10931, %v10997
  %v11000 = vadd.f32 %v10932, %v10997
  %v11001 = vadd.f32 %v10933, %v10997
  %v11002 = vadd.f32 %v10934, %v10997
  %v11003 = vadd.f32 %v10935, %v10997
  %v11004 = vadd.f32 %v10936, %v10997
  %v11005 = vadd.f32 %v10937, %v10997
  %v11006 = vadd.f32 %v10938, %v10997
  %v11007 = vadd.f32 %v10939, %v10997
  %v11008 = vadd.f32 %v10940, %v10997
  %v11009 = vadd.f32 %v10941, %v10997
  %v11010 = vadd.f32 %v10942, %v10997
  %v11011 = vadd.f32 %v10943, %v10997
  %v11012 = vadd.f32 %v10944, %v10997
  %v11013 = vadd.f32 %v10945, %v10997
  %v11014 = vadd.f32 %v10946, %v10997
  %v11015 = vadd.f32 %v10947, %v10997
  %v11016 = vadd.f32 %v10948, %v10997
  %v11017 = vadd.f32 %v10949, %v10997
  %v11018 = vadd.f32 %v10950, %v10997
  %v11019 = vadd.f32 %v10951, %v10997
  %v11020 = vadd.f32 %v10952, %v10997
  %v11021 = vadd.f32 %v10953, %v10997
  %v11022 = vadd.f32 %v10954, %v10997
  %v11023 = vadd.f32 %v10955, %v10997
  %v11024 = vadd.f32 %v10956, %v10997
  %v11025 = vadd.f32 %v10957, %v10997
  %v11026 = vadd.f32 %v10958, %v10997
  %v11027 = vadd.f32 %v10959, %v10997
  %v11028 = vadd.f32 %v10960, %v10997
  %v11029 = vadd.f32 %v10961, %v10997
  %v11030 = vadd.f32 %v10962, %v10997
  %v11031 = vadd.f32 %v10963, %v10997
  %v11032 = vadd.f32 %v10964, %v10997
  %v11033 = vadd.f32 %v10965, %v10997
  %v11034 = vadd.f32 %v10966, %v10997
  %v11035 = vadd.f32 %v10967, %v10997
  %v11036 = vadd.f32 %v10968, %v10997
  %v11037 = vadd.f32 %v10969, %v10997
  %v11038 = vadd.f32 %v10970, %v10997
  %v11039 = vadd.f32 %v10971, %v10997
  %v11040 = vadd.f32 %v10972, %v10997
  %v11041 = vadd.f32 %v10973, %v10997
  %v11042 = vadd.f32 %v10974, %v10997
  %v11043 = vadd.f32 %v10975, %v10997
  %v11044 = vadd.f32 %v10976, %v10997
  %v11045 = vadd.f32 %v10977, %v10997
  %v11046 = vadd.f32 %v10978, %v10997
  %v11047 = vadd.f32 %v10979, %v10997
  %v11048 = vadd.f32 %v10980, %v10997
  %v11049 = vadd.f32 %v10981, %v10997
  %v11050 = vadd.f32 %v10982, %v10997
  %v11051 = vadd.f32 %v10983, %v10997
  %v11052 = vadd.f32 %v10984, %v10997
  %v11053 = vadd.f32 %v10985, %v10997
  %v11054 = vadd.f32 %v10986, %v10997
  %v11055 = vadd.f32 %v10987, %v10997
  %v11056 = vadd.f32 %v10988, %v10997
  %v11057 = vadd.f32 %v10989, %v10997
  %v11058 = vadd.f32 %v10990, %v10997
  %v11059 = vadd.f32 %v10991, %v10997
  %v11060 = vadd.f32 %v10992, %v10997
  %v11061 = vadd.f32 %v10993, %v10997
  %v11062 = vadd.f32 %v10994, %v10997
  %v11063 = vadd.f32 %v10154, %v10999
  %v11064 = vadd.f32 %v10155, %v11000
  %v11065 = vadd.f32 %v10156, %v11001
  %v11066 = vadd.f32 %v10157, %v11002
  %v11067 = vadd.f32 %v10158, %v11003
  %v11068 = vadd.f32 %v10159, %v11004
  %v11069 = vadd.f32 %v10160, %v11005
  %v11070 = vadd.f32 %v10161, %v11006
  %v11071 = vadd.f32 %v10162, %v11007
  %v11072 = vadd.f32 %v10163, %v11008
  %v11073 = vadd.f32 %v10164, %v11009
  %v11074 = vadd.f32 %v10165, %v11010
  %v11075 = vadd.f32 %v10166, %v11011
  %v11076 = vadd.f32 %v10167, %v11012
  %v11077 = vadd.f32 %v10168, %v11013
  %v11078 = vadd.f32 %v10169, %v11014
  %v11079 = vadd.f32 %v10170, %v11015
  %v11080 = vadd.f32 %v10171, %v11016
  %v11081 = vadd.f32 %v10172, %v11017
  %v11082 = vadd.f32 %v10173, %v11018
  %v11083 = vadd.f32 %v10174, %v11019
  %v11084 = vadd.f32 %v10175, %v11020
  %v11085 = vadd.f32 %v10176, %v11021
  %v11086 = vadd.f32 %v10177, %v11022
  %v11087 = vadd.f32 %v10178, %v11023
  %v11088 = vadd.f32 %v10179, %v11024
  %v11089 = vadd.f32 %v10180, %v11025
  %v11090 = vadd.f32 %v10181, %v11026
  %v11091 = vadd.f32 %v10182, %v11027
  %v11092 = vadd.f32 %v10183, %v11028
  %v11093 = vadd.f32 %v10184, %v11029
  %v11094 = vadd.f32 %v10185, %v11030
  %v11095 = vadd.f32 %v10186, %v11031
  %v11096 = vadd.f32 %v10187, %v11032
  %v11097 = vadd.f32 %v10188, %v11033
  %v11098 = vadd.f32 %v10189, %v11034
  %v11099 = vadd.f32 %v10190, %v11035
  %v11100 = vadd.f32 %v10191, %v11036
  %v11101 = vadd.f32 %v10192, %v11037
  %v11102 = vadd.f32 %v10193, %v11038
  %v11103 = vadd.f32 %v10194, %v11039
  %v11104 = vadd.f32 %v10195, %v11040
  %v11105 = vadd.f32 %v10196, %v11041
  %v11106 = vadd.f32 %v10197, %v11042
  %v11107 = vadd.f32 %v10198, %v11043
  %v11108 = vadd.f32 %v10199, %v11044
  %v11109 = vadd.f32 %v10200, %v11045
  %v11110 = vadd.f32 %v10201, %v11046
  %v11111 = vadd.f32 %v10202, %v11047
  %v11112 = vadd.f32 %v10203, %v11048
  %v11113 = vadd.f32 %v10204, %v11049
  %v11114 = vadd.f32 %v10205, %v11050
  %v11115 = vadd.f32 %v10206, %v11051
  %v11116 = vadd.f32 %v10207, %v11052
  %v11117 = vadd.f32 %v10208, %v11053
  %v11118 = vadd.f32 %v10209, %v11054
  %v11119 = vadd.f32 %v10210, %v11055
  %v11120 = vadd.f32 %v10211, %v11056
  %v11121 = vadd.f32 %v10212, %v11057
  %v11122 = vadd.f32 %v10213, %v11058
  %v11123 = vadd.f32 %v10214, %v11059
  %v11124 = vadd.f32 %v10215, %v11060
  %v11125 = vadd.f32 %v10216, %v11061
  %v11126 = vadd.f32 %v10217, %v11062
  %v11127 = vmax.f32 %v11063, 0.0
  %v11128 = vmax.f32 %v11064, 0.0
  %v11129 = vmax.f32 %v11065, 0.0
  %v11130 = vmax.f32 %v11066, 0.0
  %v11131 = vmax.f32 %v11067, 0.0
  %v11132 = vmax.f32 %v11068, 0.0
  %v11133 = vmax.f32 %v11069, 0.0
  %v11134 = vmax.f32 %v11070, 0.0
  %v11135 = vmax.f32 %v11071, 0.0
  %v11136 = vmax.f32 %v11072, 0.0
  %v11137 = vmax.f32 %v11073, 0.0
  %v11138 = vmax.f32 %v11074, 0.0
  %v11139 = vmax.f32 %v11075, 0.0
  %v11140 = vmax.f32 %v11076, 0.0
  %v11141 = vmax.f32 %v11077, 0.0
  %v11142 = vmax.f32 %v11078, 0.0
  %v11143 = vmax.f32 %v11079, 0.0
  %v11144 = vmax.f32 %v11080, 0.0
  %v11145 = vmax.f32 %v11081, 0.0
  %v11146 = vmax.f32 %v11082, 0.0
  %v11147 = vmax.f32 %v11083, 0.0
  %v11148 = vmax.f32 %v11084, 0.0
  %v11149 = vmax.f32 %v11085, 0.0
  %v11150 = vmax.f32 %v11086, 0.0
  %v11151 = vmax.f32 %v11087, 0.0
  %v11152 = vmax.f32 %v11088, 0.0
  %v11153 = vmax.f32 %v11089, 0.0
  %v11154 = vmax.f32 %v11090, 0.0
  %v11155 = vmax.f32 %v11091, 0.0
  %v11156 = vmax.f32 %v11092, 0.0
  %v11157 = vmax.f32 %v11093, 0.0
  %v11158 = vmax.f32 %v11094, 0.0
  %v11159 = vmax.f32 %v11095, 0.0
  %v11160 = vmax.f32 %v11096, 0.0
  %v11161 = vmax.f32 %v11097, 0.0
  %v11162 = vmax.f32 %v11098, 0.0
  %v11163 = vmax.f32 %v11099, 0.0
  %v11164 = vmax.f32 %v11100, 0.0
  %v11165 = vmax.f32 %v11101, 0.0
  %v11166 = vmax.f32 %v11102, 0.0
  %v11167 = vmax.f32 %v11103, 0.0
  %v11168 = vmax.f32 %v11104, 0.0
  %v11169 = vmax.f32 %v11105, 0.0
  %v11170 = vmax.f32 %v11106, 0.0
  %v11171 = vmax.f32 %v11107, 0.0
  %v11172 = vmax.f32 %v11108, 0.0
  %v11173 = vmax.f32 %v11109, 0.0
  %v11174 = vmax.f32 %v11110, 0.0
  %v11175 = vmax.f32 %v11111, 0.0
  %v11176 = vmax.f32 %v11112, 0.0
  %v11177 = vmax.f32 %v11113, 0.0
  %v11178 = vmax.f32 %v11114, 0.0
  %v11179 = vmax.f32 %v11115, 0.0
  %v11180 = vmax.f32 %v11116, 0.0
  %v11181 = vmax.f32 %v11117, 0.0
  %v11182 = vmax.f32 %v11118, 0.0
  %v11183 = vmax.f32 %v11119, 0.0
  %v11184 = vmax.f32 %v11120, 0.0
  %v11185 = vmax.f32 %v11121, 0.0
  %v11186 = vmax.f32 %v11122, 0.0
  %v11187 = vmax.f32 %v11123, 0.0
  %v11188 = vmax.f32 %v11124, 0.0
  %v11189 = vmax.f32 %v11125, 0.0
  %v11190 = vmax.f32 %v11126, 0.0
  %11191 = vst.msk [vmem:[%s10] sm:$0xff] %vm4575, %v11127
  %11192 = vst.msk [vmem:[%s10 + $0x8] sm:$0xff] %vm4575, %v11128
  %11193 = vst.msk [vmem:[%s10 + $0x10] sm:$0xff] %vm4575, %v11129
  %11194 = vst.msk [vmem:[%s10 + $0x18] sm:$0xff] %vm4575, %v11130
  %11195 = vst.msk [vmem:[%s10 + $0x20] sm:$0xff] %vm4575, %v11131
  %11196 = vst.msk [vmem:[%s10 + $0x28] sm:$0xff] %vm4575, %v11132
  %11197 = vst.msk [vmem:[%s10 + $0x30] sm:$0xff] %vm4575, %v11133
  %11198 = vst.msk [vmem:[%s10 + $0x38] sm:$0xff] %vm4575, %v11134
  %11199 = vst.msk [vmem:[%s10 + $0x40] sm:$0xff] %vm4575, %v11135
  %11200 = vst.msk [vmem:[%s10 + $0x48] sm:$0xff] %vm4575, %v11136
  %11201 = vst.msk [vmem:[%s10 + $0x50] sm:$0xff] %vm4575, %v11137
  %11202 = vst.msk [vmem:[%s10 + $0x58] sm:$0xff] %vm4575, %v11138
  %11203 = vst.msk [vmem:[%s10 + $0x60] sm:$0xff] %vm4575, %v11139
  %11204 = vst.msk [vmem:[%s10 + $0x68] sm:$0xff] %vm4575, %v11140
  %11205 = vst.msk [vmem:[%s10 + $0x70] sm:$0xff] %vm4575, %v11141
  %11206 = vst.msk [vmem:[%s10 + $0x78] sm:$0xff] %vm4575, %v11142
  %11207 = vst.msk [vmem:[%s10 + $0x80] sm:$0xff] %vm4575, %v11143
  %11208 = vst.msk [vmem:[%s10 + $0x88] sm:$0xff] %vm4575, %v11144
  %11209 = vst.msk [vmem:[%s10 + $0x90] sm:$0xff] %vm4575, %v11145
  %11210 = vst.msk [vmem:[%s10 + $0x98] sm:$0xff] %vm4575, %v11146
  %11211 = vst.msk [vmem:[%s10 + $0xa0] sm:$0xff] %vm4575, %v11147
  %11212 = vst.msk [vmem:[%s10 + $0xa8] sm:$0xff] %vm4575, %v11148
  %11213 = vst.msk [vmem:[%s10 + $0xb0] sm:$0xff] %vm4575, %v11149
  %11214 = vst.msk [vmem:[%s10 + $0xb8] sm:$0xff] %vm4575, %v11150
  %11215 = vst.msk [vmem:[%s10 + $0xc0] sm:$0xff] %vm4575, %v11151
  %11216 = vst.msk [vmem:[%s10 + $0xc8] sm:$0xff] %vm4575, %v11152
  %11217 = vst.msk [vmem:[%s10 + $0xd0] sm:$0xff] %vm4575, %v11153
  %11218 = vst.msk [vmem:[%s10 + $0xd8] sm:$0xff] %vm4575, %v11154
  %11219 = vst.msk [vmem:[%s10 + $0xe0] sm:$0xff] %vm4575, %v11155
  %11220 = vst.msk [vmem:[%s10 + $0xe8] sm:$0xff] %vm4575, %v11156
  %11221 = vst.msk [vmem:[%s10 + $0xf0] sm:$0xff] %vm4575, %v11157
  %11222 = vst.msk [vmem:[%s10 + $0xf8] sm:$0xff] %vm4575, %v11158
  %11223 = vst.msk [vmem:[%s10 + $0x100] sm:$0xff] %vm4575, %v11159
  %11224 = vst.msk [vmem:[%s10 + $0x108] sm:$0xff] %vm4575, %v11160
  %11225 = vst.msk [vmem:[%s10 + $0x110] sm:$0xff] %vm4575, %v11161
  %11226 = vst.msk [vmem:[%s10 + $0x118] sm:$0xff] %vm4575, %v11162
  %11227 = vst.msk [vmem:[%s10 + $0x120] sm:$0xff] %vm4575, %v11163
  %11228 = vst.msk [vmem:[%s10 + $0x128] sm:$0xff] %vm4575, %v11164
  %11229 = vst.msk [vmem:[%s10 + $0x130] sm:$0xff] %vm4575, %v11165
  %11230 = vst.msk [vmem:[%s10 + $0x138] sm:$0xff] %vm4575, %v11166
  %11231 = vst.msk [vmem:[%s10 + $0x140] sm:$0xff] %vm4575, %v11167
  %11232 = vst.msk [vmem:[%s10 + $0x148] sm:$0xff] %vm4575, %v11168
  %11233 = vst.msk [vmem:[%s10 + $0x150] sm:$0xff] %vm4575, %v11169
  %11234 = vst.msk [vmem:[%s10 + $0x158] sm:$0xff] %vm4575, %v11170
  %11235 = vst.msk [vmem:[%s10 + $0x160] sm:$0xff] %vm4575, %v11171
  %11236 = vst.msk [vmem:[%s10 + $0x168] sm:$0xff] %vm4575, %v11172
  %11237 = vst.msk [vmem:[%s10 + $0x170] sm:$0xff] %vm4575, %v11173
  %11238 = vst.msk [vmem:[%s10 + $0x178] sm:$0xff] %vm4575, %v11174
  %11239 = vst.msk [vmem:[%s10 + $0x180] sm:$0xff] %vm4575, %v11175
  %11240 = vst.msk [vmem:[%s10 + $0x188] sm:$0xff] %vm4575, %v11176
  %11241 = vst.msk [vmem:[%s10 + $0x190] sm:$0xff] %vm4575, %v11177
  %11242 = vst.msk [vmem:[%s10 + $0x198] sm:$0xff] %vm4575, %v11178
  %11243 = vst.msk [vmem:[%s10 + $0x1a0] sm:$0xff] %vm4575, %v11179
  %11244 = vst.msk [vmem:[%s10 + $0x1a8] sm:$0xff] %vm4575, %v11180
  %11245 = vst.msk [vmem:[%s10 + $0x1b0] sm:$0xff] %vm4575, %v11181
  %11246 = vst.msk [vmem:[%s10 + $0x1b8] sm:$0xff] %vm4575, %v11182
  %11247 = vst.msk [vmem:[%s10 + $0x1c0] sm:$0xff] %vm4575, %v11183
  %11248 = vst.msk [vmem:[%s10 + $0x1c8] sm:$0xff] %vm4575, %v11184
  %11249 = vst.msk [vmem:[%s10 + $0x1d0] sm:$0xff] %vm4575, %v11185
  %11250 = vst.msk [vmem:[%s10 + $0x1d8] sm:$0xff] %vm4575, %v11186
  %11251 = vst.msk [vmem:[%s10 + $0x1e0] sm:$0xff] %vm4575, %v11187
  %11252 = vst.msk [vmem:[%s10 + $0x1e8] sm:$0xff] %vm4575, %v11188
  %11253 = vst.msk [vmem:[%s10 + $0x1f0] sm:$0xff] %vm4575, %v11189
  %11254 = vst.msk [vmem:[%s10 + $0x1f8] sm:$0xff] %vm4575, %v11190
  // Predicated region
  $region42: #{tpu_custom_call.1} parent=0 // pred_check
    _
  $region43: #{tpu_custom_call.1} parent=0 // pred_check_branch
    %11256 = sbr.rel (0) target = $region45
  $region44: #{tpu_custom_call.1} parent=0 // pred_region
    _
  $region45: #{tpu_custom_call.1} parent=0 // pred_fallthru
    _
  // Predicated region
  $region46: #{tpu_custom_call.1} parent=0 // pred_check
    _
  $region47: #{tpu_custom_call.1} parent=0 // pred_check_branch
    %11258 = sbr.rel (0) target = $region49
  $region48: #{tpu_custom_call.1} parent=0 // pred_region
    _
  $region49: #{tpu_custom_call.1} parent=0 // pred_fallthru
    _

</llo_original>
